<compile_context>
chip_gen: v7x
topology: tpu7x:2x2x1
jax: 0.10.0
libtpu: 0.0.40
codegen_flags: <defaults>
</compile_context>

<pallas_src>
import functools

import jax
import jax.numpy as jnp
from jax import lax
from jax.experimental import pallas as pl
from jax.experimental.pallas import tpu as pltpu

NEG_SLOPE = 0.1  # LeakyReLU slope used throughout the block


def _round_up(x, m):
    return (x + m - 1) // m * m


def _pick_tm(M, Kp, budget_bytes=4 * 1024 * 1024):
    """Row-tile size: whole (padded) M if the A tile fits the VMEM budget,
    otherwise the largest multiple of 8 that does (capped at 512)."""
    full = _round_up(M, 8)
    if full * Kp * 4 <= budget_bytes:
        return full
    t = (budget_bytes // (Kp * 4)) // 8 * 8
    return max(8, min(512, t))


# ---------------------------------------------------------------------------
# Pallas kernels
# ---------------------------------------------------------------------------
def _mm_kernel_single_k(slope, has_residual):
    """out = act(A @ B) [+ R], K fits one tile -> no scratch, direct store."""
    def kernel(*refs):
        if has_residual:
            a_ref, b_ref, r_ref, o_ref = refs
        else:
            a_ref, b_ref, o_ref = refs
            r_ref = None
        y = jnp.dot(a_ref[...], b_ref[...], preferred_element_type=jnp.float32)
        if slope is not None:
            y = jnp.where(y >= 0.0, y, y * slope)
        if r_ref is not None:
            y = y + r_ref[...]
        o_ref[...] = y.astype(o_ref.dtype)
    return kernel


def _mm_kernel_multi_k(slope, has_residual):
    """General tiled matmul with f32 VMEM accumulator over the K grid axis."""
    def kernel(*refs):
        if has_residual:
            a_ref, b_ref, r_ref, o_ref, acc_ref = refs
        else:
            a_ref, b_ref, o_ref, acc_ref = refs
            r_ref = None

        @pl.when(pl.program_id(2) == 0)
        def _():
            acc_ref[...] = jnp.zeros_like(acc_ref)

        acc_ref[...] += jnp.dot(a_ref[...], b_ref[...],
                                preferred_element_type=jnp.float32)

        @pl.when(pl.program_id(2) == pl.num_programs(2) - 1)
        def _():
            y = acc_ref[...]
            if slope is not None:
                y = jnp.where(y >= 0.0, y, y * slope)
            if r_ref is not None:
                y = y + r_ref[...]
            o_ref[...] = y.astype(o_ref.dtype)
    return kernel


def _mm2_kernel(slope):
    """out = lrelu(lrelu(A @ W1) @ W2) fully fused; both weights live in VMEM."""
    def kernel(a_ref, w1_ref, w2_ref, o_ref):
        h = jnp.dot(a_ref[...], w1_ref[...], preferred_element_type=jnp.float32)
        h = jnp.where(h >= 0.0, h, h * slope)
        y = jnp.dot(h, w2_ref[...], preferred_element_type=jnp.float32)
        y = jnp.where(y >= 0.0, y, y * slope)
        o_ref[...] = y.astype(o_ref.dtype)
    return kernel


def pallas_matmul(a, b, *, slope=None, residual=None, tn=128, tk=512):
    """out[M, N] = act(a[M, K] @ b[K, N]) (+ residual[M, N]), f32."""
    M, K = a.shape
    K2, N = b.shape
    assert K == K2
    Kp_full = _round_up(K, 128)
    tk = min(tk, Kp_full)
    tn = min(tn, _round_up(N, 128))
    single_k = Kp_full <= tk
    Kp = Kp_full if single_k else _round_up(K, tk)
    tm = _pick_tm(M, tk)
    Mp = _round_up(M, tm)
    Np = _round_up(N, tn)

    a_p = jnp.pad(a, ((0, Mp - M), (0, Kp - K)))
    b_p = jnp.pad(b, ((0, Kp - K), (0, Np - N)))
    has_res = residual is not None
    r_p = None
    if has_res:
        r_p = jnp.pad(residual, ((0, Mp - M), (0, Np - N)))

    if single_k:
        inputs = [a_p, b_p]
        in_specs = [pl.BlockSpec((tm, Kp), lambda i, j: (i, 0)),
                    pl.BlockSpec((Kp, tn), lambda i, j: (0, j))]
        if has_res:
            inputs.append(r_p)
            in_specs.append(pl.BlockSpec((tm, tn), lambda i, j: (i, j)))
        out = pl.pallas_call(
            _mm_kernel_single_k(slope, has_res),
            out_shape=jax.ShapeDtypeStruct((Mp, Np), jnp.float32),
            grid_spec=pltpu.PrefetchScalarGridSpec(
                num_scalar_prefetch=0,
                grid=(Mp // tm, Np // tn),
                in_specs=in_specs,
                out_specs=pl.BlockSpec((tm, tn), lambda i, j: (i, j))),
            compiler_params=pltpu.CompilerParams(
                dimension_semantics=("parallel", "parallel")),
        )(*inputs)
    else:
        inputs = [a_p, b_p]
        in_specs = [pl.BlockSpec((tm, tk), lambda i, j, k: (i, k)),
                    pl.BlockSpec((tk, tn), lambda i, j, k: (k, j))]
        if has_res:
            inputs.append(r_p)
            in_specs.append(pl.BlockSpec((tm, tn), lambda i, j, k: (i, j)))
        out = pl.pallas_call(
            _mm_kernel_multi_k(slope, has_res),
            out_shape=jax.ShapeDtypeStruct((Mp, Np), jnp.float32),
            grid_spec=pltpu.PrefetchScalarGridSpec(
                num_scalar_prefetch=0,
                grid=(Mp // tm, Np // tn, Kp // tk),
                in_specs=in_specs,
                out_specs=pl.BlockSpec((tm, tn), lambda i, j, k: (i, j)),
                scratch_shapes=[pltpu.VMEM((tm, tn), jnp.float32)]),
            compiler_params=pltpu.CompilerParams(
                dimension_semantics=("parallel", "parallel", "arbitrary")),
        )(*inputs)
    return out[:M, :N]


def pallas_matmul2(a, w1, w2, *, slope=NEG_SLOPE):
    """out = lrelu(lrelu(a @ w1) @ w2), fused in one kernel (small weights)."""
    M, K1 = a.shape
    K1b, Kh = w1.shape
    Khb, N = w2.shape
    assert K1 == K1b and Kh == Khb
    K1p = _round_up(K1, 128)
    Khp = _round_up(Kh, 128)
    Np = _round_up(N, 128)
    tm = _pick_tm(M, K1p)
    Mp = _round_up(M, tm)

    a_p = jnp.pad(a, ((0, Mp - M), (0, K1p - K1)))
    w1_p = jnp.pad(w1, ((0, K1p - K1), (0, Khp - Kh)))
    w2_p = jnp.pad(w2, ((0, Khp - Kh), (0, Np - N)))

    out = pl.pallas_call(
        _mm2_kernel(slope),
        out_shape=jax.ShapeDtypeStruct((Mp, Np), jnp.float32),
        grid_spec=pltpu.PrefetchScalarGridSpec(
            num_scalar_prefetch=0,
            grid=(Mp // tm,),
            in_specs=[pl.BlockSpec((tm, K1p), lambda i: (i, 0)),
                      pl.BlockSpec((K1p, Khp), lambda i: (0, 0)),
                      pl.BlockSpec((Khp, Np), lambda i: (0, 0))],
            out_specs=pl.BlockSpec((tm, Np), lambda i: (i, 0))),
        compiler_params=pltpu.CompilerParams(
            dimension_semantics=("parallel",)),
    )(a_p, w1_p, w2_p)
    return out[:M, :N]


# ---------------------------------------------------------------------------
# Layout helpers (pure data movement, plain JAX — no FLOPs)
# ---------------------------------------------------------------------------
def _im2col_3x3_dilated(x, d):
    """x: (B,C,H,W) -> (B*H*W, C*9); column order (c, ky, kx) matches OIHW."""
    B, C, H, W = x.shape
    xp = jnp.pad(x, ((0, 0), (0, 0), (d, d), (d, d)))
    taps = []
    for ky in range(3):
        for kx in range(3):
            taps.append(xp[:, :, ky * d:ky * d + H, kx * d:kx * d + W])
    p = jnp.stack(taps, axis=2)          # (B, C, 9, H, W)
    p = p.transpose(0, 3, 4, 1, 2)       # (B, H, W, C, 9)
    return p.reshape(B * H * W, C * 9)


def _epi_im2col(x, a):
    """Patches for Conv2d kernel=(1, a*a), stride=(1, a), pad=(0, a*(a-1)//2)."""
    B, C, H, W = x.shape
    pad = a * (a - 1) // 2
    wo = (W + 2 * pad - a * a) // a + 1
    xp = jnp.pad(x, ((0, 0), (0, 0), (0, 0), (pad, pad)))
    taps = [xp[:, :, :, kx:kx + (wo - 1) * a + 1:a] for kx in range(a * a)]
    p = jnp.stack(taps, axis=2)          # (B, C, a*a, H, wo)
    p = p.transpose(0, 3, 4, 1, 2)       # (B, H, wo, C, a*a)
    return p.reshape(B * H * wo, C * a * a), wo


def _rows_to_nchw(y, B, H, W, O):
    return y.reshape(B, H, W, O).transpose(0, 3, 1, 2)


def pixel_shuffle(x, r):
    """torch.nn.PixelShuffle: (B, r*r*C, h, w) -> (B, C, r*h, r*w)."""
    B, RC, h, w = x.shape
    C = RC // (r * r)
    x = x.reshape(B, C, r, r, h, w).transpose(0, 1, 4, 2, 5, 3)
    return x.reshape(B, C, h * r, w * r)


def pixel_shuffle_1d(x, r):
    """PixelShuffle1D from the spec: (B, r*C, h, w) -> (B, C, h, r*w)."""
    B, RC, h, w = x.shape
    C = RC // r
    x = x.reshape(B, r, C, h, w).transpose(0, 2, 3, 4, 1)
    return x.reshape(B, C, h, w * r)


# ---------------------------------------------------------------------------
# Conv layers (im2col in JAX, matmul + LeakyReLU (+ residual) in Pallas)
# ---------------------------------------------------------------------------
def conv3x3_dilated(x, w, d, *, slope=None, residual=None):
    """Conv2d 3x3, dilation=d, padding=d, stride=1, no bias."""
    B, C, H, W = x.shape
    O = w.shape[0]
    a_mat = _im2col_3x3_dilated(x, d)
    b_mat = w.reshape(O, C * 9).T
    r_mat = None
    if residual is not None:
        r_mat = residual.transpose(0, 2, 3, 1).reshape(B * H * W, O)
    y = pallas_matmul(a_mat, b_mat, slope=slope, residual=r_mat)
    return _rows_to_nchw(y, B, H, W, O)


def conv1x1(x, w, *, slope=None, bias=None):
    """Conv2d 1x1 (bias optional, folded into the matmul via a ones column)."""
    B, C, H, W = x.shape
    O = w.shape[0]
    a_mat = x.transpose(0, 2, 3, 1).reshape(B * H * W, C)
    b_mat = w.reshape(O, C).T
    if bias is not None:
        a_mat = jnp.concatenate(
            [a_mat, jnp.ones((a_mat.shape[0], 1), a_mat.dtype)], axis=1)
        b_mat = jnp.concatenate([b_mat, bias.reshape(1, O)], axis=0)
    y = pallas_matmul(a_mat, b_mat, slope=slope)
    return _rows_to_nchw(y, B, H, W, O)


def ang_branch(x, w1, w2, a, *, slope=NEG_SLOPE):
    """AngConv: strided angRes conv + 1x1 conv fused in one kernel, then
    PixelShuffle(angRes)."""
    B, C, H, W = x.shape
    h, wd = H // a, W // a
    p = x.reshape(B, C, h, a, wd, a).transpose(0, 2, 4, 1, 3, 5)
    a_mat = p.reshape(B * h * wd, C * a * a)
    O1, O2 = w1.shape[0], w2.shape[0]
    y = pallas_matmul2(a_mat, w1.reshape(O1, C * a * a).T,
                       w2.reshape(O2, O1).T, slope=slope)
    return pixel_shuffle(_rows_to_nchw(y, B, h, wd, O2), a)


def epi_branch_pair(x, w1, w2, a, *, slope=NEG_SLOPE):
    """EPIConv applied to x (horizontal) and x^T (vertical) with SHARED
    weights: both patch matrices are concatenated along M and processed by a
    single fused (conv + 1x1) kernel call."""
    B, C, H, W = x.shape
    xv = x.transpose(0, 1, 3, 2)
    a_h, wo_h = _epi_im2col(x, a)
    a_v, wo_v = _epi_im2col(xv, a)
    Mh = a_h.shape[0]
    a_mat = jnp.concatenate([a_h, a_v], axis=0)
    O1, O2 = w1.shape[0], w2.shape[0]
    y = pallas_matmul2(a_mat, w1.reshape(O1, C * a * a).T,
                       w2.reshape(O2, O1).T, slope=slope)
    y_h = _rows_to_nchw(y[:Mh], B, H, wo_h, O2)
    y_v = _rows_to_nchw(y[Mh:], B, W, wo_v, O2)
    feaEpiH = pixel_shuffle_1d(y_h, a)
    feaEpiV = pixel_shuffle_1d(y_v, a).transpose(0, 1, 3, 2)
    return feaEpiH, feaEpiV


# ---------------------------------------------------------------------------
# Full DisentgBlock forward
# ---------------------------------------------------------------------------
def disentg_block_forward(x, params, *, angRes):
    a = angRes
    s = NEG_SLOPE
    # spatial branch (two dilated 3x3 convs)
    t = conv3x3_dilated(x, params["spa_w1"], a, slope=s)
    feaSpa = conv3x3_dilated(t, params["spa_w2"], a, slope=s)
    # angular branch (strided conv + 1x1 fused, then PixelShuffle)
    feaAng = ang_branch(x, params["ang_w1"], params["ang_w2"], a, slope=s)
    # EPI branches (shared weights, H and V batched through one kernel)
    feaEpiH, feaEpiV = epi_branch_pair(x, params["epi_w1"], params["epi_w2"],
                                       a, slope=s)
    # fuse + residual (residual add fused into the last conv's epilogue)
    buf = jnp.concatenate([feaSpa, feaAng, feaEpiH, feaEpiV], axis=1)
    buf = conv1x1(buf, params["fuse_w1"], slope=s)
    if "adjust_w" in params:
        res = conv1x1(x, params["adjust_w"], bias=params["adjust_b"])
    else:
        res = x
    return conv3x3_dilated(buf, params["fuse_w2"], a, slope=None, residual=res)


# ---------------------------------------------------------------------------
# Pure-JAX reference (mirrors the PyTorch module with lax convolutions)
# ---------------------------------------------------------------------------
def _reference(x, params, *, angRes):
    a = angRes
    lrelu = lambda v: jnp.where(v >= 0, v, NEG_SLOPE * v)
    conv = functools.partial(lax.conv_general_dilated,
                             dimension_numbers=("NCHW", "OIHW", "NCHW"),
                             precision=lax.Precision.HIGHEST)
    t = lrelu(conv(x, params["spa_w1"], (1, 1), [(a, a), (a, a)],
                   rhs_dilation=(a, a)))
    feaSpa = lrelu(conv(t, params["spa_w2"], (1, 1), [(a, a), (a, a)],
                        rhs_dilation=(a, a)))
    t = lrelu(conv(x, params["ang_w1"], (a, a), "VALID"))
    t = lrelu(conv(t, params["ang_w2"], (1, 1), "VALID"))
    feaAng = pixel_shuffle(t, a)
    pad = a * (a - 1) // 2
    t = lrelu(conv(x, params["epi_w1"], (1, a), [(0, 0), (pad, pad)]))
    t = lrelu(conv(t, params["epi_w2"], (1, 1), "VALID"))
    feaEpiH = pixel_shuffle_1d(t, a)
    xv = jnp.transpose(x, (0, 1, 3, 2))
    t = lrelu(conv(xv, params["epi_w1"], (1, a), [(0, 0), (pad, pad)]))
    t = lrelu(conv(t, params["epi_w2"], (1, 1), "VALID"))
    feaEpiV = jnp.transpose(pixel_shuffle_1d(t, a), (0, 1, 3, 2))
    buf = jnp.concatenate([feaSpa, feaAng, feaEpiH, feaEpiV], axis=1)
    buf = lrelu(conv(buf, params["fuse_w1"], (1, 1), "VALID"))
    buf = conv(buf, params["fuse_w2"], (1, 1), [(a, a), (a, a)],
               rhs_dilation=(a, a))
    if "adjust_w" in params:
        res = (conv(x, params["adjust_w"], (1, 1), "VALID")
               + params["adjust_b"].reshape(1, -1, 1, 1))
    else:
        res = x
    return buf + res


if __name__ == "__main__":
    angRes = 3
    channels = 32
    out_ch = 32            # channels == out_ch -> identity residual path
    B = 2
    H = W = angRes * 8     # 24

    AngC, EpiC = channels // 4, channels // 2
    key = jax.random.PRNGKey(0)
    keys = jax.random.split(key, 11)

    def mk_w(k, shape):
        return 0.1 * jax.random.normal(k, shape, jnp.float32)

    params = {
        "spa_w1": mk_w(keys[0], (channels, channels, 3, 3)),
        "spa_w2": mk_w(keys[1], (channels, channels, 3, 3)),
        "ang_w1": mk_w(keys[2], (AngC, channels, angRes, angRes)),
        "ang_w2": mk_w(keys[3], (angRes * angRes * AngC, AngC, 1, 1)),
        "epi_w1": mk_w(keys[4], (EpiC, channels, 1, angRes * angRes)),
        "epi_w2": mk_w(keys[5], (angRes * EpiC, EpiC, 1, 1)),
        "fuse_w1": mk_w(keys[6], (channels, channels + AngC + 2 * EpiC, 1, 1)),
        "fuse_w2": mk_w(keys[7], (out_ch, channels, 3, 3)),
    }
    if channels != out_ch:
        params["adjust_w"] = mk_w(keys[8], (out_ch, channels, 1, 1))
        params["adjust_b"] = 0.1 * jax.random.normal(keys[9], (out_ch,),
                                                     jnp.float32)

    x = jax.random.normal(keys[10], (B, channels, H, W), jnp.float32)

    fwd = jax.jit(functools.partial(disentg_block_forward, angRes=angRes))
    out = jax.block_until_ready(fwd(x, params))

    ref = jax.block_until_ready(
        jax.jit(functools.partial(_reference, angRes=angRes))(x, params))

    assert out.shape == (B, out_ch, H, W), out.shape
    err = float(jnp.max(jnp.abs(out - ref)))
    scale = float(jnp.max(jnp.abs(ref))) + 1e-6
    # MXU f32 matmuls (default precision) vs HIGHEST-precision reference convs
    assert err <= 2e-2 * scale + 1e-3, (err, scale)

    print("KERNEL_OK")
</pallas_src>

<mosaic_0001>
module attributes {stable_mosaic.version = 11 : i64} {
  func.func @kernel(%arg0: i32, %arg1: memref<768x384xf32, #tpu.memory_space<vmem>>, %arg2: memref<384x128xf32, #tpu.memory_space<vmem>>, %arg3: memref<128x128xf32, #tpu.memory_space<vmem>>, %arg4: memref<768x128xf32, #tpu.memory_space<vmem>>) attributes {dimension_semantics = [#tpu.dimension_semantics<parallel>], iteration_bounds = array<i64: 1>, scalar_prefetch = 0 : i64, scratch_operands = 0 : i64, tpu.core_type = #tpu.core_type<tc>, window_params = [{transform_indices = @transform_0, window_bounds = array<i64: 768, 384>}, {pipeline_mode = #tpu.pipeline_mode<synchronous>, transform_indices = @transform_1, window_bounds = array<i64: 384, 128>}, {pipeline_mode = #tpu.pipeline_mode<synchronous>, transform_indices = @transform_2, window_bounds = array<i64: 128, 128>}, {transform_indices = @transform_3, window_bounds = array<i64: 768, 128>}]} {
    %c0 = arith.constant 0 : index
    %c0_0 = arith.constant 0 : index
    %0 = vector.load %arg1[%c0, %c0_0] : memref<768x384xf32, #tpu.memory_space<vmem>>, vector<768x384xf32>
    %c0_1 = arith.constant 0 : index
    %c0_2 = arith.constant 0 : index
    %1 = vector.load %arg2[%c0_1, %c0_2] : memref<384x128xf32, #tpu.memory_space<vmem>>, vector<384x128xf32>
    %cst = arith.constant dense<0.000000e+00> : vector<768x128xf32>
    %2 = tpu.matmul %0, %1, %cst {dimension_numbers = #tpu.dot_dimension_numbers<[1], [0], [0], [1], [0, 0, 1, 1], [], []>} : vector<768x384xf32>, vector<384x128xf32>, vector<768x128xf32> -> vector<768x128xf32>
    %cst_3 = arith.constant 0.000000e+00 : f32
    %3 = vector.broadcast %cst_3 : f32 to vector<768x128xf32>
    %4 = arith.cmpf oge, %2, %3 : vector<768x128xf32>
    %cst_4 = arith.constant 1.000000e-01 : f32
    %5 = vector.broadcast %cst_4 : f32 to vector<768x128xf32>
    %6 = arith.mulf %2, %5 : vector<768x128xf32>
    %7 = arith.select %4, %2, %6 : vector<768x128xi1>, vector<768x128xf32>
    %c0_5 = arith.constant 0 : index
    %c0_6 = arith.constant 0 : index
    %8 = vector.load %arg3[%c0_5, %c0_6] : memref<128x128xf32, #tpu.memory_space<vmem>>, vector<128x128xf32>
    %cst_7 = arith.constant dense<0.000000e+00> : vector<768x128xf32>
    %9 = tpu.matmul %7, %8, %cst_7 {dimension_numbers = #tpu.dot_dimension_numbers<[1], [0], [0], [1], [0, 0, 1, 1], [], []>} : vector<768x128xf32>, vector<128x128xf32>, vector<768x128xf32> -> vector<768x128xf32>
    %cst_8 = arith.constant 0.000000e+00 : f32
    %10 = vector.broadcast %cst_8 : f32 to vector<768x128xf32>
    %11 = arith.cmpf oge, %9, %10 : vector<768x128xf32>
    %cst_9 = arith.constant 1.000000e-01 : f32
    %12 = vector.broadcast %cst_9 : f32 to vector<768x128xf32>
    %13 = arith.mulf %9, %12 : vector<768x128xf32>
    %14 = arith.select %11, %9, %13 : vector<768x128xi1>, vector<768x128xf32>
    %c0_10 = arith.constant 0 : index
    %c0_11 = arith.constant 0 : index
    %15 = vector.load %arg4[%c0_10, %c0_11] : memref<768x128xf32, #tpu.memory_space<vmem>>, vector<768x128xf32>
    tpu.vector_store %arg4[%c0_10, %c0_11], %14 {strides = array<i32>} : memref<768x128xf32, #tpu.memory_space<vmem>>, vector<768x128xf32>,
    return
  }
  func.func @transform_0(%arg0: i32) -> (i32, i32) {
    %c0_i32 = arith.constant 0 : i32
    %c0_i32_0 = arith.constant 0 : i32
    return %arg0, %c0_i32 : i32, i32
  }
  func.func @transform_1(%arg0: i32) -> (i32, i32) {
    %c0_i32 = arith.constant 0 : i32
    %c0_i32_0 = arith.constant 0 : i32
    %c0_i32_1 = arith.constant 0 : i32
    return %c0_i32, %c0_i32_0 : i32, i32
  }
  func.func @transform_2(%arg0: i32) -> (i32, i32) {
    %c0_i32 = arith.constant 0 : i32
    %c0_i32_0 = arith.constant 0 : i32
    %c0_i32_1 = arith.constant 0 : i32
    return %c0_i32, %c0_i32_0 : i32, i32
  }
  func.func @transform_3(%arg0: i32) -> (i32, i32) {
    %c0_i32 = arith.constant 0 : i32
    %c0_i32_0 = arith.constant 0 : i32
    return %arg0, %c0_i32 : i32, i32
  }
}

module attributes {stable_mosaic.version = 11 : i64} {
  func.func @kernel(%arg0: i32, %arg1: i32, %arg2: memref<1152x384xf32, #tpu.memory_space<vmem>>, %arg3: memref<384x128xf32, #tpu.memory_space<vmem>>, %arg4: memref<1152x128xf32, #tpu.memory_space<vmem>>) attributes {dimension_semantics = [#tpu.dimension_semantics<parallel>, #tpu.dimension_semantics<parallel>], iteration_bounds = array<i64: 1, 1>, scalar_prefetch = 0 : i64, scratch_operands = 0 : i64, tpu.core_type = #tpu.core_type<tc>, window_params = [{transform_indices = @transform_0, window_bounds = array<i64: 1152, 384>}, {transform_indices = @transform_1, window_bounds = array<i64: 384, 128>}, {transform_indices = @transform_2, window_bounds = array<i64: 1152, 128>}]} {
    %c0 = arith.constant 0 : index
    %c0_0 = arith.constant 0 : index
    %0 = vector.load %arg2[%c0, %c0_0] : memref<1152x384xf32, #tpu.memory_space<vmem>>, vector<1152x384xf32>
    %c0_1 = arith.constant 0 : index
    %c0_2 = arith.constant 0 : index
    %1 = vector.load %arg3[%c0_1, %c0_2] : memref<384x128xf32, #tpu.memory_space<vmem>>, vector<384x128xf32>
    %cst = arith.constant dense<0.000000e+00> : vector<1152x128xf32>
    %2 = tpu.matmul %0, %1, %cst {dimension_numbers = #tpu.dot_dimension_numbers<[1], [0], [0], [1], [0, 0, 1, 1], [], []>} : vector<1152x384xf32>, vector<384x128xf32>, vector<1152x128xf32> -> vector<1152x128xf32>
    %cst_3 = arith.constant 0.000000e+00 : f32
    %3 = vector.broadcast %cst_3 : f32 to vector<1152x128xf32>
    %4 = arith.cmpf oge, %2, %3 : vector<1152x128xf32>
    %cst_4 = arith.constant 1.000000e-01 : f32
    %5 = vector.broadcast %cst_4 : f32 to vector<1152x128xf32>
    %6 = arith.mulf %2, %5 : vector<1152x128xf32>
    %7 = arith.select %4, %2, %6 : vector<1152x128xi1>, vector<1152x128xf32>
    %c0_5 = arith.constant 0 : index
    %c0_6 = arith.constant 0 : index
    %8 = vector.load %arg4[%c0_5, %c0_6] : memref<1152x128xf32, #tpu.memory_space<vmem>>, vector<1152x128xf32>
    tpu.vector_store %arg4[%c0_5, %c0_6], %7 {strides = array<i32>} : memref<1152x128xf32, #tpu.memory_space<vmem>>, vector<1152x128xf32>,
    return
  }
  func.func @transform_0(%arg0: i32, %arg1: i32) -> (i32, i32) {
    %c0_i32 = arith.constant 0 : i32
    %c0_i32_0 = arith.constant 0 : i32
    return %arg0, %c0_i32 : i32, i32
  }
  func.func @transform_1(%arg0: i32, %arg1: i32) -> (i32, i32) {
    %c0_i32 = arith.constant 0 : i32
    %c0_i32_0 = arith.constant 0 : i32
    return %c0_i32, %arg1 : i32, i32
  }
  func.func @transform_2(%arg0: i32, %arg1: i32) -> (i32, i32) {
    %c0_i32 = arith.constant 0 : i32
    return %arg0, %arg1 : i32, i32
  }
}

module attributes {stable_mosaic.version = 11 : i64} {
  func.func @kernel(%arg0: i32, %arg1: memref<128x384xf32, #tpu.memory_space<vmem>>, %arg2: memref<384x128xf32, #tpu.memory_space<vmem>>, %arg3: memref<128x128xf32, #tpu.memory_space<vmem>>, %arg4: memref<128x128xf32, #tpu.memory_space<vmem>>) attributes {dimension_semantics = [#tpu.dimension_semantics<parallel>], iteration_bounds = array<i64: 1>, scalar_prefetch = 0 : i64, scratch_operands = 0 : i64, tpu.core_type = #tpu.core_type<tc>, window_params = [{transform_indices = @transform_0, window_bounds = array<i64: 128, 384>}, {pipeline_mode = #tpu.pipeline_mode<synchronous>, transform_indices = @transform_1, window_bounds = array<i64: 384, 128>}, {pipeline_mode = #tpu.pipeline_mode<synchronous>, transform_indices = @transform_2, window_bounds = array<i64: 128, 128>}, {transform_indices = @transform_3, window_bounds = array<i64: 128, 128>}]} {
    %c0 = arith.constant 0 : index
    %c0_0 = arith.constant 0 : index
    %0 = vector.load %arg1[%c0, %c0_0] : memref<128x384xf32, #tpu.memory_space<vmem>>, vector<128x384xf32>
    %c0_1 = arith.constant 0 : index
    %c0_2 = arith.constant 0 : index
    %1 = vector.load %arg2[%c0_1, %c0_2] : memref<384x128xf32, #tpu.memory_space<vmem>>, vector<384x128xf32>
    %cst = arith.constant dense<0.000000e+00> : vector<128x128xf32>
    %2 = tpu.matmul %0, %1, %cst {dimension_numbers = #tpu.dot_dimension_numbers<[1], [0], [0], [1], [0, 0, 1, 1], [], []>} : vector<128x384xf32>, vector<384x128xf32>, vector<128x128xf32> -> vector<128x128xf32>
    %cst_3 = arith.constant 0.000000e+00 : f32
    %3 = vector.broadcast %cst_3 : f32 to vector<128x128xf32>
    %4 = arith.cmpf oge, %2, %3 : vector<128x128xf32>
    %cst_4 = arith.constant 1.000000e-01 : f32
    %5 = vector.broadcast %cst_4 : f32 to vector<128x128xf32>
    %6 = arith.mulf %2, %5 : vector<128x128xf32>
    %7 = arith.select %4, %2, %6 : vector<128x128xi1>, vector<128x128xf32>
    %c0_5 = arith.constant 0 : index
    %c0_6 = arith.constant 0 : index
    %8 = vector.load %arg3[%c0_5, %c0_6] : memref<128x128xf32, #tpu.memory_space<vmem>>, vector<128x128xf32>
    %cst_7 = arith.constant dense<0.000000e+00> : vector<128x128xf32>
    %9 = tpu.matmul %7, %8, %cst_7 {dimension_numbers = #tpu.dot_dimension_numbers<[1], [0], [0], [1], [0, 0, 1, 1], [], []>} : vector<128x128xf32>, vector<128x128xf32>, vector<128x128xf32> -> vector<128x128xf32>
    %cst_8 = arith.constant 0.000000e+00 : f32
    %10 = vector.broadcast %cst_8 : f32 to vector<128x128xf32>
    %11 = arith.cmpf oge, %9, %10 : vector<128x128xf32>
    %cst_9 = arith.constant 1.000000e-01 : f32
    %12 = vector.broadcast %cst_9 : f32 to vector<128x128xf32>
    %13 = arith.mulf %9, %12 : vector<128x128xf32>
    %14 = arith.select %11, %9, %13 : vector<128x128xi1>, vector<128x128xf32>
    %c0_10 = arith.constant 0 : index
    %c0_11 = arith.constant 0 : index
    %15 = vector.load %arg4[%c0_10, %c0_11] : memref<128x128xf32, #tpu.memory_space<vmem>>, vector<128x128xf32>
    tpu.vector_store %arg4[%c0_10, %c0_11], %14 {strides = array<i32>} : memref<128x128xf32, #tpu.memory_space<vmem>>, vector<128x128xf32>,
    return
  }
  func.func @transform_0(%arg0: i32) -> (i32, i32) {
    %c0_i32 = arith.constant 0 : i32
    %c0_i32_0 = arith.constant 0 : i32
    return %arg0, %c0_i32 : i32, i32
  }
  func.func @transform_1(%arg0: i32) -> (i32, i32) {
    %c0_i32 = arith.constant 0 : i32
    %c0_i32_0 = arith.constant 0 : i32
    %c0_i32_1 = arith.constant 0 : i32
    return %c0_i32, %c0_i32_0 : i32, i32
  }
  func.func @transform_2(%arg0: i32) -> (i32, i32) {
    %c0_i32 = arith.constant 0 : i32
    %c0_i32_0 = arith.constant 0 : i32
    %c0_i32_1 = arith.constant 0 : i32
    return %c0_i32, %c0_i32_0 : i32, i32
  }
  func.func @transform_3(%arg0: i32) -> (i32, i32) {
    %c0_i32 = arith.constant 0 : i32
    %c0_i32_0 = arith.constant 0 : i32
    return %arg0, %c0_i32 : i32, i32
  }
}

module attributes {stable_mosaic.version = 11 : i64} {
  func.func @kernel(%arg0: i32, %arg1: i32, %arg2: memref<1152x128xf32, #tpu.memory_space<vmem>>, %arg3: memref<128x128xf32, #tpu.memory_space<vmem>>, %arg4: memref<1152x128xf32, #tpu.memory_space<vmem>>) attributes {dimension_semantics = [#tpu.dimension_semantics<parallel>, #tpu.dimension_semantics<parallel>], iteration_bounds = array<i64: 1, 1>, scalar_prefetch = 0 : i64, scratch_operands = 0 : i64, tpu.core_type = #tpu.core_type<tc>, window_params = [{transform_indices = @transform_0, window_bounds = array<i64: 1152, 128>}, {transform_indices = @transform_1, window_bounds = array<i64: 128, 128>}, {transform_indices = @transform_2, window_bounds = array<i64: 1152, 128>}]} {
    %c0 = arith.constant 0 : index
    %c0_0 = arith.constant 0 : index
    %0 = vector.load %arg2[%c0, %c0_0] : memref<1152x128xf32, #tpu.memory_space<vmem>>, vector<1152x128xf32>
    %c0_1 = arith.constant 0 : index
    %c0_2 = arith.constant 0 : index
    %1 = vector.load %arg3[%c0_1, %c0_2] : memref<128x128xf32, #tpu.memory_space<vmem>>, vector<128x128xf32>
    %cst = arith.constant dense<0.000000e+00> : vector<1152x128xf32>
    %2 = tpu.matmul %0, %1, %cst {dimension_numbers = #tpu.dot_dimension_numbers<[1], [0], [0], [1], [0, 0, 1, 1], [], []>} : vector<1152x128xf32>, vector<128x128xf32>, vector<1152x128xf32> -> vector<1152x128xf32>
    %cst_3 = arith.constant 0.000000e+00 : f32
    %3 = vector.broadcast %cst_3 : f32 to vector<1152x128xf32>
    %4 = arith.cmpf oge, %2, %3 : vector<1152x128xf32>
    %cst_4 = arith.constant 1.000000e-01 : f32
    %5 = vector.broadcast %cst_4 : f32 to vector<1152x128xf32>
    %6 = arith.mulf %2, %5 : vector<1152x128xf32>
    %7 = arith.select %4, %2, %6 : vector<1152x128xi1>, vector<1152x128xf32>
    %c0_5 = arith.constant 0 : index
    %c0_6 = arith.constant 0 : index
    %8 = vector.load %arg4[%c0_5, %c0_6] : memref<1152x128xf32, #tpu.memory_space<vmem>>, vector<1152x128xf32>
    tpu.vector_store %arg4[%c0_5, %c0_6], %7 {strides = array<i32>} : memref<1152x128xf32, #tpu.memory_space<vmem>>, vector<1152x128xf32>,
    return
  }
  func.func @transform_0(%arg0: i32, %arg1: i32) -> (i32, i32) {
    %c0_i32 = arith.constant 0 : i32
    %c0_i32_0 = arith.constant 0 : i32
    return %arg0, %c0_i32 : i32, i32
  }
  func.func @transform_1(%arg0: i32, %arg1: i32) -> (i32, i32) {
    %c0_i32 = arith.constant 0 : i32
    %c0_i32_0 = arith.constant 0 : i32
    return %c0_i32, %arg1 : i32, i32
  }
  func.func @transform_2(%arg0: i32, %arg1: i32) -> (i32, i32) {
    %c0_i32 = arith.constant 0 : i32
    return %arg0, %arg1 : i32, i32
  }
}

module attributes {stable_mosaic.version = 11 : i64} {
  func.func @kernel(%arg0: i32, %arg1: i32, %arg2: memref<1152x384xf32, #tpu.memory_space<vmem>>, %arg3: memref<384x128xf32, #tpu.memory_space<vmem>>, %arg4: memref<1152x128xf32, #tpu.memory_space<vmem>>, %arg5: memref<1152x128xf32, #tpu.memory_space<vmem>>) attributes {dimension_semantics = [#tpu.dimension_semantics<parallel>, #tpu.dimension_semantics<parallel>], iteration_bounds = array<i64: 1, 1>, scalar_prefetch = 0 : i64, scratch_operands = 0 : i64, tpu.core_type = #tpu.core_type<tc>, window_params = [{transform_indices = @transform_0, window_bounds = array<i64: 1152, 384>}, {transform_indices = @transform_1, window_bounds = array<i64: 384, 128>}, {transform_indices = @transform_2, window_bounds = array<i64: 1152, 128>}, {transform_indices = @transform_3, window_bounds = array<i64: 1152, 128>}]} {
    %c0 = arith.constant 0 : index
    %c0_0 = arith.constant 0 : index
    %0 = vector.load %arg2[%c0, %c0_0] : memref<1152x384xf32, #tpu.memory_space<vmem>>, vector<1152x384xf32>
    %c0_1 = arith.constant 0 : index
    %c0_2 = arith.constant 0 : index
    %1 = vector.load %arg3[%c0_1, %c0_2] : memref<384x128xf32, #tpu.memory_space<vmem>>, vector<384x128xf32>
    %cst = arith.constant dense<0.000000e+00> : vector<1152x128xf32>
    %2 = tpu.matmul %0, %1, %cst {dimension_numbers = #tpu.dot_dimension_numbers<[1], [0], [0], [1], [0, 0, 1, 1], [], []>} : vector<1152x384xf32>, vector<384x128xf32>, vector<1152x128xf32> -> vector<1152x128xf32>
    %c0_3 = arith.constant 0 : index
    %c0_4 = arith.constant 0 : index
    %3 = vector.load %arg4[%c0_3, %c0_4] : memref<1152x128xf32, #tpu.memory_space<vmem>>, vector<1152x128xf32>
    %4 = arith.addf %2, %3 : vector<1152x128xf32>
    %c0_5 = arith.constant 0 : index
    %c0_6 = arith.constant 0 : index
    %5 = vector.load %arg5[%c0_5, %c0_6] : memref<1152x128xf32, #tpu.memory_space<vmem>>, vector<1152x128xf32>
    tpu.vector_store %arg5[%c0_5, %c0_6], %4 {strides = array<i32>} : memref<1152x128xf32, #tpu.memory_space<vmem>>, vector<1152x128xf32>,
    return
  }
  func.func @transform_0(%arg0: i32, %arg1: i32) -> (i32, i32) {
    %c0_i32 = arith.constant 0 : i32
    %c0_i32_0 = arith.constant 0 : i32
    return %arg0, %c0_i32 : i32, i32
  }
  func.func @transform_1(%arg0: i32, %arg1: i32) -> (i32, i32) {
    %c0_i32 = arith.constant 0 : i32
    %c0_i32_0 = arith.constant 0 : i32
    return %c0_i32, %arg1 : i32, i32
  }
  func.func @transform_2(%arg0: i32, %arg1: i32) -> (i32, i32) {
    %c0_i32 = arith.constant 0 : i32
    return %arg0, %arg1 : i32, i32
  }
  func.func @transform_3(%arg0: i32, %arg1: i32) -> (i32, i32) {
    %c0_i32 = arith.constant 0 : i32
    return %arg0, %arg1 : i32, i32
  }
}

</mosaic_0001>

<llo_original>
// kernel: disentg_block_forward.9
$region0: #{disentg_block_forward.9}
  #allocation0 [shape = 'u32[]', space=smem, size = 0x4, offset = 0x4, fixed_abs, tag = 'smem constant byte address 0x4 - core index']
  #allocation1 [shape = 'u32[144,128]{1,0:T(1,128)}', space=vmem, size = 0x12000, scoped, tag = 'internal scratch']
  %s0 = inlined_call_operand.vmem [shape: f32[768,384], index: 0, kind: input, shape index: {}]
  %s1 = inlined_call_operand.vmem [shape: f32[384,128], index: 1, kind: input, shape index: {}]
  %s2 = inlined_call_operand.vmem [shape: f32[128,128], index: 2, kind: input, shape index: {}]
  %s3 = inlined_call_operand.vmem [shape: f32[768,128], index: 3, kind: output, shape index: {}]
  %s4 = sld [smem:[#allocation0]]
  $region22: #{disentg_block_forward.9} parent=0
    _
  %s6 = ssub.s32 1, %s4
  %s7 = scalar_select 0, %s6, %s4
  // Predicated region
  $region2: #{disentg_block_forward.9} parent=0 // pred_check
    _
  $region3: #{disentg_block_forward.9} parent=0 // pred_check_branch
    %9 = sbr.rel (0) target = $region5
  $region4: #{disentg_block_forward.9} parent=0 // pred_region
    _
  $region5: #{disentg_block_forward.9} parent=0 // pred_fallthru
    _
  // Predicated region
  $region6: #{disentg_block_forward.9} parent=0 // pred_check
    _
  $region7: #{disentg_block_forward.9} parent=0 // pred_check_branch
    %11 = sbr.rel (0) target = $region9
  $region8: #{disentg_block_forward.9} parent=0 // pred_region
    _
  $region9: #{disentg_block_forward.9} parent=0 // pred_fallthru
    _
  // Predicated region
  $region10: #{disentg_block_forward.9} parent=0 // pred_check
    _
  $region11: #{disentg_block_forward.9} parent=0 // pred_check_branch
    %13 = sbr.rel (0) target = $region13
  $region12: #{disentg_block_forward.9} parent=0 // pred_region
    _
  $region13: #{disentg_block_forward.9} parent=0 // pred_fallthru
    _
  %v14 = vld [vmem:[%s0] sm:$0xff]
  %v15 = vld [vmem:[%s0 + $0x8] sm:$0xff]
  %v16 = vld [vmem:[%s0 + $0x10] sm:$0xff]
  %v17 = vld [vmem:[%s0 + $0x18] sm:$0xff]
  %v18 = vld [vmem:[%s0 + $0x20] sm:$0xff]
  %v19 = vld [vmem:[%s0 + $0x28] sm:$0xff]
  %v20 = vld [vmem:[%s0 + $0x30] sm:$0xff]
  %v21 = vld [vmem:[%s0 + $0x38] sm:$0xff]
  %v22 = vld [vmem:[%s0 + $0x40] sm:$0xff]
  %v23 = vld [vmem:[%s0 + $0x48] sm:$0xff]
  %v24 = vld [vmem:[%s0 + $0x50] sm:$0xff]
  %v25 = vld [vmem:[%s0 + $0x58] sm:$0xff]
  %v26 = vld [vmem:[%s0 + $0x60] sm:$0xff]
  %v27 = vld [vmem:[%s0 + $0x68] sm:$0xff]
  %v28 = vld [vmem:[%s0 + $0x70] sm:$0xff]
  %v29 = vld [vmem:[%s0 + $0x78] sm:$0xff]
  %v30 = vld [vmem:[%s0 + $0x80] sm:$0xff]
  %v31 = vld [vmem:[%s0 + $0x88] sm:$0xff]
  %v32 = vld [vmem:[%s0 + $0x90] sm:$0xff]
  %v33 = vld [vmem:[%s0 + $0x98] sm:$0xff]
  %v34 = vld [vmem:[%s0 + $0xa0] sm:$0xff]
  %v35 = vld [vmem:[%s0 + $0xa8] sm:$0xff]
  %v36 = vld [vmem:[%s0 + $0xb0] sm:$0xff]
  %v37 = vld [vmem:[%s0 + $0xb8] sm:$0xff]
  %v38 = vld [vmem:[%s0 + $0xc0] sm:$0xff]
  %v39 = vld [vmem:[%s0 + $0xc8] sm:$0xff]
  %v40 = vld [vmem:[%s0 + $0xd0] sm:$0xff]
  %v41 = vld [vmem:[%s0 + $0xd8] sm:$0xff]
  %v42 = vld [vmem:[%s0 + $0xe0] sm:$0xff]
  %v43 = vld [vmem:[%s0 + $0xe8] sm:$0xff]
  %v44 = vld [vmem:[%s0 + $0xf0] sm:$0xff]
  %v45 = vld [vmem:[%s0 + $0xf8] sm:$0xff]
  %v46 = vld [vmem:[%s0 + $0x100] sm:$0xff]
  %v47 = vld [vmem:[%s0 + $0x108] sm:$0xff]
  %v48 = vld [vmem:[%s0 + $0x110] sm:$0xff]
  %v49 = vld [vmem:[%s0 + $0x118] sm:$0xff]
  %v50 = vld [vmem:[%s0 + $0x120] sm:$0xff]
  %v51 = vld [vmem:[%s0 + $0x128] sm:$0xff]
  %v52 = vld [vmem:[%s0 + $0x130] sm:$0xff]
  %v53 = vld [vmem:[%s0 + $0x138] sm:$0xff]
  %v54 = vld [vmem:[%s0 + $0x140] sm:$0xff]
  %v55 = vld [vmem:[%s0 + $0x148] sm:$0xff]
  %v56 = vld [vmem:[%s0 + $0x150] sm:$0xff]
  %v57 = vld [vmem:[%s0 + $0x158] sm:$0xff]
  %v58 = vld [vmem:[%s0 + $0x160] sm:$0xff]
  %v59 = vld [vmem:[%s0 + $0x168] sm:$0xff]
  %v60 = vld [vmem:[%s0 + $0x170] sm:$0xff]
  %v61 = vld [vmem:[%s0 + $0x178] sm:$0xff]
  %v62 = vld [vmem:[%s0 + $0x180] sm:$0xff]
  %v63 = vld [vmem:[%s0 + $0x188] sm:$0xff]
  %v64 = vld [vmem:[%s0 + $0x190] sm:$0xff]
  %v65 = vld [vmem:[%s0 + $0x198] sm:$0xff]
  %v66 = vld [vmem:[%s0 + $0x1a0] sm:$0xff]
  %v67 = vld [vmem:[%s0 + $0x1a8] sm:$0xff]
  %v68 = vld [vmem:[%s0 + $0x1b0] sm:$0xff]
  %v69 = vld [vmem:[%s0 + $0x1b8] sm:$0xff]
  %v70 = vld [vmem:[%s0 + $0x1c0] sm:$0xff]
  %v71 = vld [vmem:[%s0 + $0x1c8] sm:$0xff]
  %v72 = vld [vmem:[%s0 + $0x1d0] sm:$0xff]
  %v73 = vld [vmem:[%s0 + $0x1d8] sm:$0xff]
  %v74 = vld [vmem:[%s0 + $0x1e0] sm:$0xff]
  %v75 = vld [vmem:[%s0 + $0x1e8] sm:$0xff]
  %v76 = vld [vmem:[%s0 + $0x1f0] sm:$0xff]
  %v77 = vld [vmem:[%s0 + $0x1f8] sm:$0xff]
  %v78 = vld [vmem:[%s0 + $0x200] sm:$0xff]
  %v79 = vld [vmem:[%s0 + $0x208] sm:$0xff]
  %v80 = vld [vmem:[%s0 + $0x210] sm:$0xff]
  %v81 = vld [vmem:[%s0 + $0x218] sm:$0xff]
  %v82 = vld [vmem:[%s0 + $0x220] sm:$0xff]
  %v83 = vld [vmem:[%s0 + $0x228] sm:$0xff]
  %v84 = vld [vmem:[%s0 + $0x230] sm:$0xff]
  %v85 = vld [vmem:[%s0 + $0x238] sm:$0xff]
  %v86 = vld [vmem:[%s0 + $0x240] sm:$0xff]
  %v87 = vld [vmem:[%s0 + $0x248] sm:$0xff]
  %v88 = vld [vmem:[%s0 + $0x250] sm:$0xff]
  %v89 = vld [vmem:[%s0 + $0x258] sm:$0xff]
  %v90 = vld [vmem:[%s0 + $0x260] sm:$0xff]
  %v91 = vld [vmem:[%s0 + $0x268] sm:$0xff]
  %v92 = vld [vmem:[%s0 + $0x270] sm:$0xff]
  %v93 = vld [vmem:[%s0 + $0x278] sm:$0xff]
  %v94 = vld [vmem:[%s0 + $0x280] sm:$0xff]
  %v95 = vld [vmem:[%s0 + $0x288] sm:$0xff]
  %v96 = vld [vmem:[%s0 + $0x290] sm:$0xff]
  %v97 = vld [vmem:[%s0 + $0x298] sm:$0xff]
  %v98 = vld [vmem:[%s0 + $0x2a0] sm:$0xff]
  %v99 = vld [vmem:[%s0 + $0x2a8] sm:$0xff]
  %v100 = vld [vmem:[%s0 + $0x2b0] sm:$0xff]
  %v101 = vld [vmem:[%s0 + $0x2b8] sm:$0xff]
  %v102 = vld [vmem:[%s0 + $0x2c0] sm:$0xff]
  %v103 = vld [vmem:[%s0 + $0x2c8] sm:$0xff]
  %v104 = vld [vmem:[%s0 + $0x2d0] sm:$0xff]
  %v105 = vld [vmem:[%s0 + $0x2d8] sm:$0xff]
  %v106 = vld [vmem:[%s0 + $0x2e0] sm:$0xff]
  %v107 = vld [vmem:[%s0 + $0x2e8] sm:$0xff]
  %v108 = vld [vmem:[%s0 + $0x2f0] sm:$0xff]
  %v109 = vld [vmem:[%s0 + $0x2f8] sm:$0xff]
  %v110 = vld [vmem:[%s0 + $0x300] sm:$0xff]
  %v111 = vld [vmem:[%s0 + $0x308] sm:$0xff]
  %v112 = vld [vmem:[%s0 + $0x310] sm:$0xff]
  %v113 = vld [vmem:[%s0 + $0x318] sm:$0xff]
  %v114 = vld [vmem:[%s0 + $0x320] sm:$0xff]
  %v115 = vld [vmem:[%s0 + $0x328] sm:$0xff]
  %v116 = vld [vmem:[%s0 + $0x330] sm:$0xff]
  %v117 = vld [vmem:[%s0 + $0x338] sm:$0xff]
  %v118 = vld [vmem:[%s0 + $0x340] sm:$0xff]
  %v119 = vld [vmem:[%s0 + $0x348] sm:$0xff]
  %v120 = vld [vmem:[%s0 + $0x350] sm:$0xff]
  %v121 = vld [vmem:[%s0 + $0x358] sm:$0xff]
  %v122 = vld [vmem:[%s0 + $0x360] sm:$0xff]
  %v123 = vld [vmem:[%s0 + $0x368] sm:$0xff]
  %v124 = vld [vmem:[%s0 + $0x370] sm:$0xff]
  %v125 = vld [vmem:[%s0 + $0x378] sm:$0xff]
  %v126 = vld [vmem:[%s0 + $0x380] sm:$0xff]
  %v127 = vld [vmem:[%s0 + $0x388] sm:$0xff]
  %v128 = vld [vmem:[%s0 + $0x390] sm:$0xff]
  %v129 = vld [vmem:[%s0 + $0x398] sm:$0xff]
  %v130 = vld [vmem:[%s0 + $0x3a0] sm:$0xff]
  %v131 = vld [vmem:[%s0 + $0x3a8] sm:$0xff]
  %v132 = vld [vmem:[%s0 + $0x3b0] sm:$0xff]
  %v133 = vld [vmem:[%s0 + $0x3b8] sm:$0xff]
  %v134 = vld [vmem:[%s0 + $0x3c0] sm:$0xff]
  %v135 = vld [vmem:[%s0 + $0x3c8] sm:$0xff]
  %v136 = vld [vmem:[%s0 + $0x3d0] sm:$0xff]
  %v137 = vld [vmem:[%s0 + $0x3d8] sm:$0xff]
  %v138 = vld [vmem:[%s0 + $0x3e0] sm:$0xff]
  %v139 = vld [vmem:[%s0 + $0x3e8] sm:$0xff]
  %v140 = vld [vmem:[%s0 + $0x3f0] sm:$0xff]
  %v141 = vld [vmem:[%s0 + $0x3f8] sm:$0xff]
  %v142 = vld [vmem:[%s0 + $0x400] sm:$0xff]
  %v143 = vld [vmem:[%s0 + $0x408] sm:$0xff]
  %v144 = vld [vmem:[%s0 + $0x410] sm:$0xff]
  %v145 = vld [vmem:[%s0 + $0x418] sm:$0xff]
  %v146 = vld [vmem:[%s0 + $0x420] sm:$0xff]
  %v147 = vld [vmem:[%s0 + $0x428] sm:$0xff]
  %v148 = vld [vmem:[%s0 + $0x430] sm:$0xff]
  %v149 = vld [vmem:[%s0 + $0x438] sm:$0xff]
  %v150 = vld [vmem:[%s0 + $0x440] sm:$0xff]
  %v151 = vld [vmem:[%s0 + $0x448] sm:$0xff]
  %v152 = vld [vmem:[%s0 + $0x450] sm:$0xff]
  %v153 = vld [vmem:[%s0 + $0x458] sm:$0xff]
  %v154 = vld [vmem:[%s0 + $0x460] sm:$0xff]
  %v155 = vld [vmem:[%s0 + $0x468] sm:$0xff]
  %v156 = vld [vmem:[%s0 + $0x470] sm:$0xff]
  %v157 = vld [vmem:[%s0 + $0x478] sm:$0xff]
  %v158 = vld [vmem:[%s0 + $0x480] sm:$0xff]
  %v159 = vld [vmem:[%s0 + $0x488] sm:$0xff]
  %v160 = vld [vmem:[%s0 + $0x490] sm:$0xff]
  %v161 = vld [vmem:[%s0 + $0x498] sm:$0xff]
  %v162 = vld [vmem:[%s0 + $0x4a0] sm:$0xff]
  %v163 = vld [vmem:[%s0 + $0x4a8] sm:$0xff]
  %v164 = vld [vmem:[%s0 + $0x4b0] sm:$0xff]
  %v165 = vld [vmem:[%s0 + $0x4b8] sm:$0xff]
  %v166 = vld [vmem:[%s0 + $0x4c0] sm:$0xff]
  %v167 = vld [vmem:[%s0 + $0x4c8] sm:$0xff]
  %v168 = vld [vmem:[%s0 + $0x4d0] sm:$0xff]
  %v169 = vld [vmem:[%s0 + $0x4d8] sm:$0xff]
  %v170 = vld [vmem:[%s0 + $0x4e0] sm:$0xff]
  %v171 = vld [vmem:[%s0 + $0x4e8] sm:$0xff]
  %v172 = vld [vmem:[%s0 + $0x4f0] sm:$0xff]
  %v173 = vld [vmem:[%s0 + $0x4f8] sm:$0xff]
  %v174 = vld [vmem:[%s0 + $0x500] sm:$0xff]
  %v175 = vld [vmem:[%s0 + $0x508] sm:$0xff]
  %v176 = vld [vmem:[%s0 + $0x510] sm:$0xff]
  %v177 = vld [vmem:[%s0 + $0x518] sm:$0xff]
  %v178 = vld [vmem:[%s0 + $0x520] sm:$0xff]
  %v179 = vld [vmem:[%s0 + $0x528] sm:$0xff]
  %v180 = vld [vmem:[%s0 + $0x530] sm:$0xff]
  %v181 = vld [vmem:[%s0 + $0x538] sm:$0xff]
  %v182 = vld [vmem:[%s0 + $0x540] sm:$0xff]
  %v183 = vld [vmem:[%s0 + $0x548] sm:$0xff]
  %v184 = vld [vmem:[%s0 + $0x550] sm:$0xff]
  %v185 = vld [vmem:[%s0 + $0x558] sm:$0xff]
  %v186 = vld [vmem:[%s0 + $0x560] sm:$0xff]
  %v187 = vld [vmem:[%s0 + $0x568] sm:$0xff]
  %v188 = vld [vmem:[%s0 + $0x570] sm:$0xff]
  %v189 = vld [vmem:[%s0 + $0x578] sm:$0xff]
  %v190 = vld [vmem:[%s0 + $0x580] sm:$0xff]
  %v191 = vld [vmem:[%s0 + $0x588] sm:$0xff]
  %v192 = vld [vmem:[%s0 + $0x590] sm:$0xff]
  %v193 = vld [vmem:[%s0 + $0x598] sm:$0xff]
  %v194 = vld [vmem:[%s0 + $0x5a0] sm:$0xff]
  %v195 = vld [vmem:[%s0 + $0x5a8] sm:$0xff]
  %v196 = vld [vmem:[%s0 + $0x5b0] sm:$0xff]
  %v197 = vld [vmem:[%s0 + $0x5b8] sm:$0xff]
  %v198 = vld [vmem:[%s0 + $0x5c0] sm:$0xff]
  %v199 = vld [vmem:[%s0 + $0x5c8] sm:$0xff]
  %v200 = vld [vmem:[%s0 + $0x5d0] sm:$0xff]
  %v201 = vld [vmem:[%s0 + $0x5d8] sm:$0xff]
  %v202 = vld [vmem:[%s0 + $0x5e0] sm:$0xff]
  %v203 = vld [vmem:[%s0 + $0x5e8] sm:$0xff]
  %v204 = vld [vmem:[%s0 + $0x5f0] sm:$0xff]
  %v205 = vld [vmem:[%s0 + $0x5f8] sm:$0xff]
  %v206 = vld [vmem:[%s0 + $0x600] sm:$0xff]
  %v207 = vld [vmem:[%s0 + $0x608] sm:$0xff]
  %v208 = vld [vmem:[%s0 + $0x610] sm:$0xff]
  %v209 = vld [vmem:[%s0 + $0x618] sm:$0xff]
  %v210 = vld [vmem:[%s0 + $0x620] sm:$0xff]
  %v211 = vld [vmem:[%s0 + $0x628] sm:$0xff]
  %v212 = vld [vmem:[%s0 + $0x630] sm:$0xff]
  %v213 = vld [vmem:[%s0 + $0x638] sm:$0xff]
  %v214 = vld [vmem:[%s0 + $0x640] sm:$0xff]
  %v215 = vld [vmem:[%s0 + $0x648] sm:$0xff]
  %v216 = vld [vmem:[%s0 + $0x650] sm:$0xff]
  %v217 = vld [vmem:[%s0 + $0x658] sm:$0xff]
  %v218 = vld [vmem:[%s0 + $0x660] sm:$0xff]
  %v219 = vld [vmem:[%s0 + $0x668] sm:$0xff]
  %v220 = vld [vmem:[%s0 + $0x670] sm:$0xff]
  %v221 = vld [vmem:[%s0 + $0x678] sm:$0xff]
  %v222 = vld [vmem:[%s0 + $0x680] sm:$0xff]
  %v223 = vld [vmem:[%s0 + $0x688] sm:$0xff]
  %v224 = vld [vmem:[%s0 + $0x690] sm:$0xff]
  %v225 = vld [vmem:[%s0 + $0x698] sm:$0xff]
  %v226 = vld [vmem:[%s0 + $0x6a0] sm:$0xff]
  %v227 = vld [vmem:[%s0 + $0x6a8] sm:$0xff]
  %v228 = vld [vmem:[%s0 + $0x6b0] sm:$0xff]
  %v229 = vld [vmem:[%s0 + $0x6b8] sm:$0xff]
  %v230 = vld [vmem:[%s0 + $0x6c0] sm:$0xff]
  %v231 = vld [vmem:[%s0 + $0x6c8] sm:$0xff]
  %v232 = vld [vmem:[%s0 + $0x6d0] sm:$0xff]
  %v233 = vld [vmem:[%s0 + $0x6d8] sm:$0xff]
  %v234 = vld [vmem:[%s0 + $0x6e0] sm:$0xff]
  %v235 = vld [vmem:[%s0 + $0x6e8] sm:$0xff]
  %v236 = vld [vmem:[%s0 + $0x6f0] sm:$0xff]
  %v237 = vld [vmem:[%s0 + $0x6f8] sm:$0xff]
  %v238 = vld [vmem:[%s0 + $0x700] sm:$0xff]
  %v239 = vld [vmem:[%s0 + $0x708] sm:$0xff]
  %v240 = vld [vmem:[%s0 + $0x710] sm:$0xff]
  %v241 = vld [vmem:[%s0 + $0x718] sm:$0xff]
  %v242 = vld [vmem:[%s0 + $0x720] sm:$0xff]
  %v243 = vld [vmem:[%s0 + $0x728] sm:$0xff]
  %v244 = vld [vmem:[%s0 + $0x730] sm:$0xff]
  %v245 = vld [vmem:[%s0 + $0x738] sm:$0xff]
  %v246 = vld [vmem:[%s0 + $0x740] sm:$0xff]
  %v247 = vld [vmem:[%s0 + $0x748] sm:$0xff]
  %v248 = vld [vmem:[%s0 + $0x750] sm:$0xff]
  %v249 = vld [vmem:[%s0 + $0x758] sm:$0xff]
  %v250 = vld [vmem:[%s0 + $0x760] sm:$0xff]
  %v251 = vld [vmem:[%s0 + $0x768] sm:$0xff]
  %v252 = vld [vmem:[%s0 + $0x770] sm:$0xff]
  %v253 = vld [vmem:[%s0 + $0x778] sm:$0xff]
  %v254 = vld [vmem:[%s0 + $0x780] sm:$0xff]
  %v255 = vld [vmem:[%s0 + $0x788] sm:$0xff]
  %v256 = vld [vmem:[%s0 + $0x790] sm:$0xff]
  %v257 = vld [vmem:[%s0 + $0x798] sm:$0xff]
  %v258 = vld [vmem:[%s0 + $0x7a0] sm:$0xff]
  %v259 = vld [vmem:[%s0 + $0x7a8] sm:$0xff]
  %v260 = vld [vmem:[%s0 + $0x7b0] sm:$0xff]
  %v261 = vld [vmem:[%s0 + $0x7b8] sm:$0xff]
  %v262 = vld [vmem:[%s0 + $0x7c0] sm:$0xff]
  %v263 = vld [vmem:[%s0 + $0x7c8] sm:$0xff]
  %v264 = vld [vmem:[%s0 + $0x7d0] sm:$0xff]
  %v265 = vld [vmem:[%s0 + $0x7d8] sm:$0xff]
  %v266 = vld [vmem:[%s0 + $0x7e0] sm:$0xff]
  %v267 = vld [vmem:[%s0 + $0x7e8] sm:$0xff]
  %v268 = vld [vmem:[%s0 + $0x7f0] sm:$0xff]
  %v269 = vld [vmem:[%s0 + $0x7f8] sm:$0xff]
  %v270 = vld [vmem:[%s0 + $0x800] sm:$0xff]
  %v271 = vld [vmem:[%s0 + $0x808] sm:$0xff]
  %v272 = vld [vmem:[%s0 + $0x810] sm:$0xff]
  %v273 = vld [vmem:[%s0 + $0x818] sm:$0xff]
  %v274 = vld [vmem:[%s0 + $0x820] sm:$0xff]
  %v275 = vld [vmem:[%s0 + $0x828] sm:$0xff]
  %v276 = vld [vmem:[%s0 + $0x830] sm:$0xff]
  %v277 = vld [vmem:[%s0 + $0x838] sm:$0xff]
  %v278 = vld [vmem:[%s0 + $0x840] sm:$0xff]
  %v279 = vld [vmem:[%s0 + $0x848] sm:$0xff]
  %v280 = vld [vmem:[%s0 + $0x850] sm:$0xff]
  %v281 = vld [vmem:[%s0 + $0x858] sm:$0xff]
  %v282 = vld [vmem:[%s0 + $0x860] sm:$0xff]
  %v283 = vld [vmem:[%s0 + $0x868] sm:$0xff]
  %v284 = vld [vmem:[%s0 + $0x870] sm:$0xff]
  %v285 = vld [vmem:[%s0 + $0x878] sm:$0xff]
  %v286 = vld [vmem:[%s0 + $0x880] sm:$0xff]
  %v287 = vld [vmem:[%s0 + $0x888] sm:$0xff]
  %v288 = vld [vmem:[%s0 + $0x890] sm:$0xff]
  %v289 = vld [vmem:[%s0 + $0x898] sm:$0xff]
  %v290 = vld [vmem:[%s0 + $0x8a0] sm:$0xff]
  %v291 = vld [vmem:[%s0 + $0x8a8] sm:$0xff]
  %v292 = vld [vmem:[%s0 + $0x8b0] sm:$0xff]
  %v293 = vld [vmem:[%s0 + $0x8b8] sm:$0xff]
  %v294 = vld [vmem:[%s0 + $0x8c0] sm:$0xff]
  %v295 = vld [vmem:[%s0 + $0x8c8] sm:$0xff]
  %v296 = vld [vmem:[%s0 + $0x8d0] sm:$0xff]
  %v297 = vld [vmem:[%s0 + $0x8d8] sm:$0xff]
  %v298 = vld [vmem:[%s0 + $0x8e0] sm:$0xff]
  %v299 = vld [vmem:[%s0 + $0x8e8] sm:$0xff]
  %v300 = vld [vmem:[%s0 + $0x8f0] sm:$0xff]
  %v301 = vld [vmem:[%s0 + $0x8f8] sm:$0xff]
  %v302 = vld [vmem:[%s1] sm:$0xff]
  %v303 = vld [vmem:[%s1 + $0x8] sm:$0xff]
  %v304 = vld [vmem:[%s1 + $0x10] sm:$0xff]
  %v305 = vld [vmem:[%s1 + $0x18] sm:$0xff]
  %v306 = vld [vmem:[%s1 + $0x20] sm:$0xff]
  %v307 = vld [vmem:[%s1 + $0x28] sm:$0xff]
  %v308 = vld [vmem:[%s1 + $0x30] sm:$0xff]
  %v309 = vld [vmem:[%s1 + $0x38] sm:$0xff]
  %v310 = vld [vmem:[%s1 + $0x40] sm:$0xff]
  %v311 = vld [vmem:[%s1 + $0x48] sm:$0xff]
  %v312 = vld [vmem:[%s1 + $0x50] sm:$0xff]
  %v313 = vld [vmem:[%s1 + $0x58] sm:$0xff]
  %v314 = vld [vmem:[%s1 + $0x60] sm:$0xff]
  %v315 = vld [vmem:[%s1 + $0x68] sm:$0xff]
  %v316 = vld [vmem:[%s1 + $0x70] sm:$0xff]
  %v317 = vld [vmem:[%s1 + $0x78] sm:$0xff]
  %v318 = vld [vmem:[%s1 + $0x80] sm:$0xff]
  %v319 = vld [vmem:[%s1 + $0x88] sm:$0xff]
  %v320 = vld [vmem:[%s1 + $0x90] sm:$0xff]
  %v321 = vld [vmem:[%s1 + $0x98] sm:$0xff]
  %v322 = vld [vmem:[%s1 + $0xa0] sm:$0xff]
  %v323 = vld [vmem:[%s1 + $0xa8] sm:$0xff]
  %v324 = vld [vmem:[%s1 + $0xb0] sm:$0xff]
  %v325 = vld [vmem:[%s1 + $0xb8] sm:$0xff]
  %v326 = vld [vmem:[%s1 + $0xc0] sm:$0xff]
  %v327 = vld [vmem:[%s1 + $0xc8] sm:$0xff]
  %v328 = vld [vmem:[%s1 + $0xd0] sm:$0xff]
  %v329 = vld [vmem:[%s1 + $0xd8] sm:$0xff]
  %v330 = vld [vmem:[%s1 + $0xe0] sm:$0xff]
  %v331 = vld [vmem:[%s1 + $0xe8] sm:$0xff]
  %v332 = vld [vmem:[%s1 + $0xf0] sm:$0xff]
  %v333 = vld [vmem:[%s1 + $0xf8] sm:$0xff]
  %v334 = vld [vmem:[%s1 + $0x100] sm:$0xff]
  %v335 = vld [vmem:[%s1 + $0x108] sm:$0xff]
  %v336 = vld [vmem:[%s1 + $0x110] sm:$0xff]
  %v337 = vld [vmem:[%s1 + $0x118] sm:$0xff]
  %v338 = vld [vmem:[%s1 + $0x120] sm:$0xff]
  %v339 = vld [vmem:[%s1 + $0x128] sm:$0xff]
  %v340 = vld [vmem:[%s1 + $0x130] sm:$0xff]
  %v341 = vld [vmem:[%s1 + $0x138] sm:$0xff]
  %v342 = vld [vmem:[%s1 + $0x140] sm:$0xff]
  %v343 = vld [vmem:[%s1 + $0x148] sm:$0xff]
  %v344 = vld [vmem:[%s1 + $0x150] sm:$0xff]
  %v345 = vld [vmem:[%s1 + $0x158] sm:$0xff]
  %v346 = vld [vmem:[%s1 + $0x160] sm:$0xff]
  %v347 = vld [vmem:[%s1 + $0x168] sm:$0xff]
  %v348 = vld [vmem:[%s1 + $0x170] sm:$0xff]
  %v349 = vld [vmem:[%s1 + $0x178] sm:$0xff]
  %350 = vmatprep.subr.mxu0 0.0
  %351 = vmatpush1.msra.mxu0 %v302
  %352 = vmatprep.subr.mxu0 0.0
  %353 = vmatpush1.msra.mxu0 %v303
  %354 = vmatprep.subr.mxu0 0.0
  %355 = vmatpush1.msra.mxu0 %v304
  %356 = vmatprep.subr.mxu0 0.0
  %357 = vmatpush1.msra.mxu0 %v305
  %358 = vmatprep.subr.mxu0 0.0
  %359 = vmatpush1.msra.mxu0 %v306
  %360 = vmatprep.subr.mxu0 0.0
  %361 = vmatpush1.msra.mxu0 %v307
  %362 = vmatprep.subr.mxu0 0.0
  %363 = vmatpush1.msra.mxu0 %v308
  %364 = vmatprep.subr.mxu0 0.0
  %365 = vmatpush1.msra.mxu0 %v309
  %366 = vmatprep.subr.mxu0 0.0
  %367 = vmatpush1.msra.mxu0 %v310
  %368 = vmatprep.subr.mxu0 0.0
  %369 = vmatpush1.msra.mxu0 %v311
  %370 = vmatprep.subr.mxu0 0.0
  %371 = vmatpush1.msra.mxu0 %v312
  %372 = vmatprep.subr.mxu0 0.0
  %373 = vmatpush1.msra.mxu0 %v313
  %374 = vmatprep.subr.mxu0 0.0
  %375 = vmatpush1.msra.mxu0 %v314
  %376 = vmatprep.subr.mxu0 0.0
  %377 = vmatpush1.msra.mxu0 %v315
  %378 = vmatprep.subr.mxu0 0.0
  %379 = vmatpush1.msra.mxu0 %v316
  %380 = vmatprep.subr.mxu0 0.0
  %381 = vmatpush1.msra.mxu0 %v317
  %382 = vmatprep.subr.mxu0 0.0
  %383 = vmatpush1.msra.mxu0 %v318
  %384 = vmatprep.subr.mxu0 0.0
  %385 = vmatpush1.msra.mxu0 %v319
  %386 = vmatprep.subr.mxu0 0.0
  %387 = vmatpush1.msra.mxu0 %v320
  %388 = vmatprep.subr.mxu0 0.0
  %389 = vmatpush1.msra.mxu0 %v321
  %390 = vmatprep.subr.mxu0 0.0
  %391 = vmatpush1.msra.mxu0 %v322
  %392 = vmatprep.subr.mxu0 0.0
  %393 = vmatpush1.msra.mxu0 %v323
  %394 = vmatprep.subr.mxu0 0.0
  %395 = vmatpush1.msra.mxu0 %v324
  %396 = vmatprep.subr.mxu0 0.0
  %397 = vmatpush1.msra.mxu0 %v325
  %398 = vmatprep.subr.mxu0 0.0
  %399 = vmatpush1.msra.mxu0 %v326
  %400 = vmatprep.subr.mxu0 0.0
  %401 = vmatpush1.msra.mxu0 %v327
  %402 = vmatprep.subr.mxu0 0.0
  %403 = vmatpush1.msra.mxu0 %v328
  %404 = vmatprep.subr.mxu0 0.0
  %405 = vmatpush1.msra.mxu0 %v329
  %406 = vmatprep.subr.mxu0 0.0
  %407 = vmatpush1.msra.mxu0 %v330
  %408 = vmatprep.subr.mxu0 0.0
  %409 = vmatpush1.msra.mxu0 %v331
  %410 = vmatprep.subr.mxu0 0.0
  %411 = vmatpush1.msra.mxu0 %v332
  %412 = vmatprep.subr.mxu0 0.0
  %413 = vmatpush1.msra.mxu0 %v333
  %414 = vmatprep.mubr.f32.mxu0 %v15
  %415 = vmatmul.mubr.f32.gmra.mrb[0].mxu0 %v14
  %v416 = vpop.f32.mrb[0].mxu0
  %v417 = vadd.f32 0.0, %v416
  %v418 = vpop.f32.mrb[0].mxu0
  %419 = vmatprep.mubr.f32.mxu0 %v18
  %420 = vmatmul.mubr.f32.gmra.mrb[0].mxu0 %v17
  %v421 = vpop.f32.mrb[0].mxu0
  %v422 = vadd.f32 0.0, %v421
  %v423 = vpop.f32.mrb[0].mxu0
  %424 = vmatprep.mubr.f32.mxu0 %v21
  %425 = vmatmul.mubr.f32.gmra.mrb[0].mxu0 %v20
  %v426 = vpop.f32.mrb[0].mxu0
  %v427 = vadd.f32 0.0, %v426
  %v428 = vpop.f32.mrb[0].mxu0
  %429 = vmatprep.mubr.f32.mxu0 %v24
  %430 = vmatmul.mubr.f32.gmra.mrb[0].mxu0 %v23
  %v431 = vpop.f32.mrb[0].mxu0
  %v432 = vadd.f32 0.0, %v431
  %v433 = vpop.f32.mrb[0].mxu0
  %434 = vmatprep.mubr.f32.mxu0 %v27
  %435 = vmatmul.mubr.f32.gmra.mrb[0].mxu0 %v26
  %v436 = vpop.f32.mrb[0].mxu0
  %v437 = vadd.f32 0.0, %v436
  %v438 = vpop.f32.mrb[0].mxu0
  %439 = vmatprep.mubr.f32.mxu0 %v30
  %440 = vmatmul.mubr.f32.gmra.mrb[0].mxu0 %v29
  %v441 = vpop.f32.mrb[0].mxu0
  %v442 = vadd.f32 0.0, %v441
  %v443 = vpop.f32.mrb[0].mxu0
  %444 = vmatprep.mubr.f32.mxu0 %v33
  %445 = vmatmul.mubr.f32.gmra.mrb[0].mxu0 %v32
  %v446 = vpop.f32.mrb[0].mxu0
  %v447 = vadd.f32 0.0, %v446
  %v448 = vpop.f32.mrb[0].mxu0
  %449 = vmatprep.mubr.f32.mxu0 %v36
  %450 = vmatmul.mubr.f32.gmra.mrb[0].mxu0 %v35
  %v451 = vpop.f32.mrb[0].mxu0
  %v452 = vadd.f32 0.0, %v451
  %v453 = vpop.f32.mrb[0].mxu0
  %454 = vmatprep.mubr.f32.mxu0 %v39
  %455 = vmatmul.mubr.f32.gmra.mrb[0].mxu0 %v38
  %v456 = vpop.f32.mrb[0].mxu0
  %v457 = vadd.f32 0.0, %v456
  %v458 = vpop.f32.mrb[0].mxu0
  %459 = vmatprep.mubr.f32.mxu0 %v42
  %460 = vmatmul.mubr.f32.gmra.mrb[0].mxu0 %v41
  %v461 = vpop.f32.mrb[0].mxu0
  %v462 = vadd.f32 0.0, %v461
  %v463 = vpop.f32.mrb[0].mxu0
  %464 = vmatprep.mubr.f32.mxu0 %v45
  %465 = vmatmul.mubr.f32.gmra.mrb[0].mxu0 %v44
  %v466 = vpop.f32.mrb[0].mxu0
  %v467 = vadd.f32 0.0, %v466
  %v468 = vpop.f32.mrb[0].mxu0
  %469 = vmatprep.mubr.f32.mxu0 %v48
  %470 = vmatmul.mubr.f32.gmra.mrb[0].mxu0 %v47
  %v471 = vpop.f32.mrb[0].mxu0
  %v472 = vadd.f32 0.0, %v471
  %v473 = vpop.f32.mrb[0].mxu0
  %474 = vmatprep.mubr.f32.mxu0 %v51
  %475 = vmatmul.mubr.f32.gmra.mrb[0].mxu0 %v50
  %v476 = vpop.f32.mrb[0].mxu0
  %v477 = vadd.f32 0.0, %v476
  %v478 = vpop.f32.mrb[0].mxu0
  %479 = vmatprep.mubr.f32.mxu0 %v54
  %480 = vmatmul.mubr.f32.gmra.mrb[0].mxu0 %v53
  %v481 = vpop.f32.mrb[0].mxu0
  %v482 = vadd.f32 0.0, %v481
  %v483 = vpop.f32.mrb[0].mxu0
  %484 = vmatprep.mubr.f32.mxu0 %v57
  %485 = vmatmul.mubr.f32.gmra.mrb[0].mxu0 %v56
  %v486 = vpop.f32.mrb[0].mxu0
  %v487 = vadd.f32 0.0, %v486
  %v488 = vpop.f32.mrb[0].mxu0
  %489 = vmatprep.mubr.f32.mxu0 %v60
  %490 = vmatmul.mubr.f32.gmra.mrb[0].mxu0 %v59
  %v491 = vpop.f32.mrb[0].mxu0
  %v492 = vadd.f32 0.0, %v491
  %v493 = vpop.f32.mrb[0].mxu0
  %494 = vmatprep.mubr.f32.mxu0 %v63
  %495 = vmatmul.mubr.f32.gmra.mrb[0].mxu0 %v62
  %v496 = vpop.f32.mrb[0].mxu0
  %v497 = vadd.f32 0.0, %v496
  %v498 = vpop.f32.mrb[0].mxu0
  %499 = vmatprep.mubr.f32.mxu0 %v66
  %500 = vmatmul.mubr.f32.gmra.mrb[0].mxu0 %v65
  %v501 = vpop.f32.mrb[0].mxu0
  %v502 = vadd.f32 0.0, %v501
  %v503 = vpop.f32.mrb[0].mxu0
  %504 = vmatprep.mubr.f32.mxu0 %v69
  %505 = vmatmul.mubr.f32.gmra.mrb[0].mxu0 %v68
  %v506 = vpop.f32.mrb[0].mxu0
  %v507 = vadd.f32 0.0, %v506
  %v508 = vpop.f32.mrb[0].mxu0
  %509 = vmatprep.mubr.f32.mxu0 %v72
  %510 = vmatmul.mubr.f32.gmra.mrb[0].mxu0 %v71
  %v511 = vpop.f32.mrb[0].mxu0
  %v512 = vadd.f32 0.0, %v511
  %v513 = vpop.f32.mrb[0].mxu0
  %514 = vmatprep.mubr.f32.mxu0 %v75
  %515 = vmatmul.mubr.f32.gmra.mrb[0].mxu0 %v74
  %v516 = vpop.f32.mrb[0].mxu0
  %v517 = vadd.f32 0.0, %v516
  %v518 = vpop.f32.mrb[0].mxu0
  %519 = vmatprep.mubr.f32.mxu0 %v78
  %520 = vmatmul.mubr.f32.gmra.mrb[0].mxu0 %v77
  %v521 = vpop.f32.mrb[0].mxu0
  %v522 = vadd.f32 0.0, %v521
  %v523 = vpop.f32.mrb[0].mxu0
  %524 = vmatprep.mubr.f32.mxu0 %v81
  %525 = vmatmul.mubr.f32.gmra.mrb[0].mxu0 %v80
  %v526 = vpop.f32.mrb[0].mxu0
  %v527 = vadd.f32 0.0, %v526
  %v528 = vpop.f32.mrb[0].mxu0
  %529 = vmatprep.mubr.f32.mxu0 %v84
  %530 = vmatmul.mubr.f32.gmra.mrb[0].mxu0 %v83
  %v531 = vpop.f32.mrb[0].mxu0
  %v532 = vadd.f32 0.0, %v531
  %v533 = vpop.f32.mrb[0].mxu0
  %534 = vmatprep.mubr.f32.mxu0 %v87
  %535 = vmatmul.mubr.f32.gmra.mrb[0].mxu0 %v86
  %v536 = vpop.f32.mrb[0].mxu0
  %v537 = vadd.f32 0.0, %v536
  %v538 = vpop.f32.mrb[0].mxu0
  %539 = vmatprep.mubr.f32.mxu0 %v90
  %540 = vmatmul.mubr.f32.gmra.mrb[0].mxu0 %v89
  %v541 = vpop.f32.mrb[0].mxu0
  %v542 = vadd.f32 0.0, %v541
  %v543 = vpop.f32.mrb[0].mxu0
  %544 = vmatprep.mubr.f32.mxu0 %v93
  %545 = vmatmul.mubr.f32.gmra.mrb[0].mxu0 %v92
  %v546 = vpop.f32.mrb[0].mxu0
  %v547 = vadd.f32 0.0, %v546
  %v548 = vpop.f32.mrb[0].mxu0
  %549 = vmatprep.mubr.f32.mxu0 %v96
  %550 = vmatmul.mubr.f32.gmra.mrb[0].mxu0 %v95
  %v551 = vpop.f32.mrb[0].mxu0
  %v552 = vadd.f32 0.0, %v551
  %v553 = vpop.f32.mrb[0].mxu0
  %554 = vmatprep.mubr.f32.mxu0 %v99
  %555 = vmatmul.mubr.f32.gmra.mrb[0].mxu0 %v98
  %v556 = vpop.f32.mrb[0].mxu0
  %v557 = vadd.f32 0.0, %v556
  %v558 = vpop.f32.mrb[0].mxu0
  %559 = vmatprep.mubr.f32.mxu0 %v102
  %560 = vmatmul.mubr.f32.gmra.mrb[0].mxu0 %v101
  %v561 = vpop.f32.mrb[0].mxu0
  %v562 = vadd.f32 0.0, %v561
  %v563 = vpop.f32.mrb[0].mxu0
  %564 = vmatprep.mubr.f32.mxu0 %v105
  %565 = vmatmul.mubr.f32.gmra.mrb[0].mxu0 %v104
  %v566 = vpop.f32.mrb[0].mxu0
  %v567 = vadd.f32 0.0, %v566
  %v568 = vpop.f32.mrb[0].mxu0
  %569 = vmatprep.mubr.f32.mxu0 %v108
  %570 = vmatmul.mubr.f32.gmra.mrb[0].mxu0 %v107
  %v571 = vpop.f32.mrb[0].mxu0
  %v572 = vadd.f32 0.0, %v571
  %v573 = vpop.f32.mrb[0].mxu0
  %574 = vmatprep.mubr.f32.mxu0 %v111
  %575 = vmatmul.mubr.f32.gmra.mrb[0].mxu0 %v110
  %v576 = vpop.f32.mrb[0].mxu0
  %v577 = vadd.f32 0.0, %v576
  %v578 = vpop.f32.mrb[0].mxu0
  %579 = vmatprep.mubr.f32.mxu0 %v114
  %580 = vmatmul.mubr.f32.gmra.mrb[0].mxu0 %v113
  %v581 = vpop.f32.mrb[0].mxu0
  %v582 = vadd.f32 0.0, %v581
  %v583 = vpop.f32.mrb[0].mxu0
  %584 = vmatprep.mubr.f32.mxu0 %v117
  %585 = vmatmul.mubr.f32.gmra.mrb[0].mxu0 %v116
  %v586 = vpop.f32.mrb[0].mxu0
  %v587 = vadd.f32 0.0, %v586
  %v588 = vpop.f32.mrb[0].mxu0
  %589 = vmatprep.mubr.f32.mxu0 %v120
  %590 = vmatmul.mubr.f32.gmra.mrb[0].mxu0 %v119
  %v591 = vpop.f32.mrb[0].mxu0
  %v592 = vadd.f32 0.0, %v591
  %v593 = vpop.f32.mrb[0].mxu0
  %594 = vmatprep.mubr.f32.mxu0 %v123
  %595 = vmatmul.mubr.f32.gmra.mrb[0].mxu0 %v122
  %v596 = vpop.f32.mrb[0].mxu0
  %v597 = vadd.f32 0.0, %v596
  %v598 = vpop.f32.mrb[0].mxu0
  %599 = vmatprep.mubr.f32.mxu0 %v126
  %600 = vmatmul.mubr.f32.gmra.mrb[0].mxu0 %v125
  %v601 = vpop.f32.mrb[0].mxu0
  %v602 = vadd.f32 0.0, %v601
  %v603 = vpop.f32.mrb[0].mxu0
  %604 = vmatprep.mubr.f32.mxu0 %v129
  %605 = vmatmul.mubr.f32.gmra.mrb[0].mxu0 %v128
  %v606 = vpop.f32.mrb[0].mxu0
  %v607 = vadd.f32 0.0, %v606
  %v608 = vpop.f32.mrb[0].mxu0
  %609 = vmatprep.mubr.f32.mxu0 %v132
  %610 = vmatmul.mubr.f32.gmra.mrb[0].mxu0 %v131
  %v611 = vpop.f32.mrb[0].mxu0
  %v612 = vadd.f32 0.0, %v611
  %v613 = vpop.f32.mrb[0].mxu0
  %614 = vmatprep.mubr.f32.mxu0 %v135
  %615 = vmatmul.mubr.f32.gmra.mrb[0].mxu0 %v134
  %v616 = vpop.f32.mrb[0].mxu0
  %v617 = vadd.f32 0.0, %v616
  %v618 = vpop.f32.mrb[0].mxu0
  %619 = vmatprep.mubr.f32.mxu0 %v138
  %620 = vmatmul.mubr.f32.gmra.mrb[0].mxu0 %v137
  %v621 = vpop.f32.mrb[0].mxu0
  %v622 = vadd.f32 0.0, %v621
  %v623 = vpop.f32.mrb[0].mxu0
  %624 = vmatprep.mubr.f32.mxu0 %v141
  %625 = vmatmul.mubr.f32.gmra.mrb[0].mxu0 %v140
  %v626 = vpop.f32.mrb[0].mxu0
  %v627 = vadd.f32 0.0, %v626
  %v628 = vpop.f32.mrb[0].mxu0
  %629 = vmatprep.mubr.f32.mxu0 %v144
  %630 = vmatmul.mubr.f32.gmra.mrb[0].mxu0 %v143
  %v631 = vpop.f32.mrb[0].mxu0
  %v632 = vadd.f32 0.0, %v631
  %v633 = vpop.f32.mrb[0].mxu0
  %634 = vmatprep.mubr.f32.mxu0 %v147
  %635 = vmatmul.mubr.f32.gmra.mrb[0].mxu0 %v146
  %v636 = vpop.f32.mrb[0].mxu0
  %v637 = vadd.f32 0.0, %v636
  %v638 = vpop.f32.mrb[0].mxu0
  %639 = vmatprep.mubr.f32.mxu0 %v150
  %640 = vmatmul.mubr.f32.gmra.mrb[0].mxu0 %v149
  %v641 = vpop.f32.mrb[0].mxu0
  %v642 = vadd.f32 0.0, %v641
  %v643 = vpop.f32.mrb[0].mxu0
  %644 = vmatprep.mubr.f32.mxu0 %v153
  %645 = vmatmul.mubr.f32.gmra.mrb[0].mxu0 %v152
  %v646 = vpop.f32.mrb[0].mxu0
  %v647 = vadd.f32 0.0, %v646
  %v648 = vpop.f32.mrb[0].mxu0
  %649 = vmatprep.mubr.f32.mxu0 %v156
  %650 = vmatmul.mubr.f32.gmra.mrb[0].mxu0 %v155
  %v651 = vpop.f32.mrb[0].mxu0
  %v652 = vadd.f32 0.0, %v651
  %v653 = vpop.f32.mrb[0].mxu0
  %654 = vmatprep.mubr.f32.mxu0 %v159
  %655 = vmatmul.mubr.f32.gmra.mrb[0].mxu0 %v158
  %v656 = vpop.f32.mrb[0].mxu0
  %v657 = vadd.f32 0.0, %v656
  %v658 = vpop.f32.mrb[0].mxu0
  %659 = vmatprep.mubr.f32.mxu0 %v162
  %660 = vmatmul.mubr.f32.gmra.mrb[0].mxu0 %v161
  %v661 = vpop.f32.mrb[0].mxu0
  %v662 = vadd.f32 0.0, %v661
  %v663 = vpop.f32.mrb[0].mxu0
  %664 = vmatprep.mubr.f32.mxu0 %v165
  %665 = vmatmul.mubr.f32.gmra.mrb[0].mxu0 %v164
  %v666 = vpop.f32.mrb[0].mxu0
  %v667 = vadd.f32 0.0, %v666
  %v668 = vpop.f32.mrb[0].mxu0
  %669 = vmatprep.mubr.f32.mxu0 %v168
  %670 = vmatmul.mubr.f32.gmra.mrb[0].mxu0 %v167
  %v671 = vpop.f32.mrb[0].mxu0
  %v672 = vadd.f32 0.0, %v671
  %v673 = vpop.f32.mrb[0].mxu0
  %674 = vmatprep.mubr.f32.mxu0 %v171
  %675 = vmatmul.mubr.f32.gmra.mrb[0].mxu0 %v170
  %v676 = vpop.f32.mrb[0].mxu0
  %v677 = vadd.f32 0.0, %v676
  %v678 = vpop.f32.mrb[0].mxu0
  %679 = vmatprep.mubr.f32.mxu0 %v174
  %680 = vmatmul.mubr.f32.gmra.mrb[0].mxu0 %v173
  %v681 = vpop.f32.mrb[0].mxu0
  %v682 = vadd.f32 0.0, %v681
  %v683 = vpop.f32.mrb[0].mxu0
  %684 = vmatprep.mubr.f32.mxu0 %v177
  %685 = vmatmul.mubr.f32.gmra.mrb[0].mxu0 %v176
  %v686 = vpop.f32.mrb[0].mxu0
  %v687 = vadd.f32 0.0, %v686
  %v688 = vpop.f32.mrb[0].mxu0
  %689 = vmatprep.mubr.f32.mxu0 %v180
  %690 = vmatmul.mubr.f32.gmra.mrb[0].mxu0 %v179
  %v691 = vpop.f32.mrb[0].mxu0
  %v692 = vadd.f32 0.0, %v691
  %v693 = vpop.f32.mrb[0].mxu0
  %694 = vmatprep.mubr.f32.mxu0 %v183
  %695 = vmatmul.mubr.f32.gmra.mrb[0].mxu0 %v182
  %v696 = vpop.f32.mrb[0].mxu0
  %v697 = vadd.f32 0.0, %v696
  %v698 = vpop.f32.mrb[0].mxu0
  %699 = vmatprep.mubr.f32.mxu0 %v186
  %700 = vmatmul.mubr.f32.gmra.mrb[0].mxu0 %v185
  %v701 = vpop.f32.mrb[0].mxu0
  %v702 = vadd.f32 0.0, %v701
  %v703 = vpop.f32.mrb[0].mxu0
  %704 = vmatprep.mubr.f32.mxu0 %v189
  %705 = vmatmul.mubr.f32.gmra.mrb[0].mxu0 %v188
  %v706 = vpop.f32.mrb[0].mxu0
  %v707 = vadd.f32 0.0, %v706
  %v708 = vpop.f32.mrb[0].mxu0
  %709 = vmatprep.mubr.f32.mxu0 %v192
  %710 = vmatmul.mubr.f32.gmra.mrb[0].mxu0 %v191
  %v711 = vpop.f32.mrb[0].mxu0
  %v712 = vadd.f32 0.0, %v711
  %v713 = vpop.f32.mrb[0].mxu0
  %714 = vmatprep.mubr.f32.mxu0 %v195
  %715 = vmatmul.mubr.f32.gmra.mrb[0].mxu0 %v194
  %v716 = vpop.f32.mrb[0].mxu0
  %v717 = vadd.f32 0.0, %v716
  %v718 = vpop.f32.mrb[0].mxu0
  %719 = vmatprep.mubr.f32.mxu0 %v198
  %720 = vmatmul.mubr.f32.gmra.mrb[0].mxu0 %v197
  %v721 = vpop.f32.mrb[0].mxu0
  %v722 = vadd.f32 0.0, %v721
  %v723 = vpop.f32.mrb[0].mxu0
  %724 = vmatprep.mubr.f32.mxu0 %v201
  %725 = vmatmul.mubr.f32.gmra.mrb[0].mxu0 %v200
  %v726 = vpop.f32.mrb[0].mxu0
  %v727 = vadd.f32 0.0, %v726
  %v728 = vpop.f32.mrb[0].mxu0
  %729 = vmatprep.mubr.f32.mxu0 %v204
  %730 = vmatmul.mubr.f32.gmra.mrb[0].mxu0 %v203
  %v731 = vpop.f32.mrb[0].mxu0
  %v732 = vadd.f32 0.0, %v731
  %v733 = vpop.f32.mrb[0].mxu0
  %734 = vmatprep.mubr.f32.mxu0 %v207
  %735 = vmatmul.mubr.f32.gmra.mrb[0].mxu0 %v206
  %v736 = vpop.f32.mrb[0].mxu0
  %v737 = vadd.f32 0.0, %v736
  %v738 = vpop.f32.mrb[0].mxu0
  %739 = vmatprep.mubr.f32.mxu0 %v210
  %740 = vmatmul.mubr.f32.gmra.mrb[0].mxu0 %v209
  %v741 = vpop.f32.mrb[0].mxu0
  %v742 = vadd.f32 0.0, %v741
  %v743 = vpop.f32.mrb[0].mxu0
  %744 = vmatprep.mubr.f32.mxu0 %v213
  %745 = vmatmul.mubr.f32.gmra.mrb[0].mxu0 %v212
  %v746 = vpop.f32.mrb[0].mxu0
  %v747 = vadd.f32 0.0, %v746
  %v748 = vpop.f32.mrb[0].mxu0
  %749 = vmatprep.mubr.f32.mxu0 %v216
  %750 = vmatmul.mubr.f32.gmra.mrb[0].mxu0 %v215
  %v751 = vpop.f32.mrb[0].mxu0
  %v752 = vadd.f32 0.0, %v751
  %v753 = vpop.f32.mrb[0].mxu0
  %754 = vmatprep.mubr.f32.mxu0 %v219
  %755 = vmatmul.mubr.f32.gmra.mrb[0].mxu0 %v218
  %v756 = vpop.f32.mrb[0].mxu0
  %v757 = vadd.f32 0.0, %v756
  %v758 = vpop.f32.mrb[0].mxu0
  %759 = vmatprep.mubr.f32.mxu0 %v222
  %760 = vmatmul.mubr.f32.gmra.mrb[0].mxu0 %v221
  %v761 = vpop.f32.mrb[0].mxu0
  %v762 = vadd.f32 0.0, %v761
  %v763 = vpop.f32.mrb[0].mxu0
  %764 = vmatprep.mubr.f32.mxu0 %v225
  %765 = vmatmul.mubr.f32.gmra.mrb[0].mxu0 %v224
  %v766 = vpop.f32.mrb[0].mxu0
  %v767 = vadd.f32 0.0, %v766
  %v768 = vpop.f32.mrb[0].mxu0
  %769 = vmatprep.mubr.f32.mxu0 %v228
  %770 = vmatmul.mubr.f32.gmra.mrb[0].mxu0 %v227
  %v771 = vpop.f32.mrb[0].mxu0
  %v772 = vadd.f32 0.0, %v771
  %v773 = vpop.f32.mrb[0].mxu0
  %774 = vmatprep.mubr.f32.mxu0 %v231
  %775 = vmatmul.mubr.f32.gmra.mrb[0].mxu0 %v230
  %v776 = vpop.f32.mrb[0].mxu0
  %v777 = vadd.f32 0.0, %v776
  %v778 = vpop.f32.mrb[0].mxu0
  %779 = vmatprep.mubr.f32.mxu0 %v234
  %780 = vmatmul.mubr.f32.gmra.mrb[0].mxu0 %v233
  %v781 = vpop.f32.mrb[0].mxu0
  %v782 = vadd.f32 0.0, %v781
  %v783 = vpop.f32.mrb[0].mxu0
  %784 = vmatprep.mubr.f32.mxu0 %v237
  %785 = vmatmul.mubr.f32.gmra.mrb[0].mxu0 %v236
  %v786 = vpop.f32.mrb[0].mxu0
  %v787 = vadd.f32 0.0, %v786
  %v788 = vpop.f32.mrb[0].mxu0
  %789 = vmatprep.mubr.f32.mxu0 %v240
  %790 = vmatmul.mubr.f32.gmra.mrb[0].mxu0 %v239
  %v791 = vpop.f32.mrb[0].mxu0
  %v792 = vadd.f32 0.0, %v791
  %v793 = vpop.f32.mrb[0].mxu0
  %794 = vmatprep.mubr.f32.mxu0 %v243
  %795 = vmatmul.mubr.f32.gmra.mrb[0].mxu0 %v242
  %v796 = vpop.f32.mrb[0].mxu0
  %v797 = vadd.f32 0.0, %v796
  %v798 = vpop.f32.mrb[0].mxu0
  %799 = vmatprep.mubr.f32.mxu0 %v246
  %800 = vmatmul.mubr.f32.gmra.mrb[0].mxu0 %v245
  %v801 = vpop.f32.mrb[0].mxu0
  %v802 = vadd.f32 0.0, %v801
  %v803 = vpop.f32.mrb[0].mxu0
  %804 = vmatprep.mubr.f32.mxu0 %v249
  %805 = vmatmul.mubr.f32.gmra.mrb[0].mxu0 %v248
  %v806 = vpop.f32.mrb[0].mxu0
  %v807 = vadd.f32 0.0, %v806
  %v808 = vpop.f32.mrb[0].mxu0
  %809 = vmatprep.mubr.f32.mxu0 %v252
  %810 = vmatmul.mubr.f32.gmra.mrb[0].mxu0 %v251
  %v811 = vpop.f32.mrb[0].mxu0
  %v812 = vadd.f32 0.0, %v811
  %v813 = vpop.f32.mrb[0].mxu0
  %814 = vmatprep.mubr.f32.mxu0 %v255
  %815 = vmatmul.mubr.f32.gmra.mrb[0].mxu0 %v254
  %v816 = vpop.f32.mrb[0].mxu0
  %v817 = vadd.f32 0.0, %v816
  %v818 = vpop.f32.mrb[0].mxu0
  %819 = vmatprep.mubr.f32.mxu0 %v258
  %820 = vmatmul.mubr.f32.gmra.mrb[0].mxu0 %v257
  %v821 = vpop.f32.mrb[0].mxu0
  %v822 = vadd.f32 0.0, %v821
  %v823 = vpop.f32.mrb[0].mxu0
  %824 = vmatprep.mubr.f32.mxu0 %v261
  %825 = vmatmul.mubr.f32.gmra.mrb[0].mxu0 %v260
  %v826 = vpop.f32.mrb[0].mxu0
  %v827 = vadd.f32 0.0, %v826
  %v828 = vpop.f32.mrb[0].mxu0
  %829 = vmatprep.mubr.f32.mxu0 %v264
  %830 = vmatmul.mubr.f32.gmra.mrb[0].mxu0 %v263
  %v831 = vpop.f32.mrb[0].mxu0
  %v832 = vadd.f32 0.0, %v831
  %v833 = vpop.f32.mrb[0].mxu0
  %834 = vmatprep.mubr.f32.mxu0 %v267
  %835 = vmatmul.mubr.f32.gmra.mrb[0].mxu0 %v266
  %v836 = vpop.f32.mrb[0].mxu0
  %v837 = vadd.f32 0.0, %v836
  %v838 = vpop.f32.mrb[0].mxu0
  %839 = vmatprep.mubr.f32.mxu0 %v270
  %840 = vmatmul.mubr.f32.gmra.mrb[0].mxu0 %v269
  %v841 = vpop.f32.mrb[0].mxu0
  %v842 = vadd.f32 0.0, %v841
  %v843 = vpop.f32.mrb[0].mxu0
  %844 = vmatprep.mubr.f32.mxu0 %v273
  %845 = vmatmul.mubr.f32.gmra.mrb[0].mxu0 %v272
  %v846 = vpop.f32.mrb[0].mxu0
  %v847 = vadd.f32 0.0, %v846
  %v848 = vpop.f32.mrb[0].mxu0
  %849 = vmatprep.mubr.f32.mxu0 %v276
  %850 = vmatmul.mubr.f32.gmra.mrb[0].mxu0 %v275
  %v851 = vpop.f32.mrb[0].mxu0
  %v852 = vadd.f32 0.0, %v851
  %v853 = vpop.f32.mrb[0].mxu0
  %854 = vmatprep.mubr.f32.mxu0 %v279
  %855 = vmatmul.mubr.f32.gmra.mrb[0].mxu0 %v278
  %v856 = vpop.f32.mrb[0].mxu0
  %v857 = vadd.f32 0.0, %v856
  %v858 = vpop.f32.mrb[0].mxu0
  %859 = vmatprep.mubr.f32.mxu0 %v282
  %860 = vmatmul.mubr.f32.gmra.mrb[0].mxu0 %v281
  %v861 = vpop.f32.mrb[0].mxu0
  %v862 = vadd.f32 0.0, %v861
  %v863 = vpop.f32.mrb[0].mxu0
  %864 = vmatprep.mubr.f32.mxu0 %v285
  %865 = vmatmul.mubr.f32.gmra.mrb[0].mxu0 %v284
  %v866 = vpop.f32.mrb[0].mxu0
  %v867 = vadd.f32 0.0, %v866
  %v868 = vpop.f32.mrb[0].mxu0
  %869 = vmatprep.mubr.f32.mxu0 %v288
  %870 = vmatmul.mubr.f32.gmra.mrb[0].mxu0 %v287
  %v871 = vpop.f32.mrb[0].mxu0
  %v872 = vadd.f32 0.0, %v871
  %v873 = vpop.f32.mrb[0].mxu0
  %874 = vmatprep.mubr.f32.mxu0 %v291
  %875 = vmatmul.mubr.f32.gmra.mrb[0].mxu0 %v290
  %v876 = vpop.f32.mrb[0].mxu0
  %v877 = vadd.f32 0.0, %v876
  %v878 = vpop.f32.mrb[0].mxu0
  %879 = vmatprep.mubr.f32.mxu0 %v294
  %880 = vmatmul.mubr.f32.gmra.mrb[0].mxu0 %v293
  %v881 = vpop.f32.mrb[0].mxu0
  %v882 = vadd.f32 0.0, %v881
  %v883 = vpop.f32.mrb[0].mxu0
  %884 = vmatprep.mubr.f32.mxu0 %v297
  %885 = vmatmul.mubr.f32.gmra.mrb[0].mxu0 %v296
  %v886 = vpop.f32.mrb[0].mxu0
  %v887 = vadd.f32 0.0, %v886
  %v888 = vpop.f32.mrb[0].mxu0
  %889 = vmatprep.mubr.f32.mxu0 %v300
  %890 = vmatmul.mubr.f32.gmra.mrb[0].mxu0 %v299
  %v891 = vpop.f32.mrb[0].mxu0
  %v892 = vadd.f32 0.0, %v891
  %v893 = vpop.f32.mrb[0].mxu0
  %894 = vdwg.mxu0
  %895 = vmatprep.subr.mxu0 0.0
  %896 = vmatpush1.msra.mxu0 %v334
  %897 = vmatprep.subr.mxu0 0.0
  %898 = vmatpush1.msra.mxu0 %v335
  %899 = vmatprep.subr.mxu0 0.0
  %900 = vmatpush1.msra.mxu0 %v336
  %901 = vmatprep.subr.mxu0 0.0
  %902 = vmatpush1.msra.mxu0 %v337
  %903 = vmatprep.subr.mxu0 0.0
  %904 = vmatpush1.msra.mxu0 %v338
  %905 = vmatprep.subr.mxu0 0.0
  %906 = vmatpush1.msra.mxu0 %v339
  %907 = vmatprep.subr.mxu0 0.0
  %908 = vmatpush1.msra.mxu0 %v340
  %909 = vmatprep.subr.mxu0 0.0
  %910 = vmatpush1.msra.mxu0 %v341
  %911 = vmatprep.subr.mxu0 0.0
  %912 = vmatpush1.msra.mxu0 %v342
  %913 = vmatprep.subr.mxu0 0.0
  %914 = vmatpush1.msra.mxu0 %v343
  %915 = vmatprep.subr.mxu0 0.0
  %916 = vmatpush1.msra.mxu0 %v344
  %917 = vmatprep.subr.mxu0 0.0
  %918 = vmatpush1.msra.mxu0 %v345
  %919 = vmatprep.subr.mxu0 0.0
  %920 = vmatpush1.msra.mxu0 %v346
  %921 = vmatprep.subr.mxu0 0.0
  %922 = vmatpush1.msra.mxu0 %v347
  %923 = vmatprep.subr.mxu0 0.0
  %924 = vmatpush1.msra.mxu0 %v348
  %925 = vmatprep.subr.mxu0 0.0
  %926 = vmatpush1.msra.mxu0 %v349
  %927 = vmatprep.subr.mxu0 0.0
  %928 = vmatpush1.msra.mxu0 0.0
  %929 = vmatprep.subr.mxu0 0.0
  %930 = vmatpush1.msra.mxu0 0.0
  %931 = vmatprep.subr.mxu0 0.0
  %932 = vmatpush1.msra.mxu0 0.0
  %933 = vmatprep.subr.mxu0 0.0
  %934 = vmatpush1.msra.mxu0 0.0
  %935 = vmatprep.subr.mxu0 0.0
  %936 = vmatpush1.msra.mxu0 0.0
  %937 = vmatprep.subr.mxu0 0.0
  %938 = vmatpush1.msra.mxu0 0.0
  %939 = vmatprep.subr.mxu0 0.0
  %940 = vmatpush1.msra.mxu0 0.0
  %941 = vmatprep.subr.mxu0 0.0
  %942 = vmatpush1.msra.mxu0 0.0
  %943 = vmatprep.subr.mxu0 0.0
  %944 = vmatpush1.msra.mxu0 0.0
  %945 = vmatprep.subr.mxu0 0.0
  %946 = vmatpush1.msra.mxu0 0.0
  %947 = vmatprep.subr.mxu0 0.0
  %948 = vmatpush1.msra.mxu0 0.0
  %949 = vmatprep.subr.mxu0 0.0
  %950 = vmatpush1.msra.mxu0 0.0
  %951 = vmatprep.subr.mxu0 0.0
  %952 = vmatpush1.msra.mxu0 0.0
  %953 = vmatprep.subr.mxu0 0.0
  %954 = vmatpush1.msra.mxu0 0.0
  %955 = vmatprep.subr.mxu0 0.0
  %956 = vmatpush1.msra.mxu0 0.0
  %957 = vmatprep.subr.mxu0 0.0
  %958 = vmatpush1.msra.mxu0 0.0
  %959 = vmatprep.mubr.f32.mxu0 0.0
  %960 = vmatmul.mubr.f32.gmra.mrb[0].mxu0 %v16
  %v961 = vpop.f32.mrb[0].mxu0
  %v962 = vadd.f32 %v417, %v961
  %v963 = vpop.f32.mrb[0].mxu0
  %964 = vmatprep.mubr.f32.mxu0 0.0
  %965 = vmatmul.mubr.f32.gmra.mrb[0].mxu0 %v19
  %v966 = vpop.f32.mrb[0].mxu0
  %v967 = vadd.f32 %v422, %v966
  %v968 = vpop.f32.mrb[0].mxu0
  %969 = vmatprep.mubr.f32.mxu0 0.0
  %970 = vmatmul.mubr.f32.gmra.mrb[0].mxu0 %v22
  %v971 = vpop.f32.mrb[0].mxu0
  %v972 = vadd.f32 %v427, %v971
  %v973 = vpop.f32.mrb[0].mxu0
  %974 = vmatprep.mubr.f32.mxu0 0.0
  %975 = vmatmul.mubr.f32.gmra.mrb[0].mxu0 %v25
  %v976 = vpop.f32.mrb[0].mxu0
  %v977 = vadd.f32 %v432, %v976
  %v978 = vpop.f32.mrb[0].mxu0
  %979 = vmatprep.mubr.f32.mxu0 0.0
  %980 = vmatmul.mubr.f32.gmra.mrb[0].mxu0 %v28
  %v981 = vpop.f32.mrb[0].mxu0
  %v982 = vadd.f32 %v437, %v981
  %v983 = vpop.f32.mrb[0].mxu0
  %984 = vmatprep.mubr.f32.mxu0 0.0
  %985 = vmatmul.mubr.f32.gmra.mrb[0].mxu0 %v31
  %v986 = vpop.f32.mrb[0].mxu0
  %v987 = vadd.f32 %v442, %v986
  %v988 = vpop.f32.mrb[0].mxu0
  %989 = vmatprep.mubr.f32.mxu0 0.0
  %990 = vmatmul.mubr.f32.gmra.mrb[0].mxu0 %v34
  %v991 = vpop.f32.mrb[0].mxu0
  %v992 = vadd.f32 %v447, %v991
  %v993 = vpop.f32.mrb[0].mxu0
  %994 = vmatprep.mubr.f32.mxu0 0.0
  %995 = vmatmul.mubr.f32.gmra.mrb[0].mxu0 %v37
  %v996 = vpop.f32.mrb[0].mxu0
  %v997 = vadd.f32 %v452, %v996
  %v998 = vpop.f32.mrb[0].mxu0
  %999 = vmatprep.mubr.f32.mxu0 0.0
  %1000 = vmatmul.mubr.f32.gmra.mrb[0].mxu0 %v40
  %v1001 = vpop.f32.mrb[0].mxu0
  %v1002 = vadd.f32 %v457, %v1001
  %v1003 = vpop.f32.mrb[0].mxu0
  %1004 = vmatprep.mubr.f32.mxu0 0.0
  %1005 = vmatmul.mubr.f32.gmra.mrb[0].mxu0 %v43
  %v1006 = vpop.f32.mrb[0].mxu0
  %v1007 = vadd.f32 %v462, %v1006
  %v1008 = vpop.f32.mrb[0].mxu0
  %1009 = vmatprep.mubr.f32.mxu0 0.0
  %1010 = vmatmul.mubr.f32.gmra.mrb[0].mxu0 %v46
  %v1011 = vpop.f32.mrb[0].mxu0
  %v1012 = vadd.f32 %v467, %v1011
  %v1013 = vpop.f32.mrb[0].mxu0
  %1014 = vmatprep.mubr.f32.mxu0 0.0
  %1015 = vmatmul.mubr.f32.gmra.mrb[0].mxu0 %v49
  %v1016 = vpop.f32.mrb[0].mxu0
  %v1017 = vadd.f32 %v472, %v1016
  %v1018 = vpop.f32.mrb[0].mxu0
  %1019 = vmatprep.mubr.f32.mxu0 0.0
  %1020 = vmatmul.mubr.f32.gmra.mrb[0].mxu0 %v52
  %v1021 = vpop.f32.mrb[0].mxu0
  %v1022 = vadd.f32 %v477, %v1021
  %v1023 = vpop.f32.mrb[0].mxu0
  %1024 = vmatprep.mubr.f32.mxu0 0.0
  %1025 = vmatmul.mubr.f32.gmra.mrb[0].mxu0 %v55
  %v1026 = vpop.f32.mrb[0].mxu0
  %v1027 = vadd.f32 %v482, %v1026
  %v1028 = vpop.f32.mrb[0].mxu0
  %1029 = vmatprep.mubr.f32.mxu0 0.0
  %1030 = vmatmul.mubr.f32.gmra.mrb[0].mxu0 %v58
  %v1031 = vpop.f32.mrb[0].mxu0
  %v1032 = vadd.f32 %v487, %v1031
  %v1033 = vpop.f32.mrb[0].mxu0
  %1034 = vmatprep.mubr.f32.mxu0 0.0
  %1035 = vmatmul.mubr.f32.gmra.mrb[0].mxu0 %v61
  %v1036 = vpop.f32.mrb[0].mxu0
  %v1037 = vadd.f32 %v492, %v1036
  %v1038 = vpop.f32.mrb[0].mxu0
  %1039 = vmatprep.mubr.f32.mxu0 0.0
  %1040 = vmatmul.mubr.f32.gmra.mrb[0].mxu0 %v64
  %v1041 = vpop.f32.mrb[0].mxu0
  %v1042 = vadd.f32 %v497, %v1041
  %v1043 = vpop.f32.mrb[0].mxu0
  %1044 = vmatprep.mubr.f32.mxu0 0.0
  %1045 = vmatmul.mubr.f32.gmra.mrb[0].mxu0 %v67
  %v1046 = vpop.f32.mrb[0].mxu0
  %v1047 = vadd.f32 %v502, %v1046
  %v1048 = vpop.f32.mrb[0].mxu0
  %1049 = vmatprep.mubr.f32.mxu0 0.0
  %1050 = vmatmul.mubr.f32.gmra.mrb[0].mxu0 %v70
  %v1051 = vpop.f32.mrb[0].mxu0
  %v1052 = vadd.f32 %v507, %v1051
  %v1053 = vpop.f32.mrb[0].mxu0
  %1054 = vmatprep.mubr.f32.mxu0 0.0
  %1055 = vmatmul.mubr.f32.gmra.mrb[0].mxu0 %v73
  %v1056 = vpop.f32.mrb[0].mxu0
  %v1057 = vadd.f32 %v512, %v1056
  %v1058 = vpop.f32.mrb[0].mxu0
  %1059 = vmatprep.mubr.f32.mxu0 0.0
  %1060 = vmatmul.mubr.f32.gmra.mrb[0].mxu0 %v76
  %v1061 = vpop.f32.mrb[0].mxu0
  %v1062 = vadd.f32 %v517, %v1061
  %v1063 = vpop.f32.mrb[0].mxu0
  %1064 = vmatprep.mubr.f32.mxu0 0.0
  %1065 = vmatmul.mubr.f32.gmra.mrb[0].mxu0 %v79
  %v1066 = vpop.f32.mrb[0].mxu0
  %v1067 = vadd.f32 %v522, %v1066
  %v1068 = vpop.f32.mrb[0].mxu0
  %1069 = vmatprep.mubr.f32.mxu0 0.0
  %1070 = vmatmul.mubr.f32.gmra.mrb[0].mxu0 %v82
  %v1071 = vpop.f32.mrb[0].mxu0
  %v1072 = vadd.f32 %v527, %v1071
  %v1073 = vpop.f32.mrb[0].mxu0
  %1074 = vmatprep.mubr.f32.mxu0 0.0
  %1075 = vmatmul.mubr.f32.gmra.mrb[0].mxu0 %v85
  %v1076 = vpop.f32.mrb[0].mxu0
  %v1077 = vadd.f32 %v532, %v1076
  %v1078 = vpop.f32.mrb[0].mxu0
  %1079 = vmatprep.mubr.f32.mxu0 0.0
  %1080 = vmatmul.mubr.f32.gmra.mrb[0].mxu0 %v88
  %v1081 = vpop.f32.mrb[0].mxu0
  %v1082 = vadd.f32 %v537, %v1081
  %v1083 = vpop.f32.mrb[0].mxu0
  %1084 = vmatprep.mubr.f32.mxu0 0.0
  %1085 = vmatmul.mubr.f32.gmra.mrb[0].mxu0 %v91
  %v1086 = vpop.f32.mrb[0].mxu0
  %v1087 = vadd.f32 %v542, %v1086
  %v1088 = vpop.f32.mrb[0].mxu0
  %1089 = vmatprep.mubr.f32.mxu0 0.0
  %1090 = vmatmul.mubr.f32.gmra.mrb[0].mxu0 %v94
  %v1091 = vpop.f32.mrb[0].mxu0
  %v1092 = vadd.f32 %v547, %v1091
  %v1093 = vpop.f32.mrb[0].mxu0
  %1094 = vmatprep.mubr.f32.mxu0 0.0
  %1095 = vmatmul.mubr.f32.gmra.mrb[0].mxu0 %v97
  %v1096 = vpop.f32.mrb[0].mxu0
  %v1097 = vadd.f32 %v552, %v1096
  %v1098 = vpop.f32.mrb[0].mxu0
  %1099 = vmatprep.mubr.f32.mxu0 0.0
  %1100 = vmatmul.mubr.f32.gmra.mrb[0].mxu0 %v100
  %v1101 = vpop.f32.mrb[0].mxu0
  %v1102 = vadd.f32 %v557, %v1101
  %v1103 = vpop.f32.mrb[0].mxu0
  %1104 = vmatprep.mubr.f32.mxu0 0.0
  %1105 = vmatmul.mubr.f32.gmra.mrb[0].mxu0 %v103
  %v1106 = vpop.f32.mrb[0].mxu0
  %v1107 = vadd.f32 %v562, %v1106
  %v1108 = vpop.f32.mrb[0].mxu0
  %1109 = vmatprep.mubr.f32.mxu0 0.0
  %1110 = vmatmul.mubr.f32.gmra.mrb[0].mxu0 %v106
  %v1111 = vpop.f32.mrb[0].mxu0
  %v1112 = vadd.f32 %v567, %v1111
  %v1113 = vpop.f32.mrb[0].mxu0
  %1114 = vmatprep.mubr.f32.mxu0 0.0
  %1115 = vmatmul.mubr.f32.gmra.mrb[0].mxu0 %v109
  %v1116 = vpop.f32.mrb[0].mxu0
  %v1117 = vadd.f32 %v572, %v1116
  %v1118 = vpop.f32.mrb[0].mxu0
  %1119 = vmatprep.mubr.f32.mxu0 0.0
  %1120 = vmatmul.mubr.f32.gmra.mrb[0].mxu0 %v112
  %v1121 = vpop.f32.mrb[0].mxu0
  %v1122 = vadd.f32 %v577, %v1121
  %v1123 = vpop.f32.mrb[0].mxu0
  %1124 = vmatprep.mubr.f32.mxu0 0.0
  %1125 = vmatmul.mubr.f32.gmra.mrb[0].mxu0 %v115
  %v1126 = vpop.f32.mrb[0].mxu0
  %v1127 = vadd.f32 %v582, %v1126
  %v1128 = vpop.f32.mrb[0].mxu0
  %1129 = vmatprep.mubr.f32.mxu0 0.0
  %1130 = vmatmul.mubr.f32.gmra.mrb[0].mxu0 %v118
  %v1131 = vpop.f32.mrb[0].mxu0
  %v1132 = vadd.f32 %v587, %v1131
  %v1133 = vpop.f32.mrb[0].mxu0
  %1134 = vmatprep.mubr.f32.mxu0 0.0
  %1135 = vmatmul.mubr.f32.gmra.mrb[0].mxu0 %v121
  %v1136 = vpop.f32.mrb[0].mxu0
  %v1137 = vadd.f32 %v592, %v1136
  %v1138 = vpop.f32.mrb[0].mxu0
  %1139 = vmatprep.mubr.f32.mxu0 0.0
  %1140 = vmatmul.mubr.f32.gmra.mrb[0].mxu0 %v124
  %v1141 = vpop.f32.mrb[0].mxu0
  %v1142 = vadd.f32 %v597, %v1141
  %v1143 = vpop.f32.mrb[0].mxu0
  %1144 = vmatprep.mubr.f32.mxu0 0.0
  %1145 = vmatmul.mubr.f32.gmra.mrb[0].mxu0 %v127
  %v1146 = vpop.f32.mrb[0].mxu0
  %v1147 = vadd.f32 %v602, %v1146
  %v1148 = vpop.f32.mrb[0].mxu0
  %1149 = vmatprep.mubr.f32.mxu0 0.0
  %1150 = vmatmul.mubr.f32.gmra.mrb[0].mxu0 %v130
  %v1151 = vpop.f32.mrb[0].mxu0
  %v1152 = vadd.f32 %v607, %v1151
  %v1153 = vpop.f32.mrb[0].mxu0
  %1154 = vmatprep.mubr.f32.mxu0 0.0
  %1155 = vmatmul.mubr.f32.gmra.mrb[0].mxu0 %v133
  %v1156 = vpop.f32.mrb[0].mxu0
  %v1157 = vadd.f32 %v612, %v1156
  %v1158 = vpop.f32.mrb[0].mxu0
  %1159 = vmatprep.mubr.f32.mxu0 0.0
  %1160 = vmatmul.mubr.f32.gmra.mrb[0].mxu0 %v136
  %v1161 = vpop.f32.mrb[0].mxu0
  %v1162 = vadd.f32 %v617, %v1161
  %v1163 = vpop.f32.mrb[0].mxu0
  %1164 = vmatprep.mubr.f32.mxu0 0.0
  %1165 = vmatmul.mubr.f32.gmra.mrb[0].mxu0 %v139
  %v1166 = vpop.f32.mrb[0].mxu0
  %v1167 = vadd.f32 %v622, %v1166
  %v1168 = vpop.f32.mrb[0].mxu0
  %1169 = vmatprep.mubr.f32.mxu0 0.0
  %1170 = vmatmul.mubr.f32.gmra.mrb[0].mxu0 %v142
  %v1171 = vpop.f32.mrb[0].mxu0
  %v1172 = vadd.f32 %v627, %v1171
  %v1173 = vpop.f32.mrb[0].mxu0
  %1174 = vmatprep.mubr.f32.mxu0 0.0
  %1175 = vmatmul.mubr.f32.gmra.mrb[0].mxu0 %v145
  %v1176 = vpop.f32.mrb[0].mxu0
  %v1177 = vadd.f32 %v632, %v1176
  %v1178 = vpop.f32.mrb[0].mxu0
  %1179 = vmatprep.mubr.f32.mxu0 0.0
  %1180 = vmatmul.mubr.f32.gmra.mrb[0].mxu0 %v148
  %v1181 = vpop.f32.mrb[0].mxu0
  %v1182 = vadd.f32 %v637, %v1181
  %v1183 = vpop.f32.mrb[0].mxu0
  %1184 = vmatprep.mubr.f32.mxu0 0.0
  %1185 = vmatmul.mubr.f32.gmra.mrb[0].mxu0 %v151
  %v1186 = vpop.f32.mrb[0].mxu0
  %v1187 = vadd.f32 %v642, %v1186
  %v1188 = vpop.f32.mrb[0].mxu0
  %1189 = vmatprep.mubr.f32.mxu0 0.0
  %1190 = vmatmul.mubr.f32.gmra.mrb[0].mxu0 %v154
  %v1191 = vpop.f32.mrb[0].mxu0
  %v1192 = vadd.f32 %v647, %v1191
  %v1193 = vpop.f32.mrb[0].mxu0
  %1194 = vmatprep.mubr.f32.mxu0 0.0
  %1195 = vmatmul.mubr.f32.gmra.mrb[0].mxu0 %v157
  %v1196 = vpop.f32.mrb[0].mxu0
  %v1197 = vadd.f32 %v652, %v1196
  %v1198 = vpop.f32.mrb[0].mxu0
  %1199 = vmatprep.mubr.f32.mxu0 0.0
  %1200 = vmatmul.mubr.f32.gmra.mrb[0].mxu0 %v160
  %v1201 = vpop.f32.mrb[0].mxu0
  %v1202 = vadd.f32 %v657, %v1201
  %v1203 = vpop.f32.mrb[0].mxu0
  %1204 = vmatprep.mubr.f32.mxu0 0.0
  %1205 = vmatmul.mubr.f32.gmra.mrb[0].mxu0 %v163
  %v1206 = vpop.f32.mrb[0].mxu0
  %v1207 = vadd.f32 %v662, %v1206
  %v1208 = vpop.f32.mrb[0].mxu0
  %1209 = vmatprep.mubr.f32.mxu0 0.0
  %1210 = vmatmul.mubr.f32.gmra.mrb[0].mxu0 %v166
  %v1211 = vpop.f32.mrb[0].mxu0
  %v1212 = vadd.f32 %v667, %v1211
  %v1213 = vpop.f32.mrb[0].mxu0
  %1214 = vmatprep.mubr.f32.mxu0 0.0
  %1215 = vmatmul.mubr.f32.gmra.mrb[0].mxu0 %v169
  %v1216 = vpop.f32.mrb[0].mxu0
  %v1217 = vadd.f32 %v672, %v1216
  %v1218 = vpop.f32.mrb[0].mxu0
  %1219 = vmatprep.mubr.f32.mxu0 0.0
  %1220 = vmatmul.mubr.f32.gmra.mrb[0].mxu0 %v172
  %v1221 = vpop.f32.mrb[0].mxu0
  %v1222 = vadd.f32 %v677, %v1221
  %v1223 = vpop.f32.mrb[0].mxu0
  %1224 = vmatprep.mubr.f32.mxu0 0.0
  %1225 = vmatmul.mubr.f32.gmra.mrb[0].mxu0 %v175
  %v1226 = vpop.f32.mrb[0].mxu0
  %v1227 = vadd.f32 %v682, %v1226
  %v1228 = vpop.f32.mrb[0].mxu0
  %1229 = vmatprep.mubr.f32.mxu0 0.0
  %1230 = vmatmul.mubr.f32.gmra.mrb[0].mxu0 %v178
  %v1231 = vpop.f32.mrb[0].mxu0
  %v1232 = vadd.f32 %v687, %v1231
  %v1233 = vpop.f32.mrb[0].mxu0
  %1234 = vmatprep.mubr.f32.mxu0 0.0
  %1235 = vmatmul.mubr.f32.gmra.mrb[0].mxu0 %v181
  %v1236 = vpop.f32.mrb[0].mxu0
  %v1237 = vadd.f32 %v692, %v1236
  %v1238 = vpop.f32.mrb[0].mxu0
  %1239 = vmatprep.mubr.f32.mxu0 0.0
  %1240 = vmatmul.mubr.f32.gmra.mrb[0].mxu0 %v184
  %v1241 = vpop.f32.mrb[0].mxu0
  %v1242 = vadd.f32 %v697, %v1241
  %v1243 = vpop.f32.mrb[0].mxu0
  %1244 = vmatprep.mubr.f32.mxu0 0.0
  %1245 = vmatmul.mubr.f32.gmra.mrb[0].mxu0 %v187
  %v1246 = vpop.f32.mrb[0].mxu0
  %v1247 = vadd.f32 %v702, %v1246
  %v1248 = vpop.f32.mrb[0].mxu0
  %1249 = vmatprep.mubr.f32.mxu0 0.0
  %1250 = vmatmul.mubr.f32.gmra.mrb[0].mxu0 %v190
  %v1251 = vpop.f32.mrb[0].mxu0
  %v1252 = vadd.f32 %v707, %v1251
  %v1253 = vpop.f32.mrb[0].mxu0
  %1254 = vmatprep.mubr.f32.mxu0 0.0
  %1255 = vmatmul.mubr.f32.gmra.mrb[0].mxu0 %v193
  %v1256 = vpop.f32.mrb[0].mxu0
  %v1257 = vadd.f32 %v712, %v1256
  %v1258 = vpop.f32.mrb[0].mxu0
  %1259 = vmatprep.mubr.f32.mxu0 0.0
  %1260 = vmatmul.mubr.f32.gmra.mrb[0].mxu0 %v196
  %v1261 = vpop.f32.mrb[0].mxu0
  %v1262 = vadd.f32 %v717, %v1261
  %v1263 = vpop.f32.mrb[0].mxu0
  %1264 = vmatprep.mubr.f32.mxu0 0.0
  %1265 = vmatmul.mubr.f32.gmra.mrb[0].mxu0 %v199
  %v1266 = vpop.f32.mrb[0].mxu0
  %v1267 = vadd.f32 %v722, %v1266
  %v1268 = vpop.f32.mrb[0].mxu0
  %1269 = vmatprep.mubr.f32.mxu0 0.0
  %1270 = vmatmul.mubr.f32.gmra.mrb[0].mxu0 %v202
  %v1271 = vpop.f32.mrb[0].mxu0
  %v1272 = vadd.f32 %v727, %v1271
  %v1273 = vpop.f32.mrb[0].mxu0
  %1274 = vmatprep.mubr.f32.mxu0 0.0
  %1275 = vmatmul.mubr.f32.gmra.mrb[0].mxu0 %v205
  %v1276 = vpop.f32.mrb[0].mxu0
  %v1277 = vadd.f32 %v732, %v1276
  %v1278 = vpop.f32.mrb[0].mxu0
  %1279 = vmatprep.mubr.f32.mxu0 0.0
  %1280 = vmatmul.mubr.f32.gmra.mrb[0].mxu0 %v208
  %v1281 = vpop.f32.mrb[0].mxu0
  %v1282 = vadd.f32 %v737, %v1281
  %v1283 = vpop.f32.mrb[0].mxu0
  %1284 = vmatprep.mubr.f32.mxu0 0.0
  %1285 = vmatmul.mubr.f32.gmra.mrb[0].mxu0 %v211
  %v1286 = vpop.f32.mrb[0].mxu0
  %v1287 = vadd.f32 %v742, %v1286
  %v1288 = vpop.f32.mrb[0].mxu0
  %1289 = vmatprep.mubr.f32.mxu0 0.0
  %1290 = vmatmul.mubr.f32.gmra.mrb[0].mxu0 %v214
  %v1291 = vpop.f32.mrb[0].mxu0
  %v1292 = vadd.f32 %v747, %v1291
  %v1293 = vpop.f32.mrb[0].mxu0
  %1294 = vmatprep.mubr.f32.mxu0 0.0
  %1295 = vmatmul.mubr.f32.gmra.mrb[0].mxu0 %v217
  %v1296 = vpop.f32.mrb[0].mxu0
  %v1297 = vadd.f32 %v752, %v1296
  %v1298 = vpop.f32.mrb[0].mxu0
  %1299 = vmatprep.mubr.f32.mxu0 0.0
  %1300 = vmatmul.mubr.f32.gmra.mrb[0].mxu0 %v220
  %v1301 = vpop.f32.mrb[0].mxu0
  %v1302 = vadd.f32 %v757, %v1301
  %v1303 = vpop.f32.mrb[0].mxu0
  %1304 = vmatprep.mubr.f32.mxu0 0.0
  %1305 = vmatmul.mubr.f32.gmra.mrb[0].mxu0 %v223
  %v1306 = vpop.f32.mrb[0].mxu0
  %v1307 = vadd.f32 %v762, %v1306
  %v1308 = vpop.f32.mrb[0].mxu0
  %1309 = vmatprep.mubr.f32.mxu0 0.0
  %1310 = vmatmul.mubr.f32.gmra.mrb[0].mxu0 %v226
  %v1311 = vpop.f32.mrb[0].mxu0
  %v1312 = vadd.f32 %v767, %v1311
  %v1313 = vpop.f32.mrb[0].mxu0
  %1314 = vmatprep.mubr.f32.mxu0 0.0
  %1315 = vmatmul.mubr.f32.gmra.mrb[0].mxu0 %v229
  %v1316 = vpop.f32.mrb[0].mxu0
  %v1317 = vadd.f32 %v772, %v1316
  %v1318 = vpop.f32.mrb[0].mxu0
  %1319 = vmatprep.mubr.f32.mxu0 0.0
  %1320 = vmatmul.mubr.f32.gmra.mrb[0].mxu0 %v232
  %v1321 = vpop.f32.mrb[0].mxu0
  %v1322 = vadd.f32 %v777, %v1321
  %v1323 = vpop.f32.mrb[0].mxu0
  %1324 = vmatprep.mubr.f32.mxu0 0.0
  %1325 = vmatmul.mubr.f32.gmra.mrb[0].mxu0 %v235
  %v1326 = vpop.f32.mrb[0].mxu0
  %v1327 = vadd.f32 %v782, %v1326
  %v1328 = vpop.f32.mrb[0].mxu0
  %1329 = vmatprep.mubr.f32.mxu0 0.0
  %1330 = vmatmul.mubr.f32.gmra.mrb[0].mxu0 %v238
  %v1331 = vpop.f32.mrb[0].mxu0
  %v1332 = vadd.f32 %v787, %v1331
  %v1333 = vpop.f32.mrb[0].mxu0
  %1334 = vmatprep.mubr.f32.mxu0 0.0
  %1335 = vmatmul.mubr.f32.gmra.mrb[0].mxu0 %v241
  %v1336 = vpop.f32.mrb[0].mxu0
  %v1337 = vadd.f32 %v792, %v1336
  %v1338 = vpop.f32.mrb[0].mxu0
  %1339 = vmatprep.mubr.f32.mxu0 0.0
  %1340 = vmatmul.mubr.f32.gmra.mrb[0].mxu0 %v244
  %v1341 = vpop.f32.mrb[0].mxu0
  %v1342 = vadd.f32 %v797, %v1341
  %v1343 = vpop.f32.mrb[0].mxu0
  %1344 = vmatprep.mubr.f32.mxu0 0.0
  %1345 = vmatmul.mubr.f32.gmra.mrb[0].mxu0 %v247
  %v1346 = vpop.f32.mrb[0].mxu0
  %v1347 = vadd.f32 %v802, %v1346
  %v1348 = vpop.f32.mrb[0].mxu0
  %1349 = vmatprep.mubr.f32.mxu0 0.0
  %1350 = vmatmul.mubr.f32.gmra.mrb[0].mxu0 %v250
  %v1351 = vpop.f32.mrb[0].mxu0
  %v1352 = vadd.f32 %v807, %v1351
  %v1353 = vpop.f32.mrb[0].mxu0
  %1354 = vmatprep.mubr.f32.mxu0 0.0
  %1355 = vmatmul.mubr.f32.gmra.mrb[0].mxu0 %v253
  %v1356 = vpop.f32.mrb[0].mxu0
  %v1357 = vadd.f32 %v812, %v1356
  %v1358 = vpop.f32.mrb[0].mxu0
  %1359 = vmatprep.mubr.f32.mxu0 0.0
  %1360 = vmatmul.mubr.f32.gmra.mrb[0].mxu0 %v256
  %v1361 = vpop.f32.mrb[0].mxu0
  %v1362 = vadd.f32 %v817, %v1361
  %v1363 = vpop.f32.mrb[0].mxu0
  %1364 = vmatprep.mubr.f32.mxu0 0.0
  %1365 = vmatmul.mubr.f32.gmra.mrb[0].mxu0 %v259
  %v1366 = vpop.f32.mrb[0].mxu0
  %v1367 = vadd.f32 %v822, %v1366
  %v1368 = vpop.f32.mrb[0].mxu0
  %1369 = vmatprep.mubr.f32.mxu0 0.0
  %1370 = vmatmul.mubr.f32.gmra.mrb[0].mxu0 %v262
  %v1371 = vpop.f32.mrb[0].mxu0
  %v1372 = vadd.f32 %v827, %v1371
  %v1373 = vpop.f32.mrb[0].mxu0
  %1374 = vmatprep.mubr.f32.mxu0 0.0
  %1375 = vmatmul.mubr.f32.gmra.mrb[0].mxu0 %v265
  %v1376 = vpop.f32.mrb[0].mxu0
  %v1377 = vadd.f32 %v832, %v1376
  %v1378 = vpop.f32.mrb[0].mxu0
  %1379 = vmatprep.mubr.f32.mxu0 0.0
  %1380 = vmatmul.mubr.f32.gmra.mrb[0].mxu0 %v268
  %v1381 = vpop.f32.mrb[0].mxu0
  %v1382 = vadd.f32 %v837, %v1381
  %v1383 = vpop.f32.mrb[0].mxu0
  %1384 = vmatprep.mubr.f32.mxu0 0.0
  %1385 = vmatmul.mubr.f32.gmra.mrb[0].mxu0 %v271
  %v1386 = vpop.f32.mrb[0].mxu0
  %v1387 = vadd.f32 %v842, %v1386
  %v1388 = vpop.f32.mrb[0].mxu0
  %1389 = vmatprep.mubr.f32.mxu0 0.0
  %1390 = vmatmul.mubr.f32.gmra.mrb[0].mxu0 %v274
  %v1391 = vpop.f32.mrb[0].mxu0
  %v1392 = vadd.f32 %v847, %v1391
  %v1393 = vpop.f32.mrb[0].mxu0
  %1394 = vmatprep.mubr.f32.mxu0 0.0
  %1395 = vmatmul.mubr.f32.gmra.mrb[0].mxu0 %v277
  %v1396 = vpop.f32.mrb[0].mxu0
  %v1397 = vadd.f32 %v852, %v1396
  %v1398 = vpop.f32.mrb[0].mxu0
  %1399 = vmatprep.mubr.f32.mxu0 0.0
  %1400 = vmatmul.mubr.f32.gmra.mrb[0].mxu0 %v280
  %v1401 = vpop.f32.mrb[0].mxu0
  %v1402 = vadd.f32 %v857, %v1401
  %v1403 = vpop.f32.mrb[0].mxu0
  %1404 = vmatprep.mubr.f32.mxu0 0.0
  %1405 = vmatmul.mubr.f32.gmra.mrb[0].mxu0 %v283
  %v1406 = vpop.f32.mrb[0].mxu0
  %v1407 = vadd.f32 %v862, %v1406
  %v1408 = vpop.f32.mrb[0].mxu0
  %1409 = vmatprep.mubr.f32.mxu0 0.0
  %1410 = vmatmul.mubr.f32.gmra.mrb[0].mxu0 %v286
  %v1411 = vpop.f32.mrb[0].mxu0
  %v1412 = vadd.f32 %v867, %v1411
  %v1413 = vpop.f32.mrb[0].mxu0
  %1414 = vmatprep.mubr.f32.mxu0 0.0
  %1415 = vmatmul.mubr.f32.gmra.mrb[0].mxu0 %v289
  %v1416 = vpop.f32.mrb[0].mxu0
  %v1417 = vadd.f32 %v872, %v1416
  %v1418 = vpop.f32.mrb[0].mxu0
  %1419 = vmatprep.mubr.f32.mxu0 0.0
  %1420 = vmatmul.mubr.f32.gmra.mrb[0].mxu0 %v292
  %v1421 = vpop.f32.mrb[0].mxu0
  %v1422 = vadd.f32 %v877, %v1421
  %v1423 = vpop.f32.mrb[0].mxu0
  %1424 = vmatprep.mubr.f32.mxu0 0.0
  %1425 = vmatmul.mubr.f32.gmra.mrb[0].mxu0 %v295
  %v1426 = vpop.f32.mrb[0].mxu0
  %v1427 = vadd.f32 %v882, %v1426
  %v1428 = vpop.f32.mrb[0].mxu0
  %1429 = vmatprep.mubr.f32.mxu0 0.0
  %1430 = vmatmul.mubr.f32.gmra.mrb[0].mxu0 %v298
  %v1431 = vpop.f32.mrb[0].mxu0
  %v1432 = vadd.f32 %v887, %v1431
  %v1433 = vpop.f32.mrb[0].mxu0
  %1434 = vmatprep.mubr.f32.mxu0 0.0
  %1435 = vmatmul.mubr.f32.gmra.mrb[0].mxu0 %v301
  %v1436 = vpop.f32.mrb[0].mxu0
  %v1437 = vadd.f32 %v892, %v1436
  %v1438 = vpop.f32.mrb[0].mxu0
  %1439 = vdwg.mxu0
  %vm1440 = vcmp.ge.f32.partialorder %v962, 0.0
  %vm1441 = vcmp.ge.f32.partialorder %v967, 0.0
  %vm1442 = vcmp.ge.f32.partialorder %v972, 0.0
  %vm1443 = vcmp.ge.f32.partialorder %v977, 0.0
  %vm1444 = vcmp.ge.f32.partialorder %v982, 0.0
  %vm1445 = vcmp.ge.f32.partialorder %v987, 0.0
  %vm1446 = vcmp.ge.f32.partialorder %v992, 0.0
  %vm1447 = vcmp.ge.f32.partialorder %v997, 0.0
  %vm1448 = vcmp.ge.f32.partialorder %v1002, 0.0
  %vm1449 = vcmp.ge.f32.partialorder %v1007, 0.0
  %vm1450 = vcmp.ge.f32.partialorder %v1012, 0.0
  %vm1451 = vcmp.ge.f32.partialorder %v1017, 0.0
  %vm1452 = vcmp.ge.f32.partialorder %v1022, 0.0
  %vm1453 = vcmp.ge.f32.partialorder %v1027, 0.0
  %vm1454 = vcmp.ge.f32.partialorder %v1032, 0.0
  %vm1455 = vcmp.ge.f32.partialorder %v1037, 0.0
  %vm1456 = vcmp.ge.f32.partialorder %v1042, 0.0
  %vm1457 = vcmp.ge.f32.partialorder %v1047, 0.0
  %vm1458 = vcmp.ge.f32.partialorder %v1052, 0.0
  %vm1459 = vcmp.ge.f32.partialorder %v1057, 0.0
  %vm1460 = vcmp.ge.f32.partialorder %v1062, 0.0
  %vm1461 = vcmp.ge.f32.partialorder %v1067, 0.0
  %vm1462 = vcmp.ge.f32.partialorder %v1072, 0.0
  %vm1463 = vcmp.ge.f32.partialorder %v1077, 0.0
  %vm1464 = vcmp.ge.f32.partialorder %v1082, 0.0
  %vm1465 = vcmp.ge.f32.partialorder %v1087, 0.0
  %vm1466 = vcmp.ge.f32.partialorder %v1092, 0.0
  %vm1467 = vcmp.ge.f32.partialorder %v1097, 0.0
  %vm1468 = vcmp.ge.f32.partialorder %v1102, 0.0
  %vm1469 = vcmp.ge.f32.partialorder %v1107, 0.0
  %vm1470 = vcmp.ge.f32.partialorder %v1112, 0.0
  %vm1471 = vcmp.ge.f32.partialorder %v1117, 0.0
  %vm1472 = vcmp.ge.f32.partialorder %v1122, 0.0
  %vm1473 = vcmp.ge.f32.partialorder %v1127, 0.0
  %vm1474 = vcmp.ge.f32.partialorder %v1132, 0.0
  %vm1475 = vcmp.ge.f32.partialorder %v1137, 0.0
  %vm1476 = vcmp.ge.f32.partialorder %v1142, 0.0
  %vm1477 = vcmp.ge.f32.partialorder %v1147, 0.0
  %vm1478 = vcmp.ge.f32.partialorder %v1152, 0.0
  %vm1479 = vcmp.ge.f32.partialorder %v1157, 0.0
  %vm1480 = vcmp.ge.f32.partialorder %v1162, 0.0
  %vm1481 = vcmp.ge.f32.partialorder %v1167, 0.0
  %vm1482 = vcmp.ge.f32.partialorder %v1172, 0.0
  %vm1483 = vcmp.ge.f32.partialorder %v1177, 0.0
  %vm1484 = vcmp.ge.f32.partialorder %v1182, 0.0
  %vm1485 = vcmp.ge.f32.partialorder %v1187, 0.0
  %vm1486 = vcmp.ge.f32.partialorder %v1192, 0.0
  %vm1487 = vcmp.ge.f32.partialorder %v1197, 0.0
  %vm1488 = vcmp.ge.f32.partialorder %v1202, 0.0
  %vm1489 = vcmp.ge.f32.partialorder %v1207, 0.0
  %vm1490 = vcmp.ge.f32.partialorder %v1212, 0.0
  %vm1491 = vcmp.ge.f32.partialorder %v1217, 0.0
  %vm1492 = vcmp.ge.f32.partialorder %v1222, 0.0
  %vm1493 = vcmp.ge.f32.partialorder %v1227, 0.0
  %vm1494 = vcmp.ge.f32.partialorder %v1232, 0.0
  %vm1495 = vcmp.ge.f32.partialorder %v1237, 0.0
  %vm1496 = vcmp.ge.f32.partialorder %v1242, 0.0
  %vm1497 = vcmp.ge.f32.partialorder %v1247, 0.0
  %vm1498 = vcmp.ge.f32.partialorder %v1252, 0.0
  %vm1499 = vcmp.ge.f32.partialorder %v1257, 0.0
  %vm1500 = vcmp.ge.f32.partialorder %v1262, 0.0
  %vm1501 = vcmp.ge.f32.partialorder %v1267, 0.0
  %vm1502 = vcmp.ge.f32.partialorder %v1272, 0.0
  %vm1503 = vcmp.ge.f32.partialorder %v1277, 0.0
  %vm1504 = vcmp.ge.f32.partialorder %v1282, 0.0
  %vm1505 = vcmp.ge.f32.partialorder %v1287, 0.0
  %vm1506 = vcmp.ge.f32.partialorder %v1292, 0.0
  %vm1507 = vcmp.ge.f32.partialorder %v1297, 0.0
  %vm1508 = vcmp.ge.f32.partialorder %v1302, 0.0
  %vm1509 = vcmp.ge.f32.partialorder %v1307, 0.0
  %vm1510 = vcmp.ge.f32.partialorder %v1312, 0.0
  %vm1511 = vcmp.ge.f32.partialorder %v1317, 0.0
  %vm1512 = vcmp.ge.f32.partialorder %v1322, 0.0
  %vm1513 = vcmp.ge.f32.partialorder %v1327, 0.0
  %vm1514 = vcmp.ge.f32.partialorder %v1332, 0.0
  %vm1515 = vcmp.ge.f32.partialorder %v1337, 0.0
  %vm1516 = vcmp.ge.f32.partialorder %v1342, 0.0
  %vm1517 = vcmp.ge.f32.partialorder %v1347, 0.0
  %vm1518 = vcmp.ge.f32.partialorder %v1352, 0.0
  %vm1519 = vcmp.ge.f32.partialorder %v1357, 0.0
  %vm1520 = vcmp.ge.f32.partialorder %v1362, 0.0
  %vm1521 = vcmp.ge.f32.partialorder %v1367, 0.0
  %vm1522 = vcmp.ge.f32.partialorder %v1372, 0.0
  %vm1523 = vcmp.ge.f32.partialorder %v1377, 0.0
  %vm1524 = vcmp.ge.f32.partialorder %v1382, 0.0
  %vm1525 = vcmp.ge.f32.partialorder %v1387, 0.0
  %vm1526 = vcmp.ge.f32.partialorder %v1392, 0.0
  %vm1527 = vcmp.ge.f32.partialorder %v1397, 0.0
  %vm1528 = vcmp.ge.f32.partialorder %v1402, 0.0
  %vm1529 = vcmp.ge.f32.partialorder %v1407, 0.0
  %vm1530 = vcmp.ge.f32.partialorder %v1412, 0.0
  %vm1531 = vcmp.ge.f32.partialorder %v1417, 0.0
  %vm1532 = vcmp.ge.f32.partialorder %v1422, 0.0
  %vm1533 = vcmp.ge.f32.partialorder %v1427, 0.0
  %vm1534 = vcmp.ge.f32.partialorder %v1432, 0.0
  %vm1535 = vcmp.ge.f32.partialorder %v1437, 0.0
  %v1536 = vmul.f32 %v962, 0.1
  %v1537 = vmul.f32 %v967, 0.1
  %v1538 = vmul.f32 %v972, 0.1
  %v1539 = vmul.f32 %v977, 0.1
  %v1540 = vmul.f32 %v982, 0.1
  %v1541 = vmul.f32 %v987, 0.1
  %v1542 = vmul.f32 %v992, 0.1
  %v1543 = vmul.f32 %v997, 0.1
  %v1544 = vmul.f32 %v1002, 0.1
  %v1545 = vmul.f32 %v1007, 0.1
  %v1546 = vmul.f32 %v1012, 0.1
  %v1547 = vmul.f32 %v1017, 0.1
  %v1548 = vmul.f32 %v1022, 0.1
  %v1549 = vmul.f32 %v1027, 0.1
  %v1550 = vmul.f32 %v1032, 0.1
  %v1551 = vmul.f32 %v1037, 0.1
  %v1552 = vmul.f32 %v1042, 0.1
  %v1553 = vmul.f32 %v1047, 0.1
  %v1554 = vmul.f32 %v1052, 0.1
  %v1555 = vmul.f32 %v1057, 0.1
  %v1556 = vmul.f32 %v1062, 0.1
  %v1557 = vmul.f32 %v1067, 0.1
  %v1558 = vmul.f32 %v1072, 0.1
  %v1559 = vmul.f32 %v1077, 0.1
  %v1560 = vmul.f32 %v1082, 0.1
  %v1561 = vmul.f32 %v1087, 0.1
  %v1562 = vmul.f32 %v1092, 0.1
  %v1563 = vmul.f32 %v1097, 0.1
  %v1564 = vmul.f32 %v1102, 0.1
  %v1565 = vmul.f32 %v1107, 0.1
  %v1566 = vmul.f32 %v1112, 0.1
  %v1567 = vmul.f32 %v1117, 0.1
  %v1568 = vmul.f32 %v1122, 0.1
  %v1569 = vmul.f32 %v1127, 0.1
  %v1570 = vmul.f32 %v1132, 0.1
  %v1571 = vmul.f32 %v1137, 0.1
  %v1572 = vmul.f32 %v1142, 0.1
  %v1573 = vmul.f32 %v1147, 0.1
  %v1574 = vmul.f32 %v1152, 0.1
  %v1575 = vmul.f32 %v1157, 0.1
  %v1576 = vmul.f32 %v1162, 0.1
  %v1577 = vmul.f32 %v1167, 0.1
  %v1578 = vmul.f32 %v1172, 0.1
  %v1579 = vmul.f32 %v1177, 0.1
  %v1580 = vmul.f32 %v1182, 0.1
  %v1581 = vmul.f32 %v1187, 0.1
  %v1582 = vmul.f32 %v1192, 0.1
  %v1583 = vmul.f32 %v1197, 0.1
  %v1584 = vmul.f32 %v1202, 0.1
  %v1585 = vmul.f32 %v1207, 0.1
  %v1586 = vmul.f32 %v1212, 0.1
  %v1587 = vmul.f32 %v1217, 0.1
  %v1588 = vmul.f32 %v1222, 0.1
  %v1589 = vmul.f32 %v1227, 0.1
  %v1590 = vmul.f32 %v1232, 0.1
  %v1591 = vmul.f32 %v1237, 0.1
  %v1592 = vmul.f32 %v1242, 0.1
  %v1593 = vmul.f32 %v1247, 0.1
  %v1594 = vmul.f32 %v1252, 0.1
  %v1595 = vmul.f32 %v1257, 0.1
  %v1596 = vmul.f32 %v1262, 0.1
  %v1597 = vmul.f32 %v1267, 0.1
  %v1598 = vmul.f32 %v1272, 0.1
  %v1599 = vmul.f32 %v1277, 0.1
  %v1600 = vmul.f32 %v1282, 0.1
  %v1601 = vmul.f32 %v1287, 0.1
  %v1602 = vmul.f32 %v1292, 0.1
  %v1603 = vmul.f32 %v1297, 0.1
  %v1604 = vmul.f32 %v1302, 0.1
  %v1605 = vmul.f32 %v1307, 0.1
  %v1606 = vmul.f32 %v1312, 0.1
  %v1607 = vmul.f32 %v1317, 0.1
  %v1608 = vmul.f32 %v1322, 0.1
  %v1609 = vmul.f32 %v1327, 0.1
  %v1610 = vmul.f32 %v1332, 0.1
  %v1611 = vmul.f32 %v1337, 0.1
  %v1612 = vmul.f32 %v1342, 0.1
  %v1613 = vmul.f32 %v1347, 0.1
  %v1614 = vmul.f32 %v1352, 0.1
  %v1615 = vmul.f32 %v1357, 0.1
  %v1616 = vmul.f32 %v1362, 0.1
  %v1617 = vmul.f32 %v1367, 0.1
  %v1618 = vmul.f32 %v1372, 0.1
  %v1619 = vmul.f32 %v1377, 0.1
  %v1620 = vmul.f32 %v1382, 0.1
  %v1621 = vmul.f32 %v1387, 0.1
  %v1622 = vmul.f32 %v1392, 0.1
  %v1623 = vmul.f32 %v1397, 0.1
  %v1624 = vmul.f32 %v1402, 0.1
  %v1625 = vmul.f32 %v1407, 0.1
  %v1626 = vmul.f32 %v1412, 0.1
  %v1627 = vmul.f32 %v1417, 0.1
  %v1628 = vmul.f32 %v1422, 0.1
  %v1629 = vmul.f32 %v1427, 0.1
  %v1630 = vmul.f32 %v1432, 0.1
  %v1631 = vmul.f32 %v1437, 0.1
  %v1632 = vsel %vm1440, %v962, %v1536
  %v1633 = vsel %vm1441, %v967, %v1537
  %v1634 = vsel %vm1442, %v972, %v1538
  %v1635 = vsel %vm1443, %v977, %v1539
  %v1636 = vsel %vm1444, %v982, %v1540
  %v1637 = vsel %vm1445, %v987, %v1541
  %v1638 = vsel %vm1446, %v992, %v1542
  %v1639 = vsel %vm1447, %v997, %v1543
  %v1640 = vsel %vm1448, %v1002, %v1544
  %v1641 = vsel %vm1449, %v1007, %v1545
  %v1642 = vsel %vm1450, %v1012, %v1546
  %v1643 = vsel %vm1451, %v1017, %v1547
  %v1644 = vsel %vm1452, %v1022, %v1548
  %v1645 = vsel %vm1453, %v1027, %v1549
  %v1646 = vsel %vm1454, %v1032, %v1550
  %v1647 = vsel %vm1455, %v1037, %v1551
  %v1648 = vsel %vm1456, %v1042, %v1552
  %v1649 = vsel %vm1457, %v1047, %v1553
  %v1650 = vsel %vm1458, %v1052, %v1554
  %v1651 = vsel %vm1459, %v1057, %v1555
  %v1652 = vsel %vm1460, %v1062, %v1556
  %v1653 = vsel %vm1461, %v1067, %v1557
  %v1654 = vsel %vm1462, %v1072, %v1558
  %v1655 = vsel %vm1463, %v1077, %v1559
  %v1656 = vsel %vm1464, %v1082, %v1560
  %v1657 = vsel %vm1465, %v1087, %v1561
  %v1658 = vsel %vm1466, %v1092, %v1562
  %v1659 = vsel %vm1467, %v1097, %v1563
  %v1660 = vsel %vm1468, %v1102, %v1564
  %v1661 = vsel %vm1469, %v1107, %v1565
  %v1662 = vsel %vm1470, %v1112, %v1566
  %v1663 = vsel %vm1471, %v1117, %v1567
  %v1664 = vsel %vm1472, %v1122, %v1568
  %v1665 = vsel %vm1473, %v1127, %v1569
  %v1666 = vsel %vm1474, %v1132, %v1570
  %v1667 = vsel %vm1475, %v1137, %v1571
  %v1668 = vsel %vm1476, %v1142, %v1572
  %v1669 = vsel %vm1477, %v1147, %v1573
  %v1670 = vsel %vm1478, %v1152, %v1574
  %v1671 = vsel %vm1479, %v1157, %v1575
  %v1672 = vsel %vm1480, %v1162, %v1576
  %v1673 = vsel %vm1481, %v1167, %v1577
  %v1674 = vsel %vm1482, %v1172, %v1578
  %v1675 = vsel %vm1483, %v1177, %v1579
  %v1676 = vsel %vm1484, %v1182, %v1580
  %v1677 = vsel %vm1485, %v1187, %v1581
  %v1678 = vsel %vm1486, %v1192, %v1582
  %v1679 = vsel %vm1487, %v1197, %v1583
  %v1680 = vsel %vm1488, %v1202, %v1584
  %v1681 = vsel %vm1489, %v1207, %v1585
  %v1682 = vsel %vm1490, %v1212, %v1586
  %v1683 = vsel %vm1491, %v1217, %v1587
  %v1684 = vsel %vm1492, %v1222, %v1588
  %v1685 = vsel %vm1493, %v1227, %v1589
  %v1686 = vsel %vm1494, %v1232, %v1590
  %v1687 = vsel %vm1495, %v1237, %v1591
  %v1688 = vsel %vm1496, %v1242, %v1592
  %v1689 = vsel %vm1497, %v1247, %v1593
  %v1690 = vsel %vm1498, %v1252, %v1594
  %v1691 = vsel %vm1499, %v1257, %v1595
  %v1692 = vsel %vm1500, %v1262, %v1596
  %v1693 = vsel %vm1501, %v1267, %v1597
  %v1694 = vsel %vm1502, %v1272, %v1598
  %v1695 = vsel %vm1503, %v1277, %v1599
  %v1696 = vsel %vm1504, %v1282, %v1600
  %v1697 = vsel %vm1505, %v1287, %v1601
  %v1698 = vsel %vm1506, %v1292, %v1602
  %v1699 = vsel %vm1507, %v1297, %v1603
  %v1700 = vsel %vm1508, %v1302, %v1604
  %v1701 = vsel %vm1509, %v1307, %v1605
  %v1702 = vsel %vm1510, %v1312, %v1606
  %v1703 = vsel %vm1511, %v1317, %v1607
  %v1704 = vsel %vm1512, %v1322, %v1608
  %v1705 = vsel %vm1513, %v1327, %v1609
  %v1706 = vsel %vm1514, %v1332, %v1610
  %v1707 = vsel %vm1515, %v1337, %v1611
  %v1708 = vsel %vm1516, %v1342, %v1612
  %v1709 = vsel %vm1517, %v1347, %v1613
  %v1710 = vsel %vm1518, %v1352, %v1614
  %v1711 = vsel %vm1519, %v1357, %v1615
  %v1712 = vsel %vm1520, %v1362, %v1616
  %v1713 = vsel %vm1521, %v1367, %v1617
  %v1714 = vsel %vm1522, %v1372, %v1618
  %v1715 = vsel %vm1523, %v1377, %v1619
  %v1716 = vsel %vm1524, %v1382, %v1620
  %v1717 = vsel %vm1525, %v1387, %v1621
  %v1718 = vsel %vm1526, %v1392, %v1622
  %v1719 = vsel %vm1527, %v1397, %v1623
  %v1720 = vsel %vm1528, %v1402, %v1624
  %v1721 = vsel %vm1529, %v1407, %v1625
  %v1722 = vsel %vm1530, %v1412, %v1626
  %v1723 = vsel %vm1531, %v1417, %v1627
  %v1724 = vsel %vm1532, %v1422, %v1628
  %v1725 = vsel %vm1533, %v1427, %v1629
  %v1726 = vsel %vm1534, %v1432, %v1630
  %v1727 = vsel %vm1535, %v1437, %v1631
  %v1728 = vld [vmem:[%s2] sm:$0xff]
  %v1729 = vld [vmem:[%s2 + $0x8] sm:$0xff]
  %v1730 = vld [vmem:[%s2 + $0x10] sm:$0xff]
  %v1731 = vld [vmem:[%s2 + $0x18] sm:$0xff]
  %v1732 = vld [vmem:[%s2 + $0x20] sm:$0xff]
  %v1733 = vld [vmem:[%s2 + $0x28] sm:$0xff]
  %v1734 = vld [vmem:[%s2 + $0x30] sm:$0xff]
  %v1735 = vld [vmem:[%s2 + $0x38] sm:$0xff]
  %v1736 = vld [vmem:[%s2 + $0x40] sm:$0xff]
  %v1737 = vld [vmem:[%s2 + $0x48] sm:$0xff]
  %v1738 = vld [vmem:[%s2 + $0x50] sm:$0xff]
  %v1739 = vld [vmem:[%s2 + $0x58] sm:$0xff]
  %v1740 = vld [vmem:[%s2 + $0x60] sm:$0xff]
  %v1741 = vld [vmem:[%s2 + $0x68] sm:$0xff]
  %v1742 = vld [vmem:[%s2 + $0x70] sm:$0xff]
  %v1743 = vld [vmem:[%s2 + $0x78] sm:$0xff]
  %1744 = vmatprep.subr.mxu0 0.0
  %1745 = vmatpush1.msra.mxu0 %v1728
  %1746 = vmatprep.subr.mxu0 0.0
  %1747 = vmatpush1.msra.mxu0 %v1729
  %1748 = vmatprep.subr.mxu0 0.0
  %1749 = vmatpush1.msra.mxu0 %v1730
  %1750 = vmatprep.subr.mxu0 0.0
  %1751 = vmatpush1.msra.mxu0 %v1731
  %1752 = vmatprep.subr.mxu0 0.0
  %1753 = vmatpush1.msra.mxu0 %v1732
  %1754 = vmatprep.subr.mxu0 0.0
  %1755 = vmatpush1.msra.mxu0 %v1733
  %1756 = vmatprep.subr.mxu0 0.0
  %1757 = vmatpush1.msra.mxu0 %v1734
  %1758 = vmatprep.subr.mxu0 0.0
  %1759 = vmatpush1.msra.mxu0 %v1735
  %1760 = vmatprep.subr.mxu0 0.0
  %1761 = vmatpush1.msra.mxu0 %v1736
  %1762 = vmatprep.subr.mxu0 0.0
  %1763 = vmatpush1.msra.mxu0 %v1737
  %1764 = vmatprep.subr.mxu0 0.0
  %1765 = vmatpush1.msra.mxu0 %v1738
  %1766 = vmatprep.subr.mxu0 0.0
  %1767 = vmatpush1.msra.mxu0 %v1739
  %1768 = vmatprep.subr.mxu0 0.0
  %1769 = vmatpush1.msra.mxu0 %v1740
  %1770 = vmatprep.subr.mxu0 0.0
  %1771 = vmatpush1.msra.mxu0 %v1741
  %1772 = vmatprep.subr.mxu0 0.0
  %1773 = vmatpush1.msra.mxu0 %v1742
  %1774 = vmatprep.subr.mxu0 0.0
  %1775 = vmatpush1.msra.mxu0 %v1743
  %1776 = vmatprep.subr.mxu0 0.0
  %1777 = vmatpush1.msra.mxu0 0.0
  %1778 = vmatprep.subr.mxu0 0.0
  %1779 = vmatpush1.msra.mxu0 0.0
  %1780 = vmatprep.subr.mxu0 0.0
  %1781 = vmatpush1.msra.mxu0 0.0
  %1782 = vmatprep.subr.mxu0 0.0
  %1783 = vmatpush1.msra.mxu0 0.0
  %1784 = vmatprep.subr.mxu0 0.0
  %1785 = vmatpush1.msra.mxu0 0.0
  %1786 = vmatprep.subr.mxu0 0.0
  %1787 = vmatpush1.msra.mxu0 0.0
  %1788 = vmatprep.subr.mxu0 0.0
  %1789 = vmatpush1.msra.mxu0 0.0
  %1790 = vmatprep.subr.mxu0 0.0
  %1791 = vmatpush1.msra.mxu0 0.0
  %1792 = vmatprep.subr.mxu0 0.0
  %1793 = vmatpush1.msra.mxu0 0.0
  %1794 = vmatprep.subr.mxu0 0.0
  %1795 = vmatpush1.msra.mxu0 0.0
  %1796 = vmatprep.subr.mxu0 0.0
  %1797 = vmatpush1.msra.mxu0 0.0
  %1798 = vmatprep.subr.mxu0 0.0
  %1799 = vmatpush1.msra.mxu0 0.0
  %1800 = vmatprep.subr.mxu0 0.0
  %1801 = vmatpush1.msra.mxu0 0.0
  %1802 = vmatprep.subr.mxu0 0.0
  %1803 = vmatpush1.msra.mxu0 0.0
  %1804 = vmatprep.subr.mxu0 0.0
  %1805 = vmatpush1.msra.mxu0 0.0
  %1806 = vmatprep.subr.mxu0 0.0
  %1807 = vmatpush1.msra.mxu0 0.0
  %1808 = vmatprep.mubr.f32.mxu0 0.0
  %1809 = vmatmul.mubr.f32.gmra.mrb[0].mxu0 %v1632
  %v1810 = vpop.f32.mrb[0].mxu0
  %v1811 = vadd.f32 0.0, %v1810
  %v1812 = vpop.f32.mrb[0].mxu0
  %1813 = vmatprep.mubr.f32.mxu0 0.0
  %1814 = vmatmul.mubr.f32.gmra.mrb[0].mxu0 %v1633
  %v1815 = vpop.f32.mrb[0].mxu0
  %v1816 = vadd.f32 0.0, %v1815
  %v1817 = vpop.f32.mrb[0].mxu0
  %1818 = vmatprep.mubr.f32.mxu0 0.0
  %1819 = vmatmul.mubr.f32.gmra.mrb[0].mxu0 %v1634
  %v1820 = vpop.f32.mrb[0].mxu0
  %v1821 = vadd.f32 0.0, %v1820
  %v1822 = vpop.f32.mrb[0].mxu0
  %1823 = vmatprep.mubr.f32.mxu0 0.0
  %1824 = vmatmul.mubr.f32.gmra.mrb[0].mxu0 %v1635
  %v1825 = vpop.f32.mrb[0].mxu0
  %v1826 = vadd.f32 0.0, %v1825
  %v1827 = vpop.f32.mrb[0].mxu0
  %1828 = vmatprep.mubr.f32.mxu0 0.0
  %1829 = vmatmul.mubr.f32.gmra.mrb[0].mxu0 %v1636
  %v1830 = vpop.f32.mrb[0].mxu0
  %v1831 = vadd.f32 0.0, %v1830
  %v1832 = vpop.f32.mrb[0].mxu0
  %1833 = vmatprep.mubr.f32.mxu0 0.0
  %1834 = vmatmul.mubr.f32.gmra.mrb[0].mxu0 %v1637
  %v1835 = vpop.f32.mrb[0].mxu0
  %v1836 = vadd.f32 0.0, %v1835
  %v1837 = vpop.f32.mrb[0].mxu0
  %1838 = vmatprep.mubr.f32.mxu0 0.0
  %1839 = vmatmul.mubr.f32.gmra.mrb[0].mxu0 %v1638
  %v1840 = vpop.f32.mrb[0].mxu0
  %v1841 = vadd.f32 0.0, %v1840
  %v1842 = vpop.f32.mrb[0].mxu0
  %1843 = vmatprep.mubr.f32.mxu0 0.0
  %1844 = vmatmul.mubr.f32.gmra.mrb[0].mxu0 %v1639
  %v1845 = vpop.f32.mrb[0].mxu0
  %v1846 = vadd.f32 0.0, %v1845
  %v1847 = vpop.f32.mrb[0].mxu0
  %1848 = vmatprep.mubr.f32.mxu0 0.0
  %1849 = vmatmul.mubr.f32.gmra.mrb[0].mxu0 %v1640
  %v1850 = vpop.f32.mrb[0].mxu0
  %v1851 = vadd.f32 0.0, %v1850
  %v1852 = vpop.f32.mrb[0].mxu0
  %1853 = vmatprep.mubr.f32.mxu0 0.0
  %1854 = vmatmul.mubr.f32.gmra.mrb[0].mxu0 %v1641
  %v1855 = vpop.f32.mrb[0].mxu0
  %v1856 = vadd.f32 0.0, %v1855
  %v1857 = vpop.f32.mrb[0].mxu0
  %1858 = vmatprep.mubr.f32.mxu0 0.0
  %1859 = vmatmul.mubr.f32.gmra.mrb[0].mxu0 %v1642
  %v1860 = vpop.f32.mrb[0].mxu0
  %v1861 = vadd.f32 0.0, %v1860
  %v1862 = vpop.f32.mrb[0].mxu0
  %1863 = vmatprep.mubr.f32.mxu0 0.0
  %1864 = vmatmul.mubr.f32.gmra.mrb[0].mxu0 %v1643
  %v1865 = vpop.f32.mrb[0].mxu0
  %v1866 = vadd.f32 0.0, %v1865
  %v1867 = vpop.f32.mrb[0].mxu0
  %1868 = vmatprep.mubr.f32.mxu0 0.0
  %1869 = vmatmul.mubr.f32.gmra.mrb[0].mxu0 %v1644
  %v1870 = vpop.f32.mrb[0].mxu0
  %v1871 = vadd.f32 0.0, %v1870
  %v1872 = vpop.f32.mrb[0].mxu0
  %1873 = vmatprep.mubr.f32.mxu0 0.0
  %1874 = vmatmul.mubr.f32.gmra.mrb[0].mxu0 %v1645
  %v1875 = vpop.f32.mrb[0].mxu0
  %v1876 = vadd.f32 0.0, %v1875
  %v1877 = vpop.f32.mrb[0].mxu0
  %1878 = vmatprep.mubr.f32.mxu0 0.0
  %1879 = vmatmul.mubr.f32.gmra.mrb[0].mxu0 %v1646
  %v1880 = vpop.f32.mrb[0].mxu0
  %v1881 = vadd.f32 0.0, %v1880
  %v1882 = vpop.f32.mrb[0].mxu0
  %1883 = vmatprep.mubr.f32.mxu0 0.0
  %1884 = vmatmul.mubr.f32.gmra.mrb[0].mxu0 %v1647
  %v1885 = vpop.f32.mrb[0].mxu0
  %v1886 = vadd.f32 0.0, %v1885
  %v1887 = vpop.f32.mrb[0].mxu0
  %1888 = vmatprep.mubr.f32.mxu0 0.0
  %1889 = vmatmul.mubr.f32.gmra.mrb[0].mxu0 %v1648
  %v1890 = vpop.f32.mrb[0].mxu0
  %v1891 = vadd.f32 0.0, %v1890
  %v1892 = vpop.f32.mrb[0].mxu0
  %1893 = vmatprep.mubr.f32.mxu0 0.0
  %1894 = vmatmul.mubr.f32.gmra.mrb[0].mxu0 %v1649
  %v1895 = vpop.f32.mrb[0].mxu0
  %v1896 = vadd.f32 0.0, %v1895
  %v1897 = vpop.f32.mrb[0].mxu0
  %1898 = vmatprep.mubr.f32.mxu0 0.0
  %1899 = vmatmul.mubr.f32.gmra.mrb[0].mxu0 %v1650
  %v1900 = vpop.f32.mrb[0].mxu0
  %v1901 = vadd.f32 0.0, %v1900
  %v1902 = vpop.f32.mrb[0].mxu0
  %1903 = vmatprep.mubr.f32.mxu0 0.0
  %1904 = vmatmul.mubr.f32.gmra.mrb[0].mxu0 %v1651
  %v1905 = vpop.f32.mrb[0].mxu0
  %v1906 = vadd.f32 0.0, %v1905
  %v1907 = vpop.f32.mrb[0].mxu0
  %1908 = vmatprep.mubr.f32.mxu0 0.0
  %1909 = vmatmul.mubr.f32.gmra.mrb[0].mxu0 %v1652
  %v1910 = vpop.f32.mrb[0].mxu0
  %v1911 = vadd.f32 0.0, %v1910
  %v1912 = vpop.f32.mrb[0].mxu0
  %1913 = vmatprep.mubr.f32.mxu0 0.0
  %1914 = vmatmul.mubr.f32.gmra.mrb[0].mxu0 %v1653
  %v1915 = vpop.f32.mrb[0].mxu0
  %v1916 = vadd.f32 0.0, %v1915
  %v1917 = vpop.f32.mrb[0].mxu0
  %1918 = vmatprep.mubr.f32.mxu0 0.0
  %1919 = vmatmul.mubr.f32.gmra.mrb[0].mxu0 %v1654
  %v1920 = vpop.f32.mrb[0].mxu0
  %v1921 = vadd.f32 0.0, %v1920
  %v1922 = vpop.f32.mrb[0].mxu0
  %1923 = vmatprep.mubr.f32.mxu0 0.0
  %1924 = vmatmul.mubr.f32.gmra.mrb[0].mxu0 %v1655
  %v1925 = vpop.f32.mrb[0].mxu0
  %v1926 = vadd.f32 0.0, %v1925
  %v1927 = vpop.f32.mrb[0].mxu0
  %1928 = vmatprep.mubr.f32.mxu0 0.0
  %1929 = vmatmul.mubr.f32.gmra.mrb[0].mxu0 %v1656
  %v1930 = vpop.f32.mrb[0].mxu0
  %v1931 = vadd.f32 0.0, %v1930
  %v1932 = vpop.f32.mrb[0].mxu0
  %1933 = vmatprep.mubr.f32.mxu0 0.0
  %1934 = vmatmul.mubr.f32.gmra.mrb[0].mxu0 %v1657
  %v1935 = vpop.f32.mrb[0].mxu0
  %v1936 = vadd.f32 0.0, %v1935
  %v1937 = vpop.f32.mrb[0].mxu0
  %1938 = vmatprep.mubr.f32.mxu0 0.0
  %1939 = vmatmul.mubr.f32.gmra.mrb[0].mxu0 %v1658
  %v1940 = vpop.f32.mrb[0].mxu0
  %v1941 = vadd.f32 0.0, %v1940
  %v1942 = vpop.f32.mrb[0].mxu0
  %1943 = vmatprep.mubr.f32.mxu0 0.0
  %1944 = vmatmul.mubr.f32.gmra.mrb[0].mxu0 %v1659
  %v1945 = vpop.f32.mrb[0].mxu0
  %v1946 = vadd.f32 0.0, %v1945
  %v1947 = vpop.f32.mrb[0].mxu0
  %1948 = vmatprep.mubr.f32.mxu0 0.0
  %1949 = vmatmul.mubr.f32.gmra.mrb[0].mxu0 %v1660
  %v1950 = vpop.f32.mrb[0].mxu0
  %v1951 = vadd.f32 0.0, %v1950
  %v1952 = vpop.f32.mrb[0].mxu0
  %1953 = vmatprep.mubr.f32.mxu0 0.0
  %1954 = vmatmul.mubr.f32.gmra.mrb[0].mxu0 %v1661
  %v1955 = vpop.f32.mrb[0].mxu0
  %v1956 = vadd.f32 0.0, %v1955
  %v1957 = vpop.f32.mrb[0].mxu0
  %1958 = vmatprep.mubr.f32.mxu0 0.0
  %1959 = vmatmul.mubr.f32.gmra.mrb[0].mxu0 %v1662
  %v1960 = vpop.f32.mrb[0].mxu0
  %v1961 = vadd.f32 0.0, %v1960
  %v1962 = vpop.f32.mrb[0].mxu0
  %1963 = vmatprep.mubr.f32.mxu0 0.0
  %1964 = vmatmul.mubr.f32.gmra.mrb[0].mxu0 %v1663
  %v1965 = vpop.f32.mrb[0].mxu0
  %v1966 = vadd.f32 0.0, %v1965
  %v1967 = vpop.f32.mrb[0].mxu0
  %1968 = vmatprep.mubr.f32.mxu0 0.0
  %1969 = vmatmul.mubr.f32.gmra.mrb[0].mxu0 %v1664
  %v1970 = vpop.f32.mrb[0].mxu0
  %v1971 = vadd.f32 0.0, %v1970
  %v1972 = vpop.f32.mrb[0].mxu0
  %1973 = vmatprep.mubr.f32.mxu0 0.0
  %1974 = vmatmul.mubr.f32.gmra.mrb[0].mxu0 %v1665
  %v1975 = vpop.f32.mrb[0].mxu0
  %v1976 = vadd.f32 0.0, %v1975
  %v1977 = vpop.f32.mrb[0].mxu0
  %1978 = vmatprep.mubr.f32.mxu0 0.0
  %1979 = vmatmul.mubr.f32.gmra.mrb[0].mxu0 %v1666
  %v1980 = vpop.f32.mrb[0].mxu0
  %v1981 = vadd.f32 0.0, %v1980
  %v1982 = vpop.f32.mrb[0].mxu0
  %1983 = vmatprep.mubr.f32.mxu0 0.0
  %1984 = vmatmul.mubr.f32.gmra.mrb[0].mxu0 %v1667
  %v1985 = vpop.f32.mrb[0].mxu0
  %v1986 = vadd.f32 0.0, %v1985
  %v1987 = vpop.f32.mrb[0].mxu0
  %1988 = vmatprep.mubr.f32.mxu0 0.0
  %1989 = vmatmul.mubr.f32.gmra.mrb[0].mxu0 %v1668
  %v1990 = vpop.f32.mrb[0].mxu0
  %v1991 = vadd.f32 0.0, %v1990
  %v1992 = vpop.f32.mrb[0].mxu0
  %1993 = vmatprep.mubr.f32.mxu0 0.0
  %1994 = vmatmul.mubr.f32.gmra.mrb[0].mxu0 %v1669
  %v1995 = vpop.f32.mrb[0].mxu0
  %v1996 = vadd.f32 0.0, %v1995
  %v1997 = vpop.f32.mrb[0].mxu0
  %1998 = vmatprep.mubr.f32.mxu0 0.0
  %1999 = vmatmul.mubr.f32.gmra.mrb[0].mxu0 %v1670
  %v2000 = vpop.f32.mrb[0].mxu0
  %v2001 = vadd.f32 0.0, %v2000
  %v2002 = vpop.f32.mrb[0].mxu0
  %2003 = vmatprep.mubr.f32.mxu0 0.0
  %2004 = vmatmul.mubr.f32.gmra.mrb[0].mxu0 %v1671
  %v2005 = vpop.f32.mrb[0].mxu0
  %v2006 = vadd.f32 0.0, %v2005
  %v2007 = vpop.f32.mrb[0].mxu0
  %2008 = vmatprep.mubr.f32.mxu0 0.0
  %2009 = vmatmul.mubr.f32.gmra.mrb[0].mxu0 %v1672
  %v2010 = vpop.f32.mrb[0].mxu0
  %v2011 = vadd.f32 0.0, %v2010
  %v2012 = vpop.f32.mrb[0].mxu0
  %2013 = vmatprep.mubr.f32.mxu0 0.0
  %2014 = vmatmul.mubr.f32.gmra.mrb[0].mxu0 %v1673
  %v2015 = vpop.f32.mrb[0].mxu0
  %v2016 = vadd.f32 0.0, %v2015
  %v2017 = vpop.f32.mrb[0].mxu0
  %2018 = vmatprep.mubr.f32.mxu0 0.0
  %2019 = vmatmul.mubr.f32.gmra.mrb[0].mxu0 %v1674
  %v2020 = vpop.f32.mrb[0].mxu0
  %v2021 = vadd.f32 0.0, %v2020
  %v2022 = vpop.f32.mrb[0].mxu0
  %2023 = vmatprep.mubr.f32.mxu0 0.0
  %2024 = vmatmul.mubr.f32.gmra.mrb[0].mxu0 %v1675
  %v2025 = vpop.f32.mrb[0].mxu0
  %v2026 = vadd.f32 0.0, %v2025
  %v2027 = vpop.f32.mrb[0].mxu0
  %2028 = vmatprep.mubr.f32.mxu0 0.0
  %2029 = vmatmul.mubr.f32.gmra.mrb[0].mxu0 %v1676
  %v2030 = vpop.f32.mrb[0].mxu0
  %v2031 = vadd.f32 0.0, %v2030
  %v2032 = vpop.f32.mrb[0].mxu0
  %2033 = vmatprep.mubr.f32.mxu0 0.0
  %2034 = vmatmul.mubr.f32.gmra.mrb[0].mxu0 %v1677
  %v2035 = vpop.f32.mrb[0].mxu0
  %v2036 = vadd.f32 0.0, %v2035
  %v2037 = vpop.f32.mrb[0].mxu0
  %2038 = vmatprep.mubr.f32.mxu0 0.0
  %2039 = vmatmul.mubr.f32.gmra.mrb[0].mxu0 %v1678
  %v2040 = vpop.f32.mrb[0].mxu0
  %v2041 = vadd.f32 0.0, %v2040
  %v2042 = vpop.f32.mrb[0].mxu0
  %2043 = vmatprep.mubr.f32.mxu0 0.0
  %2044 = vmatmul.mubr.f32.gmra.mrb[0].mxu0 %v1679
  %v2045 = vpop.f32.mrb[0].mxu0
  %v2046 = vadd.f32 0.0, %v2045
  %v2047 = vpop.f32.mrb[0].mxu0
  %2048 = vmatprep.mubr.f32.mxu0 0.0
  %2049 = vmatmul.mubr.f32.gmra.mrb[0].mxu0 %v1680
  %v2050 = vpop.f32.mrb[0].mxu0
  %v2051 = vadd.f32 0.0, %v2050
  %v2052 = vpop.f32.mrb[0].mxu0
  %2053 = vmatprep.mubr.f32.mxu0 0.0
  %2054 = vmatmul.mubr.f32.gmra.mrb[0].mxu0 %v1681
  %v2055 = vpop.f32.mrb[0].mxu0
  %v2056 = vadd.f32 0.0, %v2055
  %v2057 = vpop.f32.mrb[0].mxu0
  %2058 = vmatprep.mubr.f32.mxu0 0.0
  %2059 = vmatmul.mubr.f32.gmra.mrb[0].mxu0 %v1682
  %v2060 = vpop.f32.mrb[0].mxu0
  %v2061 = vadd.f32 0.0, %v2060
  %v2062 = vpop.f32.mrb[0].mxu0
  %2063 = vmatprep.mubr.f32.mxu0 0.0
  %2064 = vmatmul.mubr.f32.gmra.mrb[0].mxu0 %v1683
  %v2065 = vpop.f32.mrb[0].mxu0
  %v2066 = vadd.f32 0.0, %v2065
  %v2067 = vpop.f32.mrb[0].mxu0
  %2068 = vmatprep.mubr.f32.mxu0 0.0
  %2069 = vmatmul.mubr.f32.gmra.mrb[0].mxu0 %v1684
  %v2070 = vpop.f32.mrb[0].mxu0
  %v2071 = vadd.f32 0.0, %v2070
  %v2072 = vpop.f32.mrb[0].mxu0
  %2073 = vmatprep.mubr.f32.mxu0 0.0
  %2074 = vmatmul.mubr.f32.gmra.mrb[0].mxu0 %v1685
  %v2075 = vpop.f32.mrb[0].mxu0
  %v2076 = vadd.f32 0.0, %v2075
  %v2077 = vpop.f32.mrb[0].mxu0
  %2078 = vmatprep.mubr.f32.mxu0 0.0
  %2079 = vmatmul.mubr.f32.gmra.mrb[0].mxu0 %v1686
  %v2080 = vpop.f32.mrb[0].mxu0
  %v2081 = vadd.f32 0.0, %v2080
  %v2082 = vpop.f32.mrb[0].mxu0
  %2083 = vmatprep.mubr.f32.mxu0 0.0
  %2084 = vmatmul.mubr.f32.gmra.mrb[0].mxu0 %v1687
  %v2085 = vpop.f32.mrb[0].mxu0
  %v2086 = vadd.f32 0.0, %v2085
  %v2087 = vpop.f32.mrb[0].mxu0
  %2088 = vmatprep.mubr.f32.mxu0 0.0
  %2089 = vmatmul.mubr.f32.gmra.mrb[0].mxu0 %v1688
  %v2090 = vpop.f32.mrb[0].mxu0
  %v2091 = vadd.f32 0.0, %v2090
  %v2092 = vpop.f32.mrb[0].mxu0
  %2093 = vmatprep.mubr.f32.mxu0 0.0
  %2094 = vmatmul.mubr.f32.gmra.mrb[0].mxu0 %v1689
  %v2095 = vpop.f32.mrb[0].mxu0
  %v2096 = vadd.f32 0.0, %v2095
  %v2097 = vpop.f32.mrb[0].mxu0
  %2098 = vmatprep.mubr.f32.mxu0 0.0
  %2099 = vmatmul.mubr.f32.gmra.mrb[0].mxu0 %v1690
  %v2100 = vpop.f32.mrb[0].mxu0
  %v2101 = vadd.f32 0.0, %v2100
  %v2102 = vpop.f32.mrb[0].mxu0
  %2103 = vmatprep.mubr.f32.mxu0 0.0
  %2104 = vmatmul.mubr.f32.gmra.mrb[0].mxu0 %v1691
  %v2105 = vpop.f32.mrb[0].mxu0
  %v2106 = vadd.f32 0.0, %v2105
  %v2107 = vpop.f32.mrb[0].mxu0
  %2108 = vmatprep.mubr.f32.mxu0 0.0
  %2109 = vmatmul.mubr.f32.gmra.mrb[0].mxu0 %v1692
  %v2110 = vpop.f32.mrb[0].mxu0
  %v2111 = vadd.f32 0.0, %v2110
  %v2112 = vpop.f32.mrb[0].mxu0
  %2113 = vmatprep.mubr.f32.mxu0 0.0
  %2114 = vmatmul.mubr.f32.gmra.mrb[0].mxu0 %v1693
  %v2115 = vpop.f32.mrb[0].mxu0
  %v2116 = vadd.f32 0.0, %v2115
  %v2117 = vpop.f32.mrb[0].mxu0
  %2118 = vmatprep.mubr.f32.mxu0 0.0
  %2119 = vmatmul.mubr.f32.gmra.mrb[0].mxu0 %v1694
  %v2120 = vpop.f32.mrb[0].mxu0
  %v2121 = vadd.f32 0.0, %v2120
  %v2122 = vpop.f32.mrb[0].mxu0
  %2123 = vmatprep.mubr.f32.mxu0 0.0
  %2124 = vmatmul.mubr.f32.gmra.mrb[0].mxu0 %v1695
  %v2125 = vpop.f32.mrb[0].mxu0
  %v2126 = vadd.f32 0.0, %v2125
  %v2127 = vpop.f32.mrb[0].mxu0
  %2128 = vmatprep.mubr.f32.mxu0 0.0
  %2129 = vmatmul.mubr.f32.gmra.mrb[0].mxu0 %v1696
  %v2130 = vpop.f32.mrb[0].mxu0
  %v2131 = vadd.f32 0.0, %v2130
  %v2132 = vpop.f32.mrb[0].mxu0
  %2133 = vmatprep.mubr.f32.mxu0 0.0
  %2134 = vmatmul.mubr.f32.gmra.mrb[0].mxu0 %v1697
  %v2135 = vpop.f32.mrb[0].mxu0
  %v2136 = vadd.f32 0.0, %v2135
  %v2137 = vpop.f32.mrb[0].mxu0
  %2138 = vmatprep.mubr.f32.mxu0 0.0
  %2139 = vmatmul.mubr.f32.gmra.mrb[0].mxu0 %v1698
  %v2140 = vpop.f32.mrb[0].mxu0
  %v2141 = vadd.f32 0.0, %v2140
  %v2142 = vpop.f32.mrb[0].mxu0
  %2143 = vmatprep.mubr.f32.mxu0 0.0
  %2144 = vmatmul.mubr.f32.gmra.mrb[0].mxu0 %v1699
  %v2145 = vpop.f32.mrb[0].mxu0
  %v2146 = vadd.f32 0.0, %v2145
  %v2147 = vpop.f32.mrb[0].mxu0
  %2148 = vmatprep.mubr.f32.mxu0 0.0
  %2149 = vmatmul.mubr.f32.gmra.mrb[0].mxu0 %v1700
  %v2150 = vpop.f32.mrb[0].mxu0
  %v2151 = vadd.f32 0.0, %v2150
  %v2152 = vpop.f32.mrb[0].mxu0
  %2153 = vmatprep.mubr.f32.mxu0 0.0
  %2154 = vmatmul.mubr.f32.gmra.mrb[0].mxu0 %v1701
  %v2155 = vpop.f32.mrb[0].mxu0
  %v2156 = vadd.f32 0.0, %v2155
  %v2157 = vpop.f32.mrb[0].mxu0
  %2158 = vmatprep.mubr.f32.mxu0 0.0
  %2159 = vmatmul.mubr.f32.gmra.mrb[0].mxu0 %v1702
  %v2160 = vpop.f32.mrb[0].mxu0
  %v2161 = vadd.f32 0.0, %v2160
  %v2162 = vpop.f32.mrb[0].mxu0
  %2163 = vmatprep.mubr.f32.mxu0 0.0
  %2164 = vmatmul.mubr.f32.gmra.mrb[0].mxu0 %v1703
  %v2165 = vpop.f32.mrb[0].mxu0
  %v2166 = vadd.f32 0.0, %v2165
  %v2167 = vpop.f32.mrb[0].mxu0
  %2168 = vmatprep.mubr.f32.mxu0 0.0
  %2169 = vmatmul.mubr.f32.gmra.mrb[0].mxu0 %v1704
  %v2170 = vpop.f32.mrb[0].mxu0
  %v2171 = vadd.f32 0.0, %v2170
  %v2172 = vpop.f32.mrb[0].mxu0
  %2173 = vmatprep.mubr.f32.mxu0 0.0
  %2174 = vmatmul.mubr.f32.gmra.mrb[0].mxu0 %v1705
  %v2175 = vpop.f32.mrb[0].mxu0
  %v2176 = vadd.f32 0.0, %v2175
  %v2177 = vpop.f32.mrb[0].mxu0
  %2178 = vmatprep.mubr.f32.mxu0 0.0
  %2179 = vmatmul.mubr.f32.gmra.mrb[0].mxu0 %v1706
  %v2180 = vpop.f32.mrb[0].mxu0
  %v2181 = vadd.f32 0.0, %v2180
  %v2182 = vpop.f32.mrb[0].mxu0
  %2183 = vmatprep.mubr.f32.mxu0 0.0
  %2184 = vmatmul.mubr.f32.gmra.mrb[0].mxu0 %v1707
  %v2185 = vpop.f32.mrb[0].mxu0
  %v2186 = vadd.f32 0.0, %v2185
  %v2187 = vpop.f32.mrb[0].mxu0
  %2188 = vmatprep.mubr.f32.mxu0 0.0
  %2189 = vmatmul.mubr.f32.gmra.mrb[0].mxu0 %v1708
  %v2190 = vpop.f32.mrb[0].mxu0
  %v2191 = vadd.f32 0.0, %v2190
  %v2192 = vpop.f32.mrb[0].mxu0
  %2193 = vmatprep.mubr.f32.mxu0 0.0
  %2194 = vmatmul.mubr.f32.gmra.mrb[0].mxu0 %v1709
  %v2195 = vpop.f32.mrb[0].mxu0
  %v2196 = vadd.f32 0.0, %v2195
  %v2197 = vpop.f32.mrb[0].mxu0
  %2198 = vmatprep.mubr.f32.mxu0 0.0
  %2199 = vmatmul.mubr.f32.gmra.mrb[0].mxu0 %v1710
  %v2200 = vpop.f32.mrb[0].mxu0
  %v2201 = vadd.f32 0.0, %v2200
  %v2202 = vpop.f32.mrb[0].mxu0
  %2203 = vmatprep.mubr.f32.mxu0 0.0
  %2204 = vmatmul.mubr.f32.gmra.mrb[0].mxu0 %v1711
  %v2205 = vpop.f32.mrb[0].mxu0
  %v2206 = vadd.f32 0.0, %v2205
  %v2207 = vpop.f32.mrb[0].mxu0
  %2208 = vmatprep.mubr.f32.mxu0 0.0
  %2209 = vmatmul.mubr.f32.gmra.mrb[0].mxu0 %v1712
  %v2210 = vpop.f32.mrb[0].mxu0
  %v2211 = vadd.f32 0.0, %v2210
  %v2212 = vpop.f32.mrb[0].mxu0
  %2213 = vmatprep.mubr.f32.mxu0 0.0
  %2214 = vmatmul.mubr.f32.gmra.mrb[0].mxu0 %v1713
  %v2215 = vpop.f32.mrb[0].mxu0
  %v2216 = vadd.f32 0.0, %v2215
  %v2217 = vpop.f32.mrb[0].mxu0
  %2218 = vmatprep.mubr.f32.mxu0 0.0
  %2219 = vmatmul.mubr.f32.gmra.mrb[0].mxu0 %v1714
  %v2220 = vpop.f32.mrb[0].mxu0
  %v2221 = vadd.f32 0.0, %v2220
  %v2222 = vpop.f32.mrb[0].mxu0
  %2223 = vmatprep.mubr.f32.mxu0 0.0
  %2224 = vmatmul.mubr.f32.gmra.mrb[0].mxu0 %v1715
  %v2225 = vpop.f32.mrb[0].mxu0
  %v2226 = vadd.f32 0.0, %v2225
  %v2227 = vpop.f32.mrb[0].mxu0
  %2228 = vmatprep.mubr.f32.mxu0 0.0
  %2229 = vmatmul.mubr.f32.gmra.mrb[0].mxu0 %v1716
  %v2230 = vpop.f32.mrb[0].mxu0
  %v2231 = vadd.f32 0.0, %v2230
  %v2232 = vpop.f32.mrb[0].mxu0
  %2233 = vmatprep.mubr.f32.mxu0 0.0
  %2234 = vmatmul.mubr.f32.gmra.mrb[0].mxu0 %v1717
  %v2235 = vpop.f32.mrb[0].mxu0
  %v2236 = vadd.f32 0.0, %v2235
  %v2237 = vpop.f32.mrb[0].mxu0
  %2238 = vmatprep.mubr.f32.mxu0 0.0
  %2239 = vmatmul.mubr.f32.gmra.mrb[0].mxu0 %v1718
  %v2240 = vpop.f32.mrb[0].mxu0
  %v2241 = vadd.f32 0.0, %v2240
  %v2242 = vpop.f32.mrb[0].mxu0
  %2243 = vmatprep.mubr.f32.mxu0 0.0
  %2244 = vmatmul.mubr.f32.gmra.mrb[0].mxu0 %v1719
  %v2245 = vpop.f32.mrb[0].mxu0
  %v2246 = vadd.f32 0.0, %v2245
  %v2247 = vpop.f32.mrb[0].mxu0
  %2248 = vmatprep.mubr.f32.mxu0 0.0
  %2249 = vmatmul.mubr.f32.gmra.mrb[0].mxu0 %v1720
  %v2250 = vpop.f32.mrb[0].mxu0
  %v2251 = vadd.f32 0.0, %v2250
  %v2252 = vpop.f32.mrb[0].mxu0
  %2253 = vmatprep.mubr.f32.mxu0 0.0
  %2254 = vmatmul.mubr.f32.gmra.mrb[0].mxu0 %v1721
  %v2255 = vpop.f32.mrb[0].mxu0
  %v2256 = vadd.f32 0.0, %v2255
  %v2257 = vpop.f32.mrb[0].mxu0
  %2258 = vmatprep.mubr.f32.mxu0 0.0
  %2259 = vmatmul.mubr.f32.gmra.mrb[0].mxu0 %v1722
  %v2260 = vpop.f32.mrb[0].mxu0
  %v2261 = vadd.f32 0.0, %v2260
  %v2262 = vpop.f32.mrb[0].mxu0
  %2263 = vmatprep.mubr.f32.mxu0 0.0
  %2264 = vmatmul.mubr.f32.gmra.mrb[0].mxu0 %v1723
  %v2265 = vpop.f32.mrb[0].mxu0
  %v2266 = vadd.f32 0.0, %v2265
  %v2267 = vpop.f32.mrb[0].mxu0
  %2268 = vmatprep.mubr.f32.mxu0 0.0
  %2269 = vmatmul.mubr.f32.gmra.mrb[0].mxu0 %v1724
  %v2270 = vpop.f32.mrb[0].mxu0
  %v2271 = vadd.f32 0.0, %v2270
  %v2272 = vpop.f32.mrb[0].mxu0
  %2273 = vmatprep.mubr.f32.mxu0 0.0
  %2274 = vmatmul.mubr.f32.gmra.mrb[0].mxu0 %v1725
  %v2275 = vpop.f32.mrb[0].mxu0
  %v2276 = vadd.f32 0.0, %v2275
  %v2277 = vpop.f32.mrb[0].mxu0
  %2278 = vmatprep.mubr.f32.mxu0 0.0
  %2279 = vmatmul.mubr.f32.gmra.mrb[0].mxu0 %v1726
  %v2280 = vpop.f32.mrb[0].mxu0
  %v2281 = vadd.f32 0.0, %v2280
  %v2282 = vpop.f32.mrb[0].mxu0
  %2283 = vmatprep.mubr.f32.mxu0 0.0
  %2284 = vmatmul.mubr.f32.gmra.mrb[0].mxu0 %v1727
  %v2285 = vpop.f32.mrb[0].mxu0
  %v2286 = vadd.f32 0.0, %v2285
  %v2287 = vpop.f32.mrb[0].mxu0
  %2288 = vdwg.mxu0
  %vm2289 = vcmp.ge.f32.partialorder %v1811, 0.0
  %vm2290 = vcmp.ge.f32.partialorder %v1816, 0.0
  %vm2291 = vcmp.ge.f32.partialorder %v1821, 0.0
  %vm2292 = vcmp.ge.f32.partialorder %v1826, 0.0
  %vm2293 = vcmp.ge.f32.partialorder %v1831, 0.0
  %vm2294 = vcmp.ge.f32.partialorder %v1836, 0.0
  %vm2295 = vcmp.ge.f32.partialorder %v1841, 0.0
  %vm2296 = vcmp.ge.f32.partialorder %v1846, 0.0
  %vm2297 = vcmp.ge.f32.partialorder %v1851, 0.0
  %vm2298 = vcmp.ge.f32.partialorder %v1856, 0.0
  %vm2299 = vcmp.ge.f32.partialorder %v1861, 0.0
  %vm2300 = vcmp.ge.f32.partialorder %v1866, 0.0
  %vm2301 = vcmp.ge.f32.partialorder %v1871, 0.0
  %vm2302 = vcmp.ge.f32.partialorder %v1876, 0.0
  %vm2303 = vcmp.ge.f32.partialorder %v1881, 0.0
  %vm2304 = vcmp.ge.f32.partialorder %v1886, 0.0
  %vm2305 = vcmp.ge.f32.partialorder %v1891, 0.0
  %vm2306 = vcmp.ge.f32.partialorder %v1896, 0.0
  %vm2307 = vcmp.ge.f32.partialorder %v1901, 0.0
  %vm2308 = vcmp.ge.f32.partialorder %v1906, 0.0
  %vm2309 = vcmp.ge.f32.partialorder %v1911, 0.0
  %vm2310 = vcmp.ge.f32.partialorder %v1916, 0.0
  %vm2311 = vcmp.ge.f32.partialorder %v1921, 0.0
  %vm2312 = vcmp.ge.f32.partialorder %v1926, 0.0
  %vm2313 = vcmp.ge.f32.partialorder %v1931, 0.0
  %vm2314 = vcmp.ge.f32.partialorder %v1936, 0.0
  %vm2315 = vcmp.ge.f32.partialorder %v1941, 0.0
  %vm2316 = vcmp.ge.f32.partialorder %v1946, 0.0
  %vm2317 = vcmp.ge.f32.partialorder %v1951, 0.0
  %vm2318 = vcmp.ge.f32.partialorder %v1956, 0.0
  %vm2319 = vcmp.ge.f32.partialorder %v1961, 0.0
  %vm2320 = vcmp.ge.f32.partialorder %v1966, 0.0
  %vm2321 = vcmp.ge.f32.partialorder %v1971, 0.0
  %vm2322 = vcmp.ge.f32.partialorder %v1976, 0.0
  %vm2323 = vcmp.ge.f32.partialorder %v1981, 0.0
  %vm2324 = vcmp.ge.f32.partialorder %v1986, 0.0
  %vm2325 = vcmp.ge.f32.partialorder %v1991, 0.0
  %vm2326 = vcmp.ge.f32.partialorder %v1996, 0.0
  %vm2327 = vcmp.ge.f32.partialorder %v2001, 0.0
  %vm2328 = vcmp.ge.f32.partialorder %v2006, 0.0
  %vm2329 = vcmp.ge.f32.partialorder %v2011, 0.0
  %vm2330 = vcmp.ge.f32.partialorder %v2016, 0.0
  %vm2331 = vcmp.ge.f32.partialorder %v2021, 0.0
  %vm2332 = vcmp.ge.f32.partialorder %v2026, 0.0
  %vm2333 = vcmp.ge.f32.partialorder %v2031, 0.0
  %vm2334 = vcmp.ge.f32.partialorder %v2036, 0.0
  %vm2335 = vcmp.ge.f32.partialorder %v2041, 0.0
  %vm2336 = vcmp.ge.f32.partialorder %v2046, 0.0
  %vm2337 = vcmp.ge.f32.partialorder %v2051, 0.0
  %vm2338 = vcmp.ge.f32.partialorder %v2056, 0.0
  %vm2339 = vcmp.ge.f32.partialorder %v2061, 0.0
  %vm2340 = vcmp.ge.f32.partialorder %v2066, 0.0
  %vm2341 = vcmp.ge.f32.partialorder %v2071, 0.0
  %vm2342 = vcmp.ge.f32.partialorder %v2076, 0.0
  %vm2343 = vcmp.ge.f32.partialorder %v2081, 0.0
  %vm2344 = vcmp.ge.f32.partialorder %v2086, 0.0
  %vm2345 = vcmp.ge.f32.partialorder %v2091, 0.0
  %vm2346 = vcmp.ge.f32.partialorder %v2096, 0.0
  %vm2347 = vcmp.ge.f32.partialorder %v2101, 0.0
  %vm2348 = vcmp.ge.f32.partialorder %v2106, 0.0
  %vm2349 = vcmp.ge.f32.partialorder %v2111, 0.0
  %vm2350 = vcmp.ge.f32.partialorder %v2116, 0.0
  %vm2351 = vcmp.ge.f32.partialorder %v2121, 0.0
  %vm2352 = vcmp.ge.f32.partialorder %v2126, 0.0
  %vm2353 = vcmp.ge.f32.partialorder %v2131, 0.0
  %vm2354 = vcmp.ge.f32.partialorder %v2136, 0.0
  %vm2355 = vcmp.ge.f32.partialorder %v2141, 0.0
  %vm2356 = vcmp.ge.f32.partialorder %v2146, 0.0
  %vm2357 = vcmp.ge.f32.partialorder %v2151, 0.0
  %vm2358 = vcmp.ge.f32.partialorder %v2156, 0.0
  %vm2359 = vcmp.ge.f32.partialorder %v2161, 0.0
  %vm2360 = vcmp.ge.f32.partialorder %v2166, 0.0
  %vm2361 = vcmp.ge.f32.partialorder %v2171, 0.0
  %vm2362 = vcmp.ge.f32.partialorder %v2176, 0.0
  %vm2363 = vcmp.ge.f32.partialorder %v2181, 0.0
  %vm2364 = vcmp.ge.f32.partialorder %v2186, 0.0
  %vm2365 = vcmp.ge.f32.partialorder %v2191, 0.0
  %vm2366 = vcmp.ge.f32.partialorder %v2196, 0.0
  %vm2367 = vcmp.ge.f32.partialorder %v2201, 0.0
  %vm2368 = vcmp.ge.f32.partialorder %v2206, 0.0
  %vm2369 = vcmp.ge.f32.partialorder %v2211, 0.0
  %vm2370 = vcmp.ge.f32.partialorder %v2216, 0.0
  %vm2371 = vcmp.ge.f32.partialorder %v2221, 0.0
  %vm2372 = vcmp.ge.f32.partialorder %v2226, 0.0
  %vm2373 = vcmp.ge.f32.partialorder %v2231, 0.0
  %vm2374 = vcmp.ge.f32.partialorder %v2236, 0.0
  %vm2375 = vcmp.ge.f32.partialorder %v2241, 0.0
  %vm2376 = vcmp.ge.f32.partialorder %v2246, 0.0
  %vm2377 = vcmp.ge.f32.partialorder %v2251, 0.0
  %vm2378 = vcmp.ge.f32.partialorder %v2256, 0.0
  %vm2379 = vcmp.ge.f32.partialorder %v2261, 0.0
  %vm2380 = vcmp.ge.f32.partialorder %v2266, 0.0
  %vm2381 = vcmp.ge.f32.partialorder %v2271, 0.0
  %vm2382 = vcmp.ge.f32.partialorder %v2276, 0.0
  %vm2383 = vcmp.ge.f32.partialorder %v2281, 0.0
  %vm2384 = vcmp.ge.f32.partialorder %v2286, 0.0
  %v2385 = vmul.f32 %v1811, 0.1
  %v2386 = vmul.f32 %v1816, 0.1
  %v2387 = vmul.f32 %v1821, 0.1
  %v2388 = vmul.f32 %v1826, 0.1
  %v2389 = vmul.f32 %v1831, 0.1
  %v2390 = vmul.f32 %v1836, 0.1
  %v2391 = vmul.f32 %v1841, 0.1
  %v2392 = vmul.f32 %v1846, 0.1
  %v2393 = vmul.f32 %v1851, 0.1
  %v2394 = vmul.f32 %v1856, 0.1
  %v2395 = vmul.f32 %v1861, 0.1
  %v2396 = vmul.f32 %v1866, 0.1
  %v2397 = vmul.f32 %v1871, 0.1
  %v2398 = vmul.f32 %v1876, 0.1
  %v2399 = vmul.f32 %v1881, 0.1
  %v2400 = vmul.f32 %v1886, 0.1
  %v2401 = vmul.f32 %v1891, 0.1
  %v2402 = vmul.f32 %v1896, 0.1
  %v2403 = vmul.f32 %v1901, 0.1
  %v2404 = vmul.f32 %v1906, 0.1
  %v2405 = vmul.f32 %v1911, 0.1
  %v2406 = vmul.f32 %v1916, 0.1
  %v2407 = vmul.f32 %v1921, 0.1
  %v2408 = vmul.f32 %v1926, 0.1
  %v2409 = vmul.f32 %v1931, 0.1
  %v2410 = vmul.f32 %v1936, 0.1
  %v2411 = vmul.f32 %v1941, 0.1
  %v2412 = vmul.f32 %v1946, 0.1
  %v2413 = vmul.f32 %v1951, 0.1
  %v2414 = vmul.f32 %v1956, 0.1
  %v2415 = vmul.f32 %v1961, 0.1
  %v2416 = vmul.f32 %v1966, 0.1
  %v2417 = vmul.f32 %v1971, 0.1
  %v2418 = vmul.f32 %v1976, 0.1
  %v2419 = vmul.f32 %v1981, 0.1
  %v2420 = vmul.f32 %v1986, 0.1
  %v2421 = vmul.f32 %v1991, 0.1
  %v2422 = vmul.f32 %v1996, 0.1
  %v2423 = vmul.f32 %v2001, 0.1
  %v2424 = vmul.f32 %v2006, 0.1
  %v2425 = vmul.f32 %v2011, 0.1
  %v2426 = vmul.f32 %v2016, 0.1
  %v2427 = vmul.f32 %v2021, 0.1
  %v2428 = vmul.f32 %v2026, 0.1
  %v2429 = vmul.f32 %v2031, 0.1
  %v2430 = vmul.f32 %v2036, 0.1
  %v2431 = vmul.f32 %v2041, 0.1
  %v2432 = vmul.f32 %v2046, 0.1
  %v2433 = vmul.f32 %v2051, 0.1
  %v2434 = vmul.f32 %v2056, 0.1
  %v2435 = vmul.f32 %v2061, 0.1
  %v2436 = vmul.f32 %v2066, 0.1
  %v2437 = vmul.f32 %v2071, 0.1
  %v2438 = vmul.f32 %v2076, 0.1
  %v2439 = vmul.f32 %v2081, 0.1
  %v2440 = vmul.f32 %v2086, 0.1
  %v2441 = vmul.f32 %v2091, 0.1
  %v2442 = vmul.f32 %v2096, 0.1
  %v2443 = vmul.f32 %v2101, 0.1
  %v2444 = vmul.f32 %v2106, 0.1
  %v2445 = vmul.f32 %v2111, 0.1
  %v2446 = vmul.f32 %v2116, 0.1
  %v2447 = vmul.f32 %v2121, 0.1
  %v2448 = vmul.f32 %v2126, 0.1
  %v2449 = vmul.f32 %v2131, 0.1
  %v2450 = vmul.f32 %v2136, 0.1
  %v2451 = vmul.f32 %v2141, 0.1
  %v2452 = vmul.f32 %v2146, 0.1
  %v2453 = vmul.f32 %v2151, 0.1
  %v2454 = vmul.f32 %v2156, 0.1
  %v2455 = vmul.f32 %v2161, 0.1
  %v2456 = vmul.f32 %v2166, 0.1
  %v2457 = vmul.f32 %v2171, 0.1
  %v2458 = vmul.f32 %v2176, 0.1
  %v2459 = vmul.f32 %v2181, 0.1
  %v2460 = vmul.f32 %v2186, 0.1
  %v2461 = vmul.f32 %v2191, 0.1
  %v2462 = vmul.f32 %v2196, 0.1
  %v2463 = vmul.f32 %v2201, 0.1
  %v2464 = vmul.f32 %v2206, 0.1
  %v2465 = vmul.f32 %v2211, 0.1
  %v2466 = vmul.f32 %v2216, 0.1
  %v2467 = vmul.f32 %v2221, 0.1
  %v2468 = vmul.f32 %v2226, 0.1
  %v2469 = vmul.f32 %v2231, 0.1
  %v2470 = vmul.f32 %v2236, 0.1
  %v2471 = vmul.f32 %v2241, 0.1
  %v2472 = vmul.f32 %v2246, 0.1
  %v2473 = vmul.f32 %v2251, 0.1
  %v2474 = vmul.f32 %v2256, 0.1
  %v2475 = vmul.f32 %v2261, 0.1
  %v2476 = vmul.f32 %v2266, 0.1
  %v2477 = vmul.f32 %v2271, 0.1
  %v2478 = vmul.f32 %v2276, 0.1
  %v2479 = vmul.f32 %v2281, 0.1
  %v2480 = vmul.f32 %v2286, 0.1
  %v2481 = vsel %vm2289, %v1811, %v2385
  %v2482 = vsel %vm2290, %v1816, %v2386
  %v2483 = vsel %vm2291, %v1821, %v2387
  %v2484 = vsel %vm2292, %v1826, %v2388
  %v2485 = vsel %vm2293, %v1831, %v2389
  %v2486 = vsel %vm2294, %v1836, %v2390
  %v2487 = vsel %vm2295, %v1841, %v2391
  %v2488 = vsel %vm2296, %v1846, %v2392
  %v2489 = vsel %vm2297, %v1851, %v2393
  %v2490 = vsel %vm2298, %v1856, %v2394
  %v2491 = vsel %vm2299, %v1861, %v2395
  %v2492 = vsel %vm2300, %v1866, %v2396
  %v2493 = vsel %vm2301, %v1871, %v2397
  %v2494 = vsel %vm2302, %v1876, %v2398
  %v2495 = vsel %vm2303, %v1881, %v2399
  %v2496 = vsel %vm2304, %v1886, %v2400
  %v2497 = vsel %vm2305, %v1891, %v2401
  %v2498 = vsel %vm2306, %v1896, %v2402
  %v2499 = vsel %vm2307, %v1901, %v2403
  %v2500 = vsel %vm2308, %v1906, %v2404
  %v2501 = vsel %vm2309, %v1911, %v2405
  %v2502 = vsel %vm2310, %v1916, %v2406
  %v2503 = vsel %vm2311, %v1921, %v2407
  %v2504 = vsel %vm2312, %v1926, %v2408
  %v2505 = vsel %vm2313, %v1931, %v2409
  %v2506 = vsel %vm2314, %v1936, %v2410
  %v2507 = vsel %vm2315, %v1941, %v2411
  %v2508 = vsel %vm2316, %v1946, %v2412
  %v2509 = vsel %vm2317, %v1951, %v2413
  %v2510 = vsel %vm2318, %v1956, %v2414
  %v2511 = vsel %vm2319, %v1961, %v2415
  %v2512 = vsel %vm2320, %v1966, %v2416
  %v2513 = vsel %vm2321, %v1971, %v2417
  %v2514 = vsel %vm2322, %v1976, %v2418
  %v2515 = vsel %vm2323, %v1981, %v2419
  %v2516 = vsel %vm2324, %v1986, %v2420
  %v2517 = vsel %vm2325, %v1991, %v2421
  %v2518 = vsel %vm2326, %v1996, %v2422
  %v2519 = vsel %vm2327, %v2001, %v2423
  %v2520 = vsel %vm2328, %v2006, %v2424
  %v2521 = vsel %vm2329, %v2011, %v2425
  %v2522 = vsel %vm2330, %v2016, %v2426
  %v2523 = vsel %vm2331, %v2021, %v2427
  %v2524 = vsel %vm2332, %v2026, %v2428
  %v2525 = vsel %vm2333, %v2031, %v2429
  %v2526 = vsel %vm2334, %v2036, %v2430
  %v2527 = vsel %vm2335, %v2041, %v2431
  %v2528 = vsel %vm2336, %v2046, %v2432
  %v2529 = vsel %vm2337, %v2051, %v2433
  %v2530 = vsel %vm2338, %v2056, %v2434
  %v2531 = vsel %vm2339, %v2061, %v2435
  %v2532 = vsel %vm2340, %v2066, %v2436
  %v2533 = vsel %vm2341, %v2071, %v2437
  %v2534 = vsel %vm2342, %v2076, %v2438
  %v2535 = vsel %vm2343, %v2081, %v2439
  %v2536 = vsel %vm2344, %v2086, %v2440
  %v2537 = vsel %vm2345, %v2091, %v2441
  %v2538 = vsel %vm2346, %v2096, %v2442
  %v2539 = vsel %vm2347, %v2101, %v2443
  %v2540 = vsel %vm2348, %v2106, %v2444
  %v2541 = vsel %vm2349, %v2111, %v2445
  %v2542 = vsel %vm2350, %v2116, %v2446
  %v2543 = vsel %vm2351, %v2121, %v2447
  %v2544 = vsel %vm2352, %v2126, %v2448
  %v2545 = vsel %vm2353, %v2131, %v2449
  %v2546 = vsel %vm2354, %v2136, %v2450
  %v2547 = vsel %vm2355, %v2141, %v2451
  %v2548 = vsel %vm2356, %v2146, %v2452
  %v2549 = vsel %vm2357, %v2151, %v2453
  %v2550 = vsel %vm2358, %v2156, %v2454
  %v2551 = vsel %vm2359, %v2161, %v2455
  %v2552 = vsel %vm2360, %v2166, %v2456
  %v2553 = vsel %vm2361, %v2171, %v2457
  %v2554 = vsel %vm2362, %v2176, %v2458
  %v2555 = vsel %vm2363, %v2181, %v2459
  %v2556 = vsel %vm2364, %v2186, %v2460
  %v2557 = vsel %vm2365, %v2191, %v2461
  %v2558 = vsel %vm2366, %v2196, %v2462
  %v2559 = vsel %vm2367, %v2201, %v2463
  %v2560 = vsel %vm2368, %v2206, %v2464
  %v2561 = vsel %vm2369, %v2211, %v2465
  %v2562 = vsel %vm2370, %v2216, %v2466
  %v2563 = vsel %vm2371, %v2221, %v2467
  %v2564 = vsel %vm2372, %v2226, %v2468
  %v2565 = vsel %vm2373, %v2231, %v2469
  %v2566 = vsel %vm2374, %v2236, %v2470
  %v2567 = vsel %vm2375, %v2241, %v2471
  %v2568 = vsel %vm2376, %v2246, %v2472
  %v2569 = vsel %vm2377, %v2251, %v2473
  %v2570 = vsel %vm2378, %v2256, %v2474
  %v2571 = vsel %vm2379, %v2261, %v2475
  %v2572 = vsel %vm2380, %v2266, %v2476
  %v2573 = vsel %vm2381, %v2271, %v2477
  %v2574 = vsel %vm2382, %v2276, %v2478
  %v2575 = vsel %vm2383, %v2281, %v2479
  %v2576 = vsel %vm2384, %v2286, %v2480
  %2577 = vst [vmem:[%s3] sm:$0xff] %v2481
  %2578 = vst [vmem:[%s3 + $0x8] sm:$0xff] %v2482
  %2579 = vst [vmem:[%s3 + $0x10] sm:$0xff] %v2483
  %2580 = vst [vmem:[%s3 + $0x18] sm:$0xff] %v2484
  %2581 = vst [vmem:[%s3 + $0x20] sm:$0xff] %v2485
  %2582 = vst [vmem:[%s3 + $0x28] sm:$0xff] %v2486
  %2583 = vst [vmem:[%s3 + $0x30] sm:$0xff] %v2487
  %2584 = vst [vmem:[%s3 + $0x38] sm:$0xff] %v2488
  %2585 = vst [vmem:[%s3 + $0x40] sm:$0xff] %v2489
  %2586 = vst [vmem:[%s3 + $0x48] sm:$0xff] %v2490
  %2587 = vst [vmem:[%s3 + $0x50] sm:$0xff] %v2491
  %2588 = vst [vmem:[%s3 + $0x58] sm:$0xff] %v2492
  %2589 = vst [vmem:[%s3 + $0x60] sm:$0xff] %v2493
  %2590 = vst [vmem:[%s3 + $0x68] sm:$0xff] %v2494
  %2591 = vst [vmem:[%s3 + $0x70] sm:$0xff] %v2495
  %2592 = vst [vmem:[%s3 + $0x78] sm:$0xff] %v2496
  %2593 = vst [vmem:[%s3 + $0x80] sm:$0xff] %v2497
  %2594 = vst [vmem:[%s3 + $0x88] sm:$0xff] %v2498
  %2595 = vst [vmem:[%s3 + $0x90] sm:$0xff] %v2499
  %2596 = vst [vmem:[%s3 + $0x98] sm:$0xff] %v2500
  %2597 = vst [vmem:[%s3 + $0xa0] sm:$0xff] %v2501
  %2598 = vst [vmem:[%s3 + $0xa8] sm:$0xff] %v2502
  %2599 = vst [vmem:[%s3 + $0xb0] sm:$0xff] %v2503
  %2600 = vst [vmem:[%s3 + $0xb8] sm:$0xff] %v2504
  %2601 = vst [vmem:[%s3 + $0xc0] sm:$0xff] %v2505
  %2602 = vst [vmem:[%s3 + $0xc8] sm:$0xff] %v2506
  %2603 = vst [vmem:[%s3 + $0xd0] sm:$0xff] %v2507
  %2604 = vst [vmem:[%s3 + $0xd8] sm:$0xff] %v2508
  %2605 = vst [vmem:[%s3 + $0xe0] sm:$0xff] %v2509
  %2606 = vst [vmem:[%s3 + $0xe8] sm:$0xff] %v2510
  %2607 = vst [vmem:[%s3 + $0xf0] sm:$0xff] %v2511
  %2608 = vst [vmem:[%s3 + $0xf8] sm:$0xff] %v2512
  %2609 = vst [vmem:[%s3 + $0x100] sm:$0xff] %v2513
  %2610 = vst [vmem:[%s3 + $0x108] sm:$0xff] %v2514
  %2611 = vst [vmem:[%s3 + $0x110] sm:$0xff] %v2515
  %2612 = vst [vmem:[%s3 + $0x118] sm:$0xff] %v2516
  %2613 = vst [vmem:[%s3 + $0x120] sm:$0xff] %v2517
  %2614 = vst [vmem:[%s3 + $0x128] sm:$0xff] %v2518
  %2615 = vst [vmem:[%s3 + $0x130] sm:$0xff] %v2519
  %2616 = vst [vmem:[%s3 + $0x138] sm:$0xff] %v2520
  %2617 = vst [vmem:[%s3 + $0x140] sm:$0xff] %v2521
  %2618 = vst [vmem:[%s3 + $0x148] sm:$0xff] %v2522
  %2619 = vst [vmem:[%s3 + $0x150] sm:$0xff] %v2523
  %2620 = vst [vmem:[%s3 + $0x158] sm:$0xff] %v2524
  %2621 = vst [vmem:[%s3 + $0x160] sm:$0xff] %v2525
  %2622 = vst [vmem:[%s3 + $0x168] sm:$0xff] %v2526
  %2623 = vst [vmem:[%s3 + $0x170] sm:$0xff] %v2527
  %2624 = vst [vmem:[%s3 + $0x178] sm:$0xff] %v2528
  %2625 = vst [vmem:[%s3 + $0x180] sm:$0xff] %v2529
  %2626 = vst [vmem:[%s3 + $0x188] sm:$0xff] %v2530
  %2627 = vst [vmem:[%s3 + $0x190] sm:$0xff] %v2531
  %2628 = vst [vmem:[%s3 + $0x198] sm:$0xff] %v2532
  %2629 = vst [vmem:[%s3 + $0x1a0] sm:$0xff] %v2533
  %2630 = vst [vmem:[%s3 + $0x1a8] sm:$0xff] %v2534
  %2631 = vst [vmem:[%s3 + $0x1b0] sm:$0xff] %v2535
  %2632 = vst [vmem:[%s3 + $0x1b8] sm:$0xff] %v2536
  %2633 = vst [vmem:[%s3 + $0x1c0] sm:$0xff] %v2537
  %2634 = vst [vmem:[%s3 + $0x1c8] sm:$0xff] %v2538
  %2635 = vst [vmem:[%s3 + $0x1d0] sm:$0xff] %v2539
  %2636 = vst [vmem:[%s3 + $0x1d8] sm:$0xff] %v2540
  %2637 = vst [vmem:[%s3 + $0x1e0] sm:$0xff] %v2541
  %2638 = vst [vmem:[%s3 + $0x1e8] sm:$0xff] %v2542
  %2639 = vst [vmem:[%s3 + $0x1f0] sm:$0xff] %v2543
  %2640 = vst [vmem:[%s3 + $0x1f8] sm:$0xff] %v2544
  %2641 = vst [vmem:[%s3 + $0x200] sm:$0xff] %v2545
  %2642 = vst [vmem:[%s3 + $0x208] sm:$0xff] %v2546
  %2643 = vst [vmem:[%s3 + $0x210] sm:$0xff] %v2547
  %2644 = vst [vmem:[%s3 + $0x218] sm:$0xff] %v2548
  %2645 = vst [vmem:[%s3 + $0x220] sm:$0xff] %v2549
  %2646 = vst [vmem:[%s3 + $0x228] sm:$0xff] %v2550
  %2647 = vst [vmem:[%s3 + $0x230] sm:$0xff] %v2551
  %2648 = vst [vmem:[%s3 + $0x238] sm:$0xff] %v2552
  %2649 = vst [vmem:[%s3 + $0x240] sm:$0xff] %v2553
  %2650 = vst [vmem:[%s3 + $0x248] sm:$0xff] %v2554
  %2651 = vst [vmem:[%s3 + $0x250] sm:$0xff] %v2555
  %2652 = vst [vmem:[%s3 + $0x258] sm:$0xff] %v2556
  %2653 = vst [vmem:[%s3 + $0x260] sm:$0xff] %v2557
  %2654 = vst [vmem:[%s3 + $0x268] sm:$0xff] %v2558
  %2655 = vst [vmem:[%s3 + $0x270] sm:$0xff] %v2559
  %2656 = vst [vmem:[%s3 + $0x278] sm:$0xff] %v2560
  %2657 = vst [vmem:[%s3 + $0x280] sm:$0xff] %v2561
  %2658 = vst [vmem:[%s3 + $0x288] sm:$0xff] %v2562
  %2659 = vst [vmem:[%s3 + $0x290] sm:$0xff] %v2563
  %2660 = vst [vmem:[%s3 + $0x298] sm:$0xff] %v2564
  %2661 = vst [vmem:[%s3 + $0x2a0] sm:$0xff] %v2565
  %2662 = vst [vmem:[%s3 + $0x2a8] sm:$0xff] %v2566
  %2663 = vst [vmem:[%s3 + $0x2b0] sm:$0xff] %v2567
  %2664 = vst [vmem:[%s3 + $0x2b8] sm:$0xff] %v2568
  %2665 = vst [vmem:[%s3 + $0x2c0] sm:$0xff] %v2569
  %2666 = vst [vmem:[%s3 + $0x2c8] sm:$0xff] %v2570
  %2667 = vst [vmem:[%s3 + $0x2d0] sm:$0xff] %v2571
  %2668 = vst [vmem:[%s3 + $0x2d8] sm:$0xff] %v2572
  %2669 = vst [vmem:[%s3 + $0x2e0] sm:$0xff] %v2573
  %2670 = vst [vmem:[%s3 + $0x2e8] sm:$0xff] %v2574
  %2671 = vst [vmem:[%s3 + $0x2f0] sm:$0xff] %v2575
  %2672 = vst [vmem:[%s3 + $0x2f8] sm:$0xff] %v2576
  // Predicated region
  $region14: #{disentg_block_forward.9} parent=0 // pred_check
    _
  $region15: #{disentg_block_forward.9} parent=0 // pred_check_branch
    %2674 = sbr.rel (0) target = $region17
  $region16: #{disentg_block_forward.9} parent=0 // pred_region
    _
  $region17: #{disentg_block_forward.9} parent=0 // pred_fallthru
    _
  // Predicated region
  $region18: #{disentg_block_forward.9} parent=0 // pred_check
    _
  $region19: #{disentg_block_forward.9} parent=0 // pred_check_branch
    %2676 = sbr.rel (0) target = $region21
  $region20: #{disentg_block_forward.9} parent=0 // pred_region
    _
  $region21: #{disentg_block_forward.9} parent=0 // pred_fallthru
    _

// kernel: disentg_block_forward.6
$region0: #{disentg_block_forward.6}
  #allocation0 [shape = 'u32[]', space=smem, size = 0x4, offset = 0x4, fixed_abs, tag = 'smem constant byte address 0x4 - core index']
  #allocation1 [shape = 'u32[144,128]{1,0:T(1,128)}', space=vmem, size = 0x12000, scoped, tag = 'internal scratch']
  %s0 = inlined_call_operand.vmem [shape: f32[1152,384], index: 0, kind: input, shape index: {}]
  %s1 = inlined_call_operand.vmem [shape: f32[384,128], index: 1, kind: input, shape index: {}]
  %s2 = inlined_call_operand.vmem [shape: f32[1152,128], index: 2, kind: output, shape index: {}]
  %s3 = sld [smem:[#allocation0]]
  $region18: #{disentg_block_forward.6} parent=0
    _
  %s5 = ssub.s32 1, %s3
  %s6 = scalar_select 0, %s5, %s3
  // Predicated region
  $region2: #{disentg_block_forward.6} parent=0 // pred_check
    _
  $region3: #{disentg_block_forward.6} parent=0 // pred_check_branch
    %8 = sbr.rel (0) target = $region5
  $region4: #{disentg_block_forward.6} parent=0 // pred_region
    _
  $region5: #{disentg_block_forward.6} parent=0 // pred_fallthru
    _
  // Predicated region
  $region6: #{disentg_block_forward.6} parent=0 // pred_check
    _
  $region7: #{disentg_block_forward.6} parent=0 // pred_check_branch
    %10 = sbr.rel (0) target = $region9
  $region8: #{disentg_block_forward.6} parent=0 // pred_region
    _
  $region9: #{disentg_block_forward.6} parent=0 // pred_fallthru
    _
  %v11 = vld [vmem:[%s0] sm:$0xff]
  %v12 = vld [vmem:[%s0 + $0x8] sm:$0xff]
  %v13 = vld [vmem:[%s0 + $0x10] sm:$0xff]
  %v14 = vld [vmem:[%s0 + $0x18] sm:$0xff]
  %v15 = vld [vmem:[%s0 + $0x20] sm:$0xff]
  %v16 = vld [vmem:[%s0 + $0x28] sm:$0xff]
  %v17 = vld [vmem:[%s0 + $0x30] sm:$0xff]
  %v18 = vld [vmem:[%s0 + $0x38] sm:$0xff]
  %v19 = vld [vmem:[%s0 + $0x40] sm:$0xff]
  %v20 = vld [vmem:[%s0 + $0x48] sm:$0xff]
  %v21 = vld [vmem:[%s0 + $0x50] sm:$0xff]
  %v22 = vld [vmem:[%s0 + $0x58] sm:$0xff]
  %v23 = vld [vmem:[%s0 + $0x60] sm:$0xff]
  %v24 = vld [vmem:[%s0 + $0x68] sm:$0xff]
  %v25 = vld [vmem:[%s0 + $0x70] sm:$0xff]
  %v26 = vld [vmem:[%s0 + $0x78] sm:$0xff]
  %v27 = vld [vmem:[%s0 + $0x80] sm:$0xff]
  %v28 = vld [vmem:[%s0 + $0x88] sm:$0xff]
  %v29 = vld [vmem:[%s0 + $0x90] sm:$0xff]
  %v30 = vld [vmem:[%s0 + $0x98] sm:$0xff]
  %v31 = vld [vmem:[%s0 + $0xa0] sm:$0xff]
  %v32 = vld [vmem:[%s0 + $0xa8] sm:$0xff]
  %v33 = vld [vmem:[%s0 + $0xb0] sm:$0xff]
  %v34 = vld [vmem:[%s0 + $0xb8] sm:$0xff]
  %v35 = vld [vmem:[%s0 + $0xc0] sm:$0xff]
  %v36 = vld [vmem:[%s0 + $0xc8] sm:$0xff]
  %v37 = vld [vmem:[%s0 + $0xd0] sm:$0xff]
  %v38 = vld [vmem:[%s0 + $0xd8] sm:$0xff]
  %v39 = vld [vmem:[%s0 + $0xe0] sm:$0xff]
  %v40 = vld [vmem:[%s0 + $0xe8] sm:$0xff]
  %v41 = vld [vmem:[%s0 + $0xf0] sm:$0xff]
  %v42 = vld [vmem:[%s0 + $0xf8] sm:$0xff]
  %v43 = vld [vmem:[%s0 + $0x100] sm:$0xff]
  %v44 = vld [vmem:[%s0 + $0x108] sm:$0xff]
  %v45 = vld [vmem:[%s0 + $0x110] sm:$0xff]
  %v46 = vld [vmem:[%s0 + $0x118] sm:$0xff]
  %v47 = vld [vmem:[%s0 + $0x120] sm:$0xff]
  %v48 = vld [vmem:[%s0 + $0x128] sm:$0xff]
  %v49 = vld [vmem:[%s0 + $0x130] sm:$0xff]
  %v50 = vld [vmem:[%s0 + $0x138] sm:$0xff]
  %v51 = vld [vmem:[%s0 + $0x140] sm:$0xff]
  %v52 = vld [vmem:[%s0 + $0x148] sm:$0xff]
  %v53 = vld [vmem:[%s0 + $0x150] sm:$0xff]
  %v54 = vld [vmem:[%s0 + $0x158] sm:$0xff]
  %v55 = vld [vmem:[%s0 + $0x160] sm:$0xff]
  %v56 = vld [vmem:[%s0 + $0x168] sm:$0xff]
  %v57 = vld [vmem:[%s0 + $0x170] sm:$0xff]
  %v58 = vld [vmem:[%s0 + $0x178] sm:$0xff]
  %v59 = vld [vmem:[%s0 + $0x180] sm:$0xff]
  %v60 = vld [vmem:[%s0 + $0x188] sm:$0xff]
  %v61 = vld [vmem:[%s0 + $0x190] sm:$0xff]
  %v62 = vld [vmem:[%s0 + $0x198] sm:$0xff]
  %v63 = vld [vmem:[%s0 + $0x1a0] sm:$0xff]
  %v64 = vld [vmem:[%s0 + $0x1a8] sm:$0xff]
  %v65 = vld [vmem:[%s0 + $0x1b0] sm:$0xff]
  %v66 = vld [vmem:[%s0 + $0x1b8] sm:$0xff]
  %v67 = vld [vmem:[%s0 + $0x1c0] sm:$0xff]
  %v68 = vld [vmem:[%s0 + $0x1c8] sm:$0xff]
  %v69 = vld [vmem:[%s0 + $0x1d0] sm:$0xff]
  %v70 = vld [vmem:[%s0 + $0x1d8] sm:$0xff]
  %v71 = vld [vmem:[%s0 + $0x1e0] sm:$0xff]
  %v72 = vld [vmem:[%s0 + $0x1e8] sm:$0xff]
  %v73 = vld [vmem:[%s0 + $0x1f0] sm:$0xff]
  %v74 = vld [vmem:[%s0 + $0x1f8] sm:$0xff]
  %v75 = vld [vmem:[%s0 + $0x200] sm:$0xff]
  %v76 = vld [vmem:[%s0 + $0x208] sm:$0xff]
  %v77 = vld [vmem:[%s0 + $0x210] sm:$0xff]
  %v78 = vld [vmem:[%s0 + $0x218] sm:$0xff]
  %v79 = vld [vmem:[%s0 + $0x220] sm:$0xff]
  %v80 = vld [vmem:[%s0 + $0x228] sm:$0xff]
  %v81 = vld [vmem:[%s0 + $0x230] sm:$0xff]
  %v82 = vld [vmem:[%s0 + $0x238] sm:$0xff]
  %v83 = vld [vmem:[%s0 + $0x240] sm:$0xff]
  %v84 = vld [vmem:[%s0 + $0x248] sm:$0xff]
  %v85 = vld [vmem:[%s0 + $0x250] sm:$0xff]
  %v86 = vld [vmem:[%s0 + $0x258] sm:$0xff]
  %v87 = vld [vmem:[%s0 + $0x260] sm:$0xff]
  %v88 = vld [vmem:[%s0 + $0x268] sm:$0xff]
  %v89 = vld [vmem:[%s0 + $0x270] sm:$0xff]
  %v90 = vld [vmem:[%s0 + $0x278] sm:$0xff]
  %v91 = vld [vmem:[%s0 + $0x280] sm:$0xff]
  %v92 = vld [vmem:[%s0 + $0x288] sm:$0xff]
  %v93 = vld [vmem:[%s0 + $0x290] sm:$0xff]
  %v94 = vld [vmem:[%s0 + $0x298] sm:$0xff]
  %v95 = vld [vmem:[%s0 + $0x2a0] sm:$0xff]
  %v96 = vld [vmem:[%s0 + $0x2a8] sm:$0xff]
  %v97 = vld [vmem:[%s0 + $0x2b0] sm:$0xff]
  %v98 = vld [vmem:[%s0 + $0x2b8] sm:$0xff]
  %v99 = vld [vmem:[%s0 + $0x2c0] sm:$0xff]
  %v100 = vld [vmem:[%s0 + $0x2c8] sm:$0xff]
  %v101 = vld [vmem:[%s0 + $0x2d0] sm:$0xff]
  %v102 = vld [vmem:[%s0 + $0x2d8] sm:$0xff]
  %v103 = vld [vmem:[%s0 + $0x2e0] sm:$0xff]
  %v104 = vld [vmem:[%s0 + $0x2e8] sm:$0xff]
  %v105 = vld [vmem:[%s0 + $0x2f0] sm:$0xff]
  %v106 = vld [vmem:[%s0 + $0x2f8] sm:$0xff]
  %v107 = vld [vmem:[%s0 + $0x300] sm:$0xff]
  %v108 = vld [vmem:[%s0 + $0x308] sm:$0xff]
  %v109 = vld [vmem:[%s0 + $0x310] sm:$0xff]
  %v110 = vld [vmem:[%s0 + $0x318] sm:$0xff]
  %v111 = vld [vmem:[%s0 + $0x320] sm:$0xff]
  %v112 = vld [vmem:[%s0 + $0x328] sm:$0xff]
  %v113 = vld [vmem:[%s0 + $0x330] sm:$0xff]
  %v114 = vld [vmem:[%s0 + $0x338] sm:$0xff]
  %v115 = vld [vmem:[%s0 + $0x340] sm:$0xff]
  %v116 = vld [vmem:[%s0 + $0x348] sm:$0xff]
  %v117 = vld [vmem:[%s0 + $0x350] sm:$0xff]
  %v118 = vld [vmem:[%s0 + $0x358] sm:$0xff]
  %v119 = vld [vmem:[%s0 + $0x360] sm:$0xff]
  %v120 = vld [vmem:[%s0 + $0x368] sm:$0xff]
  %v121 = vld [vmem:[%s0 + $0x370] sm:$0xff]
  %v122 = vld [vmem:[%s0 + $0x378] sm:$0xff]
  %v123 = vld [vmem:[%s0 + $0x380] sm:$0xff]
  %v124 = vld [vmem:[%s0 + $0x388] sm:$0xff]
  %v125 = vld [vmem:[%s0 + $0x390] sm:$0xff]
  %v126 = vld [vmem:[%s0 + $0x398] sm:$0xff]
  %v127 = vld [vmem:[%s0 + $0x3a0] sm:$0xff]
  %v128 = vld [vmem:[%s0 + $0x3a8] sm:$0xff]
  %v129 = vld [vmem:[%s0 + $0x3b0] sm:$0xff]
  %v130 = vld [vmem:[%s0 + $0x3b8] sm:$0xff]
  %v131 = vld [vmem:[%s0 + $0x3c0] sm:$0xff]
  %v132 = vld [vmem:[%s0 + $0x3c8] sm:$0xff]
  %v133 = vld [vmem:[%s0 + $0x3d0] sm:$0xff]
  %v134 = vld [vmem:[%s0 + $0x3d8] sm:$0xff]
  %v135 = vld [vmem:[%s0 + $0x3e0] sm:$0xff]
  %v136 = vld [vmem:[%s0 + $0x3e8] sm:$0xff]
  %v137 = vld [vmem:[%s0 + $0x3f0] sm:$0xff]
  %v138 = vld [vmem:[%s0 + $0x3f8] sm:$0xff]
  %v139 = vld [vmem:[%s0 + $0x400] sm:$0xff]
  %v140 = vld [vmem:[%s0 + $0x408] sm:$0xff]
  %v141 = vld [vmem:[%s0 + $0x410] sm:$0xff]
  %v142 = vld [vmem:[%s0 + $0x418] sm:$0xff]
  %v143 = vld [vmem:[%s0 + $0x420] sm:$0xff]
  %v144 = vld [vmem:[%s0 + $0x428] sm:$0xff]
  %v145 = vld [vmem:[%s0 + $0x430] sm:$0xff]
  %v146 = vld [vmem:[%s0 + $0x438] sm:$0xff]
  %v147 = vld [vmem:[%s0 + $0x440] sm:$0xff]
  %v148 = vld [vmem:[%s0 + $0x448] sm:$0xff]
  %v149 = vld [vmem:[%s0 + $0x450] sm:$0xff]
  %v150 = vld [vmem:[%s0 + $0x458] sm:$0xff]
  %v151 = vld [vmem:[%s0 + $0x460] sm:$0xff]
  %v152 = vld [vmem:[%s0 + $0x468] sm:$0xff]
  %v153 = vld [vmem:[%s0 + $0x470] sm:$0xff]
  %v154 = vld [vmem:[%s0 + $0x478] sm:$0xff]
  %v155 = vld [vmem:[%s0 + $0x480] sm:$0xff]
  %v156 = vld [vmem:[%s0 + $0x488] sm:$0xff]
  %v157 = vld [vmem:[%s0 + $0x490] sm:$0xff]
  %v158 = vld [vmem:[%s0 + $0x498] sm:$0xff]
  %v159 = vld [vmem:[%s0 + $0x4a0] sm:$0xff]
  %v160 = vld [vmem:[%s0 + $0x4a8] sm:$0xff]
  %v161 = vld [vmem:[%s0 + $0x4b0] sm:$0xff]
  %v162 = vld [vmem:[%s0 + $0x4b8] sm:$0xff]
  %v163 = vld [vmem:[%s0 + $0x4c0] sm:$0xff]
  %v164 = vld [vmem:[%s0 + $0x4c8] sm:$0xff]
  %v165 = vld [vmem:[%s0 + $0x4d0] sm:$0xff]
  %v166 = vld [vmem:[%s0 + $0x4d8] sm:$0xff]
  %v167 = vld [vmem:[%s0 + $0x4e0] sm:$0xff]
  %v168 = vld [vmem:[%s0 + $0x4e8] sm:$0xff]
  %v169 = vld [vmem:[%s0 + $0x4f0] sm:$0xff]
  %v170 = vld [vmem:[%s0 + $0x4f8] sm:$0xff]
  %v171 = vld [vmem:[%s0 + $0x500] sm:$0xff]
  %v172 = vld [vmem:[%s0 + $0x508] sm:$0xff]
  %v173 = vld [vmem:[%s0 + $0x510] sm:$0xff]
  %v174 = vld [vmem:[%s0 + $0x518] sm:$0xff]
  %v175 = vld [vmem:[%s0 + $0x520] sm:$0xff]
  %v176 = vld [vmem:[%s0 + $0x528] sm:$0xff]
  %v177 = vld [vmem:[%s0 + $0x530] sm:$0xff]
  %v178 = vld [vmem:[%s0 + $0x538] sm:$0xff]
  %v179 = vld [vmem:[%s0 + $0x540] sm:$0xff]
  %v180 = vld [vmem:[%s0 + $0x548] sm:$0xff]
  %v181 = vld [vmem:[%s0 + $0x550] sm:$0xff]
  %v182 = vld [vmem:[%s0 + $0x558] sm:$0xff]
  %v183 = vld [vmem:[%s0 + $0x560] sm:$0xff]
  %v184 = vld [vmem:[%s0 + $0x568] sm:$0xff]
  %v185 = vld [vmem:[%s0 + $0x570] sm:$0xff]
  %v186 = vld [vmem:[%s0 + $0x578] sm:$0xff]
  %v187 = vld [vmem:[%s0 + $0x580] sm:$0xff]
  %v188 = vld [vmem:[%s0 + $0x588] sm:$0xff]
  %v189 = vld [vmem:[%s0 + $0x590] sm:$0xff]
  %v190 = vld [vmem:[%s0 + $0x598] sm:$0xff]
  %v191 = vld [vmem:[%s0 + $0x5a0] sm:$0xff]
  %v192 = vld [vmem:[%s0 + $0x5a8] sm:$0xff]
  %v193 = vld [vmem:[%s0 + $0x5b0] sm:$0xff]
  %v194 = vld [vmem:[%s0 + $0x5b8] sm:$0xff]
  %v195 = vld [vmem:[%s0 + $0x5c0] sm:$0xff]
  %v196 = vld [vmem:[%s0 + $0x5c8] sm:$0xff]
  %v197 = vld [vmem:[%s0 + $0x5d0] sm:$0xff]
  %v198 = vld [vmem:[%s0 + $0x5d8] sm:$0xff]
  %v199 = vld [vmem:[%s0 + $0x5e0] sm:$0xff]
  %v200 = vld [vmem:[%s0 + $0x5e8] sm:$0xff]
  %v201 = vld [vmem:[%s0 + $0x5f0] sm:$0xff]
  %v202 = vld [vmem:[%s0 + $0x5f8] sm:$0xff]
  %v203 = vld [vmem:[%s0 + $0x600] sm:$0xff]
  %v204 = vld [vmem:[%s0 + $0x608] sm:$0xff]
  %v205 = vld [vmem:[%s0 + $0x610] sm:$0xff]
  %v206 = vld [vmem:[%s0 + $0x618] sm:$0xff]
  %v207 = vld [vmem:[%s0 + $0x620] sm:$0xff]
  %v208 = vld [vmem:[%s0 + $0x628] sm:$0xff]
  %v209 = vld [vmem:[%s0 + $0x630] sm:$0xff]
  %v210 = vld [vmem:[%s0 + $0x638] sm:$0xff]
  %v211 = vld [vmem:[%s0 + $0x640] sm:$0xff]
  %v212 = vld [vmem:[%s0 + $0x648] sm:$0xff]
  %v213 = vld [vmem:[%s0 + $0x650] sm:$0xff]
  %v214 = vld [vmem:[%s0 + $0x658] sm:$0xff]
  %v215 = vld [vmem:[%s0 + $0x660] sm:$0xff]
  %v216 = vld [vmem:[%s0 + $0x668] sm:$0xff]
  %v217 = vld [vmem:[%s0 + $0x670] sm:$0xff]
  %v218 = vld [vmem:[%s0 + $0x678] sm:$0xff]
  %v219 = vld [vmem:[%s0 + $0x680] sm:$0xff]
  %v220 = vld [vmem:[%s0 + $0x688] sm:$0xff]
  %v221 = vld [vmem:[%s0 + $0x690] sm:$0xff]
  %v222 = vld [vmem:[%s0 + $0x698] sm:$0xff]
  %v223 = vld [vmem:[%s0 + $0x6a0] sm:$0xff]
  %v224 = vld [vmem:[%s0 + $0x6a8] sm:$0xff]
  %v225 = vld [vmem:[%s0 + $0x6b0] sm:$0xff]
  %v226 = vld [vmem:[%s0 + $0x6b8] sm:$0xff]
  %v227 = vld [vmem:[%s0 + $0x6c0] sm:$0xff]
  %v228 = vld [vmem:[%s0 + $0x6c8] sm:$0xff]
  %v229 = vld [vmem:[%s0 + $0x6d0] sm:$0xff]
  %v230 = vld [vmem:[%s0 + $0x6d8] sm:$0xff]
  %v231 = vld [vmem:[%s0 + $0x6e0] sm:$0xff]
  %v232 = vld [vmem:[%s0 + $0x6e8] sm:$0xff]
  %v233 = vld [vmem:[%s0 + $0x6f0] sm:$0xff]
  %v234 = vld [vmem:[%s0 + $0x6f8] sm:$0xff]
  %v235 = vld [vmem:[%s0 + $0x700] sm:$0xff]
  %v236 = vld [vmem:[%s0 + $0x708] sm:$0xff]
  %v237 = vld [vmem:[%s0 + $0x710] sm:$0xff]
  %v238 = vld [vmem:[%s0 + $0x718] sm:$0xff]
  %v239 = vld [vmem:[%s0 + $0x720] sm:$0xff]
  %v240 = vld [vmem:[%s0 + $0x728] sm:$0xff]
  %v241 = vld [vmem:[%s0 + $0x730] sm:$0xff]
  %v242 = vld [vmem:[%s0 + $0x738] sm:$0xff]
  %v243 = vld [vmem:[%s0 + $0x740] sm:$0xff]
  %v244 = vld [vmem:[%s0 + $0x748] sm:$0xff]
  %v245 = vld [vmem:[%s0 + $0x750] sm:$0xff]
  %v246 = vld [vmem:[%s0 + $0x758] sm:$0xff]
  %v247 = vld [vmem:[%s0 + $0x760] sm:$0xff]
  %v248 = vld [vmem:[%s0 + $0x768] sm:$0xff]
  %v249 = vld [vmem:[%s0 + $0x770] sm:$0xff]
  %v250 = vld [vmem:[%s0 + $0x778] sm:$0xff]
  %v251 = vld [vmem:[%s0 + $0x780] sm:$0xff]
  %v252 = vld [vmem:[%s0 + $0x788] sm:$0xff]
  %v253 = vld [vmem:[%s0 + $0x790] sm:$0xff]
  %v254 = vld [vmem:[%s0 + $0x798] sm:$0xff]
  %v255 = vld [vmem:[%s0 + $0x7a0] sm:$0xff]
  %v256 = vld [vmem:[%s0 + $0x7a8] sm:$0xff]
  %v257 = vld [vmem:[%s0 + $0x7b0] sm:$0xff]
  %v258 = vld [vmem:[%s0 + $0x7b8] sm:$0xff]
  %v259 = vld [vmem:[%s0 + $0x7c0] sm:$0xff]
  %v260 = vld [vmem:[%s0 + $0x7c8] sm:$0xff]
  %v261 = vld [vmem:[%s0 + $0x7d0] sm:$0xff]
  %v262 = vld [vmem:[%s0 + $0x7d8] sm:$0xff]
  %v263 = vld [vmem:[%s0 + $0x7e0] sm:$0xff]
  %v264 = vld [vmem:[%s0 + $0x7e8] sm:$0xff]
  %v265 = vld [vmem:[%s0 + $0x7f0] sm:$0xff]
  %v266 = vld [vmem:[%s0 + $0x7f8] sm:$0xff]
  %v267 = vld [vmem:[%s0 + $0x800] sm:$0xff]
  %v268 = vld [vmem:[%s0 + $0x808] sm:$0xff]
  %v269 = vld [vmem:[%s0 + $0x810] sm:$0xff]
  %v270 = vld [vmem:[%s0 + $0x818] sm:$0xff]
  %v271 = vld [vmem:[%s0 + $0x820] sm:$0xff]
  %v272 = vld [vmem:[%s0 + $0x828] sm:$0xff]
  %v273 = vld [vmem:[%s0 + $0x830] sm:$0xff]
  %v274 = vld [vmem:[%s0 + $0x838] sm:$0xff]
  %v275 = vld [vmem:[%s0 + $0x840] sm:$0xff]
  %v276 = vld [vmem:[%s0 + $0x848] sm:$0xff]
  %v277 = vld [vmem:[%s0 + $0x850] sm:$0xff]
  %v278 = vld [vmem:[%s0 + $0x858] sm:$0xff]
  %v279 = vld [vmem:[%s0 + $0x860] sm:$0xff]
  %v280 = vld [vmem:[%s0 + $0x868] sm:$0xff]
  %v281 = vld [vmem:[%s0 + $0x870] sm:$0xff]
  %v282 = vld [vmem:[%s0 + $0x878] sm:$0xff]
  %v283 = vld [vmem:[%s0 + $0x880] sm:$0xff]
  %v284 = vld [vmem:[%s0 + $0x888] sm:$0xff]
  %v285 = vld [vmem:[%s0 + $0x890] sm:$0xff]
  %v286 = vld [vmem:[%s0 + $0x898] sm:$0xff]
  %v287 = vld [vmem:[%s0 + $0x8a0] sm:$0xff]
  %v288 = vld [vmem:[%s0 + $0x8a8] sm:$0xff]
  %v289 = vld [vmem:[%s0 + $0x8b0] sm:$0xff]
  %v290 = vld [vmem:[%s0 + $0x8b8] sm:$0xff]
  %v291 = vld [vmem:[%s0 + $0x8c0] sm:$0xff]
  %v292 = vld [vmem:[%s0 + $0x8c8] sm:$0xff]
  %v293 = vld [vmem:[%s0 + $0x8d0] sm:$0xff]
  %v294 = vld [vmem:[%s0 + $0x8d8] sm:$0xff]
  %v295 = vld [vmem:[%s0 + $0x8e0] sm:$0xff]
  %v296 = vld [vmem:[%s0 + $0x8e8] sm:$0xff]
  %v297 = vld [vmem:[%s0 + $0x8f0] sm:$0xff]
  %v298 = vld [vmem:[%s0 + $0x8f8] sm:$0xff]
  %v299 = vld [vmem:[%s0 + $0x900] sm:$0xff]
  %v300 = vld [vmem:[%s0 + $0x908] sm:$0xff]
  %v301 = vld [vmem:[%s0 + $0x910] sm:$0xff]
  %v302 = vld [vmem:[%s0 + $0x918] sm:$0xff]
  %v303 = vld [vmem:[%s0 + $0x920] sm:$0xff]
  %v304 = vld [vmem:[%s0 + $0x928] sm:$0xff]
  %v305 = vld [vmem:[%s0 + $0x930] sm:$0xff]
  %v306 = vld [vmem:[%s0 + $0x938] sm:$0xff]
  %v307 = vld [vmem:[%s0 + $0x940] sm:$0xff]
  %v308 = vld [vmem:[%s0 + $0x948] sm:$0xff]
  %v309 = vld [vmem:[%s0 + $0x950] sm:$0xff]
  %v310 = vld [vmem:[%s0 + $0x958] sm:$0xff]
  %v311 = vld [vmem:[%s0 + $0x960] sm:$0xff]
  %v312 = vld [vmem:[%s0 + $0x968] sm:$0xff]
  %v313 = vld [vmem:[%s0 + $0x970] sm:$0xff]
  %v314 = vld [vmem:[%s0 + $0x978] sm:$0xff]
  %v315 = vld [vmem:[%s0 + $0x980] sm:$0xff]
  %v316 = vld [vmem:[%s0 + $0x988] sm:$0xff]
  %v317 = vld [vmem:[%s0 + $0x990] sm:$0xff]
  %v318 = vld [vmem:[%s0 + $0x998] sm:$0xff]
  %v319 = vld [vmem:[%s0 + $0x9a0] sm:$0xff]
  %v320 = vld [vmem:[%s0 + $0x9a8] sm:$0xff]
  %v321 = vld [vmem:[%s0 + $0x9b0] sm:$0xff]
  %v322 = vld [vmem:[%s0 + $0x9b8] sm:$0xff]
  %v323 = vld [vmem:[%s0 + $0x9c0] sm:$0xff]
  %v324 = vld [vmem:[%s0 + $0x9c8] sm:$0xff]
  %v325 = vld [vmem:[%s0 + $0x9d0] sm:$0xff]
  %v326 = vld [vmem:[%s0 + $0x9d8] sm:$0xff]
  %v327 = vld [vmem:[%s0 + $0x9e0] sm:$0xff]
  %v328 = vld [vmem:[%s0 + $0x9e8] sm:$0xff]
  %v329 = vld [vmem:[%s0 + $0x9f0] sm:$0xff]
  %v330 = vld [vmem:[%s0 + $0x9f8] sm:$0xff]
  %v331 = vld [vmem:[%s0 + $0xa00] sm:$0xff]
  %v332 = vld [vmem:[%s0 + $0xa08] sm:$0xff]
  %v333 = vld [vmem:[%s0 + $0xa10] sm:$0xff]
  %v334 = vld [vmem:[%s0 + $0xa18] sm:$0xff]
  %v335 = vld [vmem:[%s0 + $0xa20] sm:$0xff]
  %v336 = vld [vmem:[%s0 + $0xa28] sm:$0xff]
  %v337 = vld [vmem:[%s0 + $0xa30] sm:$0xff]
  %v338 = vld [vmem:[%s0 + $0xa38] sm:$0xff]
  %v339 = vld [vmem:[%s0 + $0xa40] sm:$0xff]
  %v340 = vld [vmem:[%s0 + $0xa48] sm:$0xff]
  %v341 = vld [vmem:[%s0 + $0xa50] sm:$0xff]
  %v342 = vld [vmem:[%s0 + $0xa58] sm:$0xff]
  %v343 = vld [vmem:[%s0 + $0xa60] sm:$0xff]
  %v344 = vld [vmem:[%s0 + $0xa68] sm:$0xff]
  %v345 = vld [vmem:[%s0 + $0xa70] sm:$0xff]
  %v346 = vld [vmem:[%s0 + $0xa78] sm:$0xff]
  %v347 = vld [vmem:[%s0 + $0xa80] sm:$0xff]
  %v348 = vld [vmem:[%s0 + $0xa88] sm:$0xff]
  %v349 = vld [vmem:[%s0 + $0xa90] sm:$0xff]
  %v350 = vld [vmem:[%s0 + $0xa98] sm:$0xff]
  %v351 = vld [vmem:[%s0 + $0xaa0] sm:$0xff]
  %v352 = vld [vmem:[%s0 + $0xaa8] sm:$0xff]
  %v353 = vld [vmem:[%s0 + $0xab0] sm:$0xff]
  %v354 = vld [vmem:[%s0 + $0xab8] sm:$0xff]
  %v355 = vld [vmem:[%s0 + $0xac0] sm:$0xff]
  %v356 = vld [vmem:[%s0 + $0xac8] sm:$0xff]
  %v357 = vld [vmem:[%s0 + $0xad0] sm:$0xff]
  %v358 = vld [vmem:[%s0 + $0xad8] sm:$0xff]
  %v359 = vld [vmem:[%s0 + $0xae0] sm:$0xff]
  %v360 = vld [vmem:[%s0 + $0xae8] sm:$0xff]
  %v361 = vld [vmem:[%s0 + $0xaf0] sm:$0xff]
  %v362 = vld [vmem:[%s0 + $0xaf8] sm:$0xff]
  %v363 = vld [vmem:[%s0 + $0xb00] sm:$0xff]
  %v364 = vld [vmem:[%s0 + $0xb08] sm:$0xff]
  %v365 = vld [vmem:[%s0 + $0xb10] sm:$0xff]
  %v366 = vld [vmem:[%s0 + $0xb18] sm:$0xff]
  %v367 = vld [vmem:[%s0 + $0xb20] sm:$0xff]
  %v368 = vld [vmem:[%s0 + $0xb28] sm:$0xff]
  %v369 = vld [vmem:[%s0 + $0xb30] sm:$0xff]
  %v370 = vld [vmem:[%s0 + $0xb38] sm:$0xff]
  %v371 = vld [vmem:[%s0 + $0xb40] sm:$0xff]
  %v372 = vld [vmem:[%s0 + $0xb48] sm:$0xff]
  %v373 = vld [vmem:[%s0 + $0xb50] sm:$0xff]
  %v374 = vld [vmem:[%s0 + $0xb58] sm:$0xff]
  %v375 = vld [vmem:[%s0 + $0xb60] sm:$0xff]
  %v376 = vld [vmem:[%s0 + $0xb68] sm:$0xff]
  %v377 = vld [vmem:[%s0 + $0xb70] sm:$0xff]
  %v378 = vld [vmem:[%s0 + $0xb78] sm:$0xff]
  %v379 = vld [vmem:[%s0 + $0xb80] sm:$0xff]
  %v380 = vld [vmem:[%s0 + $0xb88] sm:$0xff]
  %v381 = vld [vmem:[%s0 + $0xb90] sm:$0xff]
  %v382 = vld [vmem:[%s0 + $0xb98] sm:$0xff]
  %v383 = vld [vmem:[%s0 + $0xba0] sm:$0xff]
  %v384 = vld [vmem:[%s0 + $0xba8] sm:$0xff]
  %v385 = vld [vmem:[%s0 + $0xbb0] sm:$0xff]
  %v386 = vld [vmem:[%s0 + $0xbb8] sm:$0xff]
  %v387 = vld [vmem:[%s0 + $0xbc0] sm:$0xff]
  %v388 = vld [vmem:[%s0 + $0xbc8] sm:$0xff]
  %v389 = vld [vmem:[%s0 + $0xbd0] sm:$0xff]
  %v390 = vld [vmem:[%s0 + $0xbd8] sm:$0xff]
  %v391 = vld [vmem:[%s0 + $0xbe0] sm:$0xff]
  %v392 = vld [vmem:[%s0 + $0xbe8] sm:$0xff]
  %v393 = vld [vmem:[%s0 + $0xbf0] sm:$0xff]
  %v394 = vld [vmem:[%s0 + $0xbf8] sm:$0xff]
  %v395 = vld [vmem:[%s0 + $0xc00] sm:$0xff]
  %v396 = vld [vmem:[%s0 + $0xc08] sm:$0xff]
  %v397 = vld [vmem:[%s0 + $0xc10] sm:$0xff]
  %v398 = vld [vmem:[%s0 + $0xc18] sm:$0xff]
  %v399 = vld [vmem:[%s0 + $0xc20] sm:$0xff]
  %v400 = vld [vmem:[%s0 + $0xc28] sm:$0xff]
  %v401 = vld [vmem:[%s0 + $0xc30] sm:$0xff]
  %v402 = vld [vmem:[%s0 + $0xc38] sm:$0xff]
  %v403 = vld [vmem:[%s0 + $0xc40] sm:$0xff]
  %v404 = vld [vmem:[%s0 + $0xc48] sm:$0xff]
  %v405 = vld [vmem:[%s0 + $0xc50] sm:$0xff]
  %v406 = vld [vmem:[%s0 + $0xc58] sm:$0xff]
  %v407 = vld [vmem:[%s0 + $0xc60] sm:$0xff]
  %v408 = vld [vmem:[%s0 + $0xc68] sm:$0xff]
  %v409 = vld [vmem:[%s0 + $0xc70] sm:$0xff]
  %v410 = vld [vmem:[%s0 + $0xc78] sm:$0xff]
  %v411 = vld [vmem:[%s0 + $0xc80] sm:$0xff]
  %v412 = vld [vmem:[%s0 + $0xc88] sm:$0xff]
  %v413 = vld [vmem:[%s0 + $0xc90] sm:$0xff]
  %v414 = vld [vmem:[%s0 + $0xc98] sm:$0xff]
  %v415 = vld [vmem:[%s0 + $0xca0] sm:$0xff]
  %v416 = vld [vmem:[%s0 + $0xca8] sm:$0xff]
  %v417 = vld [vmem:[%s0 + $0xcb0] sm:$0xff]
  %v418 = vld [vmem:[%s0 + $0xcb8] sm:$0xff]
  %v419 = vld [vmem:[%s0 + $0xcc0] sm:$0xff]
  %v420 = vld [vmem:[%s0 + $0xcc8] sm:$0xff]
  %v421 = vld [vmem:[%s0 + $0xcd0] sm:$0xff]
  %v422 = vld [vmem:[%s0 + $0xcd8] sm:$0xff]
  %v423 = vld [vmem:[%s0 + $0xce0] sm:$0xff]
  %v424 = vld [vmem:[%s0 + $0xce8] sm:$0xff]
  %v425 = vld [vmem:[%s0 + $0xcf0] sm:$0xff]
  %v426 = vld [vmem:[%s0 + $0xcf8] sm:$0xff]
  %v427 = vld [vmem:[%s0 + $0xd00] sm:$0xff]
  %v428 = vld [vmem:[%s0 + $0xd08] sm:$0xff]
  %v429 = vld [vmem:[%s0 + $0xd10] sm:$0xff]
  %v430 = vld [vmem:[%s0 + $0xd18] sm:$0xff]
  %v431 = vld [vmem:[%s0 + $0xd20] sm:$0xff]
  %v432 = vld [vmem:[%s0 + $0xd28] sm:$0xff]
  %v433 = vld [vmem:[%s0 + $0xd30] sm:$0xff]
  %v434 = vld [vmem:[%s0 + $0xd38] sm:$0xff]
  %v435 = vld [vmem:[%s0 + $0xd40] sm:$0xff]
  %v436 = vld [vmem:[%s0 + $0xd48] sm:$0xff]
  %v437 = vld [vmem:[%s0 + $0xd50] sm:$0xff]
  %v438 = vld [vmem:[%s0 + $0xd58] sm:$0xff]
  %v439 = vld [vmem:[%s0 + $0xd60] sm:$0xff]
  %v440 = vld [vmem:[%s0 + $0xd68] sm:$0xff]
  %v441 = vld [vmem:[%s0 + $0xd70] sm:$0xff]
  %v442 = vld [vmem:[%s0 + $0xd78] sm:$0xff]
  %v443 = vld [vmem:[%s1] sm:$0xff]
  %v444 = vld [vmem:[%s1 + $0x8] sm:$0xff]
  %v445 = vld [vmem:[%s1 + $0x10] sm:$0xff]
  %v446 = vld [vmem:[%s1 + $0x18] sm:$0xff]
  %v447 = vld [vmem:[%s1 + $0x20] sm:$0xff]
  %v448 = vld [vmem:[%s1 + $0x28] sm:$0xff]
  %v449 = vld [vmem:[%s1 + $0x30] sm:$0xff]
  %v450 = vld [vmem:[%s1 + $0x38] sm:$0xff]
  %v451 = vld [vmem:[%s1 + $0x40] sm:$0xff]
  %v452 = vld [vmem:[%s1 + $0x48] sm:$0xff]
  %v453 = vld [vmem:[%s1 + $0x50] sm:$0xff]
  %v454 = vld [vmem:[%s1 + $0x58] sm:$0xff]
  %v455 = vld [vmem:[%s1 + $0x60] sm:$0xff]
  %v456 = vld [vmem:[%s1 + $0x68] sm:$0xff]
  %v457 = vld [vmem:[%s1 + $0x70] sm:$0xff]
  %v458 = vld [vmem:[%s1 + $0x78] sm:$0xff]
  %v459 = vld [vmem:[%s1 + $0x80] sm:$0xff]
  %v460 = vld [vmem:[%s1 + $0x88] sm:$0xff]
  %v461 = vld [vmem:[%s1 + $0x90] sm:$0xff]
  %v462 = vld [vmem:[%s1 + $0x98] sm:$0xff]
  %v463 = vld [vmem:[%s1 + $0xa0] sm:$0xff]
  %v464 = vld [vmem:[%s1 + $0xa8] sm:$0xff]
  %v465 = vld [vmem:[%s1 + $0xb0] sm:$0xff]
  %v466 = vld [vmem:[%s1 + $0xb8] sm:$0xff]
  %v467 = vld [vmem:[%s1 + $0xc0] sm:$0xff]
  %v468 = vld [vmem:[%s1 + $0xc8] sm:$0xff]
  %v469 = vld [vmem:[%s1 + $0xd0] sm:$0xff]
  %v470 = vld [vmem:[%s1 + $0xd8] sm:$0xff]
  %v471 = vld [vmem:[%s1 + $0xe0] sm:$0xff]
  %v472 = vld [vmem:[%s1 + $0xe8] sm:$0xff]
  %v473 = vld [vmem:[%s1 + $0xf0] sm:$0xff]
  %v474 = vld [vmem:[%s1 + $0xf8] sm:$0xff]
  %v475 = vld [vmem:[%s1 + $0x100] sm:$0xff]
  %v476 = vld [vmem:[%s1 + $0x108] sm:$0xff]
  %v477 = vld [vmem:[%s1 + $0x110] sm:$0xff]
  %v478 = vld [vmem:[%s1 + $0x118] sm:$0xff]
  %v479 = vld [vmem:[%s1 + $0x120] sm:$0xff]
  %v480 = vld [vmem:[%s1 + $0x128] sm:$0xff]
  %v481 = vld [vmem:[%s1 + $0x130] sm:$0xff]
  %v482 = vld [vmem:[%s1 + $0x138] sm:$0xff]
  %v483 = vld [vmem:[%s1 + $0x140] sm:$0xff]
  %v484 = vld [vmem:[%s1 + $0x148] sm:$0xff]
  %v485 = vld [vmem:[%s1 + $0x150] sm:$0xff]
  %v486 = vld [vmem:[%s1 + $0x158] sm:$0xff]
  %v487 = vld [vmem:[%s1 + $0x160] sm:$0xff]
  %v488 = vld [vmem:[%s1 + $0x168] sm:$0xff]
  %v489 = vld [vmem:[%s1 + $0x170] sm:$0xff]
  %v490 = vld [vmem:[%s1 + $0x178] sm:$0xff]
  %491 = vmatprep.subr.mxu0 0.0
  %492 = vmatpush1.msra.mxu0 %v443
  %493 = vmatprep.subr.mxu0 0.0
  %494 = vmatpush1.msra.mxu0 %v444
  %495 = vmatprep.subr.mxu0 0.0
  %496 = vmatpush1.msra.mxu0 %v445
  %497 = vmatprep.subr.mxu0 0.0
  %498 = vmatpush1.msra.mxu0 %v446
  %499 = vmatprep.subr.mxu0 0.0
  %500 = vmatpush1.msra.mxu0 %v447
  %501 = vmatprep.subr.mxu0 0.0
  %502 = vmatpush1.msra.mxu0 %v448
  %503 = vmatprep.subr.mxu0 0.0
  %504 = vmatpush1.msra.mxu0 %v449
  %505 = vmatprep.subr.mxu0 0.0
  %506 = vmatpush1.msra.mxu0 %v450
  %507 = vmatprep.subr.mxu0 0.0
  %508 = vmatpush1.msra.mxu0 %v451
  %509 = vmatprep.subr.mxu0 0.0
  %510 = vmatpush1.msra.mxu0 %v452
  %511 = vmatprep.subr.mxu0 0.0
  %512 = vmatpush1.msra.mxu0 %v453
  %513 = vmatprep.subr.mxu0 0.0
  %514 = vmatpush1.msra.mxu0 %v454
  %515 = vmatprep.subr.mxu0 0.0
  %516 = vmatpush1.msra.mxu0 %v455
  %517 = vmatprep.subr.mxu0 0.0
  %518 = vmatpush1.msra.mxu0 %v456
  %519 = vmatprep.subr.mxu0 0.0
  %520 = vmatpush1.msra.mxu0 %v457
  %521 = vmatprep.subr.mxu0 0.0
  %522 = vmatpush1.msra.mxu0 %v458
  %523 = vmatprep.subr.mxu0 0.0
  %524 = vmatpush1.msra.mxu0 %v459
  %525 = vmatprep.subr.mxu0 0.0
  %526 = vmatpush1.msra.mxu0 %v460
  %527 = vmatprep.subr.mxu0 0.0
  %528 = vmatpush1.msra.mxu0 %v461
  %529 = vmatprep.subr.mxu0 0.0
  %530 = vmatpush1.msra.mxu0 %v462
  %531 = vmatprep.subr.mxu0 0.0
  %532 = vmatpush1.msra.mxu0 %v463
  %533 = vmatprep.subr.mxu0 0.0
  %534 = vmatpush1.msra.mxu0 %v464
  %535 = vmatprep.subr.mxu0 0.0
  %536 = vmatpush1.msra.mxu0 %v465
  %537 = vmatprep.subr.mxu0 0.0
  %538 = vmatpush1.msra.mxu0 %v466
  %539 = vmatprep.subr.mxu0 0.0
  %540 = vmatpush1.msra.mxu0 %v467
  %541 = vmatprep.subr.mxu0 0.0
  %542 = vmatpush1.msra.mxu0 %v468
  %543 = vmatprep.subr.mxu0 0.0
  %544 = vmatpush1.msra.mxu0 %v469
  %545 = vmatprep.subr.mxu0 0.0
  %546 = vmatpush1.msra.mxu0 %v470
  %547 = vmatprep.subr.mxu0 0.0
  %548 = vmatpush1.msra.mxu0 %v471
  %549 = vmatprep.subr.mxu0 0.0
  %550 = vmatpush1.msra.mxu0 %v472
  %551 = vmatprep.subr.mxu0 0.0
  %552 = vmatpush1.msra.mxu0 %v473
  %553 = vmatprep.subr.mxu0 0.0
  %554 = vmatpush1.msra.mxu0 %v474
  %555 = vmatprep.mubr.f32.mxu0 %v12
  %556 = vmatmul.mubr.f32.gmra.mrb[0].mxu0 %v11
  %v557 = vpop.f32.mrb[0].mxu0
  %v558 = vadd.f32 0.0, %v557
  %v559 = vpop.f32.mrb[0].mxu0
  %560 = vmatprep.mubr.f32.mxu0 %v15
  %561 = vmatmul.mubr.f32.gmra.mrb[0].mxu0 %v14
  %v562 = vpop.f32.mrb[0].mxu0
  %v563 = vadd.f32 0.0, %v562
  %v564 = vpop.f32.mrb[0].mxu0
  %565 = vmatprep.mubr.f32.mxu0 %v18
  %566 = vmatmul.mubr.f32.gmra.mrb[0].mxu0 %v17
  %v567 = vpop.f32.mrb[0].mxu0
  %v568 = vadd.f32 0.0, %v567
  %v569 = vpop.f32.mrb[0].mxu0
  %570 = vmatprep.mubr.f32.mxu0 %v21
  %571 = vmatmul.mubr.f32.gmra.mrb[0].mxu0 %v20
  %v572 = vpop.f32.mrb[0].mxu0
  %v573 = vadd.f32 0.0, %v572
  %v574 = vpop.f32.mrb[0].mxu0
  %575 = vmatprep.mubr.f32.mxu0 %v24
  %576 = vmatmul.mubr.f32.gmra.mrb[0].mxu0 %v23
  %v577 = vpop.f32.mrb[0].mxu0
  %v578 = vadd.f32 0.0, %v577
  %v579 = vpop.f32.mrb[0].mxu0
  %580 = vmatprep.mubr.f32.mxu0 %v27
  %581 = vmatmul.mubr.f32.gmra.mrb[0].mxu0 %v26
  %v582 = vpop.f32.mrb[0].mxu0
  %v583 = vadd.f32 0.0, %v582
  %v584 = vpop.f32.mrb[0].mxu0
  %585 = vmatprep.mubr.f32.mxu0 %v30
  %586 = vmatmul.mubr.f32.gmra.mrb[0].mxu0 %v29
  %v587 = vpop.f32.mrb[0].mxu0
  %v588 = vadd.f32 0.0, %v587
  %v589 = vpop.f32.mrb[0].mxu0
  %590 = vmatprep.mubr.f32.mxu0 %v33
  %591 = vmatmul.mubr.f32.gmra.mrb[0].mxu0 %v32
  %v592 = vpop.f32.mrb[0].mxu0
  %v593 = vadd.f32 0.0, %v592
  %v594 = vpop.f32.mrb[0].mxu0
  %595 = vmatprep.mubr.f32.mxu0 %v36
  %596 = vmatmul.mubr.f32.gmra.mrb[0].mxu0 %v35
  %v597 = vpop.f32.mrb[0].mxu0
  %v598 = vadd.f32 0.0, %v597
  %v599 = vpop.f32.mrb[0].mxu0
  %600 = vmatprep.mubr.f32.mxu0 %v39
  %601 = vmatmul.mubr.f32.gmra.mrb[0].mxu0 %v38
  %v602 = vpop.f32.mrb[0].mxu0
  %v603 = vadd.f32 0.0, %v602
  %v604 = vpop.f32.mrb[0].mxu0
  %605 = vmatprep.mubr.f32.mxu0 %v42
  %606 = vmatmul.mubr.f32.gmra.mrb[0].mxu0 %v41
  %v607 = vpop.f32.mrb[0].mxu0
  %v608 = vadd.f32 0.0, %v607
  %v609 = vpop.f32.mrb[0].mxu0
  %610 = vmatprep.mubr.f32.mxu0 %v45
  %611 = vmatmul.mubr.f32.gmra.mrb[0].mxu0 %v44
  %v612 = vpop.f32.mrb[0].mxu0
  %v613 = vadd.f32 0.0, %v612
  %v614 = vpop.f32.mrb[0].mxu0
  %615 = vmatprep.mubr.f32.mxu0 %v48
  %616 = vmatmul.mubr.f32.gmra.mrb[0].mxu0 %v47
  %v617 = vpop.f32.mrb[0].mxu0
  %v618 = vadd.f32 0.0, %v617
  %v619 = vpop.f32.mrb[0].mxu0
  %620 = vmatprep.mubr.f32.mxu0 %v51
  %621 = vmatmul.mubr.f32.gmra.mrb[0].mxu0 %v50
  %v622 = vpop.f32.mrb[0].mxu0
  %v623 = vadd.f32 0.0, %v622
  %v624 = vpop.f32.mrb[0].mxu0
  %625 = vmatprep.mubr.f32.mxu0 %v54
  %626 = vmatmul.mubr.f32.gmra.mrb[0].mxu0 %v53
  %v627 = vpop.f32.mrb[0].mxu0
  %v628 = vadd.f32 0.0, %v627
  %v629 = vpop.f32.mrb[0].mxu0
  %630 = vmatprep.mubr.f32.mxu0 %v57
  %631 = vmatmul.mubr.f32.gmra.mrb[0].mxu0 %v56
  %v632 = vpop.f32.mrb[0].mxu0
  %v633 = vadd.f32 0.0, %v632
  %v634 = vpop.f32.mrb[0].mxu0
  %635 = vmatprep.mubr.f32.mxu0 %v60
  %636 = vmatmul.mubr.f32.gmra.mrb[0].mxu0 %v59
  %v637 = vpop.f32.mrb[0].mxu0
  %v638 = vadd.f32 0.0, %v637
  %v639 = vpop.f32.mrb[0].mxu0
  %640 = vmatprep.mubr.f32.mxu0 %v63
  %641 = vmatmul.mubr.f32.gmra.mrb[0].mxu0 %v62
  %v642 = vpop.f32.mrb[0].mxu0
  %v643 = vadd.f32 0.0, %v642
  %v644 = vpop.f32.mrb[0].mxu0
  %645 = vmatprep.mubr.f32.mxu0 %v66
  %646 = vmatmul.mubr.f32.gmra.mrb[0].mxu0 %v65
  %v647 = vpop.f32.mrb[0].mxu0
  %v648 = vadd.f32 0.0, %v647
  %v649 = vpop.f32.mrb[0].mxu0
  %650 = vmatprep.mubr.f32.mxu0 %v69
  %651 = vmatmul.mubr.f32.gmra.mrb[0].mxu0 %v68
  %v652 = vpop.f32.mrb[0].mxu0
  %v653 = vadd.f32 0.0, %v652
  %v654 = vpop.f32.mrb[0].mxu0
  %655 = vmatprep.mubr.f32.mxu0 %v72
  %656 = vmatmul.mubr.f32.gmra.mrb[0].mxu0 %v71
  %v657 = vpop.f32.mrb[0].mxu0
  %v658 = vadd.f32 0.0, %v657
  %v659 = vpop.f32.mrb[0].mxu0
  %660 = vmatprep.mubr.f32.mxu0 %v75
  %661 = vmatmul.mubr.f32.gmra.mrb[0].mxu0 %v74
  %v662 = vpop.f32.mrb[0].mxu0
  %v663 = vadd.f32 0.0, %v662
  %v664 = vpop.f32.mrb[0].mxu0
  %665 = vmatprep.mubr.f32.mxu0 %v78
  %666 = vmatmul.mubr.f32.gmra.mrb[0].mxu0 %v77
  %v667 = vpop.f32.mrb[0].mxu0
  %v668 = vadd.f32 0.0, %v667
  %v669 = vpop.f32.mrb[0].mxu0
  %670 = vmatprep.mubr.f32.mxu0 %v81
  %671 = vmatmul.mubr.f32.gmra.mrb[0].mxu0 %v80
  %v672 = vpop.f32.mrb[0].mxu0
  %v673 = vadd.f32 0.0, %v672
  %v674 = vpop.f32.mrb[0].mxu0
  %675 = vmatprep.mubr.f32.mxu0 %v84
  %676 = vmatmul.mubr.f32.gmra.mrb[0].mxu0 %v83
  %v677 = vpop.f32.mrb[0].mxu0
  %v678 = vadd.f32 0.0, %v677
  %v679 = vpop.f32.mrb[0].mxu0
  %680 = vmatprep.mubr.f32.mxu0 %v87
  %681 = vmatmul.mubr.f32.gmra.mrb[0].mxu0 %v86
  %v682 = vpop.f32.mrb[0].mxu0
  %v683 = vadd.f32 0.0, %v682
  %v684 = vpop.f32.mrb[0].mxu0
  %685 = vmatprep.mubr.f32.mxu0 %v90
  %686 = vmatmul.mubr.f32.gmra.mrb[0].mxu0 %v89
  %v687 = vpop.f32.mrb[0].mxu0
  %v688 = vadd.f32 0.0, %v687
  %v689 = vpop.f32.mrb[0].mxu0
  %690 = vmatprep.mubr.f32.mxu0 %v93
  %691 = vmatmul.mubr.f32.gmra.mrb[0].mxu0 %v92
  %v692 = vpop.f32.mrb[0].mxu0
  %v693 = vadd.f32 0.0, %v692
  %v694 = vpop.f32.mrb[0].mxu0
  %695 = vmatprep.mubr.f32.mxu0 %v96
  %696 = vmatmul.mubr.f32.gmra.mrb[0].mxu0 %v95
  %v697 = vpop.f32.mrb[0].mxu0
  %v698 = vadd.f32 0.0, %v697
  %v699 = vpop.f32.mrb[0].mxu0
  %700 = vmatprep.mubr.f32.mxu0 %v99
  %701 = vmatmul.mubr.f32.gmra.mrb[0].mxu0 %v98
  %v702 = vpop.f32.mrb[0].mxu0
  %v703 = vadd.f32 0.0, %v702
  %v704 = vpop.f32.mrb[0].mxu0
  %705 = vmatprep.mubr.f32.mxu0 %v102
  %706 = vmatmul.mubr.f32.gmra.mrb[0].mxu0 %v101
  %v707 = vpop.f32.mrb[0].mxu0
  %v708 = vadd.f32 0.0, %v707
  %v709 = vpop.f32.mrb[0].mxu0
  %710 = vmatprep.mubr.f32.mxu0 %v105
  %711 = vmatmul.mubr.f32.gmra.mrb[0].mxu0 %v104
  %v712 = vpop.f32.mrb[0].mxu0
  %v713 = vadd.f32 0.0, %v712
  %v714 = vpop.f32.mrb[0].mxu0
  %715 = vmatprep.mubr.f32.mxu0 %v108
  %716 = vmatmul.mubr.f32.gmra.mrb[0].mxu0 %v107
  %v717 = vpop.f32.mrb[0].mxu0
  %v718 = vadd.f32 0.0, %v717
  %v719 = vpop.f32.mrb[0].mxu0
  %720 = vmatprep.mubr.f32.mxu0 %v111
  %721 = vmatmul.mubr.f32.gmra.mrb[0].mxu0 %v110
  %v722 = vpop.f32.mrb[0].mxu0
  %v723 = vadd.f32 0.0, %v722
  %v724 = vpop.f32.mrb[0].mxu0
  %725 = vmatprep.mubr.f32.mxu0 %v114
  %726 = vmatmul.mubr.f32.gmra.mrb[0].mxu0 %v113
  %v727 = vpop.f32.mrb[0].mxu0
  %v728 = vadd.f32 0.0, %v727
  %v729 = vpop.f32.mrb[0].mxu0
  %730 = vmatprep.mubr.f32.mxu0 %v117
  %731 = vmatmul.mubr.f32.gmra.mrb[0].mxu0 %v116
  %v732 = vpop.f32.mrb[0].mxu0
  %v733 = vadd.f32 0.0, %v732
  %v734 = vpop.f32.mrb[0].mxu0
  %735 = vmatprep.mubr.f32.mxu0 %v120
  %736 = vmatmul.mubr.f32.gmra.mrb[0].mxu0 %v119
  %v737 = vpop.f32.mrb[0].mxu0
  %v738 = vadd.f32 0.0, %v737
  %v739 = vpop.f32.mrb[0].mxu0
  %740 = vmatprep.mubr.f32.mxu0 %v123
  %741 = vmatmul.mubr.f32.gmra.mrb[0].mxu0 %v122
  %v742 = vpop.f32.mrb[0].mxu0
  %v743 = vadd.f32 0.0, %v742
  %v744 = vpop.f32.mrb[0].mxu0
  %745 = vmatprep.mubr.f32.mxu0 %v126
  %746 = vmatmul.mubr.f32.gmra.mrb[0].mxu0 %v125
  %v747 = vpop.f32.mrb[0].mxu0
  %v748 = vadd.f32 0.0, %v747
  %v749 = vpop.f32.mrb[0].mxu0
  %750 = vmatprep.mubr.f32.mxu0 %v129
  %751 = vmatmul.mubr.f32.gmra.mrb[0].mxu0 %v128
  %v752 = vpop.f32.mrb[0].mxu0
  %v753 = vadd.f32 0.0, %v752
  %v754 = vpop.f32.mrb[0].mxu0
  %755 = vmatprep.mubr.f32.mxu0 %v132
  %756 = vmatmul.mubr.f32.gmra.mrb[0].mxu0 %v131
  %v757 = vpop.f32.mrb[0].mxu0
  %v758 = vadd.f32 0.0, %v757
  %v759 = vpop.f32.mrb[0].mxu0
  %760 = vmatprep.mubr.f32.mxu0 %v135
  %761 = vmatmul.mubr.f32.gmra.mrb[0].mxu0 %v134
  %v762 = vpop.f32.mrb[0].mxu0
  %v763 = vadd.f32 0.0, %v762
  %v764 = vpop.f32.mrb[0].mxu0
  %765 = vmatprep.mubr.f32.mxu0 %v138
  %766 = vmatmul.mubr.f32.gmra.mrb[0].mxu0 %v137
  %v767 = vpop.f32.mrb[0].mxu0
  %v768 = vadd.f32 0.0, %v767
  %v769 = vpop.f32.mrb[0].mxu0
  %770 = vmatprep.mubr.f32.mxu0 %v141
  %771 = vmatmul.mubr.f32.gmra.mrb[0].mxu0 %v140
  %v772 = vpop.f32.mrb[0].mxu0
  %v773 = vadd.f32 0.0, %v772
  %v774 = vpop.f32.mrb[0].mxu0
  %775 = vmatprep.mubr.f32.mxu0 %v144
  %776 = vmatmul.mubr.f32.gmra.mrb[0].mxu0 %v143
  %v777 = vpop.f32.mrb[0].mxu0
  %v778 = vadd.f32 0.0, %v777
  %v779 = vpop.f32.mrb[0].mxu0
  %780 = vmatprep.mubr.f32.mxu0 %v147
  %781 = vmatmul.mubr.f32.gmra.mrb[0].mxu0 %v146
  %v782 = vpop.f32.mrb[0].mxu0
  %v783 = vadd.f32 0.0, %v782
  %v784 = vpop.f32.mrb[0].mxu0
  %785 = vmatprep.mubr.f32.mxu0 %v150
  %786 = vmatmul.mubr.f32.gmra.mrb[0].mxu0 %v149
  %v787 = vpop.f32.mrb[0].mxu0
  %v788 = vadd.f32 0.0, %v787
  %v789 = vpop.f32.mrb[0].mxu0
  %790 = vmatprep.mubr.f32.mxu0 %v153
  %791 = vmatmul.mubr.f32.gmra.mrb[0].mxu0 %v152
  %v792 = vpop.f32.mrb[0].mxu0
  %v793 = vadd.f32 0.0, %v792
  %v794 = vpop.f32.mrb[0].mxu0
  %795 = vmatprep.mubr.f32.mxu0 %v156
  %796 = vmatmul.mubr.f32.gmra.mrb[0].mxu0 %v155
  %v797 = vpop.f32.mrb[0].mxu0
  %v798 = vadd.f32 0.0, %v797
  %v799 = vpop.f32.mrb[0].mxu0
  %800 = vmatprep.mubr.f32.mxu0 %v159
  %801 = vmatmul.mubr.f32.gmra.mrb[0].mxu0 %v158
  %v802 = vpop.f32.mrb[0].mxu0
  %v803 = vadd.f32 0.0, %v802
  %v804 = vpop.f32.mrb[0].mxu0
  %805 = vmatprep.mubr.f32.mxu0 %v162
  %806 = vmatmul.mubr.f32.gmra.mrb[0].mxu0 %v161
  %v807 = vpop.f32.mrb[0].mxu0
  %v808 = vadd.f32 0.0, %v807
  %v809 = vpop.f32.mrb[0].mxu0
  %810 = vmatprep.mubr.f32.mxu0 %v165
  %811 = vmatmul.mubr.f32.gmra.mrb[0].mxu0 %v164
  %v812 = vpop.f32.mrb[0].mxu0
  %v813 = vadd.f32 0.0, %v812
  %v814 = vpop.f32.mrb[0].mxu0
  %815 = vmatprep.mubr.f32.mxu0 %v168
  %816 = vmatmul.mubr.f32.gmra.mrb[0].mxu0 %v167
  %v817 = vpop.f32.mrb[0].mxu0
  %v818 = vadd.f32 0.0, %v817
  %v819 = vpop.f32.mrb[0].mxu0
  %820 = vmatprep.mubr.f32.mxu0 %v171
  %821 = vmatmul.mubr.f32.gmra.mrb[0].mxu0 %v170
  %v822 = vpop.f32.mrb[0].mxu0
  %v823 = vadd.f32 0.0, %v822
  %v824 = vpop.f32.mrb[0].mxu0
  %825 = vmatprep.mubr.f32.mxu0 %v174
  %826 = vmatmul.mubr.f32.gmra.mrb[0].mxu0 %v173
  %v827 = vpop.f32.mrb[0].mxu0
  %v828 = vadd.f32 0.0, %v827
  %v829 = vpop.f32.mrb[0].mxu0
  %830 = vmatprep.mubr.f32.mxu0 %v177
  %831 = vmatmul.mubr.f32.gmra.mrb[0].mxu0 %v176
  %v832 = vpop.f32.mrb[0].mxu0
  %v833 = vadd.f32 0.0, %v832
  %v834 = vpop.f32.mrb[0].mxu0
  %835 = vmatprep.mubr.f32.mxu0 %v180
  %836 = vmatmul.mubr.f32.gmra.mrb[0].mxu0 %v179
  %v837 = vpop.f32.mrb[0].mxu0
  %v838 = vadd.f32 0.0, %v837
  %v839 = vpop.f32.mrb[0].mxu0
  %840 = vmatprep.mubr.f32.mxu0 %v183
  %841 = vmatmul.mubr.f32.gmra.mrb[0].mxu0 %v182
  %v842 = vpop.f32.mrb[0].mxu0
  %v843 = vadd.f32 0.0, %v842
  %v844 = vpop.f32.mrb[0].mxu0
  %845 = vmatprep.mubr.f32.mxu0 %v186
  %846 = vmatmul.mubr.f32.gmra.mrb[0].mxu0 %v185
  %v847 = vpop.f32.mrb[0].mxu0
  %v848 = vadd.f32 0.0, %v847
  %v849 = vpop.f32.mrb[0].mxu0
  %850 = vmatprep.mubr.f32.mxu0 %v189
  %851 = vmatmul.mubr.f32.gmra.mrb[0].mxu0 %v188
  %v852 = vpop.f32.mrb[0].mxu0
  %v853 = vadd.f32 0.0, %v852
  %v854 = vpop.f32.mrb[0].mxu0
  %855 = vmatprep.mubr.f32.mxu0 %v192
  %856 = vmatmul.mubr.f32.gmra.mrb[0].mxu0 %v191
  %v857 = vpop.f32.mrb[0].mxu0
  %v858 = vadd.f32 0.0, %v857
  %v859 = vpop.f32.mrb[0].mxu0
  %860 = vmatprep.mubr.f32.mxu0 %v195
  %861 = vmatmul.mubr.f32.gmra.mrb[0].mxu0 %v194
  %v862 = vpop.f32.mrb[0].mxu0
  %v863 = vadd.f32 0.0, %v862
  %v864 = vpop.f32.mrb[0].mxu0
  %865 = vmatprep.mubr.f32.mxu0 %v198
  %866 = vmatmul.mubr.f32.gmra.mrb[0].mxu0 %v197
  %v867 = vpop.f32.mrb[0].mxu0
  %v868 = vadd.f32 0.0, %v867
  %v869 = vpop.f32.mrb[0].mxu0
  %870 = vmatprep.mubr.f32.mxu0 %v201
  %871 = vmatmul.mubr.f32.gmra.mrb[0].mxu0 %v200
  %v872 = vpop.f32.mrb[0].mxu0
  %v873 = vadd.f32 0.0, %v872
  %v874 = vpop.f32.mrb[0].mxu0
  %875 = vmatprep.mubr.f32.mxu0 %v204
  %876 = vmatmul.mubr.f32.gmra.mrb[0].mxu0 %v203
  %v877 = vpop.f32.mrb[0].mxu0
  %v878 = vadd.f32 0.0, %v877
  %v879 = vpop.f32.mrb[0].mxu0
  %880 = vmatprep.mubr.f32.mxu0 %v207
  %881 = vmatmul.mubr.f32.gmra.mrb[0].mxu0 %v206
  %v882 = vpop.f32.mrb[0].mxu0
  %v883 = vadd.f32 0.0, %v882
  %v884 = vpop.f32.mrb[0].mxu0
  %885 = vmatprep.mubr.f32.mxu0 %v210
  %886 = vmatmul.mubr.f32.gmra.mrb[0].mxu0 %v209
  %v887 = vpop.f32.mrb[0].mxu0
  %v888 = vadd.f32 0.0, %v887
  %v889 = vpop.f32.mrb[0].mxu0
  %890 = vmatprep.mubr.f32.mxu0 %v213
  %891 = vmatmul.mubr.f32.gmra.mrb[0].mxu0 %v212
  %v892 = vpop.f32.mrb[0].mxu0
  %v893 = vadd.f32 0.0, %v892
  %v894 = vpop.f32.mrb[0].mxu0
  %895 = vmatprep.mubr.f32.mxu0 %v216
  %896 = vmatmul.mubr.f32.gmra.mrb[0].mxu0 %v215
  %v897 = vpop.f32.mrb[0].mxu0
  %v898 = vadd.f32 0.0, %v897
  %v899 = vpop.f32.mrb[0].mxu0
  %900 = vmatprep.mubr.f32.mxu0 %v219
  %901 = vmatmul.mubr.f32.gmra.mrb[0].mxu0 %v218
  %v902 = vpop.f32.mrb[0].mxu0
  %v903 = vadd.f32 0.0, %v902
  %v904 = vpop.f32.mrb[0].mxu0
  %905 = vmatprep.mubr.f32.mxu0 %v222
  %906 = vmatmul.mubr.f32.gmra.mrb[0].mxu0 %v221
  %v907 = vpop.f32.mrb[0].mxu0
  %v908 = vadd.f32 0.0, %v907
  %v909 = vpop.f32.mrb[0].mxu0
  %910 = vmatprep.mubr.f32.mxu0 %v225
  %911 = vmatmul.mubr.f32.gmra.mrb[0].mxu0 %v224
  %v912 = vpop.f32.mrb[0].mxu0
  %v913 = vadd.f32 0.0, %v912
  %v914 = vpop.f32.mrb[0].mxu0
  %915 = vmatprep.mubr.f32.mxu0 %v228
  %916 = vmatmul.mubr.f32.gmra.mrb[0].mxu0 %v227
  %v917 = vpop.f32.mrb[0].mxu0
  %v918 = vadd.f32 0.0, %v917
  %v919 = vpop.f32.mrb[0].mxu0
  %920 = vmatprep.mubr.f32.mxu0 %v231
  %921 = vmatmul.mubr.f32.gmra.mrb[0].mxu0 %v230
  %v922 = vpop.f32.mrb[0].mxu0
  %v923 = vadd.f32 0.0, %v922
  %v924 = vpop.f32.mrb[0].mxu0
  %925 = vmatprep.mubr.f32.mxu0 %v234
  %926 = vmatmul.mubr.f32.gmra.mrb[0].mxu0 %v233
  %v927 = vpop.f32.mrb[0].mxu0
  %v928 = vadd.f32 0.0, %v927
  %v929 = vpop.f32.mrb[0].mxu0
  %930 = vmatprep.mubr.f32.mxu0 %v237
  %931 = vmatmul.mubr.f32.gmra.mrb[0].mxu0 %v236
  %v932 = vpop.f32.mrb[0].mxu0
  %v933 = vadd.f32 0.0, %v932
  %v934 = vpop.f32.mrb[0].mxu0
  %935 = vmatprep.mubr.f32.mxu0 %v240
  %936 = vmatmul.mubr.f32.gmra.mrb[0].mxu0 %v239
  %v937 = vpop.f32.mrb[0].mxu0
  %v938 = vadd.f32 0.0, %v937
  %v939 = vpop.f32.mrb[0].mxu0
  %940 = vmatprep.mubr.f32.mxu0 %v243
  %941 = vmatmul.mubr.f32.gmra.mrb[0].mxu0 %v242
  %v942 = vpop.f32.mrb[0].mxu0
  %v943 = vadd.f32 0.0, %v942
  %v944 = vpop.f32.mrb[0].mxu0
  %945 = vmatprep.mubr.f32.mxu0 %v246
  %946 = vmatmul.mubr.f32.gmra.mrb[0].mxu0 %v245
  %v947 = vpop.f32.mrb[0].mxu0
  %v948 = vadd.f32 0.0, %v947
  %v949 = vpop.f32.mrb[0].mxu0
  %950 = vmatprep.mubr.f32.mxu0 %v249
  %951 = vmatmul.mubr.f32.gmra.mrb[0].mxu0 %v248
  %v952 = vpop.f32.mrb[0].mxu0
  %v953 = vadd.f32 0.0, %v952
  %v954 = vpop.f32.mrb[0].mxu0
  %955 = vmatprep.mubr.f32.mxu0 %v252
  %956 = vmatmul.mubr.f32.gmra.mrb[0].mxu0 %v251
  %v957 = vpop.f32.mrb[0].mxu0
  %v958 = vadd.f32 0.0, %v957
  %v959 = vpop.f32.mrb[0].mxu0
  %960 = vmatprep.mubr.f32.mxu0 %v255
  %961 = vmatmul.mubr.f32.gmra.mrb[0].mxu0 %v254
  %v962 = vpop.f32.mrb[0].mxu0
  %v963 = vadd.f32 0.0, %v962
  %v964 = vpop.f32.mrb[0].mxu0
  %965 = vmatprep.mubr.f32.mxu0 %v258
  %966 = vmatmul.mubr.f32.gmra.mrb[0].mxu0 %v257
  %v967 = vpop.f32.mrb[0].mxu0
  %v968 = vadd.f32 0.0, %v967
  %v969 = vpop.f32.mrb[0].mxu0
  %970 = vmatprep.mubr.f32.mxu0 %v261
  %971 = vmatmul.mubr.f32.gmra.mrb[0].mxu0 %v260
  %v972 = vpop.f32.mrb[0].mxu0
  %v973 = vadd.f32 0.0, %v972
  %v974 = vpop.f32.mrb[0].mxu0
  %975 = vmatprep.mubr.f32.mxu0 %v264
  %976 = vmatmul.mubr.f32.gmra.mrb[0].mxu0 %v263
  %v977 = vpop.f32.mrb[0].mxu0
  %v978 = vadd.f32 0.0, %v977
  %v979 = vpop.f32.mrb[0].mxu0
  %980 = vmatprep.mubr.f32.mxu0 %v267
  %981 = vmatmul.mubr.f32.gmra.mrb[0].mxu0 %v266
  %v982 = vpop.f32.mrb[0].mxu0
  %v983 = vadd.f32 0.0, %v982
  %v984 = vpop.f32.mrb[0].mxu0
  %985 = vmatprep.mubr.f32.mxu0 %v270
  %986 = vmatmul.mubr.f32.gmra.mrb[0].mxu0 %v269
  %v987 = vpop.f32.mrb[0].mxu0
  %v988 = vadd.f32 0.0, %v987
  %v989 = vpop.f32.mrb[0].mxu0
  %990 = vmatprep.mubr.f32.mxu0 %v273
  %991 = vmatmul.mubr.f32.gmra.mrb[0].mxu0 %v272
  %v992 = vpop.f32.mrb[0].mxu0
  %v993 = vadd.f32 0.0, %v992
  %v994 = vpop.f32.mrb[0].mxu0
  %995 = vmatprep.mubr.f32.mxu0 %v276
  %996 = vmatmul.mubr.f32.gmra.mrb[0].mxu0 %v275
  %v997 = vpop.f32.mrb[0].mxu0
  %v998 = vadd.f32 0.0, %v997
  %v999 = vpop.f32.mrb[0].mxu0
  %1000 = vmatprep.mubr.f32.mxu0 %v279
  %1001 = vmatmul.mubr.f32.gmra.mrb[0].mxu0 %v278
  %v1002 = vpop.f32.mrb[0].mxu0
  %v1003 = vadd.f32 0.0, %v1002
  %v1004 = vpop.f32.mrb[0].mxu0
  %1005 = vmatprep.mubr.f32.mxu0 %v282
  %1006 = vmatmul.mubr.f32.gmra.mrb[0].mxu0 %v281
  %v1007 = vpop.f32.mrb[0].mxu0
  %v1008 = vadd.f32 0.0, %v1007
  %v1009 = vpop.f32.mrb[0].mxu0
  %1010 = vmatprep.mubr.f32.mxu0 %v285
  %1011 = vmatmul.mubr.f32.gmra.mrb[0].mxu0 %v284
  %v1012 = vpop.f32.mrb[0].mxu0
  %v1013 = vadd.f32 0.0, %v1012
  %v1014 = vpop.f32.mrb[0].mxu0
  %1015 = vmatprep.mubr.f32.mxu0 %v288
  %1016 = vmatmul.mubr.f32.gmra.mrb[0].mxu0 %v287
  %v1017 = vpop.f32.mrb[0].mxu0
  %v1018 = vadd.f32 0.0, %v1017
  %v1019 = vpop.f32.mrb[0].mxu0
  %1020 = vmatprep.mubr.f32.mxu0 %v291
  %1021 = vmatmul.mubr.f32.gmra.mrb[0].mxu0 %v290
  %v1022 = vpop.f32.mrb[0].mxu0
  %v1023 = vadd.f32 0.0, %v1022
  %v1024 = vpop.f32.mrb[0].mxu0
  %1025 = vmatprep.mubr.f32.mxu0 %v294
  %1026 = vmatmul.mubr.f32.gmra.mrb[0].mxu0 %v293
  %v1027 = vpop.f32.mrb[0].mxu0
  %v1028 = vadd.f32 0.0, %v1027
  %v1029 = vpop.f32.mrb[0].mxu0
  %1030 = vmatprep.mubr.f32.mxu0 %v297
  %1031 = vmatmul.mubr.f32.gmra.mrb[0].mxu0 %v296
  %v1032 = vpop.f32.mrb[0].mxu0
  %v1033 = vadd.f32 0.0, %v1032
  %v1034 = vpop.f32.mrb[0].mxu0
  %1035 = vmatprep.mubr.f32.mxu0 %v300
  %1036 = vmatmul.mubr.f32.gmra.mrb[0].mxu0 %v299
  %v1037 = vpop.f32.mrb[0].mxu0
  %v1038 = vadd.f32 0.0, %v1037
  %v1039 = vpop.f32.mrb[0].mxu0
  %1040 = vmatprep.mubr.f32.mxu0 %v303
  %1041 = vmatmul.mubr.f32.gmra.mrb[0].mxu0 %v302
  %v1042 = vpop.f32.mrb[0].mxu0
  %v1043 = vadd.f32 0.0, %v1042
  %v1044 = vpop.f32.mrb[0].mxu0
  %1045 = vmatprep.mubr.f32.mxu0 %v306
  %1046 = vmatmul.mubr.f32.gmra.mrb[0].mxu0 %v305
  %v1047 = vpop.f32.mrb[0].mxu0
  %v1048 = vadd.f32 0.0, %v1047
  %v1049 = vpop.f32.mrb[0].mxu0
  %1050 = vmatprep.mubr.f32.mxu0 %v309
  %1051 = vmatmul.mubr.f32.gmra.mrb[0].mxu0 %v308
  %v1052 = vpop.f32.mrb[0].mxu0
  %v1053 = vadd.f32 0.0, %v1052
  %v1054 = vpop.f32.mrb[0].mxu0
  %1055 = vmatprep.mubr.f32.mxu0 %v312
  %1056 = vmatmul.mubr.f32.gmra.mrb[0].mxu0 %v311
  %v1057 = vpop.f32.mrb[0].mxu0
  %v1058 = vadd.f32 0.0, %v1057
  %v1059 = vpop.f32.mrb[0].mxu0
  %1060 = vmatprep.mubr.f32.mxu0 %v315
  %1061 = vmatmul.mubr.f32.gmra.mrb[0].mxu0 %v314
  %v1062 = vpop.f32.mrb[0].mxu0
  %v1063 = vadd.f32 0.0, %v1062
  %v1064 = vpop.f32.mrb[0].mxu0
  %1065 = vmatprep.mubr.f32.mxu0 %v318
  %1066 = vmatmul.mubr.f32.gmra.mrb[0].mxu0 %v317
  %v1067 = vpop.f32.mrb[0].mxu0
  %v1068 = vadd.f32 0.0, %v1067
  %v1069 = vpop.f32.mrb[0].mxu0
  %1070 = vmatprep.mubr.f32.mxu0 %v321
  %1071 = vmatmul.mubr.f32.gmra.mrb[0].mxu0 %v320
  %v1072 = vpop.f32.mrb[0].mxu0
  %v1073 = vadd.f32 0.0, %v1072
  %v1074 = vpop.f32.mrb[0].mxu0
  %1075 = vmatprep.mubr.f32.mxu0 %v324
  %1076 = vmatmul.mubr.f32.gmra.mrb[0].mxu0 %v323
  %v1077 = vpop.f32.mrb[0].mxu0
  %v1078 = vadd.f32 0.0, %v1077
  %v1079 = vpop.f32.mrb[0].mxu0
  %1080 = vmatprep.mubr.f32.mxu0 %v327
  %1081 = vmatmul.mubr.f32.gmra.mrb[0].mxu0 %v326
  %v1082 = vpop.f32.mrb[0].mxu0
  %v1083 = vadd.f32 0.0, %v1082
  %v1084 = vpop.f32.mrb[0].mxu0
  %1085 = vmatprep.mubr.f32.mxu0 %v330
  %1086 = vmatmul.mubr.f32.gmra.mrb[0].mxu0 %v329
  %v1087 = vpop.f32.mrb[0].mxu0
  %v1088 = vadd.f32 0.0, %v1087
  %v1089 = vpop.f32.mrb[0].mxu0
  %1090 = vmatprep.mubr.f32.mxu0 %v333
  %1091 = vmatmul.mubr.f32.gmra.mrb[0].mxu0 %v332
  %v1092 = vpop.f32.mrb[0].mxu0
  %v1093 = vadd.f32 0.0, %v1092
  %v1094 = vpop.f32.mrb[0].mxu0
  %1095 = vmatprep.mubr.f32.mxu0 %v336
  %1096 = vmatmul.mubr.f32.gmra.mrb[0].mxu0 %v335
  %v1097 = vpop.f32.mrb[0].mxu0
  %v1098 = vadd.f32 0.0, %v1097
  %v1099 = vpop.f32.mrb[0].mxu0
  %1100 = vmatprep.mubr.f32.mxu0 %v339
  %1101 = vmatmul.mubr.f32.gmra.mrb[0].mxu0 %v338
  %v1102 = vpop.f32.mrb[0].mxu0
  %v1103 = vadd.f32 0.0, %v1102
  %v1104 = vpop.f32.mrb[0].mxu0
  %1105 = vmatprep.mubr.f32.mxu0 %v342
  %1106 = vmatmul.mubr.f32.gmra.mrb[0].mxu0 %v341
  %v1107 = vpop.f32.mrb[0].mxu0
  %v1108 = vadd.f32 0.0, %v1107
  %v1109 = vpop.f32.mrb[0].mxu0
  %1110 = vmatprep.mubr.f32.mxu0 %v345
  %1111 = vmatmul.mubr.f32.gmra.mrb[0].mxu0 %v344
  %v1112 = vpop.f32.mrb[0].mxu0
  %v1113 = vadd.f32 0.0, %v1112
  %v1114 = vpop.f32.mrb[0].mxu0
  %1115 = vmatprep.mubr.f32.mxu0 %v348
  %1116 = vmatmul.mubr.f32.gmra.mrb[0].mxu0 %v347
  %v1117 = vpop.f32.mrb[0].mxu0
  %v1118 = vadd.f32 0.0, %v1117
  %v1119 = vpop.f32.mrb[0].mxu0
  %1120 = vmatprep.mubr.f32.mxu0 %v351
  %1121 = vmatmul.mubr.f32.gmra.mrb[0].mxu0 %v350
  %v1122 = vpop.f32.mrb[0].mxu0
  %v1123 = vadd.f32 0.0, %v1122
  %v1124 = vpop.f32.mrb[0].mxu0
  %1125 = vmatprep.mubr.f32.mxu0 %v354
  %1126 = vmatmul.mubr.f32.gmra.mrb[0].mxu0 %v353
  %v1127 = vpop.f32.mrb[0].mxu0
  %v1128 = vadd.f32 0.0, %v1127
  %v1129 = vpop.f32.mrb[0].mxu0
  %1130 = vmatprep.mubr.f32.mxu0 %v357
  %1131 = vmatmul.mubr.f32.gmra.mrb[0].mxu0 %v356
  %v1132 = vpop.f32.mrb[0].mxu0
  %v1133 = vadd.f32 0.0, %v1132
  %v1134 = vpop.f32.mrb[0].mxu0
  %1135 = vmatprep.mubr.f32.mxu0 %v360
  %1136 = vmatmul.mubr.f32.gmra.mrb[0].mxu0 %v359
  %v1137 = vpop.f32.mrb[0].mxu0
  %v1138 = vadd.f32 0.0, %v1137
  %v1139 = vpop.f32.mrb[0].mxu0
  %1140 = vmatprep.mubr.f32.mxu0 %v363
  %1141 = vmatmul.mubr.f32.gmra.mrb[0].mxu0 %v362
  %v1142 = vpop.f32.mrb[0].mxu0
  %v1143 = vadd.f32 0.0, %v1142
  %v1144 = vpop.f32.mrb[0].mxu0
  %1145 = vmatprep.mubr.f32.mxu0 %v366
  %1146 = vmatmul.mubr.f32.gmra.mrb[0].mxu0 %v365
  %v1147 = vpop.f32.mrb[0].mxu0
  %v1148 = vadd.f32 0.0, %v1147
  %v1149 = vpop.f32.mrb[0].mxu0
  %1150 = vmatprep.mubr.f32.mxu0 %v369
  %1151 = vmatmul.mubr.f32.gmra.mrb[0].mxu0 %v368
  %v1152 = vpop.f32.mrb[0].mxu0
  %v1153 = vadd.f32 0.0, %v1152
  %v1154 = vpop.f32.mrb[0].mxu0
  %1155 = vmatprep.mubr.f32.mxu0 %v372
  %1156 = vmatmul.mubr.f32.gmra.mrb[0].mxu0 %v371
  %v1157 = vpop.f32.mrb[0].mxu0
  %v1158 = vadd.f32 0.0, %v1157
  %v1159 = vpop.f32.mrb[0].mxu0
  %1160 = vmatprep.mubr.f32.mxu0 %v375
  %1161 = vmatmul.mubr.f32.gmra.mrb[0].mxu0 %v374
  %v1162 = vpop.f32.mrb[0].mxu0
  %v1163 = vadd.f32 0.0, %v1162
  %v1164 = vpop.f32.mrb[0].mxu0
  %1165 = vmatprep.mubr.f32.mxu0 %v378
  %1166 = vmatmul.mubr.f32.gmra.mrb[0].mxu0 %v377
  %v1167 = vpop.f32.mrb[0].mxu0
  %v1168 = vadd.f32 0.0, %v1167
  %v1169 = vpop.f32.mrb[0].mxu0
  %1170 = vmatprep.mubr.f32.mxu0 %v381
  %1171 = vmatmul.mubr.f32.gmra.mrb[0].mxu0 %v380
  %v1172 = vpop.f32.mrb[0].mxu0
  %v1173 = vadd.f32 0.0, %v1172
  %v1174 = vpop.f32.mrb[0].mxu0
  %1175 = vmatprep.mubr.f32.mxu0 %v384
  %1176 = vmatmul.mubr.f32.gmra.mrb[0].mxu0 %v383
  %v1177 = vpop.f32.mrb[0].mxu0
  %v1178 = vadd.f32 0.0, %v1177
  %v1179 = vpop.f32.mrb[0].mxu0
  %1180 = vmatprep.mubr.f32.mxu0 %v387
  %1181 = vmatmul.mubr.f32.gmra.mrb[0].mxu0 %v386
  %v1182 = vpop.f32.mrb[0].mxu0
  %v1183 = vadd.f32 0.0, %v1182
  %v1184 = vpop.f32.mrb[0].mxu0
  %1185 = vmatprep.mubr.f32.mxu0 %v390
  %1186 = vmatmul.mubr.f32.gmra.mrb[0].mxu0 %v389
  %v1187 = vpop.f32.mrb[0].mxu0
  %v1188 = vadd.f32 0.0, %v1187
  %v1189 = vpop.f32.mrb[0].mxu0
  %1190 = vmatprep.mubr.f32.mxu0 %v393
  %1191 = vmatmul.mubr.f32.gmra.mrb[0].mxu0 %v392
  %v1192 = vpop.f32.mrb[0].mxu0
  %v1193 = vadd.f32 0.0, %v1192
  %v1194 = vpop.f32.mrb[0].mxu0
  %1195 = vmatprep.mubr.f32.mxu0 %v396
  %1196 = vmatmul.mubr.f32.gmra.mrb[0].mxu0 %v395
  %v1197 = vpop.f32.mrb[0].mxu0
  %v1198 = vadd.f32 0.0, %v1197
  %v1199 = vpop.f32.mrb[0].mxu0
  %1200 = vmatprep.mubr.f32.mxu0 %v399
  %1201 = vmatmul.mubr.f32.gmra.mrb[0].mxu0 %v398
  %v1202 = vpop.f32.mrb[0].mxu0
  %v1203 = vadd.f32 0.0, %v1202
  %v1204 = vpop.f32.mrb[0].mxu0
  %1205 = vmatprep.mubr.f32.mxu0 %v402
  %1206 = vmatmul.mubr.f32.gmra.mrb[0].mxu0 %v401
  %v1207 = vpop.f32.mrb[0].mxu0
  %v1208 = vadd.f32 0.0, %v1207
  %v1209 = vpop.f32.mrb[0].mxu0
  %1210 = vmatprep.mubr.f32.mxu0 %v405
  %1211 = vmatmul.mubr.f32.gmra.mrb[0].mxu0 %v404
  %v1212 = vpop.f32.mrb[0].mxu0
  %v1213 = vadd.f32 0.0, %v1212
  %v1214 = vpop.f32.mrb[0].mxu0
  %1215 = vmatprep.mubr.f32.mxu0 %v408
  %1216 = vmatmul.mubr.f32.gmra.mrb[0].mxu0 %v407
  %v1217 = vpop.f32.mrb[0].mxu0
  %v1218 = vadd.f32 0.0, %v1217
  %v1219 = vpop.f32.mrb[0].mxu0
  %1220 = vmatprep.mubr.f32.mxu0 %v411
  %1221 = vmatmul.mubr.f32.gmra.mrb[0].mxu0 %v410
  %v1222 = vpop.f32.mrb[0].mxu0
  %v1223 = vadd.f32 0.0, %v1222
  %v1224 = vpop.f32.mrb[0].mxu0
  %1225 = vmatprep.mubr.f32.mxu0 %v414
  %1226 = vmatmul.mubr.f32.gmra.mrb[0].mxu0 %v413
  %v1227 = vpop.f32.mrb[0].mxu0
  %v1228 = vadd.f32 0.0, %v1227
  %v1229 = vpop.f32.mrb[0].mxu0
  %1230 = vmatprep.mubr.f32.mxu0 %v417
  %1231 = vmatmul.mubr.f32.gmra.mrb[0].mxu0 %v416
  %v1232 = vpop.f32.mrb[0].mxu0
  %v1233 = vadd.f32 0.0, %v1232
  %v1234 = vpop.f32.mrb[0].mxu0
  %1235 = vmatprep.mubr.f32.mxu0 %v420
  %1236 = vmatmul.mubr.f32.gmra.mrb[0].mxu0 %v419
  %v1237 = vpop.f32.mrb[0].mxu0
  %v1238 = vadd.f32 0.0, %v1237
  %v1239 = vpop.f32.mrb[0].mxu0
  %1240 = vmatprep.mubr.f32.mxu0 %v423
  %1241 = vmatmul.mubr.f32.gmra.mrb[0].mxu0 %v422
  %v1242 = vpop.f32.mrb[0].mxu0
  %v1243 = vadd.f32 0.0, %v1242
  %v1244 = vpop.f32.mrb[0].mxu0
  %1245 = vmatprep.mubr.f32.mxu0 %v426
  %1246 = vmatmul.mubr.f32.gmra.mrb[0].mxu0 %v425
  %v1247 = vpop.f32.mrb[0].mxu0
  %v1248 = vadd.f32 0.0, %v1247
  %v1249 = vpop.f32.mrb[0].mxu0
  %1250 = vmatprep.mubr.f32.mxu0 %v429
  %1251 = vmatmul.mubr.f32.gmra.mrb[0].mxu0 %v428
  %v1252 = vpop.f32.mrb[0].mxu0
  %v1253 = vadd.f32 0.0, %v1252
  %v1254 = vpop.f32.mrb[0].mxu0
  %1255 = vmatprep.mubr.f32.mxu0 %v432
  %1256 = vmatmul.mubr.f32.gmra.mrb[0].mxu0 %v431
  %v1257 = vpop.f32.mrb[0].mxu0
  %v1258 = vadd.f32 0.0, %v1257
  %v1259 = vpop.f32.mrb[0].mxu0
  %1260 = vmatprep.mubr.f32.mxu0 %v435
  %1261 = vmatmul.mubr.f32.gmra.mrb[0].mxu0 %v434
  %v1262 = vpop.f32.mrb[0].mxu0
  %v1263 = vadd.f32 0.0, %v1262
  %v1264 = vpop.f32.mrb[0].mxu0
  %1265 = vmatprep.mubr.f32.mxu0 %v438
  %1266 = vmatmul.mubr.f32.gmra.mrb[0].mxu0 %v437
  %v1267 = vpop.f32.mrb[0].mxu0
  %v1268 = vadd.f32 0.0, %v1267
  %v1269 = vpop.f32.mrb[0].mxu0
  %1270 = vmatprep.mubr.f32.mxu0 %v441
  %1271 = vmatmul.mubr.f32.gmra.mrb[0].mxu0 %v440
  %v1272 = vpop.f32.mrb[0].mxu0
  %v1273 = vadd.f32 0.0, %v1272
  %v1274 = vpop.f32.mrb[0].mxu0
  %1275 = vdwg.mxu0
  %1276 = vmatprep.subr.mxu0 0.0
  %1277 = vmatpush1.msra.mxu0 %v475
  %1278 = vmatprep.subr.mxu0 0.0
  %1279 = vmatpush1.msra.mxu0 %v476
  %1280 = vmatprep.subr.mxu0 0.0
  %1281 = vmatpush1.msra.mxu0 %v477
  %1282 = vmatprep.subr.mxu0 0.0
  %1283 = vmatpush1.msra.mxu0 %v478
  %1284 = vmatprep.subr.mxu0 0.0
  %1285 = vmatpush1.msra.mxu0 %v479
  %1286 = vmatprep.subr.mxu0 0.0
  %1287 = vmatpush1.msra.mxu0 %v480
  %1288 = vmatprep.subr.mxu0 0.0
  %1289 = vmatpush1.msra.mxu0 %v481
  %1290 = vmatprep.subr.mxu0 0.0
  %1291 = vmatpush1.msra.mxu0 %v482
  %1292 = vmatprep.subr.mxu0 0.0
  %1293 = vmatpush1.msra.mxu0 %v483
  %1294 = vmatprep.subr.mxu0 0.0
  %1295 = vmatpush1.msra.mxu0 %v484
  %1296 = vmatprep.subr.mxu0 0.0
  %1297 = vmatpush1.msra.mxu0 %v485
  %1298 = vmatprep.subr.mxu0 0.0
  %1299 = vmatpush1.msra.mxu0 %v486
  %1300 = vmatprep.subr.mxu0 0.0
  %1301 = vmatpush1.msra.mxu0 %v487
  %1302 = vmatprep.subr.mxu0 0.0
  %1303 = vmatpush1.msra.mxu0 %v488
  %1304 = vmatprep.subr.mxu0 0.0
  %1305 = vmatpush1.msra.mxu0 %v489
  %1306 = vmatprep.subr.mxu0 0.0
  %1307 = vmatpush1.msra.mxu0 %v490
  %1308 = vmatprep.subr.mxu0 0.0
  %1309 = vmatpush1.msra.mxu0 0.0
  %1310 = vmatprep.subr.mxu0 0.0
  %1311 = vmatpush1.msra.mxu0 0.0
  %1312 = vmatprep.subr.mxu0 0.0
  %1313 = vmatpush1.msra.mxu0 0.0
  %1314 = vmatprep.subr.mxu0 0.0
  %1315 = vmatpush1.msra.mxu0 0.0
  %1316 = vmatprep.subr.mxu0 0.0
  %1317 = vmatpush1.msra.mxu0 0.0
  %1318 = vmatprep.subr.mxu0 0.0
  %1319 = vmatpush1.msra.mxu0 0.0
  %1320 = vmatprep.subr.mxu0 0.0
  %1321 = vmatpush1.msra.mxu0 0.0
  %1322 = vmatprep.subr.mxu0 0.0
  %1323 = vmatpush1.msra.mxu0 0.0
  %1324 = vmatprep.subr.mxu0 0.0
  %1325 = vmatpush1.msra.mxu0 0.0
  %1326 = vmatprep.subr.mxu0 0.0
  %1327 = vmatpush1.msra.mxu0 0.0
  %1328 = vmatprep.subr.mxu0 0.0
  %1329 = vmatpush1.msra.mxu0 0.0
  %1330 = vmatprep.subr.mxu0 0.0
  %1331 = vmatpush1.msra.mxu0 0.0
  %1332 = vmatprep.subr.mxu0 0.0
  %1333 = vmatpush1.msra.mxu0 0.0
  %1334 = vmatprep.subr.mxu0 0.0
  %1335 = vmatpush1.msra.mxu0 0.0
  %1336 = vmatprep.subr.mxu0 0.0
  %1337 = vmatpush1.msra.mxu0 0.0
  %1338 = vmatprep.subr.mxu0 0.0
  %1339 = vmatpush1.msra.mxu0 0.0
  %1340 = vmatprep.mubr.f32.mxu0 0.0
  %1341 = vmatmul.mubr.f32.gmra.mrb[0].mxu0 %v13
  %v1342 = vpop.f32.mrb[0].mxu0
  %v1343 = vadd.f32 %v558, %v1342
  %v1344 = vpop.f32.mrb[0].mxu0
  %1345 = vmatprep.mubr.f32.mxu0 0.0
  %1346 = vmatmul.mubr.f32.gmra.mrb[0].mxu0 %v16
  %v1347 = vpop.f32.mrb[0].mxu0
  %v1348 = vadd.f32 %v563, %v1347
  %v1349 = vpop.f32.mrb[0].mxu0
  %1350 = vmatprep.mubr.f32.mxu0 0.0
  %1351 = vmatmul.mubr.f32.gmra.mrb[0].mxu0 %v19
  %v1352 = vpop.f32.mrb[0].mxu0
  %v1353 = vadd.f32 %v568, %v1352
  %v1354 = vpop.f32.mrb[0].mxu0
  %1355 = vmatprep.mubr.f32.mxu0 0.0
  %1356 = vmatmul.mubr.f32.gmra.mrb[0].mxu0 %v22
  %v1357 = vpop.f32.mrb[0].mxu0
  %v1358 = vadd.f32 %v573, %v1357
  %v1359 = vpop.f32.mrb[0].mxu0
  %1360 = vmatprep.mubr.f32.mxu0 0.0
  %1361 = vmatmul.mubr.f32.gmra.mrb[0].mxu0 %v25
  %v1362 = vpop.f32.mrb[0].mxu0
  %v1363 = vadd.f32 %v578, %v1362
  %v1364 = vpop.f32.mrb[0].mxu0
  %1365 = vmatprep.mubr.f32.mxu0 0.0
  %1366 = vmatmul.mubr.f32.gmra.mrb[0].mxu0 %v28
  %v1367 = vpop.f32.mrb[0].mxu0
  %v1368 = vadd.f32 %v583, %v1367
  %v1369 = vpop.f32.mrb[0].mxu0
  %1370 = vmatprep.mubr.f32.mxu0 0.0
  %1371 = vmatmul.mubr.f32.gmra.mrb[0].mxu0 %v31
  %v1372 = vpop.f32.mrb[0].mxu0
  %v1373 = vadd.f32 %v588, %v1372
  %v1374 = vpop.f32.mrb[0].mxu0
  %1375 = vmatprep.mubr.f32.mxu0 0.0
  %1376 = vmatmul.mubr.f32.gmra.mrb[0].mxu0 %v34
  %v1377 = vpop.f32.mrb[0].mxu0
  %v1378 = vadd.f32 %v593, %v1377
  %v1379 = vpop.f32.mrb[0].mxu0
  %1380 = vmatprep.mubr.f32.mxu0 0.0
  %1381 = vmatmul.mubr.f32.gmra.mrb[0].mxu0 %v37
  %v1382 = vpop.f32.mrb[0].mxu0
  %v1383 = vadd.f32 %v598, %v1382
  %v1384 = vpop.f32.mrb[0].mxu0
  %1385 = vmatprep.mubr.f32.mxu0 0.0
  %1386 = vmatmul.mubr.f32.gmra.mrb[0].mxu0 %v40
  %v1387 = vpop.f32.mrb[0].mxu0
  %v1388 = vadd.f32 %v603, %v1387
  %v1389 = vpop.f32.mrb[0].mxu0
  %1390 = vmatprep.mubr.f32.mxu0 0.0
  %1391 = vmatmul.mubr.f32.gmra.mrb[0].mxu0 %v43
  %v1392 = vpop.f32.mrb[0].mxu0
  %v1393 = vadd.f32 %v608, %v1392
  %v1394 = vpop.f32.mrb[0].mxu0
  %1395 = vmatprep.mubr.f32.mxu0 0.0
  %1396 = vmatmul.mubr.f32.gmra.mrb[0].mxu0 %v46
  %v1397 = vpop.f32.mrb[0].mxu0
  %v1398 = vadd.f32 %v613, %v1397
  %v1399 = vpop.f32.mrb[0].mxu0
  %1400 = vmatprep.mubr.f32.mxu0 0.0
  %1401 = vmatmul.mubr.f32.gmra.mrb[0].mxu0 %v49
  %v1402 = vpop.f32.mrb[0].mxu0
  %v1403 = vadd.f32 %v618, %v1402
  %v1404 = vpop.f32.mrb[0].mxu0
  %1405 = vmatprep.mubr.f32.mxu0 0.0
  %1406 = vmatmul.mubr.f32.gmra.mrb[0].mxu0 %v52
  %v1407 = vpop.f32.mrb[0].mxu0
  %v1408 = vadd.f32 %v623, %v1407
  %v1409 = vpop.f32.mrb[0].mxu0
  %1410 = vmatprep.mubr.f32.mxu0 0.0
  %1411 = vmatmul.mubr.f32.gmra.mrb[0].mxu0 %v55
  %v1412 = vpop.f32.mrb[0].mxu0
  %v1413 = vadd.f32 %v628, %v1412
  %v1414 = vpop.f32.mrb[0].mxu0
  %1415 = vmatprep.mubr.f32.mxu0 0.0
  %1416 = vmatmul.mubr.f32.gmra.mrb[0].mxu0 %v58
  %v1417 = vpop.f32.mrb[0].mxu0
  %v1418 = vadd.f32 %v633, %v1417
  %v1419 = vpop.f32.mrb[0].mxu0
  %1420 = vmatprep.mubr.f32.mxu0 0.0
  %1421 = vmatmul.mubr.f32.gmra.mrb[0].mxu0 %v61
  %v1422 = vpop.f32.mrb[0].mxu0
  %v1423 = vadd.f32 %v638, %v1422
  %v1424 = vpop.f32.mrb[0].mxu0
  %1425 = vmatprep.mubr.f32.mxu0 0.0
  %1426 = vmatmul.mubr.f32.gmra.mrb[0].mxu0 %v64
  %v1427 = vpop.f32.mrb[0].mxu0
  %v1428 = vadd.f32 %v643, %v1427
  %v1429 = vpop.f32.mrb[0].mxu0
  %1430 = vmatprep.mubr.f32.mxu0 0.0
  %1431 = vmatmul.mubr.f32.gmra.mrb[0].mxu0 %v67
  %v1432 = vpop.f32.mrb[0].mxu0
  %v1433 = vadd.f32 %v648, %v1432
  %v1434 = vpop.f32.mrb[0].mxu0
  %1435 = vmatprep.mubr.f32.mxu0 0.0
  %1436 = vmatmul.mubr.f32.gmra.mrb[0].mxu0 %v70
  %v1437 = vpop.f32.mrb[0].mxu0
  %v1438 = vadd.f32 %v653, %v1437
  %v1439 = vpop.f32.mrb[0].mxu0
  %1440 = vmatprep.mubr.f32.mxu0 0.0
  %1441 = vmatmul.mubr.f32.gmra.mrb[0].mxu0 %v73
  %v1442 = vpop.f32.mrb[0].mxu0
  %v1443 = vadd.f32 %v658, %v1442
  %v1444 = vpop.f32.mrb[0].mxu0
  %1445 = vmatprep.mubr.f32.mxu0 0.0
  %1446 = vmatmul.mubr.f32.gmra.mrb[0].mxu0 %v76
  %v1447 = vpop.f32.mrb[0].mxu0
  %v1448 = vadd.f32 %v663, %v1447
  %v1449 = vpop.f32.mrb[0].mxu0
  %1450 = vmatprep.mubr.f32.mxu0 0.0
  %1451 = vmatmul.mubr.f32.gmra.mrb[0].mxu0 %v79
  %v1452 = vpop.f32.mrb[0].mxu0
  %v1453 = vadd.f32 %v668, %v1452
  %v1454 = vpop.f32.mrb[0].mxu0
  %1455 = vmatprep.mubr.f32.mxu0 0.0
  %1456 = vmatmul.mubr.f32.gmra.mrb[0].mxu0 %v82
  %v1457 = vpop.f32.mrb[0].mxu0
  %v1458 = vadd.f32 %v673, %v1457
  %v1459 = vpop.f32.mrb[0].mxu0
  %1460 = vmatprep.mubr.f32.mxu0 0.0
  %1461 = vmatmul.mubr.f32.gmra.mrb[0].mxu0 %v85
  %v1462 = vpop.f32.mrb[0].mxu0
  %v1463 = vadd.f32 %v678, %v1462
  %v1464 = vpop.f32.mrb[0].mxu0
  %1465 = vmatprep.mubr.f32.mxu0 0.0
  %1466 = vmatmul.mubr.f32.gmra.mrb[0].mxu0 %v88
  %v1467 = vpop.f32.mrb[0].mxu0
  %v1468 = vadd.f32 %v683, %v1467
  %v1469 = vpop.f32.mrb[0].mxu0
  %1470 = vmatprep.mubr.f32.mxu0 0.0
  %1471 = vmatmul.mubr.f32.gmra.mrb[0].mxu0 %v91
  %v1472 = vpop.f32.mrb[0].mxu0
  %v1473 = vadd.f32 %v688, %v1472
  %v1474 = vpop.f32.mrb[0].mxu0
  %1475 = vmatprep.mubr.f32.mxu0 0.0
  %1476 = vmatmul.mubr.f32.gmra.mrb[0].mxu0 %v94
  %v1477 = vpop.f32.mrb[0].mxu0
  %v1478 = vadd.f32 %v693, %v1477
  %v1479 = vpop.f32.mrb[0].mxu0
  %1480 = vmatprep.mubr.f32.mxu0 0.0
  %1481 = vmatmul.mubr.f32.gmra.mrb[0].mxu0 %v97
  %v1482 = vpop.f32.mrb[0].mxu0
  %v1483 = vadd.f32 %v698, %v1482
  %v1484 = vpop.f32.mrb[0].mxu0
  %1485 = vmatprep.mubr.f32.mxu0 0.0
  %1486 = vmatmul.mubr.f32.gmra.mrb[0].mxu0 %v100
  %v1487 = vpop.f32.mrb[0].mxu0
  %v1488 = vadd.f32 %v703, %v1487
  %v1489 = vpop.f32.mrb[0].mxu0
  %1490 = vmatprep.mubr.f32.mxu0 0.0
  %1491 = vmatmul.mubr.f32.gmra.mrb[0].mxu0 %v103
  %v1492 = vpop.f32.mrb[0].mxu0
  %v1493 = vadd.f32 %v708, %v1492
  %v1494 = vpop.f32.mrb[0].mxu0
  %1495 = vmatprep.mubr.f32.mxu0 0.0
  %1496 = vmatmul.mubr.f32.gmra.mrb[0].mxu0 %v106
  %v1497 = vpop.f32.mrb[0].mxu0
  %v1498 = vadd.f32 %v713, %v1497
  %v1499 = vpop.f32.mrb[0].mxu0
  %1500 = vmatprep.mubr.f32.mxu0 0.0
  %1501 = vmatmul.mubr.f32.gmra.mrb[0].mxu0 %v109
  %v1502 = vpop.f32.mrb[0].mxu0
  %v1503 = vadd.f32 %v718, %v1502
  %v1504 = vpop.f32.mrb[0].mxu0
  %1505 = vmatprep.mubr.f32.mxu0 0.0
  %1506 = vmatmul.mubr.f32.gmra.mrb[0].mxu0 %v112
  %v1507 = vpop.f32.mrb[0].mxu0
  %v1508 = vadd.f32 %v723, %v1507
  %v1509 = vpop.f32.mrb[0].mxu0
  %1510 = vmatprep.mubr.f32.mxu0 0.0
  %1511 = vmatmul.mubr.f32.gmra.mrb[0].mxu0 %v115
  %v1512 = vpop.f32.mrb[0].mxu0
  %v1513 = vadd.f32 %v728, %v1512
  %v1514 = vpop.f32.mrb[0].mxu0
  %1515 = vmatprep.mubr.f32.mxu0 0.0
  %1516 = vmatmul.mubr.f32.gmra.mrb[0].mxu0 %v118
  %v1517 = vpop.f32.mrb[0].mxu0
  %v1518 = vadd.f32 %v733, %v1517
  %v1519 = vpop.f32.mrb[0].mxu0
  %1520 = vmatprep.mubr.f32.mxu0 0.0
  %1521 = vmatmul.mubr.f32.gmra.mrb[0].mxu0 %v121
  %v1522 = vpop.f32.mrb[0].mxu0
  %v1523 = vadd.f32 %v738, %v1522
  %v1524 = vpop.f32.mrb[0].mxu0
  %1525 = vmatprep.mubr.f32.mxu0 0.0
  %1526 = vmatmul.mubr.f32.gmra.mrb[0].mxu0 %v124
  %v1527 = vpop.f32.mrb[0].mxu0
  %v1528 = vadd.f32 %v743, %v1527
  %v1529 = vpop.f32.mrb[0].mxu0
  %1530 = vmatprep.mubr.f32.mxu0 0.0
  %1531 = vmatmul.mubr.f32.gmra.mrb[0].mxu0 %v127
  %v1532 = vpop.f32.mrb[0].mxu0
  %v1533 = vadd.f32 %v748, %v1532
  %v1534 = vpop.f32.mrb[0].mxu0
  %1535 = vmatprep.mubr.f32.mxu0 0.0
  %1536 = vmatmul.mubr.f32.gmra.mrb[0].mxu0 %v130
  %v1537 = vpop.f32.mrb[0].mxu0
  %v1538 = vadd.f32 %v753, %v1537
  %v1539 = vpop.f32.mrb[0].mxu0
  %1540 = vmatprep.mubr.f32.mxu0 0.0
  %1541 = vmatmul.mubr.f32.gmra.mrb[0].mxu0 %v133
  %v1542 = vpop.f32.mrb[0].mxu0
  %v1543 = vadd.f32 %v758, %v1542
  %v1544 = vpop.f32.mrb[0].mxu0
  %1545 = vmatprep.mubr.f32.mxu0 0.0
  %1546 = vmatmul.mubr.f32.gmra.mrb[0].mxu0 %v136
  %v1547 = vpop.f32.mrb[0].mxu0
  %v1548 = vadd.f32 %v763, %v1547
  %v1549 = vpop.f32.mrb[0].mxu0
  %1550 = vmatprep.mubr.f32.mxu0 0.0
  %1551 = vmatmul.mubr.f32.gmra.mrb[0].mxu0 %v139
  %v1552 = vpop.f32.mrb[0].mxu0
  %v1553 = vadd.f32 %v768, %v1552
  %v1554 = vpop.f32.mrb[0].mxu0
  %1555 = vmatprep.mubr.f32.mxu0 0.0
  %1556 = vmatmul.mubr.f32.gmra.mrb[0].mxu0 %v142
  %v1557 = vpop.f32.mrb[0].mxu0
  %v1558 = vadd.f32 %v773, %v1557
  %v1559 = vpop.f32.mrb[0].mxu0
  %1560 = vmatprep.mubr.f32.mxu0 0.0
  %1561 = vmatmul.mubr.f32.gmra.mrb[0].mxu0 %v145
  %v1562 = vpop.f32.mrb[0].mxu0
  %v1563 = vadd.f32 %v778, %v1562
  %v1564 = vpop.f32.mrb[0].mxu0
  %1565 = vmatprep.mubr.f32.mxu0 0.0
  %1566 = vmatmul.mubr.f32.gmra.mrb[0].mxu0 %v148
  %v1567 = vpop.f32.mrb[0].mxu0
  %v1568 = vadd.f32 %v783, %v1567
  %v1569 = vpop.f32.mrb[0].mxu0
  %1570 = vmatprep.mubr.f32.mxu0 0.0
  %1571 = vmatmul.mubr.f32.gmra.mrb[0].mxu0 %v151
  %v1572 = vpop.f32.mrb[0].mxu0
  %v1573 = vadd.f32 %v788, %v1572
  %v1574 = vpop.f32.mrb[0].mxu0
  %1575 = vmatprep.mubr.f32.mxu0 0.0
  %1576 = vmatmul.mubr.f32.gmra.mrb[0].mxu0 %v154
  %v1577 = vpop.f32.mrb[0].mxu0
  %v1578 = vadd.f32 %v793, %v1577
  %v1579 = vpop.f32.mrb[0].mxu0
  %1580 = vmatprep.mubr.f32.mxu0 0.0
  %1581 = vmatmul.mubr.f32.gmra.mrb[0].mxu0 %v157
  %v1582 = vpop.f32.mrb[0].mxu0
  %v1583 = vadd.f32 %v798, %v1582
  %v1584 = vpop.f32.mrb[0].mxu0
  %1585 = vmatprep.mubr.f32.mxu0 0.0
  %1586 = vmatmul.mubr.f32.gmra.mrb[0].mxu0 %v160
  %v1587 = vpop.f32.mrb[0].mxu0
  %v1588 = vadd.f32 %v803, %v1587
  %v1589 = vpop.f32.mrb[0].mxu0
  %1590 = vmatprep.mubr.f32.mxu0 0.0
  %1591 = vmatmul.mubr.f32.gmra.mrb[0].mxu0 %v163
  %v1592 = vpop.f32.mrb[0].mxu0
  %v1593 = vadd.f32 %v808, %v1592
  %v1594 = vpop.f32.mrb[0].mxu0
  %1595 = vmatprep.mubr.f32.mxu0 0.0
  %1596 = vmatmul.mubr.f32.gmra.mrb[0].mxu0 %v166
  %v1597 = vpop.f32.mrb[0].mxu0
  %v1598 = vadd.f32 %v813, %v1597
  %v1599 = vpop.f32.mrb[0].mxu0
  %1600 = vmatprep.mubr.f32.mxu0 0.0
  %1601 = vmatmul.mubr.f32.gmra.mrb[0].mxu0 %v169
  %v1602 = vpop.f32.mrb[0].mxu0
  %v1603 = vadd.f32 %v818, %v1602
  %v1604 = vpop.f32.mrb[0].mxu0
  %1605 = vmatprep.mubr.f32.mxu0 0.0
  %1606 = vmatmul.mubr.f32.gmra.mrb[0].mxu0 %v172
  %v1607 = vpop.f32.mrb[0].mxu0
  %v1608 = vadd.f32 %v823, %v1607
  %v1609 = vpop.f32.mrb[0].mxu0
  %1610 = vmatprep.mubr.f32.mxu0 0.0
  %1611 = vmatmul.mubr.f32.gmra.mrb[0].mxu0 %v175
  %v1612 = vpop.f32.mrb[0].mxu0
  %v1613 = vadd.f32 %v828, %v1612
  %v1614 = vpop.f32.mrb[0].mxu0
  %1615 = vmatprep.mubr.f32.mxu0 0.0
  %1616 = vmatmul.mubr.f32.gmra.mrb[0].mxu0 %v178
  %v1617 = vpop.f32.mrb[0].mxu0
  %v1618 = vadd.f32 %v833, %v1617
  %v1619 = vpop.f32.mrb[0].mxu0
  %1620 = vmatprep.mubr.f32.mxu0 0.0
  %1621 = vmatmul.mubr.f32.gmra.mrb[0].mxu0 %v181
  %v1622 = vpop.f32.mrb[0].mxu0
  %v1623 = vadd.f32 %v838, %v1622
  %v1624 = vpop.f32.mrb[0].mxu0
  %1625 = vmatprep.mubr.f32.mxu0 0.0
  %1626 = vmatmul.mubr.f32.gmra.mrb[0].mxu0 %v184
  %v1627 = vpop.f32.mrb[0].mxu0
  %v1628 = vadd.f32 %v843, %v1627
  %v1629 = vpop.f32.mrb[0].mxu0
  %1630 = vmatprep.mubr.f32.mxu0 0.0
  %1631 = vmatmul.mubr.f32.gmra.mrb[0].mxu0 %v187
  %v1632 = vpop.f32.mrb[0].mxu0
  %v1633 = vadd.f32 %v848, %v1632
  %v1634 = vpop.f32.mrb[0].mxu0
  %1635 = vmatprep.mubr.f32.mxu0 0.0
  %1636 = vmatmul.mubr.f32.gmra.mrb[0].mxu0 %v190
  %v1637 = vpop.f32.mrb[0].mxu0
  %v1638 = vadd.f32 %v853, %v1637
  %v1639 = vpop.f32.mrb[0].mxu0
  %1640 = vmatprep.mubr.f32.mxu0 0.0
  %1641 = vmatmul.mubr.f32.gmra.mrb[0].mxu0 %v193
  %v1642 = vpop.f32.mrb[0].mxu0
  %v1643 = vadd.f32 %v858, %v1642
  %v1644 = vpop.f32.mrb[0].mxu0
  %1645 = vmatprep.mubr.f32.mxu0 0.0
  %1646 = vmatmul.mubr.f32.gmra.mrb[0].mxu0 %v196
  %v1647 = vpop.f32.mrb[0].mxu0
  %v1648 = vadd.f32 %v863, %v1647
  %v1649 = vpop.f32.mrb[0].mxu0
  %1650 = vmatprep.mubr.f32.mxu0 0.0
  %1651 = vmatmul.mubr.f32.gmra.mrb[0].mxu0 %v199
  %v1652 = vpop.f32.mrb[0].mxu0
  %v1653 = vadd.f32 %v868, %v1652
  %v1654 = vpop.f32.mrb[0].mxu0
  %1655 = vmatprep.mubr.f32.mxu0 0.0
  %1656 = vmatmul.mubr.f32.gmra.mrb[0].mxu0 %v202
  %v1657 = vpop.f32.mrb[0].mxu0
  %v1658 = vadd.f32 %v873, %v1657
  %v1659 = vpop.f32.mrb[0].mxu0
  %1660 = vmatprep.mubr.f32.mxu0 0.0
  %1661 = vmatmul.mubr.f32.gmra.mrb[0].mxu0 %v205
  %v1662 = vpop.f32.mrb[0].mxu0
  %v1663 = vadd.f32 %v878, %v1662
  %v1664 = vpop.f32.mrb[0].mxu0
  %1665 = vmatprep.mubr.f32.mxu0 0.0
  %1666 = vmatmul.mubr.f32.gmra.mrb[0].mxu0 %v208
  %v1667 = vpop.f32.mrb[0].mxu0
  %v1668 = vadd.f32 %v883, %v1667
  %v1669 = vpop.f32.mrb[0].mxu0
  %1670 = vmatprep.mubr.f32.mxu0 0.0
  %1671 = vmatmul.mubr.f32.gmra.mrb[0].mxu0 %v211
  %v1672 = vpop.f32.mrb[0].mxu0
  %v1673 = vadd.f32 %v888, %v1672
  %v1674 = vpop.f32.mrb[0].mxu0
  %1675 = vmatprep.mubr.f32.mxu0 0.0
  %1676 = vmatmul.mubr.f32.gmra.mrb[0].mxu0 %v214
  %v1677 = vpop.f32.mrb[0].mxu0
  %v1678 = vadd.f32 %v893, %v1677
  %v1679 = vpop.f32.mrb[0].mxu0
  %1680 = vmatprep.mubr.f32.mxu0 0.0
  %1681 = vmatmul.mubr.f32.gmra.mrb[0].mxu0 %v217
  %v1682 = vpop.f32.mrb[0].mxu0
  %v1683 = vadd.f32 %v898, %v1682
  %v1684 = vpop.f32.mrb[0].mxu0
  %1685 = vmatprep.mubr.f32.mxu0 0.0
  %1686 = vmatmul.mubr.f32.gmra.mrb[0].mxu0 %v220
  %v1687 = vpop.f32.mrb[0].mxu0
  %v1688 = vadd.f32 %v903, %v1687
  %v1689 = vpop.f32.mrb[0].mxu0
  %1690 = vmatprep.mubr.f32.mxu0 0.0
  %1691 = vmatmul.mubr.f32.gmra.mrb[0].mxu0 %v223
  %v1692 = vpop.f32.mrb[0].mxu0
  %v1693 = vadd.f32 %v908, %v1692
  %v1694 = vpop.f32.mrb[0].mxu0
  %1695 = vmatprep.mubr.f32.mxu0 0.0
  %1696 = vmatmul.mubr.f32.gmra.mrb[0].mxu0 %v226
  %v1697 = vpop.f32.mrb[0].mxu0
  %v1698 = vadd.f32 %v913, %v1697
  %v1699 = vpop.f32.mrb[0].mxu0
  %1700 = vmatprep.mubr.f32.mxu0 0.0
  %1701 = vmatmul.mubr.f32.gmra.mrb[0].mxu0 %v229
  %v1702 = vpop.f32.mrb[0].mxu0
  %v1703 = vadd.f32 %v918, %v1702
  %v1704 = vpop.f32.mrb[0].mxu0
  %1705 = vmatprep.mubr.f32.mxu0 0.0
  %1706 = vmatmul.mubr.f32.gmra.mrb[0].mxu0 %v232
  %v1707 = vpop.f32.mrb[0].mxu0
  %v1708 = vadd.f32 %v923, %v1707
  %v1709 = vpop.f32.mrb[0].mxu0
  %1710 = vmatprep.mubr.f32.mxu0 0.0
  %1711 = vmatmul.mubr.f32.gmra.mrb[0].mxu0 %v235
  %v1712 = vpop.f32.mrb[0].mxu0
  %v1713 = vadd.f32 %v928, %v1712
  %v1714 = vpop.f32.mrb[0].mxu0
  %1715 = vmatprep.mubr.f32.mxu0 0.0
  %1716 = vmatmul.mubr.f32.gmra.mrb[0].mxu0 %v238
  %v1717 = vpop.f32.mrb[0].mxu0
  %v1718 = vadd.f32 %v933, %v1717
  %v1719 = vpop.f32.mrb[0].mxu0
  %1720 = vmatprep.mubr.f32.mxu0 0.0
  %1721 = vmatmul.mubr.f32.gmra.mrb[0].mxu0 %v241
  %v1722 = vpop.f32.mrb[0].mxu0
  %v1723 = vadd.f32 %v938, %v1722
  %v1724 = vpop.f32.mrb[0].mxu0
  %1725 = vmatprep.mubr.f32.mxu0 0.0
  %1726 = vmatmul.mubr.f32.gmra.mrb[0].mxu0 %v244
  %v1727 = vpop.f32.mrb[0].mxu0
  %v1728 = vadd.f32 %v943, %v1727
  %v1729 = vpop.f32.mrb[0].mxu0
  %1730 = vmatprep.mubr.f32.mxu0 0.0
  %1731 = vmatmul.mubr.f32.gmra.mrb[0].mxu0 %v247
  %v1732 = vpop.f32.mrb[0].mxu0
  %v1733 = vadd.f32 %v948, %v1732
  %v1734 = vpop.f32.mrb[0].mxu0
  %1735 = vmatprep.mubr.f32.mxu0 0.0
  %1736 = vmatmul.mubr.f32.gmra.mrb[0].mxu0 %v250
  %v1737 = vpop.f32.mrb[0].mxu0
  %v1738 = vadd.f32 %v953, %v1737
  %v1739 = vpop.f32.mrb[0].mxu0
  %1740 = vmatprep.mubr.f32.mxu0 0.0
  %1741 = vmatmul.mubr.f32.gmra.mrb[0].mxu0 %v253
  %v1742 = vpop.f32.mrb[0].mxu0
  %v1743 = vadd.f32 %v958, %v1742
  %v1744 = vpop.f32.mrb[0].mxu0
  %1745 = vmatprep.mubr.f32.mxu0 0.0
  %1746 = vmatmul.mubr.f32.gmra.mrb[0].mxu0 %v256
  %v1747 = vpop.f32.mrb[0].mxu0
  %v1748 = vadd.f32 %v963, %v1747
  %v1749 = vpop.f32.mrb[0].mxu0
  %1750 = vmatprep.mubr.f32.mxu0 0.0
  %1751 = vmatmul.mubr.f32.gmra.mrb[0].mxu0 %v259
  %v1752 = vpop.f32.mrb[0].mxu0
  %v1753 = vadd.f32 %v968, %v1752
  %v1754 = vpop.f32.mrb[0].mxu0
  %1755 = vmatprep.mubr.f32.mxu0 0.0
  %1756 = vmatmul.mubr.f32.gmra.mrb[0].mxu0 %v262
  %v1757 = vpop.f32.mrb[0].mxu0
  %v1758 = vadd.f32 %v973, %v1757
  %v1759 = vpop.f32.mrb[0].mxu0
  %1760 = vmatprep.mubr.f32.mxu0 0.0
  %1761 = vmatmul.mubr.f32.gmra.mrb[0].mxu0 %v265
  %v1762 = vpop.f32.mrb[0].mxu0
  %v1763 = vadd.f32 %v978, %v1762
  %v1764 = vpop.f32.mrb[0].mxu0
  %1765 = vmatprep.mubr.f32.mxu0 0.0
  %1766 = vmatmul.mubr.f32.gmra.mrb[0].mxu0 %v268
  %v1767 = vpop.f32.mrb[0].mxu0
  %v1768 = vadd.f32 %v983, %v1767
  %v1769 = vpop.f32.mrb[0].mxu0
  %1770 = vmatprep.mubr.f32.mxu0 0.0
  %1771 = vmatmul.mubr.f32.gmra.mrb[0].mxu0 %v271
  %v1772 = vpop.f32.mrb[0].mxu0
  %v1773 = vadd.f32 %v988, %v1772
  %v1774 = vpop.f32.mrb[0].mxu0
  %1775 = vmatprep.mubr.f32.mxu0 0.0
  %1776 = vmatmul.mubr.f32.gmra.mrb[0].mxu0 %v274
  %v1777 = vpop.f32.mrb[0].mxu0
  %v1778 = vadd.f32 %v993, %v1777
  %v1779 = vpop.f32.mrb[0].mxu0
  %1780 = vmatprep.mubr.f32.mxu0 0.0
  %1781 = vmatmul.mubr.f32.gmra.mrb[0].mxu0 %v277
  %v1782 = vpop.f32.mrb[0].mxu0
  %v1783 = vadd.f32 %v998, %v1782
  %v1784 = vpop.f32.mrb[0].mxu0
  %1785 = vmatprep.mubr.f32.mxu0 0.0
  %1786 = vmatmul.mubr.f32.gmra.mrb[0].mxu0 %v280
  %v1787 = vpop.f32.mrb[0].mxu0
  %v1788 = vadd.f32 %v1003, %v1787
  %v1789 = vpop.f32.mrb[0].mxu0
  %1790 = vmatprep.mubr.f32.mxu0 0.0
  %1791 = vmatmul.mubr.f32.gmra.mrb[0].mxu0 %v283
  %v1792 = vpop.f32.mrb[0].mxu0
  %v1793 = vadd.f32 %v1008, %v1792
  %v1794 = vpop.f32.mrb[0].mxu0
  %1795 = vmatprep.mubr.f32.mxu0 0.0
  %1796 = vmatmul.mubr.f32.gmra.mrb[0].mxu0 %v286
  %v1797 = vpop.f32.mrb[0].mxu0
  %v1798 = vadd.f32 %v1013, %v1797
  %v1799 = vpop.f32.mrb[0].mxu0
  %1800 = vmatprep.mubr.f32.mxu0 0.0
  %1801 = vmatmul.mubr.f32.gmra.mrb[0].mxu0 %v289
  %v1802 = vpop.f32.mrb[0].mxu0
  %v1803 = vadd.f32 %v1018, %v1802
  %v1804 = vpop.f32.mrb[0].mxu0
  %1805 = vmatprep.mubr.f32.mxu0 0.0
  %1806 = vmatmul.mubr.f32.gmra.mrb[0].mxu0 %v292
  %v1807 = vpop.f32.mrb[0].mxu0
  %v1808 = vadd.f32 %v1023, %v1807
  %v1809 = vpop.f32.mrb[0].mxu0
  %1810 = vmatprep.mubr.f32.mxu0 0.0
  %1811 = vmatmul.mubr.f32.gmra.mrb[0].mxu0 %v295
  %v1812 = vpop.f32.mrb[0].mxu0
  %v1813 = vadd.f32 %v1028, %v1812
  %v1814 = vpop.f32.mrb[0].mxu0
  %1815 = vmatprep.mubr.f32.mxu0 0.0
  %1816 = vmatmul.mubr.f32.gmra.mrb[0].mxu0 %v298
  %v1817 = vpop.f32.mrb[0].mxu0
  %v1818 = vadd.f32 %v1033, %v1817
  %v1819 = vpop.f32.mrb[0].mxu0
  %1820 = vmatprep.mubr.f32.mxu0 0.0
  %1821 = vmatmul.mubr.f32.gmra.mrb[0].mxu0 %v301
  %v1822 = vpop.f32.mrb[0].mxu0
  %v1823 = vadd.f32 %v1038, %v1822
  %v1824 = vpop.f32.mrb[0].mxu0
  %1825 = vmatprep.mubr.f32.mxu0 0.0
  %1826 = vmatmul.mubr.f32.gmra.mrb[0].mxu0 %v304
  %v1827 = vpop.f32.mrb[0].mxu0
  %v1828 = vadd.f32 %v1043, %v1827
  %v1829 = vpop.f32.mrb[0].mxu0
  %1830 = vmatprep.mubr.f32.mxu0 0.0
  %1831 = vmatmul.mubr.f32.gmra.mrb[0].mxu0 %v307
  %v1832 = vpop.f32.mrb[0].mxu0
  %v1833 = vadd.f32 %v1048, %v1832
  %v1834 = vpop.f32.mrb[0].mxu0
  %1835 = vmatprep.mubr.f32.mxu0 0.0
  %1836 = vmatmul.mubr.f32.gmra.mrb[0].mxu0 %v310
  %v1837 = vpop.f32.mrb[0].mxu0
  %v1838 = vadd.f32 %v1053, %v1837
  %v1839 = vpop.f32.mrb[0].mxu0
  %1840 = vmatprep.mubr.f32.mxu0 0.0
  %1841 = vmatmul.mubr.f32.gmra.mrb[0].mxu0 %v313
  %v1842 = vpop.f32.mrb[0].mxu0
  %v1843 = vadd.f32 %v1058, %v1842
  %v1844 = vpop.f32.mrb[0].mxu0
  %1845 = vmatprep.mubr.f32.mxu0 0.0
  %1846 = vmatmul.mubr.f32.gmra.mrb[0].mxu0 %v316
  %v1847 = vpop.f32.mrb[0].mxu0
  %v1848 = vadd.f32 %v1063, %v1847
  %v1849 = vpop.f32.mrb[0].mxu0
  %1850 = vmatprep.mubr.f32.mxu0 0.0
  %1851 = vmatmul.mubr.f32.gmra.mrb[0].mxu0 %v319
  %v1852 = vpop.f32.mrb[0].mxu0
  %v1853 = vadd.f32 %v1068, %v1852
  %v1854 = vpop.f32.mrb[0].mxu0
  %1855 = vmatprep.mubr.f32.mxu0 0.0
  %1856 = vmatmul.mubr.f32.gmra.mrb[0].mxu0 %v322
  %v1857 = vpop.f32.mrb[0].mxu0
  %v1858 = vadd.f32 %v1073, %v1857
  %v1859 = vpop.f32.mrb[0].mxu0
  %1860 = vmatprep.mubr.f32.mxu0 0.0
  %1861 = vmatmul.mubr.f32.gmra.mrb[0].mxu0 %v325
  %v1862 = vpop.f32.mrb[0].mxu0
  %v1863 = vadd.f32 %v1078, %v1862
  %v1864 = vpop.f32.mrb[0].mxu0
  %1865 = vmatprep.mubr.f32.mxu0 0.0
  %1866 = vmatmul.mubr.f32.gmra.mrb[0].mxu0 %v328
  %v1867 = vpop.f32.mrb[0].mxu0
  %v1868 = vadd.f32 %v1083, %v1867
  %v1869 = vpop.f32.mrb[0].mxu0
  %1870 = vmatprep.mubr.f32.mxu0 0.0
  %1871 = vmatmul.mubr.f32.gmra.mrb[0].mxu0 %v331
  %v1872 = vpop.f32.mrb[0].mxu0
  %v1873 = vadd.f32 %v1088, %v1872
  %v1874 = vpop.f32.mrb[0].mxu0
  %1875 = vmatprep.mubr.f32.mxu0 0.0
  %1876 = vmatmul.mubr.f32.gmra.mrb[0].mxu0 %v334
  %v1877 = vpop.f32.mrb[0].mxu0
  %v1878 = vadd.f32 %v1093, %v1877
  %v1879 = vpop.f32.mrb[0].mxu0
  %1880 = vmatprep.mubr.f32.mxu0 0.0
  %1881 = vmatmul.mubr.f32.gmra.mrb[0].mxu0 %v337
  %v1882 = vpop.f32.mrb[0].mxu0
  %v1883 = vadd.f32 %v1098, %v1882
  %v1884 = vpop.f32.mrb[0].mxu0
  %1885 = vmatprep.mubr.f32.mxu0 0.0
  %1886 = vmatmul.mubr.f32.gmra.mrb[0].mxu0 %v340
  %v1887 = vpop.f32.mrb[0].mxu0
  %v1888 = vadd.f32 %v1103, %v1887
  %v1889 = vpop.f32.mrb[0].mxu0
  %1890 = vmatprep.mubr.f32.mxu0 0.0
  %1891 = vmatmul.mubr.f32.gmra.mrb[0].mxu0 %v343
  %v1892 = vpop.f32.mrb[0].mxu0
  %v1893 = vadd.f32 %v1108, %v1892
  %v1894 = vpop.f32.mrb[0].mxu0
  %1895 = vmatprep.mubr.f32.mxu0 0.0
  %1896 = vmatmul.mubr.f32.gmra.mrb[0].mxu0 %v346
  %v1897 = vpop.f32.mrb[0].mxu0
  %v1898 = vadd.f32 %v1113, %v1897
  %v1899 = vpop.f32.mrb[0].mxu0
  %1900 = vmatprep.mubr.f32.mxu0 0.0
  %1901 = vmatmul.mubr.f32.gmra.mrb[0].mxu0 %v349
  %v1902 = vpop.f32.mrb[0].mxu0
  %v1903 = vadd.f32 %v1118, %v1902
  %v1904 = vpop.f32.mrb[0].mxu0
  %1905 = vmatprep.mubr.f32.mxu0 0.0
  %1906 = vmatmul.mubr.f32.gmra.mrb[0].mxu0 %v352
  %v1907 = vpop.f32.mrb[0].mxu0
  %v1908 = vadd.f32 %v1123, %v1907
  %v1909 = vpop.f32.mrb[0].mxu0
  %1910 = vmatprep.mubr.f32.mxu0 0.0
  %1911 = vmatmul.mubr.f32.gmra.mrb[0].mxu0 %v355
  %v1912 = vpop.f32.mrb[0].mxu0
  %v1913 = vadd.f32 %v1128, %v1912
  %v1914 = vpop.f32.mrb[0].mxu0
  %1915 = vmatprep.mubr.f32.mxu0 0.0
  %1916 = vmatmul.mubr.f32.gmra.mrb[0].mxu0 %v358
  %v1917 = vpop.f32.mrb[0].mxu0
  %v1918 = vadd.f32 %v1133, %v1917
  %v1919 = vpop.f32.mrb[0].mxu0
  %1920 = vmatprep.mubr.f32.mxu0 0.0
  %1921 = vmatmul.mubr.f32.gmra.mrb[0].mxu0 %v361
  %v1922 = vpop.f32.mrb[0].mxu0
  %v1923 = vadd.f32 %v1138, %v1922
  %v1924 = vpop.f32.mrb[0].mxu0
  %1925 = vmatprep.mubr.f32.mxu0 0.0
  %1926 = vmatmul.mubr.f32.gmra.mrb[0].mxu0 %v364
  %v1927 = vpop.f32.mrb[0].mxu0
  %v1928 = vadd.f32 %v1143, %v1927
  %v1929 = vpop.f32.mrb[0].mxu0
  %1930 = vmatprep.mubr.f32.mxu0 0.0
  %1931 = vmatmul.mubr.f32.gmra.mrb[0].mxu0 %v367
  %v1932 = vpop.f32.mrb[0].mxu0
  %v1933 = vadd.f32 %v1148, %v1932
  %v1934 = vpop.f32.mrb[0].mxu0
  %1935 = vmatprep.mubr.f32.mxu0 0.0
  %1936 = vmatmul.mubr.f32.gmra.mrb[0].mxu0 %v370
  %v1937 = vpop.f32.mrb[0].mxu0
  %v1938 = vadd.f32 %v1153, %v1937
  %v1939 = vpop.f32.mrb[0].mxu0
  %1940 = vmatprep.mubr.f32.mxu0 0.0
  %1941 = vmatmul.mubr.f32.gmra.mrb[0].mxu0 %v373
  %v1942 = vpop.f32.mrb[0].mxu0
  %v1943 = vadd.f32 %v1158, %v1942
  %v1944 = vpop.f32.mrb[0].mxu0
  %1945 = vmatprep.mubr.f32.mxu0 0.0
  %1946 = vmatmul.mubr.f32.gmra.mrb[0].mxu0 %v376
  %v1947 = vpop.f32.mrb[0].mxu0
  %v1948 = vadd.f32 %v1163, %v1947
  %v1949 = vpop.f32.mrb[0].mxu0
  %1950 = vmatprep.mubr.f32.mxu0 0.0
  %1951 = vmatmul.mubr.f32.gmra.mrb[0].mxu0 %v379
  %v1952 = vpop.f32.mrb[0].mxu0
  %v1953 = vadd.f32 %v1168, %v1952
  %v1954 = vpop.f32.mrb[0].mxu0
  %1955 = vmatprep.mubr.f32.mxu0 0.0
  %1956 = vmatmul.mubr.f32.gmra.mrb[0].mxu0 %v382
  %v1957 = vpop.f32.mrb[0].mxu0
  %v1958 = vadd.f32 %v1173, %v1957
  %v1959 = vpop.f32.mrb[0].mxu0
  %1960 = vmatprep.mubr.f32.mxu0 0.0
  %1961 = vmatmul.mubr.f32.gmra.mrb[0].mxu0 %v385
  %v1962 = vpop.f32.mrb[0].mxu0
  %v1963 = vadd.f32 %v1178, %v1962
  %v1964 = vpop.f32.mrb[0].mxu0
  %1965 = vmatprep.mubr.f32.mxu0 0.0
  %1966 = vmatmul.mubr.f32.gmra.mrb[0].mxu0 %v388
  %v1967 = vpop.f32.mrb[0].mxu0
  %v1968 = vadd.f32 %v1183, %v1967
  %v1969 = vpop.f32.mrb[0].mxu0
  %1970 = vmatprep.mubr.f32.mxu0 0.0
  %1971 = vmatmul.mubr.f32.gmra.mrb[0].mxu0 %v391
  %v1972 = vpop.f32.mrb[0].mxu0
  %v1973 = vadd.f32 %v1188, %v1972
  %v1974 = vpop.f32.mrb[0].mxu0
  %1975 = vmatprep.mubr.f32.mxu0 0.0
  %1976 = vmatmul.mubr.f32.gmra.mrb[0].mxu0 %v394
  %v1977 = vpop.f32.mrb[0].mxu0
  %v1978 = vadd.f32 %v1193, %v1977
  %v1979 = vpop.f32.mrb[0].mxu0
  %1980 = vmatprep.mubr.f32.mxu0 0.0
  %1981 = vmatmul.mubr.f32.gmra.mrb[0].mxu0 %v397
  %v1982 = vpop.f32.mrb[0].mxu0
  %v1983 = vadd.f32 %v1198, %v1982
  %v1984 = vpop.f32.mrb[0].mxu0
  %1985 = vmatprep.mubr.f32.mxu0 0.0
  %1986 = vmatmul.mubr.f32.gmra.mrb[0].mxu0 %v400
  %v1987 = vpop.f32.mrb[0].mxu0
  %v1988 = vadd.f32 %v1203, %v1987
  %v1989 = vpop.f32.mrb[0].mxu0
  %1990 = vmatprep.mubr.f32.mxu0 0.0
  %1991 = vmatmul.mubr.f32.gmra.mrb[0].mxu0 %v403
  %v1992 = vpop.f32.mrb[0].mxu0
  %v1993 = vadd.f32 %v1208, %v1992
  %v1994 = vpop.f32.mrb[0].mxu0
  %1995 = vmatprep.mubr.f32.mxu0 0.0
  %1996 = vmatmul.mubr.f32.gmra.mrb[0].mxu0 %v406
  %v1997 = vpop.f32.mrb[0].mxu0
  %v1998 = vadd.f32 %v1213, %v1997
  %v1999 = vpop.f32.mrb[0].mxu0
  %2000 = vmatprep.mubr.f32.mxu0 0.0
  %2001 = vmatmul.mubr.f32.gmra.mrb[0].mxu0 %v409
  %v2002 = vpop.f32.mrb[0].mxu0
  %v2003 = vadd.f32 %v1218, %v2002
  %v2004 = vpop.f32.mrb[0].mxu0
  %2005 = vmatprep.mubr.f32.mxu0 0.0
  %2006 = vmatmul.mubr.f32.gmra.mrb[0].mxu0 %v412
  %v2007 = vpop.f32.mrb[0].mxu0
  %v2008 = vadd.f32 %v1223, %v2007
  %v2009 = vpop.f32.mrb[0].mxu0
  %2010 = vmatprep.mubr.f32.mxu0 0.0
  %2011 = vmatmul.mubr.f32.gmra.mrb[0].mxu0 %v415
  %v2012 = vpop.f32.mrb[0].mxu0
  %v2013 = vadd.f32 %v1228, %v2012
  %v2014 = vpop.f32.mrb[0].mxu0
  %2015 = vmatprep.mubr.f32.mxu0 0.0
  %2016 = vmatmul.mubr.f32.gmra.mrb[0].mxu0 %v418
  %v2017 = vpop.f32.mrb[0].mxu0
  %v2018 = vadd.f32 %v1233, %v2017
  %v2019 = vpop.f32.mrb[0].mxu0
  %2020 = vmatprep.mubr.f32.mxu0 0.0
  %2021 = vmatmul.mubr.f32.gmra.mrb[0].mxu0 %v421
  %v2022 = vpop.f32.mrb[0].mxu0
  %v2023 = vadd.f32 %v1238, %v2022
  %v2024 = vpop.f32.mrb[0].mxu0
  %2025 = vmatprep.mubr.f32.mxu0 0.0
  %2026 = vmatmul.mubr.f32.gmra.mrb[0].mxu0 %v424
  %v2027 = vpop.f32.mrb[0].mxu0
  %v2028 = vadd.f32 %v1243, %v2027
  %v2029 = vpop.f32.mrb[0].mxu0
  %2030 = vmatprep.mubr.f32.mxu0 0.0
  %2031 = vmatmul.mubr.f32.gmra.mrb[0].mxu0 %v427
  %v2032 = vpop.f32.mrb[0].mxu0
  %v2033 = vadd.f32 %v1248, %v2032
  %v2034 = vpop.f32.mrb[0].mxu0
  %2035 = vmatprep.mubr.f32.mxu0 0.0
  %2036 = vmatmul.mubr.f32.gmra.mrb[0].mxu0 %v430
  %v2037 = vpop.f32.mrb[0].mxu0
  %v2038 = vadd.f32 %v1253, %v2037
  %v2039 = vpop.f32.mrb[0].mxu0
  %2040 = vmatprep.mubr.f32.mxu0 0.0
  %2041 = vmatmul.mubr.f32.gmra.mrb[0].mxu0 %v433
  %v2042 = vpop.f32.mrb[0].mxu0
  %v2043 = vadd.f32 %v1258, %v2042
  %v2044 = vpop.f32.mrb[0].mxu0
  %2045 = vmatprep.mubr.f32.mxu0 0.0
  %2046 = vmatmul.mubr.f32.gmra.mrb[0].mxu0 %v436
  %v2047 = vpop.f32.mrb[0].mxu0
  %v2048 = vadd.f32 %v1263, %v2047
  %v2049 = vpop.f32.mrb[0].mxu0
  %2050 = vmatprep.mubr.f32.mxu0 0.0
  %2051 = vmatmul.mubr.f32.gmra.mrb[0].mxu0 %v439
  %v2052 = vpop.f32.mrb[0].mxu0
  %v2053 = vadd.f32 %v1268, %v2052
  %v2054 = vpop.f32.mrb[0].mxu0
  %2055 = vmatprep.mubr.f32.mxu0 0.0
  %2056 = vmatmul.mubr.f32.gmra.mrb[0].mxu0 %v442
  %v2057 = vpop.f32.mrb[0].mxu0
  %v2058 = vadd.f32 %v1273, %v2057
  %v2059 = vpop.f32.mrb[0].mxu0
  %2060 = vdwg.mxu0
  %vm2061 = vcmp.ge.f32.partialorder %v1343, 0.0
  %vm2062 = vcmp.ge.f32.partialorder %v1348, 0.0
  %vm2063 = vcmp.ge.f32.partialorder %v1353, 0.0
  %vm2064 = vcmp.ge.f32.partialorder %v1358, 0.0
  %vm2065 = vcmp.ge.f32.partialorder %v1363, 0.0
  %vm2066 = vcmp.ge.f32.partialorder %v1368, 0.0
  %vm2067 = vcmp.ge.f32.partialorder %v1373, 0.0
  %vm2068 = vcmp.ge.f32.partialorder %v1378, 0.0
  %vm2069 = vcmp.ge.f32.partialorder %v1383, 0.0
  %vm2070 = vcmp.ge.f32.partialorder %v1388, 0.0
  %vm2071 = vcmp.ge.f32.partialorder %v1393, 0.0
  %vm2072 = vcmp.ge.f32.partialorder %v1398, 0.0
  %vm2073 = vcmp.ge.f32.partialorder %v1403, 0.0
  %vm2074 = vcmp.ge.f32.partialorder %v1408, 0.0
  %vm2075 = vcmp.ge.f32.partialorder %v1413, 0.0
  %vm2076 = vcmp.ge.f32.partialorder %v1418, 0.0
  %vm2077 = vcmp.ge.f32.partialorder %v1423, 0.0
  %vm2078 = vcmp.ge.f32.partialorder %v1428, 0.0
  %vm2079 = vcmp.ge.f32.partialorder %v1433, 0.0
  %vm2080 = vcmp.ge.f32.partialorder %v1438, 0.0
  %vm2081 = vcmp.ge.f32.partialorder %v1443, 0.0
  %vm2082 = vcmp.ge.f32.partialorder %v1448, 0.0
  %vm2083 = vcmp.ge.f32.partialorder %v1453, 0.0
  %vm2084 = vcmp.ge.f32.partialorder %v1458, 0.0
  %vm2085 = vcmp.ge.f32.partialorder %v1463, 0.0
  %vm2086 = vcmp.ge.f32.partialorder %v1468, 0.0
  %vm2087 = vcmp.ge.f32.partialorder %v1473, 0.0
  %vm2088 = vcmp.ge.f32.partialorder %v1478, 0.0
  %vm2089 = vcmp.ge.f32.partialorder %v1483, 0.0
  %vm2090 = vcmp.ge.f32.partialorder %v1488, 0.0
  %vm2091 = vcmp.ge.f32.partialorder %v1493, 0.0
  %vm2092 = vcmp.ge.f32.partialorder %v1498, 0.0
  %vm2093 = vcmp.ge.f32.partialorder %v1503, 0.0
  %vm2094 = vcmp.ge.f32.partialorder %v1508, 0.0
  %vm2095 = vcmp.ge.f32.partialorder %v1513, 0.0
  %vm2096 = vcmp.ge.f32.partialorder %v1518, 0.0
  %vm2097 = vcmp.ge.f32.partialorder %v1523, 0.0
  %vm2098 = vcmp.ge.f32.partialorder %v1528, 0.0
  %vm2099 = vcmp.ge.f32.partialorder %v1533, 0.0
  %vm2100 = vcmp.ge.f32.partialorder %v1538, 0.0
  %vm2101 = vcmp.ge.f32.partialorder %v1543, 0.0
  %vm2102 = vcmp.ge.f32.partialorder %v1548, 0.0
  %vm2103 = vcmp.ge.f32.partialorder %v1553, 0.0
  %vm2104 = vcmp.ge.f32.partialorder %v1558, 0.0
  %vm2105 = vcmp.ge.f32.partialorder %v1563, 0.0
  %vm2106 = vcmp.ge.f32.partialorder %v1568, 0.0
  %vm2107 = vcmp.ge.f32.partialorder %v1573, 0.0
  %vm2108 = vcmp.ge.f32.partialorder %v1578, 0.0
  %vm2109 = vcmp.ge.f32.partialorder %v1583, 0.0
  %vm2110 = vcmp.ge.f32.partialorder %v1588, 0.0
  %vm2111 = vcmp.ge.f32.partialorder %v1593, 0.0
  %vm2112 = vcmp.ge.f32.partialorder %v1598, 0.0
  %vm2113 = vcmp.ge.f32.partialorder %v1603, 0.0
  %vm2114 = vcmp.ge.f32.partialorder %v1608, 0.0
  %vm2115 = vcmp.ge.f32.partialorder %v1613, 0.0
  %vm2116 = vcmp.ge.f32.partialorder %v1618, 0.0
  %vm2117 = vcmp.ge.f32.partialorder %v1623, 0.0
  %vm2118 = vcmp.ge.f32.partialorder %v1628, 0.0
  %vm2119 = vcmp.ge.f32.partialorder %v1633, 0.0
  %vm2120 = vcmp.ge.f32.partialorder %v1638, 0.0
  %vm2121 = vcmp.ge.f32.partialorder %v1643, 0.0
  %vm2122 = vcmp.ge.f32.partialorder %v1648, 0.0
  %vm2123 = vcmp.ge.f32.partialorder %v1653, 0.0
  %vm2124 = vcmp.ge.f32.partialorder %v1658, 0.0
  %vm2125 = vcmp.ge.f32.partialorder %v1663, 0.0
  %vm2126 = vcmp.ge.f32.partialorder %v1668, 0.0
  %vm2127 = vcmp.ge.f32.partialorder %v1673, 0.0
  %vm2128 = vcmp.ge.f32.partialorder %v1678, 0.0
  %vm2129 = vcmp.ge.f32.partialorder %v1683, 0.0
  %vm2130 = vcmp.ge.f32.partialorder %v1688, 0.0
  %vm2131 = vcmp.ge.f32.partialorder %v1693, 0.0
  %vm2132 = vcmp.ge.f32.partialorder %v1698, 0.0
  %vm2133 = vcmp.ge.f32.partialorder %v1703, 0.0
  %vm2134 = vcmp.ge.f32.partialorder %v1708, 0.0
  %vm2135 = vcmp.ge.f32.partialorder %v1713, 0.0
  %vm2136 = vcmp.ge.f32.partialorder %v1718, 0.0
  %vm2137 = vcmp.ge.f32.partialorder %v1723, 0.0
  %vm2138 = vcmp.ge.f32.partialorder %v1728, 0.0
  %vm2139 = vcmp.ge.f32.partialorder %v1733, 0.0
  %vm2140 = vcmp.ge.f32.partialorder %v1738, 0.0
  %vm2141 = vcmp.ge.f32.partialorder %v1743, 0.0
  %vm2142 = vcmp.ge.f32.partialorder %v1748, 0.0
  %vm2143 = vcmp.ge.f32.partialorder %v1753, 0.0
  %vm2144 = vcmp.ge.f32.partialorder %v1758, 0.0
  %vm2145 = vcmp.ge.f32.partialorder %v1763, 0.0
  %vm2146 = vcmp.ge.f32.partialorder %v1768, 0.0
  %vm2147 = vcmp.ge.f32.partialorder %v1773, 0.0
  %vm2148 = vcmp.ge.f32.partialorder %v1778, 0.0
  %vm2149 = vcmp.ge.f32.partialorder %v1783, 0.0
  %vm2150 = vcmp.ge.f32.partialorder %v1788, 0.0
  %vm2151 = vcmp.ge.f32.partialorder %v1793, 0.0
  %vm2152 = vcmp.ge.f32.partialorder %v1798, 0.0
  %vm2153 = vcmp.ge.f32.partialorder %v1803, 0.0
  %vm2154 = vcmp.ge.f32.partialorder %v1808, 0.0
  %vm2155 = vcmp.ge.f32.partialorder %v1813, 0.0
  %vm2156 = vcmp.ge.f32.partialorder %v1818, 0.0
  %vm2157 = vcmp.ge.f32.partialorder %v1823, 0.0
  %vm2158 = vcmp.ge.f32.partialorder %v1828, 0.0
  %vm2159 = vcmp.ge.f32.partialorder %v1833, 0.0
  %vm2160 = vcmp.ge.f32.partialorder %v1838, 0.0
  %vm2161 = vcmp.ge.f32.partialorder %v1843, 0.0
  %vm2162 = vcmp.ge.f32.partialorder %v1848, 0.0
  %vm2163 = vcmp.ge.f32.partialorder %v1853, 0.0
  %vm2164 = vcmp.ge.f32.partialorder %v1858, 0.0
  %vm2165 = vcmp.ge.f32.partialorder %v1863, 0.0
  %vm2166 = vcmp.ge.f32.partialorder %v1868, 0.0
  %vm2167 = vcmp.ge.f32.partialorder %v1873, 0.0
  %vm2168 = vcmp.ge.f32.partialorder %v1878, 0.0
  %vm2169 = vcmp.ge.f32.partialorder %v1883, 0.0
  %vm2170 = vcmp.ge.f32.partialorder %v1888, 0.0
  %vm2171 = vcmp.ge.f32.partialorder %v1893, 0.0
  %vm2172 = vcmp.ge.f32.partialorder %v1898, 0.0
  %vm2173 = vcmp.ge.f32.partialorder %v1903, 0.0
  %vm2174 = vcmp.ge.f32.partialorder %v1908, 0.0
  %vm2175 = vcmp.ge.f32.partialorder %v1913, 0.0
  %vm2176 = vcmp.ge.f32.partialorder %v1918, 0.0
  %vm2177 = vcmp.ge.f32.partialorder %v1923, 0.0
  %vm2178 = vcmp.ge.f32.partialorder %v1928, 0.0
  %vm2179 = vcmp.ge.f32.partialorder %v1933, 0.0
  %vm2180 = vcmp.ge.f32.partialorder %v1938, 0.0
  %vm2181 = vcmp.ge.f32.partialorder %v1943, 0.0
  %vm2182 = vcmp.ge.f32.partialorder %v1948, 0.0
  %vm2183 = vcmp.ge.f32.partialorder %v1953, 0.0
  %vm2184 = vcmp.ge.f32.partialorder %v1958, 0.0
  %vm2185 = vcmp.ge.f32.partialorder %v1963, 0.0
  %vm2186 = vcmp.ge.f32.partialorder %v1968, 0.0
  %vm2187 = vcmp.ge.f32.partialorder %v1973, 0.0
  %vm2188 = vcmp.ge.f32.partialorder %v1978, 0.0
  %vm2189 = vcmp.ge.f32.partialorder %v1983, 0.0
  %vm2190 = vcmp.ge.f32.partialorder %v1988, 0.0
  %vm2191 = vcmp.ge.f32.partialorder %v1993, 0.0
  %vm2192 = vcmp.ge.f32.partialorder %v1998, 0.0
  %vm2193 = vcmp.ge.f32.partialorder %v2003, 0.0
  %vm2194 = vcmp.ge.f32.partialorder %v2008, 0.0
  %vm2195 = vcmp.ge.f32.partialorder %v2013, 0.0
  %vm2196 = vcmp.ge.f32.partialorder %v2018, 0.0
  %vm2197 = vcmp.ge.f32.partialorder %v2023, 0.0
  %vm2198 = vcmp.ge.f32.partialorder %v2028, 0.0
  %vm2199 = vcmp.ge.f32.partialorder %v2033, 0.0
  %vm2200 = vcmp.ge.f32.partialorder %v2038, 0.0
  %vm2201 = vcmp.ge.f32.partialorder %v2043, 0.0
  %vm2202 = vcmp.ge.f32.partialorder %v2048, 0.0
  %vm2203 = vcmp.ge.f32.partialorder %v2053, 0.0
  %vm2204 = vcmp.ge.f32.partialorder %v2058, 0.0
  %v2205 = vmul.f32 %v1343, 0.1
  %v2206 = vmul.f32 %v1348, 0.1
  %v2207 = vmul.f32 %v1353, 0.1
  %v2208 = vmul.f32 %v1358, 0.1
  %v2209 = vmul.f32 %v1363, 0.1
  %v2210 = vmul.f32 %v1368, 0.1
  %v2211 = vmul.f32 %v1373, 0.1
  %v2212 = vmul.f32 %v1378, 0.1
  %v2213 = vmul.f32 %v1383, 0.1
  %v2214 = vmul.f32 %v1388, 0.1
  %v2215 = vmul.f32 %v1393, 0.1
  %v2216 = vmul.f32 %v1398, 0.1
  %v2217 = vmul.f32 %v1403, 0.1
  %v2218 = vmul.f32 %v1408, 0.1
  %v2219 = vmul.f32 %v1413, 0.1
  %v2220 = vmul.f32 %v1418, 0.1
  %v2221 = vmul.f32 %v1423, 0.1
  %v2222 = vmul.f32 %v1428, 0.1
  %v2223 = vmul.f32 %v1433, 0.1
  %v2224 = vmul.f32 %v1438, 0.1
  %v2225 = vmul.f32 %v1443, 0.1
  %v2226 = vmul.f32 %v1448, 0.1
  %v2227 = vmul.f32 %v1453, 0.1
  %v2228 = vmul.f32 %v1458, 0.1
  %v2229 = vmul.f32 %v1463, 0.1
  %v2230 = vmul.f32 %v1468, 0.1
  %v2231 = vmul.f32 %v1473, 0.1
  %v2232 = vmul.f32 %v1478, 0.1
  %v2233 = vmul.f32 %v1483, 0.1
  %v2234 = vmul.f32 %v1488, 0.1
  %v2235 = vmul.f32 %v1493, 0.1
  %v2236 = vmul.f32 %v1498, 0.1
  %v2237 = vmul.f32 %v1503, 0.1
  %v2238 = vmul.f32 %v1508, 0.1
  %v2239 = vmul.f32 %v1513, 0.1
  %v2240 = vmul.f32 %v1518, 0.1
  %v2241 = vmul.f32 %v1523, 0.1
  %v2242 = vmul.f32 %v1528, 0.1
  %v2243 = vmul.f32 %v1533, 0.1
  %v2244 = vmul.f32 %v1538, 0.1
  %v2245 = vmul.f32 %v1543, 0.1
  %v2246 = vmul.f32 %v1548, 0.1
  %v2247 = vmul.f32 %v1553, 0.1
  %v2248 = vmul.f32 %v1558, 0.1
  %v2249 = vmul.f32 %v1563, 0.1
  %v2250 = vmul.f32 %v1568, 0.1
  %v2251 = vmul.f32 %v1573, 0.1
  %v2252 = vmul.f32 %v1578, 0.1
  %v2253 = vmul.f32 %v1583, 0.1
  %v2254 = vmul.f32 %v1588, 0.1
  %v2255 = vmul.f32 %v1593, 0.1
  %v2256 = vmul.f32 %v1598, 0.1
  %v2257 = vmul.f32 %v1603, 0.1
  %v2258 = vmul.f32 %v1608, 0.1
  %v2259 = vmul.f32 %v1613, 0.1
  %v2260 = vmul.f32 %v1618, 0.1
  %v2261 = vmul.f32 %v1623, 0.1
  %v2262 = vmul.f32 %v1628, 0.1
  %v2263 = vmul.f32 %v1633, 0.1
  %v2264 = vmul.f32 %v1638, 0.1
  %v2265 = vmul.f32 %v1643, 0.1
  %v2266 = vmul.f32 %v1648, 0.1
  %v2267 = vmul.f32 %v1653, 0.1
  %v2268 = vmul.f32 %v1658, 0.1
  %v2269 = vmul.f32 %v1663, 0.1
  %v2270 = vmul.f32 %v1668, 0.1
  %v2271 = vmul.f32 %v1673, 0.1
  %v2272 = vmul.f32 %v1678, 0.1
  %v2273 = vmul.f32 %v1683, 0.1
  %v2274 = vmul.f32 %v1688, 0.1
  %v2275 = vmul.f32 %v1693, 0.1
  %v2276 = vmul.f32 %v1698, 0.1
  %v2277 = vmul.f32 %v1703, 0.1
  %v2278 = vmul.f32 %v1708, 0.1
  %v2279 = vmul.f32 %v1713, 0.1
  %v2280 = vmul.f32 %v1718, 0.1
  %v2281 = vmul.f32 %v1723, 0.1
  %v2282 = vmul.f32 %v1728, 0.1
  %v2283 = vmul.f32 %v1733, 0.1
  %v2284 = vmul.f32 %v1738, 0.1
  %v2285 = vmul.f32 %v1743, 0.1
  %v2286 = vmul.f32 %v1748, 0.1
  %v2287 = vmul.f32 %v1753, 0.1
  %v2288 = vmul.f32 %v1758, 0.1
  %v2289 = vmul.f32 %v1763, 0.1
  %v2290 = vmul.f32 %v1768, 0.1
  %v2291 = vmul.f32 %v1773, 0.1
  %v2292 = vmul.f32 %v1778, 0.1
  %v2293 = vmul.f32 %v1783, 0.1
  %v2294 = vmul.f32 %v1788, 0.1
  %v2295 = vmul.f32 %v1793, 0.1
  %v2296 = vmul.f32 %v1798, 0.1
  %v2297 = vmul.f32 %v1803, 0.1
  %v2298 = vmul.f32 %v1808, 0.1
  %v2299 = vmul.f32 %v1813, 0.1
  %v2300 = vmul.f32 %v1818, 0.1
  %v2301 = vmul.f32 %v1823, 0.1
  %v2302 = vmul.f32 %v1828, 0.1
  %v2303 = vmul.f32 %v1833, 0.1
  %v2304 = vmul.f32 %v1838, 0.1
  %v2305 = vmul.f32 %v1843, 0.1
  %v2306 = vmul.f32 %v1848, 0.1
  %v2307 = vmul.f32 %v1853, 0.1
  %v2308 = vmul.f32 %v1858, 0.1
  %v2309 = vmul.f32 %v1863, 0.1
  %v2310 = vmul.f32 %v1868, 0.1
  %v2311 = vmul.f32 %v1873, 0.1
  %v2312 = vmul.f32 %v1878, 0.1
  %v2313 = vmul.f32 %v1883, 0.1
  %v2314 = vmul.f32 %v1888, 0.1
  %v2315 = vmul.f32 %v1893, 0.1
  %v2316 = vmul.f32 %v1898, 0.1
  %v2317 = vmul.f32 %v1903, 0.1
  %v2318 = vmul.f32 %v1908, 0.1
  %v2319 = vmul.f32 %v1913, 0.1
  %v2320 = vmul.f32 %v1918, 0.1
  %v2321 = vmul.f32 %v1923, 0.1
  %v2322 = vmul.f32 %v1928, 0.1
  %v2323 = vmul.f32 %v1933, 0.1
  %v2324 = vmul.f32 %v1938, 0.1
  %v2325 = vmul.f32 %v1943, 0.1
  %v2326 = vmul.f32 %v1948, 0.1
  %v2327 = vmul.f32 %v1953, 0.1
  %v2328 = vmul.f32 %v1958, 0.1
  %v2329 = vmul.f32 %v1963, 0.1
  %v2330 = vmul.f32 %v1968, 0.1
  %v2331 = vmul.f32 %v1973, 0.1
  %v2332 = vmul.f32 %v1978, 0.1
  %v2333 = vmul.f32 %v1983, 0.1
  %v2334 = vmul.f32 %v1988, 0.1
  %v2335 = vmul.f32 %v1993, 0.1
  %v2336 = vmul.f32 %v1998, 0.1
  %v2337 = vmul.f32 %v2003, 0.1
  %v2338 = vmul.f32 %v2008, 0.1
  %v2339 = vmul.f32 %v2013, 0.1
  %v2340 = vmul.f32 %v2018, 0.1
  %v2341 = vmul.f32 %v2023, 0.1
  %v2342 = vmul.f32 %v2028, 0.1
  %v2343 = vmul.f32 %v2033, 0.1
  %v2344 = vmul.f32 %v2038, 0.1
  %v2345 = vmul.f32 %v2043, 0.1
  %v2346 = vmul.f32 %v2048, 0.1
  %v2347 = vmul.f32 %v2053, 0.1
  %v2348 = vmul.f32 %v2058, 0.1
  %v2349 = vsel %vm2061, %v1343, %v2205
  %v2350 = vsel %vm2062, %v1348, %v2206
  %v2351 = vsel %vm2063, %v1353, %v2207
  %v2352 = vsel %vm2064, %v1358, %v2208
  %v2353 = vsel %vm2065, %v1363, %v2209
  %v2354 = vsel %vm2066, %v1368, %v2210
  %v2355 = vsel %vm2067, %v1373, %v2211
  %v2356 = vsel %vm2068, %v1378, %v2212
  %v2357 = vsel %vm2069, %v1383, %v2213
  %v2358 = vsel %vm2070, %v1388, %v2214
  %v2359 = vsel %vm2071, %v1393, %v2215
  %v2360 = vsel %vm2072, %v1398, %v2216
  %v2361 = vsel %vm2073, %v1403, %v2217
  %v2362 = vsel %vm2074, %v1408, %v2218
  %v2363 = vsel %vm2075, %v1413, %v2219
  %v2364 = vsel %vm2076, %v1418, %v2220
  %v2365 = vsel %vm2077, %v1423, %v2221
  %v2366 = vsel %vm2078, %v1428, %v2222
  %v2367 = vsel %vm2079, %v1433, %v2223
  %v2368 = vsel %vm2080, %v1438, %v2224
  %v2369 = vsel %vm2081, %v1443, %v2225
  %v2370 = vsel %vm2082, %v1448, %v2226
  %v2371 = vsel %vm2083, %v1453, %v2227
  %v2372 = vsel %vm2084, %v1458, %v2228
  %v2373 = vsel %vm2085, %v1463, %v2229
  %v2374 = vsel %vm2086, %v1468, %v2230
  %v2375 = vsel %vm2087, %v1473, %v2231
  %v2376 = vsel %vm2088, %v1478, %v2232
  %v2377 = vsel %vm2089, %v1483, %v2233
  %v2378 = vsel %vm2090, %v1488, %v2234
  %v2379 = vsel %vm2091, %v1493, %v2235
  %v2380 = vsel %vm2092, %v1498, %v2236
  %v2381 = vsel %vm2093, %v1503, %v2237
  %v2382 = vsel %vm2094, %v1508, %v2238
  %v2383 = vsel %vm2095, %v1513, %v2239
  %v2384 = vsel %vm2096, %v1518, %v2240
  %v2385 = vsel %vm2097, %v1523, %v2241
  %v2386 = vsel %vm2098, %v1528, %v2242
  %v2387 = vsel %vm2099, %v1533, %v2243
  %v2388 = vsel %vm2100, %v1538, %v2244
  %v2389 = vsel %vm2101, %v1543, %v2245
  %v2390 = vsel %vm2102, %v1548, %v2246
  %v2391 = vsel %vm2103, %v1553, %v2247
  %v2392 = vsel %vm2104, %v1558, %v2248
  %v2393 = vsel %vm2105, %v1563, %v2249
  %v2394 = vsel %vm2106, %v1568, %v2250
  %v2395 = vsel %vm2107, %v1573, %v2251
  %v2396 = vsel %vm2108, %v1578, %v2252
  %v2397 = vsel %vm2109, %v1583, %v2253
  %v2398 = vsel %vm2110, %v1588, %v2254
  %v2399 = vsel %vm2111, %v1593, %v2255
  %v2400 = vsel %vm2112, %v1598, %v2256
  %v2401 = vsel %vm2113, %v1603, %v2257
  %v2402 = vsel %vm2114, %v1608, %v2258
  %v2403 = vsel %vm2115, %v1613, %v2259
  %v2404 = vsel %vm2116, %v1618, %v2260
  %v2405 = vsel %vm2117, %v1623, %v2261
  %v2406 = vsel %vm2118, %v1628, %v2262
  %v2407 = vsel %vm2119, %v1633, %v2263
  %v2408 = vsel %vm2120, %v1638, %v2264
  %v2409 = vsel %vm2121, %v1643, %v2265
  %v2410 = vsel %vm2122, %v1648, %v2266
  %v2411 = vsel %vm2123, %v1653, %v2267
  %v2412 = vsel %vm2124, %v1658, %v2268
  %v2413 = vsel %vm2125, %v1663, %v2269
  %v2414 = vsel %vm2126, %v1668, %v2270
  %v2415 = vsel %vm2127, %v1673, %v2271
  %v2416 = vsel %vm2128, %v1678, %v2272
  %v2417 = vsel %vm2129, %v1683, %v2273
  %v2418 = vsel %vm2130, %v1688, %v2274
  %v2419 = vsel %vm2131, %v1693, %v2275
  %v2420 = vsel %vm2132, %v1698, %v2276
  %v2421 = vsel %vm2133, %v1703, %v2277
  %v2422 = vsel %vm2134, %v1708, %v2278
  %v2423 = vsel %vm2135, %v1713, %v2279
  %v2424 = vsel %vm2136, %v1718, %v2280
  %v2425 = vsel %vm2137, %v1723, %v2281
  %v2426 = vsel %vm2138, %v1728, %v2282
  %v2427 = vsel %vm2139, %v1733, %v2283
  %v2428 = vsel %vm2140, %v1738, %v2284
  %v2429 = vsel %vm2141, %v1743, %v2285
  %v2430 = vsel %vm2142, %v1748, %v2286
  %v2431 = vsel %vm2143, %v1753, %v2287
  %v2432 = vsel %vm2144, %v1758, %v2288
  %v2433 = vsel %vm2145, %v1763, %v2289
  %v2434 = vsel %vm2146, %v1768, %v2290
  %v2435 = vsel %vm2147, %v1773, %v2291
  %v2436 = vsel %vm2148, %v1778, %v2292
  %v2437 = vsel %vm2149, %v1783, %v2293
  %v2438 = vsel %vm2150, %v1788, %v2294
  %v2439 = vsel %vm2151, %v1793, %v2295
  %v2440 = vsel %vm2152, %v1798, %v2296
  %v2441 = vsel %vm2153, %v1803, %v2297
  %v2442 = vsel %vm2154, %v1808, %v2298
  %v2443 = vsel %vm2155, %v1813, %v2299
  %v2444 = vsel %vm2156, %v1818, %v2300
  %v2445 = vsel %vm2157, %v1823, %v2301
  %v2446 = vsel %vm2158, %v1828, %v2302
  %v2447 = vsel %vm2159, %v1833, %v2303
  %v2448 = vsel %vm2160, %v1838, %v2304
  %v2449 = vsel %vm2161, %v1843, %v2305
  %v2450 = vsel %vm2162, %v1848, %v2306
  %v2451 = vsel %vm2163, %v1853, %v2307
  %v2452 = vsel %vm2164, %v1858, %v2308
  %v2453 = vsel %vm2165, %v1863, %v2309
  %v2454 = vsel %vm2166, %v1868, %v2310
  %v2455 = vsel %vm2167, %v1873, %v2311
  %v2456 = vsel %vm2168, %v1878, %v2312
  %v2457 = vsel %vm2169, %v1883, %v2313
  %v2458 = vsel %vm2170, %v1888, %v2314
  %v2459 = vsel %vm2171, %v1893, %v2315
  %v2460 = vsel %vm2172, %v1898, %v2316
  %v2461 = vsel %vm2173, %v1903, %v2317
  %v2462 = vsel %vm2174, %v1908, %v2318
  %v2463 = vsel %vm2175, %v1913, %v2319
  %v2464 = vsel %vm2176, %v1918, %v2320
  %v2465 = vsel %vm2177, %v1923, %v2321
  %v2466 = vsel %vm2178, %v1928, %v2322
  %v2467 = vsel %vm2179, %v1933, %v2323
  %v2468 = vsel %vm2180, %v1938, %v2324
  %v2469 = vsel %vm2181, %v1943, %v2325
  %v2470 = vsel %vm2182, %v1948, %v2326
  %v2471 = vsel %vm2183, %v1953, %v2327
  %v2472 = vsel %vm2184, %v1958, %v2328
  %v2473 = vsel %vm2185, %v1963, %v2329
  %v2474 = vsel %vm2186, %v1968, %v2330
  %v2475 = vsel %vm2187, %v1973, %v2331
  %v2476 = vsel %vm2188, %v1978, %v2332
  %v2477 = vsel %vm2189, %v1983, %v2333
  %v2478 = vsel %vm2190, %v1988, %v2334
  %v2479 = vsel %vm2191, %v1993, %v2335
  %v2480 = vsel %vm2192, %v1998, %v2336
  %v2481 = vsel %vm2193, %v2003, %v2337
  %v2482 = vsel %vm2194, %v2008, %v2338
  %v2483 = vsel %vm2195, %v2013, %v2339
  %v2484 = vsel %vm2196, %v2018, %v2340
  %v2485 = vsel %vm2197, %v2023, %v2341
  %v2486 = vsel %vm2198, %v2028, %v2342
  %v2487 = vsel %vm2199, %v2033, %v2343
  %v2488 = vsel %vm2200, %v2038, %v2344
  %v2489 = vsel %vm2201, %v2043, %v2345
  %v2490 = vsel %vm2202, %v2048, %v2346
  %v2491 = vsel %vm2203, %v2053, %v2347
  %v2492 = vsel %vm2204, %v2058, %v2348
  %2493 = vst [vmem:[%s2] sm:$0xff] %v2349
  %2494 = vst [vmem:[%s2 + $0x8] sm:$0xff] %v2350
  %2495 = vst [vmem:[%s2 + $0x10] sm:$0xff] %v2351
  %2496 = vst [vmem:[%s2 + $0x18] sm:$0xff] %v2352
  %2497 = vst [vmem:[%s2 + $0x20] sm:$0xff] %v2353
  %2498 = vst [vmem:[%s2 + $0x28] sm:$0xff] %v2354
  %2499 = vst [vmem:[%s2 + $0x30] sm:$0xff] %v2355
  %2500 = vst [vmem:[%s2 + $0x38] sm:$0xff] %v2356
  %2501 = vst [vmem:[%s2 + $0x40] sm:$0xff] %v2357
  %2502 = vst [vmem:[%s2 + $0x48] sm:$0xff] %v2358
  %2503 = vst [vmem:[%s2 + $0x50] sm:$0xff] %v2359
  %2504 = vst [vmem:[%s2 + $0x58] sm:$0xff] %v2360
  %2505 = vst [vmem:[%s2 + $0x60] sm:$0xff] %v2361
  %2506 = vst [vmem:[%s2 + $0x68] sm:$0xff] %v2362
  %2507 = vst [vmem:[%s2 + $0x70] sm:$0xff] %v2363
  %2508 = vst [vmem:[%s2 + $0x78] sm:$0xff] %v2364
  %2509 = vst [vmem:[%s2 + $0x80] sm:$0xff] %v2365
  %2510 = vst [vmem:[%s2 + $0x88] sm:$0xff] %v2366
  %2511 = vst [vmem:[%s2 + $0x90] sm:$0xff] %v2367
  %2512 = vst [vmem:[%s2 + $0x98] sm:$0xff] %v2368
  %2513 = vst [vmem:[%s2 + $0xa0] sm:$0xff] %v2369
  %2514 = vst [vmem:[%s2 + $0xa8] sm:$0xff] %v2370
  %2515 = vst [vmem:[%s2 + $0xb0] sm:$0xff] %v2371
  %2516 = vst [vmem:[%s2 + $0xb8] sm:$0xff] %v2372
  %2517 = vst [vmem:[%s2 + $0xc0] sm:$0xff] %v2373
  %2518 = vst [vmem:[%s2 + $0xc8] sm:$0xff] %v2374
  %2519 = vst [vmem:[%s2 + $0xd0] sm:$0xff] %v2375
  %2520 = vst [vmem:[%s2 + $0xd8] sm:$0xff] %v2376
  %2521 = vst [vmem:[%s2 + $0xe0] sm:$0xff] %v2377
  %2522 = vst [vmem:[%s2 + $0xe8] sm:$0xff] %v2378
  %2523 = vst [vmem:[%s2 + $0xf0] sm:$0xff] %v2379
  %2524 = vst [vmem:[%s2 + $0xf8] sm:$0xff] %v2380
  %2525 = vst [vmem:[%s2 + $0x100] sm:$0xff] %v2381
  %2526 = vst [vmem:[%s2 + $0x108] sm:$0xff] %v2382
  %2527 = vst [vmem:[%s2 + $0x110] sm:$0xff] %v2383
  %2528 = vst [vmem:[%s2 + $0x118] sm:$0xff] %v2384
  %2529 = vst [vmem:[%s2 + $0x120] sm:$0xff] %v2385
  %2530 = vst [vmem:[%s2 + $0x128] sm:$0xff] %v2386
  %2531 = vst [vmem:[%s2 + $0x130] sm:$0xff] %v2387
  %2532 = vst [vmem:[%s2 + $0x138] sm:$0xff] %v2388
  %2533 = vst [vmem:[%s2 + $0x140] sm:$0xff] %v2389
  %2534 = vst [vmem:[%s2 + $0x148] sm:$0xff] %v2390
  %2535 = vst [vmem:[%s2 + $0x150] sm:$0xff] %v2391
  %2536 = vst [vmem:[%s2 + $0x158] sm:$0xff] %v2392
  %2537 = vst [vmem:[%s2 + $0x160] sm:$0xff] %v2393
  %2538 = vst [vmem:[%s2 + $0x168] sm:$0xff] %v2394
  %2539 = vst [vmem:[%s2 + $0x170] sm:$0xff] %v2395
  %2540 = vst [vmem:[%s2 + $0x178] sm:$0xff] %v2396
  %2541 = vst [vmem:[%s2 + $0x180] sm:$0xff] %v2397
  %2542 = vst [vmem:[%s2 + $0x188] sm:$0xff] %v2398
  %2543 = vst [vmem:[%s2 + $0x190] sm:$0xff] %v2399
  %2544 = vst [vmem:[%s2 + $0x198] sm:$0xff] %v2400
  %2545 = vst [vmem:[%s2 + $0x1a0] sm:$0xff] %v2401
  %2546 = vst [vmem:[%s2 + $0x1a8] sm:$0xff] %v2402
  %2547 = vst [vmem:[%s2 + $0x1b0] sm:$0xff] %v2403
  %2548 = vst [vmem:[%s2 + $0x1b8] sm:$0xff] %v2404
  %2549 = vst [vmem:[%s2 + $0x1c0] sm:$0xff] %v2405
  %2550 = vst [vmem:[%s2 + $0x1c8] sm:$0xff] %v2406
  %2551 = vst [vmem:[%s2 + $0x1d0] sm:$0xff] %v2407
  %2552 = vst [vmem:[%s2 + $0x1d8] sm:$0xff] %v2408
  %2553 = vst [vmem:[%s2 + $0x1e0] sm:$0xff] %v2409
  %2554 = vst [vmem:[%s2 + $0x1e8] sm:$0xff] %v2410
  %2555 = vst [vmem:[%s2 + $0x1f0] sm:$0xff] %v2411
  %2556 = vst [vmem:[%s2 + $0x1f8] sm:$0xff] %v2412
  %2557 = vst [vmem:[%s2 + $0x200] sm:$0xff] %v2413
  %2558 = vst [vmem:[%s2 + $0x208] sm:$0xff] %v2414
  %2559 = vst [vmem:[%s2 + $0x210] sm:$0xff] %v2415
  %2560 = vst [vmem:[%s2 + $0x218] sm:$0xff] %v2416
  %2561 = vst [vmem:[%s2 + $0x220] sm:$0xff] %v2417
  %2562 = vst [vmem:[%s2 + $0x228] sm:$0xff] %v2418
  %2563 = vst [vmem:[%s2 + $0x230] sm:$0xff] %v2419
  %2564 = vst [vmem:[%s2 + $0x238] sm:$0xff] %v2420
  %2565 = vst [vmem:[%s2 + $0x240] sm:$0xff] %v2421
  %2566 = vst [vmem:[%s2 + $0x248] sm:$0xff] %v2422
  %2567 = vst [vmem:[%s2 + $0x250] sm:$0xff] %v2423
  %2568 = vst [vmem:[%s2 + $0x258] sm:$0xff] %v2424
  %2569 = vst [vmem:[%s2 + $0x260] sm:$0xff] %v2425
  %2570 = vst [vmem:[%s2 + $0x268] sm:$0xff] %v2426
  %2571 = vst [vmem:[%s2 + $0x270] sm:$0xff] %v2427
  %2572 = vst [vmem:[%s2 + $0x278] sm:$0xff] %v2428
  %2573 = vst [vmem:[%s2 + $0x280] sm:$0xff] %v2429
  %2574 = vst [vmem:[%s2 + $0x288] sm:$0xff] %v2430
  %2575 = vst [vmem:[%s2 + $0x290] sm:$0xff] %v2431
  %2576 = vst [vmem:[%s2 + $0x298] sm:$0xff] %v2432
  %2577 = vst [vmem:[%s2 + $0x2a0] sm:$0xff] %v2433
  %2578 = vst [vmem:[%s2 + $0x2a8] sm:$0xff] %v2434
  %2579 = vst [vmem:[%s2 + $0x2b0] sm:$0xff] %v2435
  %2580 = vst [vmem:[%s2 + $0x2b8] sm:$0xff] %v2436
  %2581 = vst [vmem:[%s2 + $0x2c0] sm:$0xff] %v2437
  %2582 = vst [vmem:[%s2 + $0x2c8] sm:$0xff] %v2438
  %2583 = vst [vmem:[%s2 + $0x2d0] sm:$0xff] %v2439
  %2584 = vst [vmem:[%s2 + $0x2d8] sm:$0xff] %v2440
  %2585 = vst [vmem:[%s2 + $0x2e0] sm:$0xff] %v2441
  %2586 = vst [vmem:[%s2 + $0x2e8] sm:$0xff] %v2442
  %2587 = vst [vmem:[%s2 + $0x2f0] sm:$0xff] %v2443
  %2588 = vst [vmem:[%s2 + $0x2f8] sm:$0xff] %v2444
  %2589 = vst [vmem:[%s2 + $0x300] sm:$0xff] %v2445
  %2590 = vst [vmem:[%s2 + $0x308] sm:$0xff] %v2446
  %2591 = vst [vmem:[%s2 + $0x310] sm:$0xff] %v2447
  %2592 = vst [vmem:[%s2 + $0x318] sm:$0xff] %v2448
  %2593 = vst [vmem:[%s2 + $0x320] sm:$0xff] %v2449
  %2594 = vst [vmem:[%s2 + $0x328] sm:$0xff] %v2450
  %2595 = vst [vmem:[%s2 + $0x330] sm:$0xff] %v2451
  %2596 = vst [vmem:[%s2 + $0x338] sm:$0xff] %v2452
  %2597 = vst [vmem:[%s2 + $0x340] sm:$0xff] %v2453
  %2598 = vst [vmem:[%s2 + $0x348] sm:$0xff] %v2454
  %2599 = vst [vmem:[%s2 + $0x350] sm:$0xff] %v2455
  %2600 = vst [vmem:[%s2 + $0x358] sm:$0xff] %v2456
  %2601 = vst [vmem:[%s2 + $0x360] sm:$0xff] %v2457
  %2602 = vst [vmem:[%s2 + $0x368] sm:$0xff] %v2458
  %2603 = vst [vmem:[%s2 + $0x370] sm:$0xff] %v2459
  %2604 = vst [vmem:[%s2 + $0x378] sm:$0xff] %v2460
  %2605 = vst [vmem:[%s2 + $0x380] sm:$0xff] %v2461
  %2606 = vst [vmem:[%s2 + $0x388] sm:$0xff] %v2462
  %2607 = vst [vmem:[%s2 + $0x390] sm:$0xff] %v2463
  %2608 = vst [vmem:[%s2 + $0x398] sm:$0xff] %v2464
  %2609 = vst [vmem:[%s2 + $0x3a0] sm:$0xff] %v2465
  %2610 = vst [vmem:[%s2 + $0x3a8] sm:$0xff] %v2466
  %2611 = vst [vmem:[%s2 + $0x3b0] sm:$0xff] %v2467
  %2612 = vst [vmem:[%s2 + $0x3b8] sm:$0xff] %v2468
  %2613 = vst [vmem:[%s2 + $0x3c0] sm:$0xff] %v2469
  %2614 = vst [vmem:[%s2 + $0x3c8] sm:$0xff] %v2470
  %2615 = vst [vmem:[%s2 + $0x3d0] sm:$0xff] %v2471
  %2616 = vst [vmem:[%s2 + $0x3d8] sm:$0xff] %v2472
  %2617 = vst [vmem:[%s2 + $0x3e0] sm:$0xff] %v2473
  %2618 = vst [vmem:[%s2 + $0x3e8] sm:$0xff] %v2474
  %2619 = vst [vmem:[%s2 + $0x3f0] sm:$0xff] %v2475
  %2620 = vst [vmem:[%s2 + $0x3f8] sm:$0xff] %v2476
  %2621 = vst [vmem:[%s2 + $0x400] sm:$0xff] %v2477
  %2622 = vst [vmem:[%s2 + $0x408] sm:$0xff] %v2478
  %2623 = vst [vmem:[%s2 + $0x410] sm:$0xff] %v2479
  %2624 = vst [vmem:[%s2 + $0x418] sm:$0xff] %v2480
  %2625 = vst [vmem:[%s2 + $0x420] sm:$0xff] %v2481
  %2626 = vst [vmem:[%s2 + $0x428] sm:$0xff] %v2482
  %2627 = vst [vmem:[%s2 + $0x430] sm:$0xff] %v2483
  %2628 = vst [vmem:[%s2 + $0x438] sm:$0xff] %v2484
  %2629 = vst [vmem:[%s2 + $0x440] sm:$0xff] %v2485
  %2630 = vst [vmem:[%s2 + $0x448] sm:$0xff] %v2486
  %2631 = vst [vmem:[%s2 + $0x450] sm:$0xff] %v2487
  %2632 = vst [vmem:[%s2 + $0x458] sm:$0xff] %v2488
  %2633 = vst [vmem:[%s2 + $0x460] sm:$0xff] %v2489
  %2634 = vst [vmem:[%s2 + $0x468] sm:$0xff] %v2490
  %2635 = vst [vmem:[%s2 + $0x470] sm:$0xff] %v2491
  %2636 = vst [vmem:[%s2 + $0x478] sm:$0xff] %v2492
  // Predicated region
  $region10: #{disentg_block_forward.6} parent=0 // pred_check
    _
  $region11: #{disentg_block_forward.6} parent=0 // pred_check_branch
    %2638 = sbr.rel (0) target = $region13
  $region12: #{disentg_block_forward.6} parent=0 // pred_region
    _
  $region13: #{disentg_block_forward.6} parent=0 // pred_fallthru
    _
  // Predicated region
  $region14: #{disentg_block_forward.6} parent=0 // pred_check
    _
  $region15: #{disentg_block_forward.6} parent=0 // pred_check_branch
    %2640 = sbr.rel (0) target = $region17
  $region16: #{disentg_block_forward.6} parent=0 // pred_region
    _
  $region17: #{disentg_block_forward.6} parent=0 // pred_fallthru
    _

// kernel: disentg_block_forward.8
$region0: #{disentg_block_forward.8}
  #allocation0 [shape = 'u32[]', space=smem, size = 0x4, offset = 0x4, fixed_abs, tag = 'smem constant byte address 0x4 - core index']
  #allocation1 [shape = 'u32[144,128]{1,0:T(1,128)}', space=vmem, size = 0x12000, scoped, tag = 'internal scratch']
  %s0 = inlined_call_operand.vmem [shape: f32[128,384], index: 0, kind: input, shape index: {}]
  %s1 = inlined_call_operand.vmem [shape: f32[384,128], index: 1, kind: input, shape index: {}]
  %s2 = inlined_call_operand.vmem [shape: f32[128,128], index: 2, kind: input, shape index: {}]
  %s3 = inlined_call_operand.vmem [shape: f32[128,128], index: 3, kind: output, shape index: {}]
  %s4 = sld [smem:[#allocation0]]
  $region22: #{disentg_block_forward.8} parent=0
    _
  %s6 = ssub.s32 1, %s4
  %s7 = scalar_select 0, %s6, %s4
  // Predicated region
  $region2: #{disentg_block_forward.8} parent=0 // pred_check
    _
  $region3: #{disentg_block_forward.8} parent=0 // pred_check_branch
    %9 = sbr.rel (0) target = $region5
  $region4: #{disentg_block_forward.8} parent=0 // pred_region
    _
  $region5: #{disentg_block_forward.8} parent=0 // pred_fallthru
    _
  // Predicated region
  $region6: #{disentg_block_forward.8} parent=0 // pred_check
    _
  $region7: #{disentg_block_forward.8} parent=0 // pred_check_branch
    %11 = sbr.rel (0) target = $region9
  $region8: #{disentg_block_forward.8} parent=0 // pred_region
    _
  $region9: #{disentg_block_forward.8} parent=0 // pred_fallthru
    _
  // Predicated region
  $region10: #{disentg_block_forward.8} parent=0 // pred_check
    _
  $region11: #{disentg_block_forward.8} parent=0 // pred_check_branch
    %13 = sbr.rel (0) target = $region13
  $region12: #{disentg_block_forward.8} parent=0 // pred_region
    _
  $region13: #{disentg_block_forward.8} parent=0 // pred_fallthru
    _
  %v14 = vld [vmem:[%s0] sm:$0xff]
  %v15 = vld [vmem:[%s0 + $0x8] sm:$0xff]
  %v16 = vld [vmem:[%s0 + $0x10] sm:$0xff]
  %v17 = vld [vmem:[%s0 + $0x18] sm:$0xff]
  %v18 = vld [vmem:[%s0 + $0x20] sm:$0xff]
  %v19 = vld [vmem:[%s0 + $0x28] sm:$0xff]
  %v20 = vld [vmem:[%s0 + $0x30] sm:$0xff]
  %v21 = vld [vmem:[%s0 + $0x38] sm:$0xff]
  %v22 = vld [vmem:[%s0 + $0x40] sm:$0xff]
  %v23 = vld [vmem:[%s0 + $0x48] sm:$0xff]
  %v24 = vld [vmem:[%s0 + $0x50] sm:$0xff]
  %v25 = vld [vmem:[%s0 + $0x58] sm:$0xff]
  %v26 = vld [vmem:[%s0 + $0x60] sm:$0xff]
  %v27 = vld [vmem:[%s0 + $0x68] sm:$0xff]
  %v28 = vld [vmem:[%s0 + $0x70] sm:$0xff]
  %v29 = vld [vmem:[%s0 + $0x78] sm:$0xff]
  %v30 = vld [vmem:[%s0 + $0x80] sm:$0xff]
  %v31 = vld [vmem:[%s0 + $0x88] sm:$0xff]
  %v32 = vld [vmem:[%s0 + $0x90] sm:$0xff]
  %v33 = vld [vmem:[%s0 + $0x98] sm:$0xff]
  %v34 = vld [vmem:[%s0 + $0xa0] sm:$0xff]
  %v35 = vld [vmem:[%s0 + $0xa8] sm:$0xff]
  %v36 = vld [vmem:[%s0 + $0xb0] sm:$0xff]
  %v37 = vld [vmem:[%s0 + $0xb8] sm:$0xff]
  %v38 = vld [vmem:[%s0 + $0xc0] sm:$0xff]
  %v39 = vld [vmem:[%s0 + $0xc8] sm:$0xff]
  %v40 = vld [vmem:[%s0 + $0xd0] sm:$0xff]
  %v41 = vld [vmem:[%s0 + $0xd8] sm:$0xff]
  %v42 = vld [vmem:[%s0 + $0xe0] sm:$0xff]
  %v43 = vld [vmem:[%s0 + $0xe8] sm:$0xff]
  %v44 = vld [vmem:[%s0 + $0xf0] sm:$0xff]
  %v45 = vld [vmem:[%s0 + $0xf8] sm:$0xff]
  %v46 = vld [vmem:[%s0 + $0x100] sm:$0xff]
  %v47 = vld [vmem:[%s0 + $0x108] sm:$0xff]
  %v48 = vld [vmem:[%s0 + $0x110] sm:$0xff]
  %v49 = vld [vmem:[%s0 + $0x118] sm:$0xff]
  %v50 = vld [vmem:[%s0 + $0x120] sm:$0xff]
  %v51 = vld [vmem:[%s0 + $0x128] sm:$0xff]
  %v52 = vld [vmem:[%s0 + $0x130] sm:$0xff]
  %v53 = vld [vmem:[%s0 + $0x138] sm:$0xff]
  %v54 = vld [vmem:[%s0 + $0x140] sm:$0xff]
  %v55 = vld [vmem:[%s0 + $0x148] sm:$0xff]
  %v56 = vld [vmem:[%s0 + $0x150] sm:$0xff]
  %v57 = vld [vmem:[%s0 + $0x158] sm:$0xff]
  %v58 = vld [vmem:[%s0 + $0x160] sm:$0xff]
  %v59 = vld [vmem:[%s0 + $0x168] sm:$0xff]
  %v60 = vld [vmem:[%s0 + $0x170] sm:$0xff]
  %v61 = vld [vmem:[%s0 + $0x178] sm:$0xff]
  %v62 = vld [vmem:[%s1] sm:$0xff]
  %v63 = vld [vmem:[%s1 + $0x8] sm:$0xff]
  %v64 = vld [vmem:[%s1 + $0x10] sm:$0xff]
  %v65 = vld [vmem:[%s1 + $0x18] sm:$0xff]
  %v66 = vld [vmem:[%s1 + $0x20] sm:$0xff]
  %v67 = vld [vmem:[%s1 + $0x28] sm:$0xff]
  %v68 = vld [vmem:[%s1 + $0x30] sm:$0xff]
  %v69 = vld [vmem:[%s1 + $0x38] sm:$0xff]
  %v70 = vld [vmem:[%s1 + $0x40] sm:$0xff]
  %v71 = vld [vmem:[%s1 + $0x48] sm:$0xff]
  %v72 = vld [vmem:[%s1 + $0x50] sm:$0xff]
  %v73 = vld [vmem:[%s1 + $0x58] sm:$0xff]
  %v74 = vld [vmem:[%s1 + $0x60] sm:$0xff]
  %v75 = vld [vmem:[%s1 + $0x68] sm:$0xff]
  %v76 = vld [vmem:[%s1 + $0x70] sm:$0xff]
  %v77 = vld [vmem:[%s1 + $0x78] sm:$0xff]
  %v78 = vld [vmem:[%s1 + $0x80] sm:$0xff]
  %v79 = vld [vmem:[%s1 + $0x88] sm:$0xff]
  %v80 = vld [vmem:[%s1 + $0x90] sm:$0xff]
  %v81 = vld [vmem:[%s1 + $0x98] sm:$0xff]
  %v82 = vld [vmem:[%s1 + $0xa0] sm:$0xff]
  %v83 = vld [vmem:[%s1 + $0xa8] sm:$0xff]
  %v84 = vld [vmem:[%s1 + $0xb0] sm:$0xff]
  %v85 = vld [vmem:[%s1 + $0xb8] sm:$0xff]
  %v86 = vld [vmem:[%s1 + $0xc0] sm:$0xff]
  %v87 = vld [vmem:[%s1 + $0xc8] sm:$0xff]
  %v88 = vld [vmem:[%s1 + $0xd0] sm:$0xff]
  %v89 = vld [vmem:[%s1 + $0xd8] sm:$0xff]
  %v90 = vld [vmem:[%s1 + $0xe0] sm:$0xff]
  %v91 = vld [vmem:[%s1 + $0xe8] sm:$0xff]
  %v92 = vld [vmem:[%s1 + $0xf0] sm:$0xff]
  %v93 = vld [vmem:[%s1 + $0xf8] sm:$0xff]
  %v94 = vld [vmem:[%s1 + $0x100] sm:$0xff]
  %v95 = vld [vmem:[%s1 + $0x108] sm:$0xff]
  %v96 = vld [vmem:[%s1 + $0x110] sm:$0xff]
  %v97 = vld [vmem:[%s1 + $0x118] sm:$0xff]
  %v98 = vld [vmem:[%s1 + $0x120] sm:$0xff]
  %v99 = vld [vmem:[%s1 + $0x128] sm:$0xff]
  %v100 = vld [vmem:[%s1 + $0x130] sm:$0xff]
  %v101 = vld [vmem:[%s1 + $0x138] sm:$0xff]
  %v102 = vld [vmem:[%s1 + $0x140] sm:$0xff]
  %v103 = vld [vmem:[%s1 + $0x148] sm:$0xff]
  %v104 = vld [vmem:[%s1 + $0x150] sm:$0xff]
  %v105 = vld [vmem:[%s1 + $0x158] sm:$0xff]
  %v106 = vld [vmem:[%s1 + $0x160] sm:$0xff]
  %v107 = vld [vmem:[%s1 + $0x168] sm:$0xff]
  %v108 = vld [vmem:[%s1 + $0x170] sm:$0xff]
  %v109 = vld [vmem:[%s1 + $0x178] sm:$0xff]
  %110 = vmatprep.subr.mxu0 0.0
  %111 = vmatpush1.msra.mxu0 %v62
  %112 = vmatprep.subr.mxu0 0.0
  %113 = vmatpush1.msra.mxu0 %v63
  %114 = vmatprep.subr.mxu0 0.0
  %115 = vmatpush1.msra.mxu0 %v64
  %116 = vmatprep.subr.mxu0 0.0
  %117 = vmatpush1.msra.mxu0 %v65
  %118 = vmatprep.subr.mxu0 0.0
  %119 = vmatpush1.msra.mxu0 %v66
  %120 = vmatprep.subr.mxu0 0.0
  %121 = vmatpush1.msra.mxu0 %v67
  %122 = vmatprep.subr.mxu0 0.0
  %123 = vmatpush1.msra.mxu0 %v68
  %124 = vmatprep.subr.mxu0 0.0
  %125 = vmatpush1.msra.mxu0 %v69
  %126 = vmatprep.subr.mxu0 0.0
  %127 = vmatpush1.msra.mxu0 %v70
  %128 = vmatprep.subr.mxu0 0.0
  %129 = vmatpush1.msra.mxu0 %v71
  %130 = vmatprep.subr.mxu0 0.0
  %131 = vmatpush1.msra.mxu0 %v72
  %132 = vmatprep.subr.mxu0 0.0
  %133 = vmatpush1.msra.mxu0 %v73
  %134 = vmatprep.subr.mxu0 0.0
  %135 = vmatpush1.msra.mxu0 %v74
  %136 = vmatprep.subr.mxu0 0.0
  %137 = vmatpush1.msra.mxu0 %v75
  %138 = vmatprep.subr.mxu0 0.0
  %139 = vmatpush1.msra.mxu0 %v76
  %140 = vmatprep.subr.mxu0 0.0
  %141 = vmatpush1.msra.mxu0 %v77
  %142 = vmatprep.subr.mxu0 0.0
  %143 = vmatpush1.msra.mxu0 %v78
  %144 = vmatprep.subr.mxu0 0.0
  %145 = vmatpush1.msra.mxu0 %v79
  %146 = vmatprep.subr.mxu0 0.0
  %147 = vmatpush1.msra.mxu0 %v80
  %148 = vmatprep.subr.mxu0 0.0
  %149 = vmatpush1.msra.mxu0 %v81
  %150 = vmatprep.subr.mxu0 0.0
  %151 = vmatpush1.msra.mxu0 %v82
  %152 = vmatprep.subr.mxu0 0.0
  %153 = vmatpush1.msra.mxu0 %v83
  %154 = vmatprep.subr.mxu0 0.0
  %155 = vmatpush1.msra.mxu0 %v84
  %156 = vmatprep.subr.mxu0 0.0
  %157 = vmatpush1.msra.mxu0 %v85
  %158 = vmatprep.subr.mxu0 0.0
  %159 = vmatpush1.msra.mxu0 %v86
  %160 = vmatprep.subr.mxu0 0.0
  %161 = vmatpush1.msra.mxu0 %v87
  %162 = vmatprep.subr.mxu0 0.0
  %163 = vmatpush1.msra.mxu0 %v88
  %164 = vmatprep.subr.mxu0 0.0
  %165 = vmatpush1.msra.mxu0 %v89
  %166 = vmatprep.subr.mxu0 0.0
  %167 = vmatpush1.msra.mxu0 %v90
  %168 = vmatprep.subr.mxu0 0.0
  %169 = vmatpush1.msra.mxu0 %v91
  %170 = vmatprep.subr.mxu0 0.0
  %171 = vmatpush1.msra.mxu0 %v92
  %172 = vmatprep.subr.mxu0 0.0
  %173 = vmatpush1.msra.mxu0 %v93
  %174 = vmatprep.mubr.f32.mxu0 %v15
  %175 = vmatmul.mubr.f32.gmra.mrb[0].mxu0 %v14
  %v176 = vpop.f32.mrb[0].mxu0
  %v177 = vadd.f32 0.0, %v176
  %v178 = vpop.f32.mrb[0].mxu0
  %179 = vmatprep.mubr.f32.mxu0 %v18
  %180 = vmatmul.mubr.f32.gmra.mrb[0].mxu0 %v17
  %v181 = vpop.f32.mrb[0].mxu0
  %v182 = vadd.f32 0.0, %v181
  %v183 = vpop.f32.mrb[0].mxu0
  %184 = vmatprep.mubr.f32.mxu0 %v21
  %185 = vmatmul.mubr.f32.gmra.mrb[0].mxu0 %v20
  %v186 = vpop.f32.mrb[0].mxu0
  %v187 = vadd.f32 0.0, %v186
  %v188 = vpop.f32.mrb[0].mxu0
  %189 = vmatprep.mubr.f32.mxu0 %v24
  %190 = vmatmul.mubr.f32.gmra.mrb[0].mxu0 %v23
  %v191 = vpop.f32.mrb[0].mxu0
  %v192 = vadd.f32 0.0, %v191
  %v193 = vpop.f32.mrb[0].mxu0
  %194 = vmatprep.mubr.f32.mxu0 %v27
  %195 = vmatmul.mubr.f32.gmra.mrb[0].mxu0 %v26
  %v196 = vpop.f32.mrb[0].mxu0
  %v197 = vadd.f32 0.0, %v196
  %v198 = vpop.f32.mrb[0].mxu0
  %199 = vmatprep.mubr.f32.mxu0 %v30
  %200 = vmatmul.mubr.f32.gmra.mrb[0].mxu0 %v29
  %v201 = vpop.f32.mrb[0].mxu0
  %v202 = vadd.f32 0.0, %v201
  %v203 = vpop.f32.mrb[0].mxu0
  %204 = vmatprep.mubr.f32.mxu0 %v33
  %205 = vmatmul.mubr.f32.gmra.mrb[0].mxu0 %v32
  %v206 = vpop.f32.mrb[0].mxu0
  %v207 = vadd.f32 0.0, %v206
  %v208 = vpop.f32.mrb[0].mxu0
  %209 = vmatprep.mubr.f32.mxu0 %v36
  %210 = vmatmul.mubr.f32.gmra.mrb[0].mxu0 %v35
  %v211 = vpop.f32.mrb[0].mxu0
  %v212 = vadd.f32 0.0, %v211
  %v213 = vpop.f32.mrb[0].mxu0
  %214 = vmatprep.mubr.f32.mxu0 %v39
  %215 = vmatmul.mubr.f32.gmra.mrb[0].mxu0 %v38
  %v216 = vpop.f32.mrb[0].mxu0
  %v217 = vadd.f32 0.0, %v216
  %v218 = vpop.f32.mrb[0].mxu0
  %219 = vmatprep.mubr.f32.mxu0 %v42
  %220 = vmatmul.mubr.f32.gmra.mrb[0].mxu0 %v41
  %v221 = vpop.f32.mrb[0].mxu0
  %v222 = vadd.f32 0.0, %v221
  %v223 = vpop.f32.mrb[0].mxu0
  %224 = vmatprep.mubr.f32.mxu0 %v45
  %225 = vmatmul.mubr.f32.gmra.mrb[0].mxu0 %v44
  %v226 = vpop.f32.mrb[0].mxu0
  %v227 = vadd.f32 0.0, %v226
  %v228 = vpop.f32.mrb[0].mxu0
  %229 = vmatprep.mubr.f32.mxu0 %v48
  %230 = vmatmul.mubr.f32.gmra.mrb[0].mxu0 %v47
  %v231 = vpop.f32.mrb[0].mxu0
  %v232 = vadd.f32 0.0, %v231
  %v233 = vpop.f32.mrb[0].mxu0
  %234 = vmatprep.mubr.f32.mxu0 %v51
  %235 = vmatmul.mubr.f32.gmra.mrb[0].mxu0 %v50
  %v236 = vpop.f32.mrb[0].mxu0
  %v237 = vadd.f32 0.0, %v236
  %v238 = vpop.f32.mrb[0].mxu0
  %239 = vmatprep.mubr.f32.mxu0 %v54
  %240 = vmatmul.mubr.f32.gmra.mrb[0].mxu0 %v53
  %v241 = vpop.f32.mrb[0].mxu0
  %v242 = vadd.f32 0.0, %v241
  %v243 = vpop.f32.mrb[0].mxu0
  %244 = vmatprep.mubr.f32.mxu0 %v57
  %245 = vmatmul.mubr.f32.gmra.mrb[0].mxu0 %v56
  %v246 = vpop.f32.mrb[0].mxu0
  %v247 = vadd.f32 0.0, %v246
  %v248 = vpop.f32.mrb[0].mxu0
  %249 = vmatprep.mubr.f32.mxu0 %v60
  %250 = vmatmul.mubr.f32.gmra.mrb[0].mxu0 %v59
  %v251 = vpop.f32.mrb[0].mxu0
  %v252 = vadd.f32 0.0, %v251
  %v253 = vpop.f32.mrb[0].mxu0
  %254 = vdwg.mxu0
  %255 = vmatprep.subr.mxu0 0.0
  %256 = vmatpush1.msra.mxu0 %v94
  %257 = vmatprep.subr.mxu0 0.0
  %258 = vmatpush1.msra.mxu0 %v95
  %259 = vmatprep.subr.mxu0 0.0
  %260 = vmatpush1.msra.mxu0 %v96
  %261 = vmatprep.subr.mxu0 0.0
  %262 = vmatpush1.msra.mxu0 %v97
  %263 = vmatprep.subr.mxu0 0.0
  %264 = vmatpush1.msra.mxu0 %v98
  %265 = vmatprep.subr.mxu0 0.0
  %266 = vmatpush1.msra.mxu0 %v99
  %267 = vmatprep.subr.mxu0 0.0
  %268 = vmatpush1.msra.mxu0 %v100
  %269 = vmatprep.subr.mxu0 0.0
  %270 = vmatpush1.msra.mxu0 %v101
  %271 = vmatprep.subr.mxu0 0.0
  %272 = vmatpush1.msra.mxu0 %v102
  %273 = vmatprep.subr.mxu0 0.0
  %274 = vmatpush1.msra.mxu0 %v103
  %275 = vmatprep.subr.mxu0 0.0
  %276 = vmatpush1.msra.mxu0 %v104
  %277 = vmatprep.subr.mxu0 0.0
  %278 = vmatpush1.msra.mxu0 %v105
  %279 = vmatprep.subr.mxu0 0.0
  %280 = vmatpush1.msra.mxu0 %v106
  %281 = vmatprep.subr.mxu0 0.0
  %282 = vmatpush1.msra.mxu0 %v107
  %283 = vmatprep.subr.mxu0 0.0
  %284 = vmatpush1.msra.mxu0 %v108
  %285 = vmatprep.subr.mxu0 0.0
  %286 = vmatpush1.msra.mxu0 %v109
  %287 = vmatprep.subr.mxu0 0.0
  %288 = vmatpush1.msra.mxu0 0.0
  %289 = vmatprep.subr.mxu0 0.0
  %290 = vmatpush1.msra.mxu0 0.0
  %291 = vmatprep.subr.mxu0 0.0
  %292 = vmatpush1.msra.mxu0 0.0
  %293 = vmatprep.subr.mxu0 0.0
  %294 = vmatpush1.msra.mxu0 0.0
  %295 = vmatprep.subr.mxu0 0.0
  %296 = vmatpush1.msra.mxu0 0.0
  %297 = vmatprep.subr.mxu0 0.0
  %298 = vmatpush1.msra.mxu0 0.0
  %299 = vmatprep.subr.mxu0 0.0
  %300 = vmatpush1.msra.mxu0 0.0
  %301 = vmatprep.subr.mxu0 0.0
  %302 = vmatpush1.msra.mxu0 0.0
  %303 = vmatprep.subr.mxu0 0.0
  %304 = vmatpush1.msra.mxu0 0.0
  %305 = vmatprep.subr.mxu0 0.0
  %306 = vmatpush1.msra.mxu0 0.0
  %307 = vmatprep.subr.mxu0 0.0
  %308 = vmatpush1.msra.mxu0 0.0
  %309 = vmatprep.subr.mxu0 0.0
  %310 = vmatpush1.msra.mxu0 0.0
  %311 = vmatprep.subr.mxu0 0.0
  %312 = vmatpush1.msra.mxu0 0.0
  %313 = vmatprep.subr.mxu0 0.0
  %314 = vmatpush1.msra.mxu0 0.0
  %315 = vmatprep.subr.mxu0 0.0
  %316 = vmatpush1.msra.mxu0 0.0
  %317 = vmatprep.subr.mxu0 0.0
  %318 = vmatpush1.msra.mxu0 0.0
  %319 = vmatprep.mubr.f32.mxu0 0.0
  %320 = vmatmul.mubr.f32.gmra.mrb[0].mxu0 %v16
  %v321 = vpop.f32.mrb[0].mxu0
  %v322 = vadd.f32 %v177, %v321
  %v323 = vpop.f32.mrb[0].mxu0
  %324 = vmatprep.mubr.f32.mxu0 0.0
  %325 = vmatmul.mubr.f32.gmra.mrb[0].mxu0 %v19
  %v326 = vpop.f32.mrb[0].mxu0
  %v327 = vadd.f32 %v182, %v326
  %v328 = vpop.f32.mrb[0].mxu0
  %329 = vmatprep.mubr.f32.mxu0 0.0
  %330 = vmatmul.mubr.f32.gmra.mrb[0].mxu0 %v22
  %v331 = vpop.f32.mrb[0].mxu0
  %v332 = vadd.f32 %v187, %v331
  %v333 = vpop.f32.mrb[0].mxu0
  %334 = vmatprep.mubr.f32.mxu0 0.0
  %335 = vmatmul.mubr.f32.gmra.mrb[0].mxu0 %v25
  %v336 = vpop.f32.mrb[0].mxu0
  %v337 = vadd.f32 %v192, %v336
  %v338 = vpop.f32.mrb[0].mxu0
  %339 = vmatprep.mubr.f32.mxu0 0.0
  %340 = vmatmul.mubr.f32.gmra.mrb[0].mxu0 %v28
  %v341 = vpop.f32.mrb[0].mxu0
  %v342 = vadd.f32 %v197, %v341
  %v343 = vpop.f32.mrb[0].mxu0
  %344 = vmatprep.mubr.f32.mxu0 0.0
  %345 = vmatmul.mubr.f32.gmra.mrb[0].mxu0 %v31
  %v346 = vpop.f32.mrb[0].mxu0
  %v347 = vadd.f32 %v202, %v346
  %v348 = vpop.f32.mrb[0].mxu0
  %349 = vmatprep.mubr.f32.mxu0 0.0
  %350 = vmatmul.mubr.f32.gmra.mrb[0].mxu0 %v34
  %v351 = vpop.f32.mrb[0].mxu0
  %v352 = vadd.f32 %v207, %v351
  %v353 = vpop.f32.mrb[0].mxu0
  %354 = vmatprep.mubr.f32.mxu0 0.0
  %355 = vmatmul.mubr.f32.gmra.mrb[0].mxu0 %v37
  %v356 = vpop.f32.mrb[0].mxu0
  %v357 = vadd.f32 %v212, %v356
  %v358 = vpop.f32.mrb[0].mxu0
  %359 = vmatprep.mubr.f32.mxu0 0.0
  %360 = vmatmul.mubr.f32.gmra.mrb[0].mxu0 %v40
  %v361 = vpop.f32.mrb[0].mxu0
  %v362 = vadd.f32 %v217, %v361
  %v363 = vpop.f32.mrb[0].mxu0
  %364 = vmatprep.mubr.f32.mxu0 0.0
  %365 = vmatmul.mubr.f32.gmra.mrb[0].mxu0 %v43
  %v366 = vpop.f32.mrb[0].mxu0
  %v367 = vadd.f32 %v222, %v366
  %v368 = vpop.f32.mrb[0].mxu0
  %369 = vmatprep.mubr.f32.mxu0 0.0
  %370 = vmatmul.mubr.f32.gmra.mrb[0].mxu0 %v46
  %v371 = vpop.f32.mrb[0].mxu0
  %v372 = vadd.f32 %v227, %v371
  %v373 = vpop.f32.mrb[0].mxu0
  %374 = vmatprep.mubr.f32.mxu0 0.0
  %375 = vmatmul.mubr.f32.gmra.mrb[0].mxu0 %v49
  %v376 = vpop.f32.mrb[0].mxu0
  %v377 = vadd.f32 %v232, %v376
  %v378 = vpop.f32.mrb[0].mxu0
  %379 = vmatprep.mubr.f32.mxu0 0.0
  %380 = vmatmul.mubr.f32.gmra.mrb[0].mxu0 %v52
  %v381 = vpop.f32.mrb[0].mxu0
  %v382 = vadd.f32 %v237, %v381
  %v383 = vpop.f32.mrb[0].mxu0
  %384 = vmatprep.mubr.f32.mxu0 0.0
  %385 = vmatmul.mubr.f32.gmra.mrb[0].mxu0 %v55
  %v386 = vpop.f32.mrb[0].mxu0
  %v387 = vadd.f32 %v242, %v386
  %v388 = vpop.f32.mrb[0].mxu0
  %389 = vmatprep.mubr.f32.mxu0 0.0
  %390 = vmatmul.mubr.f32.gmra.mrb[0].mxu0 %v58
  %v391 = vpop.f32.mrb[0].mxu0
  %v392 = vadd.f32 %v247, %v391
  %v393 = vpop.f32.mrb[0].mxu0
  %394 = vmatprep.mubr.f32.mxu0 0.0
  %395 = vmatmul.mubr.f32.gmra.mrb[0].mxu0 %v61
  %v396 = vpop.f32.mrb[0].mxu0
  %v397 = vadd.f32 %v252, %v396
  %v398 = vpop.f32.mrb[0].mxu0
  %399 = vdwg.mxu0
  %vm400 = vcmp.ge.f32.partialorder %v322, 0.0
  %vm401 = vcmp.ge.f32.partialorder %v327, 0.0
  %vm402 = vcmp.ge.f32.partialorder %v332, 0.0
  %vm403 = vcmp.ge.f32.partialorder %v337, 0.0
  %vm404 = vcmp.ge.f32.partialorder %v342, 0.0
  %vm405 = vcmp.ge.f32.partialorder %v347, 0.0
  %vm406 = vcmp.ge.f32.partialorder %v352, 0.0
  %vm407 = vcmp.ge.f32.partialorder %v357, 0.0
  %vm408 = vcmp.ge.f32.partialorder %v362, 0.0
  %vm409 = vcmp.ge.f32.partialorder %v367, 0.0
  %vm410 = vcmp.ge.f32.partialorder %v372, 0.0
  %vm411 = vcmp.ge.f32.partialorder %v377, 0.0
  %vm412 = vcmp.ge.f32.partialorder %v382, 0.0
  %vm413 = vcmp.ge.f32.partialorder %v387, 0.0
  %vm414 = vcmp.ge.f32.partialorder %v392, 0.0
  %vm415 = vcmp.ge.f32.partialorder %v397, 0.0
  %v416 = vmul.f32 %v322, 0.1
  %v417 = vmul.f32 %v327, 0.1
  %v418 = vmul.f32 %v332, 0.1
  %v419 = vmul.f32 %v337, 0.1
  %v420 = vmul.f32 %v342, 0.1
  %v421 = vmul.f32 %v347, 0.1
  %v422 = vmul.f32 %v352, 0.1
  %v423 = vmul.f32 %v357, 0.1
  %v424 = vmul.f32 %v362, 0.1
  %v425 = vmul.f32 %v367, 0.1
  %v426 = vmul.f32 %v372, 0.1
  %v427 = vmul.f32 %v377, 0.1
  %v428 = vmul.f32 %v382, 0.1
  %v429 = vmul.f32 %v387, 0.1
  %v430 = vmul.f32 %v392, 0.1
  %v431 = vmul.f32 %v397, 0.1
  %v432 = vsel %vm400, %v322, %v416
  %v433 = vsel %vm401, %v327, %v417
  %v434 = vsel %vm402, %v332, %v418
  %v435 = vsel %vm403, %v337, %v419
  %v436 = vsel %vm404, %v342, %v420
  %v437 = vsel %vm405, %v347, %v421
  %v438 = vsel %vm406, %v352, %v422
  %v439 = vsel %vm407, %v357, %v423
  %v440 = vsel %vm408, %v362, %v424
  %v441 = vsel %vm409, %v367, %v425
  %v442 = vsel %vm410, %v372, %v426
  %v443 = vsel %vm411, %v377, %v427
  %v444 = vsel %vm412, %v382, %v428
  %v445 = vsel %vm413, %v387, %v429
  %v446 = vsel %vm414, %v392, %v430
  %v447 = vsel %vm415, %v397, %v431
  %v448 = vld [vmem:[%s2] sm:$0xff]
  %v449 = vld [vmem:[%s2 + $0x8] sm:$0xff]
  %v450 = vld [vmem:[%s2 + $0x10] sm:$0xff]
  %v451 = vld [vmem:[%s2 + $0x18] sm:$0xff]
  %v452 = vld [vmem:[%s2 + $0x20] sm:$0xff]
  %v453 = vld [vmem:[%s2 + $0x28] sm:$0xff]
  %v454 = vld [vmem:[%s2 + $0x30] sm:$0xff]
  %v455 = vld [vmem:[%s2 + $0x38] sm:$0xff]
  %v456 = vld [vmem:[%s2 + $0x40] sm:$0xff]
  %v457 = vld [vmem:[%s2 + $0x48] sm:$0xff]
  %v458 = vld [vmem:[%s2 + $0x50] sm:$0xff]
  %v459 = vld [vmem:[%s2 + $0x58] sm:$0xff]
  %v460 = vld [vmem:[%s2 + $0x60] sm:$0xff]
  %v461 = vld [vmem:[%s2 + $0x68] sm:$0xff]
  %v462 = vld [vmem:[%s2 + $0x70] sm:$0xff]
  %v463 = vld [vmem:[%s2 + $0x78] sm:$0xff]
  %464 = vmatprep.subr.mxu0 0.0
  %465 = vmatpush1.msra.mxu0 %v448
  %466 = vmatprep.subr.mxu0 0.0
  %467 = vmatpush1.msra.mxu0 %v449
  %468 = vmatprep.subr.mxu0 0.0
  %469 = vmatpush1.msra.mxu0 %v450
  %470 = vmatprep.subr.mxu0 0.0
  %471 = vmatpush1.msra.mxu0 %v451
  %472 = vmatprep.subr.mxu0 0.0
  %473 = vmatpush1.msra.mxu0 %v452
  %474 = vmatprep.subr.mxu0 0.0
  %475 = vmatpush1.msra.mxu0 %v453
  %476 = vmatprep.subr.mxu0 0.0
  %477 = vmatpush1.msra.mxu0 %v454
  %478 = vmatprep.subr.mxu0 0.0
  %479 = vmatpush1.msra.mxu0 %v455
  %480 = vmatprep.subr.mxu0 0.0
  %481 = vmatpush1.msra.mxu0 %v456
  %482 = vmatprep.subr.mxu0 0.0
  %483 = vmatpush1.msra.mxu0 %v457
  %484 = vmatprep.subr.mxu0 0.0
  %485 = vmatpush1.msra.mxu0 %v458
  %486 = vmatprep.subr.mxu0 0.0
  %487 = vmatpush1.msra.mxu0 %v459
  %488 = vmatprep.subr.mxu0 0.0
  %489 = vmatpush1.msra.mxu0 %v460
  %490 = vmatprep.subr.mxu0 0.0
  %491 = vmatpush1.msra.mxu0 %v461
  %492 = vmatprep.subr.mxu0 0.0
  %493 = vmatpush1.msra.mxu0 %v462
  %494 = vmatprep.subr.mxu0 0.0
  %495 = vmatpush1.msra.mxu0 %v463
  %496 = vmatprep.subr.mxu0 0.0
  %497 = vmatpush1.msra.mxu0 0.0
  %498 = vmatprep.subr.mxu0 0.0
  %499 = vmatpush1.msra.mxu0 0.0
  %500 = vmatprep.subr.mxu0 0.0
  %501 = vmatpush1.msra.mxu0 0.0
  %502 = vmatprep.subr.mxu0 0.0
  %503 = vmatpush1.msra.mxu0 0.0
  %504 = vmatprep.subr.mxu0 0.0
  %505 = vmatpush1.msra.mxu0 0.0
  %506 = vmatprep.subr.mxu0 0.0
  %507 = vmatpush1.msra.mxu0 0.0
  %508 = vmatprep.subr.mxu0 0.0
  %509 = vmatpush1.msra.mxu0 0.0
  %510 = vmatprep.subr.mxu0 0.0
  %511 = vmatpush1.msra.mxu0 0.0
  %512 = vmatprep.subr.mxu0 0.0
  %513 = vmatpush1.msra.mxu0 0.0
  %514 = vmatprep.subr.mxu0 0.0
  %515 = vmatpush1.msra.mxu0 0.0
  %516 = vmatprep.subr.mxu0 0.0
  %517 = vmatpush1.msra.mxu0 0.0
  %518 = vmatprep.subr.mxu0 0.0
  %519 = vmatpush1.msra.mxu0 0.0
  %520 = vmatprep.subr.mxu0 0.0
  %521 = vmatpush1.msra.mxu0 0.0
  %522 = vmatprep.subr.mxu0 0.0
  %523 = vmatpush1.msra.mxu0 0.0
  %524 = vmatprep.subr.mxu0 0.0
  %525 = vmatpush1.msra.mxu0 0.0
  %526 = vmatprep.subr.mxu0 0.0
  %527 = vmatpush1.msra.mxu0 0.0
  %528 = vmatprep.mubr.f32.mxu0 0.0
  %529 = vmatmul.mubr.f32.gmra.mrb[0].mxu0 %v432
  %v530 = vpop.f32.mrb[0].mxu0
  %v531 = vadd.f32 0.0, %v530
  %v532 = vpop.f32.mrb[0].mxu0
  %533 = vmatprep.mubr.f32.mxu0 0.0
  %534 = vmatmul.mubr.f32.gmra.mrb[0].mxu0 %v433
  %v535 = vpop.f32.mrb[0].mxu0
  %v536 = vadd.f32 0.0, %v535
  %v537 = vpop.f32.mrb[0].mxu0
  %538 = vmatprep.mubr.f32.mxu0 0.0
  %539 = vmatmul.mubr.f32.gmra.mrb[0].mxu0 %v434
  %v540 = vpop.f32.mrb[0].mxu0
  %v541 = vadd.f32 0.0, %v540
  %v542 = vpop.f32.mrb[0].mxu0
  %543 = vmatprep.mubr.f32.mxu0 0.0
  %544 = vmatmul.mubr.f32.gmra.mrb[0].mxu0 %v435
  %v545 = vpop.f32.mrb[0].mxu0
  %v546 = vadd.f32 0.0, %v545
  %v547 = vpop.f32.mrb[0].mxu0
  %548 = vmatprep.mubr.f32.mxu0 0.0
  %549 = vmatmul.mubr.f32.gmra.mrb[0].mxu0 %v436
  %v550 = vpop.f32.mrb[0].mxu0
  %v551 = vadd.f32 0.0, %v550
  %v552 = vpop.f32.mrb[0].mxu0
  %553 = vmatprep.mubr.f32.mxu0 0.0
  %554 = vmatmul.mubr.f32.gmra.mrb[0].mxu0 %v437
  %v555 = vpop.f32.mrb[0].mxu0
  %v556 = vadd.f32 0.0, %v555
  %v557 = vpop.f32.mrb[0].mxu0
  %558 = vmatprep.mubr.f32.mxu0 0.0
  %559 = vmatmul.mubr.f32.gmra.mrb[0].mxu0 %v438
  %v560 = vpop.f32.mrb[0].mxu0
  %v561 = vadd.f32 0.0, %v560
  %v562 = vpop.f32.mrb[0].mxu0
  %563 = vmatprep.mubr.f32.mxu0 0.0
  %564 = vmatmul.mubr.f32.gmra.mrb[0].mxu0 %v439
  %v565 = vpop.f32.mrb[0].mxu0
  %v566 = vadd.f32 0.0, %v565
  %v567 = vpop.f32.mrb[0].mxu0
  %568 = vmatprep.mubr.f32.mxu0 0.0
  %569 = vmatmul.mubr.f32.gmra.mrb[0].mxu0 %v440
  %v570 = vpop.f32.mrb[0].mxu0
  %v571 = vadd.f32 0.0, %v570
  %v572 = vpop.f32.mrb[0].mxu0
  %573 = vmatprep.mubr.f32.mxu0 0.0
  %574 = vmatmul.mubr.f32.gmra.mrb[0].mxu0 %v441
  %v575 = vpop.f32.mrb[0].mxu0
  %v576 = vadd.f32 0.0, %v575
  %v577 = vpop.f32.mrb[0].mxu0
  %578 = vmatprep.mubr.f32.mxu0 0.0
  %579 = vmatmul.mubr.f32.gmra.mrb[0].mxu0 %v442
  %v580 = vpop.f32.mrb[0].mxu0
  %v581 = vadd.f32 0.0, %v580
  %v582 = vpop.f32.mrb[0].mxu0
  %583 = vmatprep.mubr.f32.mxu0 0.0
  %584 = vmatmul.mubr.f32.gmra.mrb[0].mxu0 %v443
  %v585 = vpop.f32.mrb[0].mxu0
  %v586 = vadd.f32 0.0, %v585
  %v587 = vpop.f32.mrb[0].mxu0
  %588 = vmatprep.mubr.f32.mxu0 0.0
  %589 = vmatmul.mubr.f32.gmra.mrb[0].mxu0 %v444
  %v590 = vpop.f32.mrb[0].mxu0
  %v591 = vadd.f32 0.0, %v590
  %v592 = vpop.f32.mrb[0].mxu0
  %593 = vmatprep.mubr.f32.mxu0 0.0
  %594 = vmatmul.mubr.f32.gmra.mrb[0].mxu0 %v445
  %v595 = vpop.f32.mrb[0].mxu0
  %v596 = vadd.f32 0.0, %v595
  %v597 = vpop.f32.mrb[0].mxu0
  %598 = vmatprep.mubr.f32.mxu0 0.0
  %599 = vmatmul.mubr.f32.gmra.mrb[0].mxu0 %v446
  %v600 = vpop.f32.mrb[0].mxu0
  %v601 = vadd.f32 0.0, %v600
  %v602 = vpop.f32.mrb[0].mxu0
  %603 = vmatprep.mubr.f32.mxu0 0.0
  %604 = vmatmul.mubr.f32.gmra.mrb[0].mxu0 %v447
  %v605 = vpop.f32.mrb[0].mxu0
  %v606 = vadd.f32 0.0, %v605
  %v607 = vpop.f32.mrb[0].mxu0
  %608 = vdwg.mxu0
  %vm609 = vcmp.ge.f32.partialorder %v531, 0.0
  %vm610 = vcmp.ge.f32.partialorder %v536, 0.0
  %vm611 = vcmp.ge.f32.partialorder %v541, 0.0
  %vm612 = vcmp.ge.f32.partialorder %v546, 0.0
  %vm613 = vcmp.ge.f32.partialorder %v551, 0.0
  %vm614 = vcmp.ge.f32.partialorder %v556, 0.0
  %vm615 = vcmp.ge.f32.partialorder %v561, 0.0
  %vm616 = vcmp.ge.f32.partialorder %v566, 0.0
  %vm617 = vcmp.ge.f32.partialorder %v571, 0.0
  %vm618 = vcmp.ge.f32.partialorder %v576, 0.0
  %vm619 = vcmp.ge.f32.partialorder %v581, 0.0
  %vm620 = vcmp.ge.f32.partialorder %v586, 0.0
  %vm621 = vcmp.ge.f32.partialorder %v591, 0.0
  %vm622 = vcmp.ge.f32.partialorder %v596, 0.0
  %vm623 = vcmp.ge.f32.partialorder %v601, 0.0
  %vm624 = vcmp.ge.f32.partialorder %v606, 0.0
  %v625 = vmul.f32 %v531, 0.1
  %v626 = vmul.f32 %v536, 0.1
  %v627 = vmul.f32 %v541, 0.1
  %v628 = vmul.f32 %v546, 0.1
  %v629 = vmul.f32 %v551, 0.1
  %v630 = vmul.f32 %v556, 0.1
  %v631 = vmul.f32 %v561, 0.1
  %v632 = vmul.f32 %v566, 0.1
  %v633 = vmul.f32 %v571, 0.1
  %v634 = vmul.f32 %v576, 0.1
  %v635 = vmul.f32 %v581, 0.1
  %v636 = vmul.f32 %v586, 0.1
  %v637 = vmul.f32 %v591, 0.1
  %v638 = vmul.f32 %v596, 0.1
  %v639 = vmul.f32 %v601, 0.1
  %v640 = vmul.f32 %v606, 0.1
  %v641 = vsel %vm609, %v531, %v625
  %v642 = vsel %vm610, %v536, %v626
  %v643 = vsel %vm611, %v541, %v627
  %v644 = vsel %vm612, %v546, %v628
  %v645 = vsel %vm613, %v551, %v629
  %v646 = vsel %vm614, %v556, %v630
  %v647 = vsel %vm615, %v561, %v631
  %v648 = vsel %vm616, %v566, %v632
  %v649 = vsel %vm617, %v571, %v633
  %v650 = vsel %vm618, %v576, %v634
  %v651 = vsel %vm619, %v581, %v635
  %v652 = vsel %vm620, %v586, %v636
  %v653 = vsel %vm621, %v591, %v637
  %v654 = vsel %vm622, %v596, %v638
  %v655 = vsel %vm623, %v601, %v639
  %v656 = vsel %vm624, %v606, %v640
  %657 = vst [vmem:[%s3] sm:$0xff] %v641
  %658 = vst [vmem:[%s3 + $0x8] sm:$0xff] %v642
  %659 = vst [vmem:[%s3 + $0x10] sm:$0xff] %v643
  %660 = vst [vmem:[%s3 + $0x18] sm:$0xff] %v644
  %661 = vst [vmem:[%s3 + $0x20] sm:$0xff] %v645
  %662 = vst [vmem:[%s3 + $0x28] sm:$0xff] %v646
  %663 = vst [vmem:[%s3 + $0x30] sm:$0xff] %v647
  %664 = vst [vmem:[%s3 + $0x38] sm:$0xff] %v648
  %665 = vst [vmem:[%s3 + $0x40] sm:$0xff] %v649
  %666 = vst [vmem:[%s3 + $0x48] sm:$0xff] %v650
  %667 = vst [vmem:[%s3 + $0x50] sm:$0xff] %v651
  %668 = vst [vmem:[%s3 + $0x58] sm:$0xff] %v652
  %669 = vst [vmem:[%s3 + $0x60] sm:$0xff] %v653
  %670 = vst [vmem:[%s3 + $0x68] sm:$0xff] %v654
  %671 = vst [vmem:[%s3 + $0x70] sm:$0xff] %v655
  %672 = vst [vmem:[%s3 + $0x78] sm:$0xff] %v656
  // Predicated region
  $region14: #{disentg_block_forward.8} parent=0 // pred_check
    _
  $region15: #{disentg_block_forward.8} parent=0 // pred_check_branch
    %674 = sbr.rel (0) target = $region17
  $region16: #{disentg_block_forward.8} parent=0 // pred_region
    _
  $region17: #{disentg_block_forward.8} parent=0 // pred_fallthru
    _
  // Predicated region
  $region18: #{disentg_block_forward.8} parent=0 // pred_check
    _
  $region19: #{disentg_block_forward.8} parent=0 // pred_check_branch
    %676 = sbr.rel (0) target = $region21
  $region20: #{disentg_block_forward.8} parent=0 // pred_region
    _
  $region21: #{disentg_block_forward.8} parent=0 // pred_fallthru
    _

// kernel: disentg_block_forward.10
$region0: #{disentg_block_forward.10}
  #allocation0 [shape = 'u32[]', space=smem, size = 0x4, offset = 0x4, fixed_abs, tag = 'smem constant byte address 0x4 - core index']
  #allocation1 [shape = 'u32[144,128]{1,0:T(1,128)}', space=vmem, size = 0x12000, scoped, tag = 'internal scratch']
  %s0 = inlined_call_operand.vmem [shape: f32[1152,128], index: 0, kind: input, shape index: {}]
  %s1 = inlined_call_operand.vmem [shape: f32[128,128], index: 1, kind: input, shape index: {}]
  %s2 = inlined_call_operand.vmem [shape: f32[1152,128], index: 2, kind: output, shape index: {}]
  %s3 = sld [smem:[#allocation0]]
  $region18: #{disentg_block_forward.10} parent=0
    _
  %s5 = ssub.s32 1, %s3
  %s6 = scalar_select 0, %s5, %s3
  // Predicated region
  $region2: #{disentg_block_forward.10} parent=0 // pred_check
    _
  $region3: #{disentg_block_forward.10} parent=0 // pred_check_branch
    %8 = sbr.rel (0) target = $region5
  $region4: #{disentg_block_forward.10} parent=0 // pred_region
    _
  $region5: #{disentg_block_forward.10} parent=0 // pred_fallthru
    _
  // Predicated region
  $region6: #{disentg_block_forward.10} parent=0 // pred_check
    _
  $region7: #{disentg_block_forward.10} parent=0 // pred_check_branch
    %10 = sbr.rel (0) target = $region9
  $region8: #{disentg_block_forward.10} parent=0 // pred_region
    _
  $region9: #{disentg_block_forward.10} parent=0 // pred_fallthru
    _
  %v11 = vld [vmem:[%s0] sm:$0xff]
  %v12 = vld [vmem:[%s0 + $0x8] sm:$0xff]
  %v13 = vld [vmem:[%s0 + $0x10] sm:$0xff]
  %v14 = vld [vmem:[%s0 + $0x18] sm:$0xff]
  %v15 = vld [vmem:[%s0 + $0x20] sm:$0xff]
  %v16 = vld [vmem:[%s0 + $0x28] sm:$0xff]
  %v17 = vld [vmem:[%s0 + $0x30] sm:$0xff]
  %v18 = vld [vmem:[%s0 + $0x38] sm:$0xff]
  %v19 = vld [vmem:[%s0 + $0x40] sm:$0xff]
  %v20 = vld [vmem:[%s0 + $0x48] sm:$0xff]
  %v21 = vld [vmem:[%s0 + $0x50] sm:$0xff]
  %v22 = vld [vmem:[%s0 + $0x58] sm:$0xff]
  %v23 = vld [vmem:[%s0 + $0x60] sm:$0xff]
  %v24 = vld [vmem:[%s0 + $0x68] sm:$0xff]
  %v25 = vld [vmem:[%s0 + $0x70] sm:$0xff]
  %v26 = vld [vmem:[%s0 + $0x78] sm:$0xff]
  %v27 = vld [vmem:[%s0 + $0x80] sm:$0xff]
  %v28 = vld [vmem:[%s0 + $0x88] sm:$0xff]
  %v29 = vld [vmem:[%s0 + $0x90] sm:$0xff]
  %v30 = vld [vmem:[%s0 + $0x98] sm:$0xff]
  %v31 = vld [vmem:[%s0 + $0xa0] sm:$0xff]
  %v32 = vld [vmem:[%s0 + $0xa8] sm:$0xff]
  %v33 = vld [vmem:[%s0 + $0xb0] sm:$0xff]
  %v34 = vld [vmem:[%s0 + $0xb8] sm:$0xff]
  %v35 = vld [vmem:[%s0 + $0xc0] sm:$0xff]
  %v36 = vld [vmem:[%s0 + $0xc8] sm:$0xff]
  %v37 = vld [vmem:[%s0 + $0xd0] sm:$0xff]
  %v38 = vld [vmem:[%s0 + $0xd8] sm:$0xff]
  %v39 = vld [vmem:[%s0 + $0xe0] sm:$0xff]
  %v40 = vld [vmem:[%s0 + $0xe8] sm:$0xff]
  %v41 = vld [vmem:[%s0 + $0xf0] sm:$0xff]
  %v42 = vld [vmem:[%s0 + $0xf8] sm:$0xff]
  %v43 = vld [vmem:[%s0 + $0x100] sm:$0xff]
  %v44 = vld [vmem:[%s0 + $0x108] sm:$0xff]
  %v45 = vld [vmem:[%s0 + $0x110] sm:$0xff]
  %v46 = vld [vmem:[%s0 + $0x118] sm:$0xff]
  %v47 = vld [vmem:[%s0 + $0x120] sm:$0xff]
  %v48 = vld [vmem:[%s0 + $0x128] sm:$0xff]
  %v49 = vld [vmem:[%s0 + $0x130] sm:$0xff]
  %v50 = vld [vmem:[%s0 + $0x138] sm:$0xff]
  %v51 = vld [vmem:[%s0 + $0x140] sm:$0xff]
  %v52 = vld [vmem:[%s0 + $0x148] sm:$0xff]
  %v53 = vld [vmem:[%s0 + $0x150] sm:$0xff]
  %v54 = vld [vmem:[%s0 + $0x158] sm:$0xff]
  %v55 = vld [vmem:[%s0 + $0x160] sm:$0xff]
  %v56 = vld [vmem:[%s0 + $0x168] sm:$0xff]
  %v57 = vld [vmem:[%s0 + $0x170] sm:$0xff]
  %v58 = vld [vmem:[%s0 + $0x178] sm:$0xff]
  %v59 = vld [vmem:[%s0 + $0x180] sm:$0xff]
  %v60 = vld [vmem:[%s0 + $0x188] sm:$0xff]
  %v61 = vld [vmem:[%s0 + $0x190] sm:$0xff]
  %v62 = vld [vmem:[%s0 + $0x198] sm:$0xff]
  %v63 = vld [vmem:[%s0 + $0x1a0] sm:$0xff]
  %v64 = vld [vmem:[%s0 + $0x1a8] sm:$0xff]
  %v65 = vld [vmem:[%s0 + $0x1b0] sm:$0xff]
  %v66 = vld [vmem:[%s0 + $0x1b8] sm:$0xff]
  %v67 = vld [vmem:[%s0 + $0x1c0] sm:$0xff]
  %v68 = vld [vmem:[%s0 + $0x1c8] sm:$0xff]
  %v69 = vld [vmem:[%s0 + $0x1d0] sm:$0xff]
  %v70 = vld [vmem:[%s0 + $0x1d8] sm:$0xff]
  %v71 = vld [vmem:[%s0 + $0x1e0] sm:$0xff]
  %v72 = vld [vmem:[%s0 + $0x1e8] sm:$0xff]
  %v73 = vld [vmem:[%s0 + $0x1f0] sm:$0xff]
  %v74 = vld [vmem:[%s0 + $0x1f8] sm:$0xff]
  %v75 = vld [vmem:[%s0 + $0x200] sm:$0xff]
  %v76 = vld [vmem:[%s0 + $0x208] sm:$0xff]
  %v77 = vld [vmem:[%s0 + $0x210] sm:$0xff]
  %v78 = vld [vmem:[%s0 + $0x218] sm:$0xff]
  %v79 = vld [vmem:[%s0 + $0x220] sm:$0xff]
  %v80 = vld [vmem:[%s0 + $0x228] sm:$0xff]
  %v81 = vld [vmem:[%s0 + $0x230] sm:$0xff]
  %v82 = vld [vmem:[%s0 + $0x238] sm:$0xff]
  %v83 = vld [vmem:[%s0 + $0x240] sm:$0xff]
  %v84 = vld [vmem:[%s0 + $0x248] sm:$0xff]
  %v85 = vld [vmem:[%s0 + $0x250] sm:$0xff]
  %v86 = vld [vmem:[%s0 + $0x258] sm:$0xff]
  %v87 = vld [vmem:[%s0 + $0x260] sm:$0xff]
  %v88 = vld [vmem:[%s0 + $0x268] sm:$0xff]
  %v89 = vld [vmem:[%s0 + $0x270] sm:$0xff]
  %v90 = vld [vmem:[%s0 + $0x278] sm:$0xff]
  %v91 = vld [vmem:[%s0 + $0x280] sm:$0xff]
  %v92 = vld [vmem:[%s0 + $0x288] sm:$0xff]
  %v93 = vld [vmem:[%s0 + $0x290] sm:$0xff]
  %v94 = vld [vmem:[%s0 + $0x298] sm:$0xff]
  %v95 = vld [vmem:[%s0 + $0x2a0] sm:$0xff]
  %v96 = vld [vmem:[%s0 + $0x2a8] sm:$0xff]
  %v97 = vld [vmem:[%s0 + $0x2b0] sm:$0xff]
  %v98 = vld [vmem:[%s0 + $0x2b8] sm:$0xff]
  %v99 = vld [vmem:[%s0 + $0x2c0] sm:$0xff]
  %v100 = vld [vmem:[%s0 + $0x2c8] sm:$0xff]
  %v101 = vld [vmem:[%s0 + $0x2d0] sm:$0xff]
  %v102 = vld [vmem:[%s0 + $0x2d8] sm:$0xff]
  %v103 = vld [vmem:[%s0 + $0x2e0] sm:$0xff]
  %v104 = vld [vmem:[%s0 + $0x2e8] sm:$0xff]
  %v105 = vld [vmem:[%s0 + $0x2f0] sm:$0xff]
  %v106 = vld [vmem:[%s0 + $0x2f8] sm:$0xff]
  %v107 = vld [vmem:[%s0 + $0x300] sm:$0xff]
  %v108 = vld [vmem:[%s0 + $0x308] sm:$0xff]
  %v109 = vld [vmem:[%s0 + $0x310] sm:$0xff]
  %v110 = vld [vmem:[%s0 + $0x318] sm:$0xff]
  %v111 = vld [vmem:[%s0 + $0x320] sm:$0xff]
  %v112 = vld [vmem:[%s0 + $0x328] sm:$0xff]
  %v113 = vld [vmem:[%s0 + $0x330] sm:$0xff]
  %v114 = vld [vmem:[%s0 + $0x338] sm:$0xff]
  %v115 = vld [vmem:[%s0 + $0x340] sm:$0xff]
  %v116 = vld [vmem:[%s0 + $0x348] sm:$0xff]
  %v117 = vld [vmem:[%s0 + $0x350] sm:$0xff]
  %v118 = vld [vmem:[%s0 + $0x358] sm:$0xff]
  %v119 = vld [vmem:[%s0 + $0x360] sm:$0xff]
  %v120 = vld [vmem:[%s0 + $0x368] sm:$0xff]
  %v121 = vld [vmem:[%s0 + $0x370] sm:$0xff]
  %v122 = vld [vmem:[%s0 + $0x378] sm:$0xff]
  %v123 = vld [vmem:[%s0 + $0x380] sm:$0xff]
  %v124 = vld [vmem:[%s0 + $0x388] sm:$0xff]
  %v125 = vld [vmem:[%s0 + $0x390] sm:$0xff]
  %v126 = vld [vmem:[%s0 + $0x398] sm:$0xff]
  %v127 = vld [vmem:[%s0 + $0x3a0] sm:$0xff]
  %v128 = vld [vmem:[%s0 + $0x3a8] sm:$0xff]
  %v129 = vld [vmem:[%s0 + $0x3b0] sm:$0xff]
  %v130 = vld [vmem:[%s0 + $0x3b8] sm:$0xff]
  %v131 = vld [vmem:[%s0 + $0x3c0] sm:$0xff]
  %v132 = vld [vmem:[%s0 + $0x3c8] sm:$0xff]
  %v133 = vld [vmem:[%s0 + $0x3d0] sm:$0xff]
  %v134 = vld [vmem:[%s0 + $0x3d8] sm:$0xff]
  %v135 = vld [vmem:[%s0 + $0x3e0] sm:$0xff]
  %v136 = vld [vmem:[%s0 + $0x3e8] sm:$0xff]
  %v137 = vld [vmem:[%s0 + $0x3f0] sm:$0xff]
  %v138 = vld [vmem:[%s0 + $0x3f8] sm:$0xff]
  %v139 = vld [vmem:[%s0 + $0x400] sm:$0xff]
  %v140 = vld [vmem:[%s0 + $0x408] sm:$0xff]
  %v141 = vld [vmem:[%s0 + $0x410] sm:$0xff]
  %v142 = vld [vmem:[%s0 + $0x418] sm:$0xff]
  %v143 = vld [vmem:[%s0 + $0x420] sm:$0xff]
  %v144 = vld [vmem:[%s0 + $0x428] sm:$0xff]
  %v145 = vld [vmem:[%s0 + $0x430] sm:$0xff]
  %v146 = vld [vmem:[%s0 + $0x438] sm:$0xff]
  %v147 = vld [vmem:[%s0 + $0x440] sm:$0xff]
  %v148 = vld [vmem:[%s0 + $0x448] sm:$0xff]
  %v149 = vld [vmem:[%s0 + $0x450] sm:$0xff]
  %v150 = vld [vmem:[%s0 + $0x458] sm:$0xff]
  %v151 = vld [vmem:[%s0 + $0x460] sm:$0xff]
  %v152 = vld [vmem:[%s0 + $0x468] sm:$0xff]
  %v153 = vld [vmem:[%s0 + $0x470] sm:$0xff]
  %v154 = vld [vmem:[%s0 + $0x478] sm:$0xff]
  %v155 = vld [vmem:[%s1] sm:$0xff]
  %v156 = vld [vmem:[%s1 + $0x8] sm:$0xff]
  %v157 = vld [vmem:[%s1 + $0x10] sm:$0xff]
  %v158 = vld [vmem:[%s1 + $0x18] sm:$0xff]
  %v159 = vld [vmem:[%s1 + $0x20] sm:$0xff]
  %v160 = vld [vmem:[%s1 + $0x28] sm:$0xff]
  %v161 = vld [vmem:[%s1 + $0x30] sm:$0xff]
  %v162 = vld [vmem:[%s1 + $0x38] sm:$0xff]
  %v163 = vld [vmem:[%s1 + $0x40] sm:$0xff]
  %v164 = vld [vmem:[%s1 + $0x48] sm:$0xff]
  %v165 = vld [vmem:[%s1 + $0x50] sm:$0xff]
  %v166 = vld [vmem:[%s1 + $0x58] sm:$0xff]
  %v167 = vld [vmem:[%s1 + $0x60] sm:$0xff]
  %v168 = vld [vmem:[%s1 + $0x68] sm:$0xff]
  %v169 = vld [vmem:[%s1 + $0x70] sm:$0xff]
  %v170 = vld [vmem:[%s1 + $0x78] sm:$0xff]
  %171 = vmatprep.subr.mxu0 0.0
  %172 = vmatpush1.msra.mxu0 %v155
  %173 = vmatprep.subr.mxu0 0.0
  %174 = vmatpush1.msra.mxu0 %v156
  %175 = vmatprep.subr.mxu0 0.0
  %176 = vmatpush1.msra.mxu0 %v157
  %177 = vmatprep.subr.mxu0 0.0
  %178 = vmatpush1.msra.mxu0 %v158
  %179 = vmatprep.subr.mxu0 0.0
  %180 = vmatpush1.msra.mxu0 %v159
  %181 = vmatprep.subr.mxu0 0.0
  %182 = vmatpush1.msra.mxu0 %v160
  %183 = vmatprep.subr.mxu0 0.0
  %184 = vmatpush1.msra.mxu0 %v161
  %185 = vmatprep.subr.mxu0 0.0
  %186 = vmatpush1.msra.mxu0 %v162
  %187 = vmatprep.subr.mxu0 0.0
  %188 = vmatpush1.msra.mxu0 %v163
  %189 = vmatprep.subr.mxu0 0.0
  %190 = vmatpush1.msra.mxu0 %v164
  %191 = vmatprep.subr.mxu0 0.0
  %192 = vmatpush1.msra.mxu0 %v165
  %193 = vmatprep.subr.mxu0 0.0
  %194 = vmatpush1.msra.mxu0 %v166
  %195 = vmatprep.subr.mxu0 0.0
  %196 = vmatpush1.msra.mxu0 %v167
  %197 = vmatprep.subr.mxu0 0.0
  %198 = vmatpush1.msra.mxu0 %v168
  %199 = vmatprep.subr.mxu0 0.0
  %200 = vmatpush1.msra.mxu0 %v169
  %201 = vmatprep.subr.mxu0 0.0
  %202 = vmatpush1.msra.mxu0 %v170
  %203 = vmatprep.subr.mxu0 0.0
  %204 = vmatpush1.msra.mxu0 0.0
  %205 = vmatprep.subr.mxu0 0.0
  %206 = vmatpush1.msra.mxu0 0.0
  %207 = vmatprep.subr.mxu0 0.0
  %208 = vmatpush1.msra.mxu0 0.0
  %209 = vmatprep.subr.mxu0 0.0
  %210 = vmatpush1.msra.mxu0 0.0
  %211 = vmatprep.subr.mxu0 0.0
  %212 = vmatpush1.msra.mxu0 0.0
  %213 = vmatprep.subr.mxu0 0.0
  %214 = vmatpush1.msra.mxu0 0.0
  %215 = vmatprep.subr.mxu0 0.0
  %216 = vmatpush1.msra.mxu0 0.0
  %217 = vmatprep.subr.mxu0 0.0
  %218 = vmatpush1.msra.mxu0 0.0
  %219 = vmatprep.subr.mxu0 0.0
  %220 = vmatpush1.msra.mxu0 0.0
  %221 = vmatprep.subr.mxu0 0.0
  %222 = vmatpush1.msra.mxu0 0.0
  %223 = vmatprep.subr.mxu0 0.0
  %224 = vmatpush1.msra.mxu0 0.0
  %225 = vmatprep.subr.mxu0 0.0
  %226 = vmatpush1.msra.mxu0 0.0
  %227 = vmatprep.subr.mxu0 0.0
  %228 = vmatpush1.msra.mxu0 0.0
  %229 = vmatprep.subr.mxu0 0.0
  %230 = vmatpush1.msra.mxu0 0.0
  %231 = vmatprep.subr.mxu0 0.0
  %232 = vmatpush1.msra.mxu0 0.0
  %233 = vmatprep.subr.mxu0 0.0
  %234 = vmatpush1.msra.mxu0 0.0
  %235 = vmatprep.mubr.f32.mxu0 0.0
  %236 = vmatmul.mubr.f32.gmra.mrb[0].mxu0 %v11
  %v237 = vpop.f32.mrb[0].mxu0
  %v238 = vadd.f32 0.0, %v237
  %v239 = vpop.f32.mrb[0].mxu0
  %240 = vmatprep.mubr.f32.mxu0 0.0
  %241 = vmatmul.mubr.f32.gmra.mrb[0].mxu0 %v12
  %v242 = vpop.f32.mrb[0].mxu0
  %v243 = vadd.f32 0.0, %v242
  %v244 = vpop.f32.mrb[0].mxu0
  %245 = vmatprep.mubr.f32.mxu0 0.0
  %246 = vmatmul.mubr.f32.gmra.mrb[0].mxu0 %v13
  %v247 = vpop.f32.mrb[0].mxu0
  %v248 = vadd.f32 0.0, %v247
  %v249 = vpop.f32.mrb[0].mxu0
  %250 = vmatprep.mubr.f32.mxu0 0.0
  %251 = vmatmul.mubr.f32.gmra.mrb[0].mxu0 %v14
  %v252 = vpop.f32.mrb[0].mxu0
  %v253 = vadd.f32 0.0, %v252
  %v254 = vpop.f32.mrb[0].mxu0
  %255 = vmatprep.mubr.f32.mxu0 0.0
  %256 = vmatmul.mubr.f32.gmra.mrb[0].mxu0 %v15
  %v257 = vpop.f32.mrb[0].mxu0
  %v258 = vadd.f32 0.0, %v257
  %v259 = vpop.f32.mrb[0].mxu0
  %260 = vmatprep.mubr.f32.mxu0 0.0
  %261 = vmatmul.mubr.f32.gmra.mrb[0].mxu0 %v16
  %v262 = vpop.f32.mrb[0].mxu0
  %v263 = vadd.f32 0.0, %v262
  %v264 = vpop.f32.mrb[0].mxu0
  %265 = vmatprep.mubr.f32.mxu0 0.0
  %266 = vmatmul.mubr.f32.gmra.mrb[0].mxu0 %v17
  %v267 = vpop.f32.mrb[0].mxu0
  %v268 = vadd.f32 0.0, %v267
  %v269 = vpop.f32.mrb[0].mxu0
  %270 = vmatprep.mubr.f32.mxu0 0.0
  %271 = vmatmul.mubr.f32.gmra.mrb[0].mxu0 %v18
  %v272 = vpop.f32.mrb[0].mxu0
  %v273 = vadd.f32 0.0, %v272
  %v274 = vpop.f32.mrb[0].mxu0
  %275 = vmatprep.mubr.f32.mxu0 0.0
  %276 = vmatmul.mubr.f32.gmra.mrb[0].mxu0 %v19
  %v277 = vpop.f32.mrb[0].mxu0
  %v278 = vadd.f32 0.0, %v277
  %v279 = vpop.f32.mrb[0].mxu0
  %280 = vmatprep.mubr.f32.mxu0 0.0
  %281 = vmatmul.mubr.f32.gmra.mrb[0].mxu0 %v20
  %v282 = vpop.f32.mrb[0].mxu0
  %v283 = vadd.f32 0.0, %v282
  %v284 = vpop.f32.mrb[0].mxu0
  %285 = vmatprep.mubr.f32.mxu0 0.0
  %286 = vmatmul.mubr.f32.gmra.mrb[0].mxu0 %v21
  %v287 = vpop.f32.mrb[0].mxu0
  %v288 = vadd.f32 0.0, %v287
  %v289 = vpop.f32.mrb[0].mxu0
  %290 = vmatprep.mubr.f32.mxu0 0.0
  %291 = vmatmul.mubr.f32.gmra.mrb[0].mxu0 %v22
  %v292 = vpop.f32.mrb[0].mxu0
  %v293 = vadd.f32 0.0, %v292
  %v294 = vpop.f32.mrb[0].mxu0
  %295 = vmatprep.mubr.f32.mxu0 0.0
  %296 = vmatmul.mubr.f32.gmra.mrb[0].mxu0 %v23
  %v297 = vpop.f32.mrb[0].mxu0
  %v298 = vadd.f32 0.0, %v297
  %v299 = vpop.f32.mrb[0].mxu0
  %300 = vmatprep.mubr.f32.mxu0 0.0
  %301 = vmatmul.mubr.f32.gmra.mrb[0].mxu0 %v24
  %v302 = vpop.f32.mrb[0].mxu0
  %v303 = vadd.f32 0.0, %v302
  %v304 = vpop.f32.mrb[0].mxu0
  %305 = vmatprep.mubr.f32.mxu0 0.0
  %306 = vmatmul.mubr.f32.gmra.mrb[0].mxu0 %v25
  %v307 = vpop.f32.mrb[0].mxu0
  %v308 = vadd.f32 0.0, %v307
  %v309 = vpop.f32.mrb[0].mxu0
  %310 = vmatprep.mubr.f32.mxu0 0.0
  %311 = vmatmul.mubr.f32.gmra.mrb[0].mxu0 %v26
  %v312 = vpop.f32.mrb[0].mxu0
  %v313 = vadd.f32 0.0, %v312
  %v314 = vpop.f32.mrb[0].mxu0
  %315 = vmatprep.mubr.f32.mxu0 0.0
  %316 = vmatmul.mubr.f32.gmra.mrb[0].mxu0 %v27
  %v317 = vpop.f32.mrb[0].mxu0
  %v318 = vadd.f32 0.0, %v317
  %v319 = vpop.f32.mrb[0].mxu0
  %320 = vmatprep.mubr.f32.mxu0 0.0
  %321 = vmatmul.mubr.f32.gmra.mrb[0].mxu0 %v28
  %v322 = vpop.f32.mrb[0].mxu0
  %v323 = vadd.f32 0.0, %v322
  %v324 = vpop.f32.mrb[0].mxu0
  %325 = vmatprep.mubr.f32.mxu0 0.0
  %326 = vmatmul.mubr.f32.gmra.mrb[0].mxu0 %v29
  %v327 = vpop.f32.mrb[0].mxu0
  %v328 = vadd.f32 0.0, %v327
  %v329 = vpop.f32.mrb[0].mxu0
  %330 = vmatprep.mubr.f32.mxu0 0.0
  %331 = vmatmul.mubr.f32.gmra.mrb[0].mxu0 %v30
  %v332 = vpop.f32.mrb[0].mxu0
  %v333 = vadd.f32 0.0, %v332
  %v334 = vpop.f32.mrb[0].mxu0
  %335 = vmatprep.mubr.f32.mxu0 0.0
  %336 = vmatmul.mubr.f32.gmra.mrb[0].mxu0 %v31
  %v337 = vpop.f32.mrb[0].mxu0
  %v338 = vadd.f32 0.0, %v337
  %v339 = vpop.f32.mrb[0].mxu0
  %340 = vmatprep.mubr.f32.mxu0 0.0
  %341 = vmatmul.mubr.f32.gmra.mrb[0].mxu0 %v32
  %v342 = vpop.f32.mrb[0].mxu0
  %v343 = vadd.f32 0.0, %v342
  %v344 = vpop.f32.mrb[0].mxu0
  %345 = vmatprep.mubr.f32.mxu0 0.0
  %346 = vmatmul.mubr.f32.gmra.mrb[0].mxu0 %v33
  %v347 = vpop.f32.mrb[0].mxu0
  %v348 = vadd.f32 0.0, %v347
  %v349 = vpop.f32.mrb[0].mxu0
  %350 = vmatprep.mubr.f32.mxu0 0.0
  %351 = vmatmul.mubr.f32.gmra.mrb[0].mxu0 %v34
  %v352 = vpop.f32.mrb[0].mxu0
  %v353 = vadd.f32 0.0, %v352
  %v354 = vpop.f32.mrb[0].mxu0
  %355 = vmatprep.mubr.f32.mxu0 0.0
  %356 = vmatmul.mubr.f32.gmra.mrb[0].mxu0 %v35
  %v357 = vpop.f32.mrb[0].mxu0
  %v358 = vadd.f32 0.0, %v357
  %v359 = vpop.f32.mrb[0].mxu0
  %360 = vmatprep.mubr.f32.mxu0 0.0
  %361 = vmatmul.mubr.f32.gmra.mrb[0].mxu0 %v36
  %v362 = vpop.f32.mrb[0].mxu0
  %v363 = vadd.f32 0.0, %v362
  %v364 = vpop.f32.mrb[0].mxu0
  %365 = vmatprep.mubr.f32.mxu0 0.0
  %366 = vmatmul.mubr.f32.gmra.mrb[0].mxu0 %v37
  %v367 = vpop.f32.mrb[0].mxu0
  %v368 = vadd.f32 0.0, %v367
  %v369 = vpop.f32.mrb[0].mxu0
  %370 = vmatprep.mubr.f32.mxu0 0.0
  %371 = vmatmul.mubr.f32.gmra.mrb[0].mxu0 %v38
  %v372 = vpop.f32.mrb[0].mxu0
  %v373 = vadd.f32 0.0, %v372
  %v374 = vpop.f32.mrb[0].mxu0
  %375 = vmatprep.mubr.f32.mxu0 0.0
  %376 = vmatmul.mubr.f32.gmra.mrb[0].mxu0 %v39
  %v377 = vpop.f32.mrb[0].mxu0
  %v378 = vadd.f32 0.0, %v377
  %v379 = vpop.f32.mrb[0].mxu0
  %380 = vmatprep.mubr.f32.mxu0 0.0
  %381 = vmatmul.mubr.f32.gmra.mrb[0].mxu0 %v40
  %v382 = vpop.f32.mrb[0].mxu0
  %v383 = vadd.f32 0.0, %v382
  %v384 = vpop.f32.mrb[0].mxu0
  %385 = vmatprep.mubr.f32.mxu0 0.0
  %386 = vmatmul.mubr.f32.gmra.mrb[0].mxu0 %v41
  %v387 = vpop.f32.mrb[0].mxu0
  %v388 = vadd.f32 0.0, %v387
  %v389 = vpop.f32.mrb[0].mxu0
  %390 = vmatprep.mubr.f32.mxu0 0.0
  %391 = vmatmul.mubr.f32.gmra.mrb[0].mxu0 %v42
  %v392 = vpop.f32.mrb[0].mxu0
  %v393 = vadd.f32 0.0, %v392
  %v394 = vpop.f32.mrb[0].mxu0
  %395 = vmatprep.mubr.f32.mxu0 0.0
  %396 = vmatmul.mubr.f32.gmra.mrb[0].mxu0 %v43
  %v397 = vpop.f32.mrb[0].mxu0
  %v398 = vadd.f32 0.0, %v397
  %v399 = vpop.f32.mrb[0].mxu0
  %400 = vmatprep.mubr.f32.mxu0 0.0
  %401 = vmatmul.mubr.f32.gmra.mrb[0].mxu0 %v44
  %v402 = vpop.f32.mrb[0].mxu0
  %v403 = vadd.f32 0.0, %v402
  %v404 = vpop.f32.mrb[0].mxu0
  %405 = vmatprep.mubr.f32.mxu0 0.0
  %406 = vmatmul.mubr.f32.gmra.mrb[0].mxu0 %v45
  %v407 = vpop.f32.mrb[0].mxu0
  %v408 = vadd.f32 0.0, %v407
  %v409 = vpop.f32.mrb[0].mxu0
  %410 = vmatprep.mubr.f32.mxu0 0.0
  %411 = vmatmul.mubr.f32.gmra.mrb[0].mxu0 %v46
  %v412 = vpop.f32.mrb[0].mxu0
  %v413 = vadd.f32 0.0, %v412
  %v414 = vpop.f32.mrb[0].mxu0
  %415 = vmatprep.mubr.f32.mxu0 0.0
  %416 = vmatmul.mubr.f32.gmra.mrb[0].mxu0 %v47
  %v417 = vpop.f32.mrb[0].mxu0
  %v418 = vadd.f32 0.0, %v417
  %v419 = vpop.f32.mrb[0].mxu0
  %420 = vmatprep.mubr.f32.mxu0 0.0
  %421 = vmatmul.mubr.f32.gmra.mrb[0].mxu0 %v48
  %v422 = vpop.f32.mrb[0].mxu0
  %v423 = vadd.f32 0.0, %v422
  %v424 = vpop.f32.mrb[0].mxu0
  %425 = vmatprep.mubr.f32.mxu0 0.0
  %426 = vmatmul.mubr.f32.gmra.mrb[0].mxu0 %v49
  %v427 = vpop.f32.mrb[0].mxu0
  %v428 = vadd.f32 0.0, %v427
  %v429 = vpop.f32.mrb[0].mxu0
  %430 = vmatprep.mubr.f32.mxu0 0.0
  %431 = vmatmul.mubr.f32.gmra.mrb[0].mxu0 %v50
  %v432 = vpop.f32.mrb[0].mxu0
  %v433 = vadd.f32 0.0, %v432
  %v434 = vpop.f32.mrb[0].mxu0
  %435 = vmatprep.mubr.f32.mxu0 0.0
  %436 = vmatmul.mubr.f32.gmra.mrb[0].mxu0 %v51
  %v437 = vpop.f32.mrb[0].mxu0
  %v438 = vadd.f32 0.0, %v437
  %v439 = vpop.f32.mrb[0].mxu0
  %440 = vmatprep.mubr.f32.mxu0 0.0
  %441 = vmatmul.mubr.f32.gmra.mrb[0].mxu0 %v52
  %v442 = vpop.f32.mrb[0].mxu0
  %v443 = vadd.f32 0.0, %v442
  %v444 = vpop.f32.mrb[0].mxu0
  %445 = vmatprep.mubr.f32.mxu0 0.0
  %446 = vmatmul.mubr.f32.gmra.mrb[0].mxu0 %v53
  %v447 = vpop.f32.mrb[0].mxu0
  %v448 = vadd.f32 0.0, %v447
  %v449 = vpop.f32.mrb[0].mxu0
  %450 = vmatprep.mubr.f32.mxu0 0.0
  %451 = vmatmul.mubr.f32.gmra.mrb[0].mxu0 %v54
  %v452 = vpop.f32.mrb[0].mxu0
  %v453 = vadd.f32 0.0, %v452
  %v454 = vpop.f32.mrb[0].mxu0
  %455 = vmatprep.mubr.f32.mxu0 0.0
  %456 = vmatmul.mubr.f32.gmra.mrb[0].mxu0 %v55
  %v457 = vpop.f32.mrb[0].mxu0
  %v458 = vadd.f32 0.0, %v457
  %v459 = vpop.f32.mrb[0].mxu0
  %460 = vmatprep.mubr.f32.mxu0 0.0
  %461 = vmatmul.mubr.f32.gmra.mrb[0].mxu0 %v56
  %v462 = vpop.f32.mrb[0].mxu0
  %v463 = vadd.f32 0.0, %v462
  %v464 = vpop.f32.mrb[0].mxu0
  %465 = vmatprep.mubr.f32.mxu0 0.0
  %466 = vmatmul.mubr.f32.gmra.mrb[0].mxu0 %v57
  %v467 = vpop.f32.mrb[0].mxu0
  %v468 = vadd.f32 0.0, %v467
  %v469 = vpop.f32.mrb[0].mxu0
  %470 = vmatprep.mubr.f32.mxu0 0.0
  %471 = vmatmul.mubr.f32.gmra.mrb[0].mxu0 %v58
  %v472 = vpop.f32.mrb[0].mxu0
  %v473 = vadd.f32 0.0, %v472
  %v474 = vpop.f32.mrb[0].mxu0
  %475 = vmatprep.mubr.f32.mxu0 0.0
  %476 = vmatmul.mubr.f32.gmra.mrb[0].mxu0 %v59
  %v477 = vpop.f32.mrb[0].mxu0
  %v478 = vadd.f32 0.0, %v477
  %v479 = vpop.f32.mrb[0].mxu0
  %480 = vmatprep.mubr.f32.mxu0 0.0
  %481 = vmatmul.mubr.f32.gmra.mrb[0].mxu0 %v60
  %v482 = vpop.f32.mrb[0].mxu0
  %v483 = vadd.f32 0.0, %v482
  %v484 = vpop.f32.mrb[0].mxu0
  %485 = vmatprep.mubr.f32.mxu0 0.0
  %486 = vmatmul.mubr.f32.gmra.mrb[0].mxu0 %v61
  %v487 = vpop.f32.mrb[0].mxu0
  %v488 = vadd.f32 0.0, %v487
  %v489 = vpop.f32.mrb[0].mxu0
  %490 = vmatprep.mubr.f32.mxu0 0.0
  %491 = vmatmul.mubr.f32.gmra.mrb[0].mxu0 %v62
  %v492 = vpop.f32.mrb[0].mxu0
  %v493 = vadd.f32 0.0, %v492
  %v494 = vpop.f32.mrb[0].mxu0
  %495 = vmatprep.mubr.f32.mxu0 0.0
  %496 = vmatmul.mubr.f32.gmra.mrb[0].mxu0 %v63
  %v497 = vpop.f32.mrb[0].mxu0
  %v498 = vadd.f32 0.0, %v497
  %v499 = vpop.f32.mrb[0].mxu0
  %500 = vmatprep.mubr.f32.mxu0 0.0
  %501 = vmatmul.mubr.f32.gmra.mrb[0].mxu0 %v64
  %v502 = vpop.f32.mrb[0].mxu0
  %v503 = vadd.f32 0.0, %v502
  %v504 = vpop.f32.mrb[0].mxu0
  %505 = vmatprep.mubr.f32.mxu0 0.0
  %506 = vmatmul.mubr.f32.gmra.mrb[0].mxu0 %v65
  %v507 = vpop.f32.mrb[0].mxu0
  %v508 = vadd.f32 0.0, %v507
  %v509 = vpop.f32.mrb[0].mxu0
  %510 = vmatprep.mubr.f32.mxu0 0.0
  %511 = vmatmul.mubr.f32.gmra.mrb[0].mxu0 %v66
  %v512 = vpop.f32.mrb[0].mxu0
  %v513 = vadd.f32 0.0, %v512
  %v514 = vpop.f32.mrb[0].mxu0
  %515 = vmatprep.mubr.f32.mxu0 0.0
  %516 = vmatmul.mubr.f32.gmra.mrb[0].mxu0 %v67
  %v517 = vpop.f32.mrb[0].mxu0
  %v518 = vadd.f32 0.0, %v517
  %v519 = vpop.f32.mrb[0].mxu0
  %520 = vmatprep.mubr.f32.mxu0 0.0
  %521 = vmatmul.mubr.f32.gmra.mrb[0].mxu0 %v68
  %v522 = vpop.f32.mrb[0].mxu0
  %v523 = vadd.f32 0.0, %v522
  %v524 = vpop.f32.mrb[0].mxu0
  %525 = vmatprep.mubr.f32.mxu0 0.0
  %526 = vmatmul.mubr.f32.gmra.mrb[0].mxu0 %v69
  %v527 = vpop.f32.mrb[0].mxu0
  %v528 = vadd.f32 0.0, %v527
  %v529 = vpop.f32.mrb[0].mxu0
  %530 = vmatprep.mubr.f32.mxu0 0.0
  %531 = vmatmul.mubr.f32.gmra.mrb[0].mxu0 %v70
  %v532 = vpop.f32.mrb[0].mxu0
  %v533 = vadd.f32 0.0, %v532
  %v534 = vpop.f32.mrb[0].mxu0
  %535 = vmatprep.mubr.f32.mxu0 0.0
  %536 = vmatmul.mubr.f32.gmra.mrb[0].mxu0 %v71
  %v537 = vpop.f32.mrb[0].mxu0
  %v538 = vadd.f32 0.0, %v537
  %v539 = vpop.f32.mrb[0].mxu0
  %540 = vmatprep.mubr.f32.mxu0 0.0
  %541 = vmatmul.mubr.f32.gmra.mrb[0].mxu0 %v72
  %v542 = vpop.f32.mrb[0].mxu0
  %v543 = vadd.f32 0.0, %v542
  %v544 = vpop.f32.mrb[0].mxu0
  %545 = vmatprep.mubr.f32.mxu0 0.0
  %546 = vmatmul.mubr.f32.gmra.mrb[0].mxu0 %v73
  %v547 = vpop.f32.mrb[0].mxu0
  %v548 = vadd.f32 0.0, %v547
  %v549 = vpop.f32.mrb[0].mxu0
  %550 = vmatprep.mubr.f32.mxu0 0.0
  %551 = vmatmul.mubr.f32.gmra.mrb[0].mxu0 %v74
  %v552 = vpop.f32.mrb[0].mxu0
  %v553 = vadd.f32 0.0, %v552
  %v554 = vpop.f32.mrb[0].mxu0
  %555 = vmatprep.mubr.f32.mxu0 0.0
  %556 = vmatmul.mubr.f32.gmra.mrb[0].mxu0 %v75
  %v557 = vpop.f32.mrb[0].mxu0
  %v558 = vadd.f32 0.0, %v557
  %v559 = vpop.f32.mrb[0].mxu0
  %560 = vmatprep.mubr.f32.mxu0 0.0
  %561 = vmatmul.mubr.f32.gmra.mrb[0].mxu0 %v76
  %v562 = vpop.f32.mrb[0].mxu0
  %v563 = vadd.f32 0.0, %v562
  %v564 = vpop.f32.mrb[0].mxu0
  %565 = vmatprep.mubr.f32.mxu0 0.0
  %566 = vmatmul.mubr.f32.gmra.mrb[0].mxu0 %v77
  %v567 = vpop.f32.mrb[0].mxu0
  %v568 = vadd.f32 0.0, %v567
  %v569 = vpop.f32.mrb[0].mxu0
  %570 = vmatprep.mubr.f32.mxu0 0.0
  %571 = vmatmul.mubr.f32.gmra.mrb[0].mxu0 %v78
  %v572 = vpop.f32.mrb[0].mxu0
  %v573 = vadd.f32 0.0, %v572
  %v574 = vpop.f32.mrb[0].mxu0
  %575 = vmatprep.mubr.f32.mxu0 0.0
  %576 = vmatmul.mubr.f32.gmra.mrb[0].mxu0 %v79
  %v577 = vpop.f32.mrb[0].mxu0
  %v578 = vadd.f32 0.0, %v577
  %v579 = vpop.f32.mrb[0].mxu0
  %580 = vmatprep.mubr.f32.mxu0 0.0
  %581 = vmatmul.mubr.f32.gmra.mrb[0].mxu0 %v80
  %v582 = vpop.f32.mrb[0].mxu0
  %v583 = vadd.f32 0.0, %v582
  %v584 = vpop.f32.mrb[0].mxu0
  %585 = vmatprep.mubr.f32.mxu0 0.0
  %586 = vmatmul.mubr.f32.gmra.mrb[0].mxu0 %v81
  %v587 = vpop.f32.mrb[0].mxu0
  %v588 = vadd.f32 0.0, %v587
  %v589 = vpop.f32.mrb[0].mxu0
  %590 = vmatprep.mubr.f32.mxu0 0.0
  %591 = vmatmul.mubr.f32.gmra.mrb[0].mxu0 %v82
  %v592 = vpop.f32.mrb[0].mxu0
  %v593 = vadd.f32 0.0, %v592
  %v594 = vpop.f32.mrb[0].mxu0
  %595 = vmatprep.mubr.f32.mxu0 0.0
  %596 = vmatmul.mubr.f32.gmra.mrb[0].mxu0 %v83
  %v597 = vpop.f32.mrb[0].mxu0
  %v598 = vadd.f32 0.0, %v597
  %v599 = vpop.f32.mrb[0].mxu0
  %600 = vmatprep.mubr.f32.mxu0 0.0
  %601 = vmatmul.mubr.f32.gmra.mrb[0].mxu0 %v84
  %v602 = vpop.f32.mrb[0].mxu0
  %v603 = vadd.f32 0.0, %v602
  %v604 = vpop.f32.mrb[0].mxu0
  %605 = vmatprep.mubr.f32.mxu0 0.0
  %606 = vmatmul.mubr.f32.gmra.mrb[0].mxu0 %v85
  %v607 = vpop.f32.mrb[0].mxu0
  %v608 = vadd.f32 0.0, %v607
  %v609 = vpop.f32.mrb[0].mxu0
  %610 = vmatprep.mubr.f32.mxu0 0.0
  %611 = vmatmul.mubr.f32.gmra.mrb[0].mxu0 %v86
  %v612 = vpop.f32.mrb[0].mxu0
  %v613 = vadd.f32 0.0, %v612
  %v614 = vpop.f32.mrb[0].mxu0
  %615 = vmatprep.mubr.f32.mxu0 0.0
  %616 = vmatmul.mubr.f32.gmra.mrb[0].mxu0 %v87
  %v617 = vpop.f32.mrb[0].mxu0
  %v618 = vadd.f32 0.0, %v617
  %v619 = vpop.f32.mrb[0].mxu0
  %620 = vmatprep.mubr.f32.mxu0 0.0
  %621 = vmatmul.mubr.f32.gmra.mrb[0].mxu0 %v88
  %v622 = vpop.f32.mrb[0].mxu0
  %v623 = vadd.f32 0.0, %v622
  %v624 = vpop.f32.mrb[0].mxu0
  %625 = vmatprep.mubr.f32.mxu0 0.0
  %626 = vmatmul.mubr.f32.gmra.mrb[0].mxu0 %v89
  %v627 = vpop.f32.mrb[0].mxu0
  %v628 = vadd.f32 0.0, %v627
  %v629 = vpop.f32.mrb[0].mxu0
  %630 = vmatprep.mubr.f32.mxu0 0.0
  %631 = vmatmul.mubr.f32.gmra.mrb[0].mxu0 %v90
  %v632 = vpop.f32.mrb[0].mxu0
  %v633 = vadd.f32 0.0, %v632
  %v634 = vpop.f32.mrb[0].mxu0
  %635 = vmatprep.mubr.f32.mxu0 0.0
  %636 = vmatmul.mubr.f32.gmra.mrb[0].mxu0 %v91
  %v637 = vpop.f32.mrb[0].mxu0
  %v638 = vadd.f32 0.0, %v637
  %v639 = vpop.f32.mrb[0].mxu0
  %640 = vmatprep.mubr.f32.mxu0 0.0
  %641 = vmatmul.mubr.f32.gmra.mrb[0].mxu0 %v92
  %v642 = vpop.f32.mrb[0].mxu0
  %v643 = vadd.f32 0.0, %v642
  %v644 = vpop.f32.mrb[0].mxu0
  %645 = vmatprep.mubr.f32.mxu0 0.0
  %646 = vmatmul.mubr.f32.gmra.mrb[0].mxu0 %v93
  %v647 = vpop.f32.mrb[0].mxu0
  %v648 = vadd.f32 0.0, %v647
  %v649 = vpop.f32.mrb[0].mxu0
  %650 = vmatprep.mubr.f32.mxu0 0.0
  %651 = vmatmul.mubr.f32.gmra.mrb[0].mxu0 %v94
  %v652 = vpop.f32.mrb[0].mxu0
  %v653 = vadd.f32 0.0, %v652
  %v654 = vpop.f32.mrb[0].mxu0
  %655 = vmatprep.mubr.f32.mxu0 0.0
  %656 = vmatmul.mubr.f32.gmra.mrb[0].mxu0 %v95
  %v657 = vpop.f32.mrb[0].mxu0
  %v658 = vadd.f32 0.0, %v657
  %v659 = vpop.f32.mrb[0].mxu0
  %660 = vmatprep.mubr.f32.mxu0 0.0
  %661 = vmatmul.mubr.f32.gmra.mrb[0].mxu0 %v96
  %v662 = vpop.f32.mrb[0].mxu0
  %v663 = vadd.f32 0.0, %v662
  %v664 = vpop.f32.mrb[0].mxu0
  %665 = vmatprep.mubr.f32.mxu0 0.0
  %666 = vmatmul.mubr.f32.gmra.mrb[0].mxu0 %v97
  %v667 = vpop.f32.mrb[0].mxu0
  %v668 = vadd.f32 0.0, %v667
  %v669 = vpop.f32.mrb[0].mxu0
  %670 = vmatprep.mubr.f32.mxu0 0.0
  %671 = vmatmul.mubr.f32.gmra.mrb[0].mxu0 %v98
  %v672 = vpop.f32.mrb[0].mxu0
  %v673 = vadd.f32 0.0, %v672
  %v674 = vpop.f32.mrb[0].mxu0
  %675 = vmatprep.mubr.f32.mxu0 0.0
  %676 = vmatmul.mubr.f32.gmra.mrb[0].mxu0 %v99
  %v677 = vpop.f32.mrb[0].mxu0
  %v678 = vadd.f32 0.0, %v677
  %v679 = vpop.f32.mrb[0].mxu0
  %680 = vmatprep.mubr.f32.mxu0 0.0
  %681 = vmatmul.mubr.f32.gmra.mrb[0].mxu0 %v100
  %v682 = vpop.f32.mrb[0].mxu0
  %v683 = vadd.f32 0.0, %v682
  %v684 = vpop.f32.mrb[0].mxu0
  %685 = vmatprep.mubr.f32.mxu0 0.0
  %686 = vmatmul.mubr.f32.gmra.mrb[0].mxu0 %v101
  %v687 = vpop.f32.mrb[0].mxu0
  %v688 = vadd.f32 0.0, %v687
  %v689 = vpop.f32.mrb[0].mxu0
  %690 = vmatprep.mubr.f32.mxu0 0.0
  %691 = vmatmul.mubr.f32.gmra.mrb[0].mxu0 %v102
  %v692 = vpop.f32.mrb[0].mxu0
  %v693 = vadd.f32 0.0, %v692
  %v694 = vpop.f32.mrb[0].mxu0
  %695 = vmatprep.mubr.f32.mxu0 0.0
  %696 = vmatmul.mubr.f32.gmra.mrb[0].mxu0 %v103
  %v697 = vpop.f32.mrb[0].mxu0
  %v698 = vadd.f32 0.0, %v697
  %v699 = vpop.f32.mrb[0].mxu0
  %700 = vmatprep.mubr.f32.mxu0 0.0
  %701 = vmatmul.mubr.f32.gmra.mrb[0].mxu0 %v104
  %v702 = vpop.f32.mrb[0].mxu0
  %v703 = vadd.f32 0.0, %v702
  %v704 = vpop.f32.mrb[0].mxu0
  %705 = vmatprep.mubr.f32.mxu0 0.0
  %706 = vmatmul.mubr.f32.gmra.mrb[0].mxu0 %v105
  %v707 = vpop.f32.mrb[0].mxu0
  %v708 = vadd.f32 0.0, %v707
  %v709 = vpop.f32.mrb[0].mxu0
  %710 = vmatprep.mubr.f32.mxu0 0.0
  %711 = vmatmul.mubr.f32.gmra.mrb[0].mxu0 %v106
  %v712 = vpop.f32.mrb[0].mxu0
  %v713 = vadd.f32 0.0, %v712
  %v714 = vpop.f32.mrb[0].mxu0
  %715 = vmatprep.mubr.f32.mxu0 0.0
  %716 = vmatmul.mubr.f32.gmra.mrb[0].mxu0 %v107
  %v717 = vpop.f32.mrb[0].mxu0
  %v718 = vadd.f32 0.0, %v717
  %v719 = vpop.f32.mrb[0].mxu0
  %720 = vmatprep.mubr.f32.mxu0 0.0
  %721 = vmatmul.mubr.f32.gmra.mrb[0].mxu0 %v108
  %v722 = vpop.f32.mrb[0].mxu0
  %v723 = vadd.f32 0.0, %v722
  %v724 = vpop.f32.mrb[0].mxu0
  %725 = vmatprep.mubr.f32.mxu0 0.0
  %726 = vmatmul.mubr.f32.gmra.mrb[0].mxu0 %v109
  %v727 = vpop.f32.mrb[0].mxu0
  %v728 = vadd.f32 0.0, %v727
  %v729 = vpop.f32.mrb[0].mxu0
  %730 = vmatprep.mubr.f32.mxu0 0.0
  %731 = vmatmul.mubr.f32.gmra.mrb[0].mxu0 %v110
  %v732 = vpop.f32.mrb[0].mxu0
  %v733 = vadd.f32 0.0, %v732
  %v734 = vpop.f32.mrb[0].mxu0
  %735 = vmatprep.mubr.f32.mxu0 0.0
  %736 = vmatmul.mubr.f32.gmra.mrb[0].mxu0 %v111
  %v737 = vpop.f32.mrb[0].mxu0
  %v738 = vadd.f32 0.0, %v737
  %v739 = vpop.f32.mrb[0].mxu0
  %740 = vmatprep.mubr.f32.mxu0 0.0
  %741 = vmatmul.mubr.f32.gmra.mrb[0].mxu0 %v112
  %v742 = vpop.f32.mrb[0].mxu0
  %v743 = vadd.f32 0.0, %v742
  %v744 = vpop.f32.mrb[0].mxu0
  %745 = vmatprep.mubr.f32.mxu0 0.0
  %746 = vmatmul.mubr.f32.gmra.mrb[0].mxu0 %v113
  %v747 = vpop.f32.mrb[0].mxu0
  %v748 = vadd.f32 0.0, %v747
  %v749 = vpop.f32.mrb[0].mxu0
  %750 = vmatprep.mubr.f32.mxu0 0.0
  %751 = vmatmul.mubr.f32.gmra.mrb[0].mxu0 %v114
  %v752 = vpop.f32.mrb[0].mxu0
  %v753 = vadd.f32 0.0, %v752
  %v754 = vpop.f32.mrb[0].mxu0
  %755 = vmatprep.mubr.f32.mxu0 0.0
  %756 = vmatmul.mubr.f32.gmra.mrb[0].mxu0 %v115
  %v757 = vpop.f32.mrb[0].mxu0
  %v758 = vadd.f32 0.0, %v757
  %v759 = vpop.f32.mrb[0].mxu0
  %760 = vmatprep.mubr.f32.mxu0 0.0
  %761 = vmatmul.mubr.f32.gmra.mrb[0].mxu0 %v116
  %v762 = vpop.f32.mrb[0].mxu0
  %v763 = vadd.f32 0.0, %v762
  %v764 = vpop.f32.mrb[0].mxu0
  %765 = vmatprep.mubr.f32.mxu0 0.0
  %766 = vmatmul.mubr.f32.gmra.mrb[0].mxu0 %v117
  %v767 = vpop.f32.mrb[0].mxu0
  %v768 = vadd.f32 0.0, %v767
  %v769 = vpop.f32.mrb[0].mxu0
  %770 = vmatprep.mubr.f32.mxu0 0.0
  %771 = vmatmul.mubr.f32.gmra.mrb[0].mxu0 %v118
  %v772 = vpop.f32.mrb[0].mxu0
  %v773 = vadd.f32 0.0, %v772
  %v774 = vpop.f32.mrb[0].mxu0
  %775 = vmatprep.mubr.f32.mxu0 0.0
  %776 = vmatmul.mubr.f32.gmra.mrb[0].mxu0 %v119
  %v777 = vpop.f32.mrb[0].mxu0
  %v778 = vadd.f32 0.0, %v777
  %v779 = vpop.f32.mrb[0].mxu0
  %780 = vmatprep.mubr.f32.mxu0 0.0
  %781 = vmatmul.mubr.f32.gmra.mrb[0].mxu0 %v120
  %v782 = vpop.f32.mrb[0].mxu0
  %v783 = vadd.f32 0.0, %v782
  %v784 = vpop.f32.mrb[0].mxu0
  %785 = vmatprep.mubr.f32.mxu0 0.0
  %786 = vmatmul.mubr.f32.gmra.mrb[0].mxu0 %v121
  %v787 = vpop.f32.mrb[0].mxu0
  %v788 = vadd.f32 0.0, %v787
  %v789 = vpop.f32.mrb[0].mxu0
  %790 = vmatprep.mubr.f32.mxu0 0.0
  %791 = vmatmul.mubr.f32.gmra.mrb[0].mxu0 %v122
  %v792 = vpop.f32.mrb[0].mxu0
  %v793 = vadd.f32 0.0, %v792
  %v794 = vpop.f32.mrb[0].mxu0
  %795 = vmatprep.mubr.f32.mxu0 0.0
  %796 = vmatmul.mubr.f32.gmra.mrb[0].mxu0 %v123
  %v797 = vpop.f32.mrb[0].mxu0
  %v798 = vadd.f32 0.0, %v797
  %v799 = vpop.f32.mrb[0].mxu0
  %800 = vmatprep.mubr.f32.mxu0 0.0
  %801 = vmatmul.mubr.f32.gmra.mrb[0].mxu0 %v124
  %v802 = vpop.f32.mrb[0].mxu0
  %v803 = vadd.f32 0.0, %v802
  %v804 = vpop.f32.mrb[0].mxu0
  %805 = vmatprep.mubr.f32.mxu0 0.0
  %806 = vmatmul.mubr.f32.gmra.mrb[0].mxu0 %v125
  %v807 = vpop.f32.mrb[0].mxu0
  %v808 = vadd.f32 0.0, %v807
  %v809 = vpop.f32.mrb[0].mxu0
  %810 = vmatprep.mubr.f32.mxu0 0.0
  %811 = vmatmul.mubr.f32.gmra.mrb[0].mxu0 %v126
  %v812 = vpop.f32.mrb[0].mxu0
  %v813 = vadd.f32 0.0, %v812
  %v814 = vpop.f32.mrb[0].mxu0
  %815 = vmatprep.mubr.f32.mxu0 0.0
  %816 = vmatmul.mubr.f32.gmra.mrb[0].mxu0 %v127
  %v817 = vpop.f32.mrb[0].mxu0
  %v818 = vadd.f32 0.0, %v817
  %v819 = vpop.f32.mrb[0].mxu0
  %820 = vmatprep.mubr.f32.mxu0 0.0
  %821 = vmatmul.mubr.f32.gmra.mrb[0].mxu0 %v128
  %v822 = vpop.f32.mrb[0].mxu0
  %v823 = vadd.f32 0.0, %v822
  %v824 = vpop.f32.mrb[0].mxu0
  %825 = vmatprep.mubr.f32.mxu0 0.0
  %826 = vmatmul.mubr.f32.gmra.mrb[0].mxu0 %v129
  %v827 = vpop.f32.mrb[0].mxu0
  %v828 = vadd.f32 0.0, %v827
  %v829 = vpop.f32.mrb[0].mxu0
  %830 = vmatprep.mubr.f32.mxu0 0.0
  %831 = vmatmul.mubr.f32.gmra.mrb[0].mxu0 %v130
  %v832 = vpop.f32.mrb[0].mxu0
  %v833 = vadd.f32 0.0, %v832
  %v834 = vpop.f32.mrb[0].mxu0
  %835 = vmatprep.mubr.f32.mxu0 0.0
  %836 = vmatmul.mubr.f32.gmra.mrb[0].mxu0 %v131
  %v837 = vpop.f32.mrb[0].mxu0
  %v838 = vadd.f32 0.0, %v837
  %v839 = vpop.f32.mrb[0].mxu0
  %840 = vmatprep.mubr.f32.mxu0 0.0
  %841 = vmatmul.mubr.f32.gmra.mrb[0].mxu0 %v132
  %v842 = vpop.f32.mrb[0].mxu0
  %v843 = vadd.f32 0.0, %v842
  %v844 = vpop.f32.mrb[0].mxu0
  %845 = vmatprep.mubr.f32.mxu0 0.0
  %846 = vmatmul.mubr.f32.gmra.mrb[0].mxu0 %v133
  %v847 = vpop.f32.mrb[0].mxu0
  %v848 = vadd.f32 0.0, %v847
  %v849 = vpop.f32.mrb[0].mxu0
  %850 = vmatprep.mubr.f32.mxu0 0.0
  %851 = vmatmul.mubr.f32.gmra.mrb[0].mxu0 %v134
  %v852 = vpop.f32.mrb[0].mxu0
  %v853 = vadd.f32 0.0, %v852
  %v854 = vpop.f32.mrb[0].mxu0
  %855 = vmatprep.mubr.f32.mxu0 0.0
  %856 = vmatmul.mubr.f32.gmra.mrb[0].mxu0 %v135
  %v857 = vpop.f32.mrb[0].mxu0
  %v858 = vadd.f32 0.0, %v857
  %v859 = vpop.f32.mrb[0].mxu0
  %860 = vmatprep.mubr.f32.mxu0 0.0
  %861 = vmatmul.mubr.f32.gmra.mrb[0].mxu0 %v136
  %v862 = vpop.f32.mrb[0].mxu0
  %v863 = vadd.f32 0.0, %v862
  %v864 = vpop.f32.mrb[0].mxu0
  %865 = vmatprep.mubr.f32.mxu0 0.0
  %866 = vmatmul.mubr.f32.gmra.mrb[0].mxu0 %v137
  %v867 = vpop.f32.mrb[0].mxu0
  %v868 = vadd.f32 0.0, %v867
  %v869 = vpop.f32.mrb[0].mxu0
  %870 = vmatprep.mubr.f32.mxu0 0.0
  %871 = vmatmul.mubr.f32.gmra.mrb[0].mxu0 %v138
  %v872 = vpop.f32.mrb[0].mxu0
  %v873 = vadd.f32 0.0, %v872
  %v874 = vpop.f32.mrb[0].mxu0
  %875 = vmatprep.mubr.f32.mxu0 0.0
  %876 = vmatmul.mubr.f32.gmra.mrb[0].mxu0 %v139
  %v877 = vpop.f32.mrb[0].mxu0
  %v878 = vadd.f32 0.0, %v877
  %v879 = vpop.f32.mrb[0].mxu0
  %880 = vmatprep.mubr.f32.mxu0 0.0
  %881 = vmatmul.mubr.f32.gmra.mrb[0].mxu0 %v140
  %v882 = vpop.f32.mrb[0].mxu0
  %v883 = vadd.f32 0.0, %v882
  %v884 = vpop.f32.mrb[0].mxu0
  %885 = vmatprep.mubr.f32.mxu0 0.0
  %886 = vmatmul.mubr.f32.gmra.mrb[0].mxu0 %v141
  %v887 = vpop.f32.mrb[0].mxu0
  %v888 = vadd.f32 0.0, %v887
  %v889 = vpop.f32.mrb[0].mxu0
  %890 = vmatprep.mubr.f32.mxu0 0.0
  %891 = vmatmul.mubr.f32.gmra.mrb[0].mxu0 %v142
  %v892 = vpop.f32.mrb[0].mxu0
  %v893 = vadd.f32 0.0, %v892
  %v894 = vpop.f32.mrb[0].mxu0
  %895 = vmatprep.mubr.f32.mxu0 0.0
  %896 = vmatmul.mubr.f32.gmra.mrb[0].mxu0 %v143
  %v897 = vpop.f32.mrb[0].mxu0
  %v898 = vadd.f32 0.0, %v897
  %v899 = vpop.f32.mrb[0].mxu0
  %900 = vmatprep.mubr.f32.mxu0 0.0
  %901 = vmatmul.mubr.f32.gmra.mrb[0].mxu0 %v144
  %v902 = vpop.f32.mrb[0].mxu0
  %v903 = vadd.f32 0.0, %v902
  %v904 = vpop.f32.mrb[0].mxu0
  %905 = vmatprep.mubr.f32.mxu0 0.0
  %906 = vmatmul.mubr.f32.gmra.mrb[0].mxu0 %v145
  %v907 = vpop.f32.mrb[0].mxu0
  %v908 = vadd.f32 0.0, %v907
  %v909 = vpop.f32.mrb[0].mxu0
  %910 = vmatprep.mubr.f32.mxu0 0.0
  %911 = vmatmul.mubr.f32.gmra.mrb[0].mxu0 %v146
  %v912 = vpop.f32.mrb[0].mxu0
  %v913 = vadd.f32 0.0, %v912
  %v914 = vpop.f32.mrb[0].mxu0
  %915 = vmatprep.mubr.f32.mxu0 0.0
  %916 = vmatmul.mubr.f32.gmra.mrb[0].mxu0 %v147
  %v917 = vpop.f32.mrb[0].mxu0
  %v918 = vadd.f32 0.0, %v917
  %v919 = vpop.f32.mrb[0].mxu0
  %920 = vmatprep.mubr.f32.mxu0 0.0
  %921 = vmatmul.mubr.f32.gmra.mrb[0].mxu0 %v148
  %v922 = vpop.f32.mrb[0].mxu0
  %v923 = vadd.f32 0.0, %v922
  %v924 = vpop.f32.mrb[0].mxu0
  %925 = vmatprep.mubr.f32.mxu0 0.0
  %926 = vmatmul.mubr.f32.gmra.mrb[0].mxu0 %v149
  %v927 = vpop.f32.mrb[0].mxu0
  %v928 = vadd.f32 0.0, %v927
  %v929 = vpop.f32.mrb[0].mxu0
  %930 = vmatprep.mubr.f32.mxu0 0.0
  %931 = vmatmul.mubr.f32.gmra.mrb[0].mxu0 %v150
  %v932 = vpop.f32.mrb[0].mxu0
  %v933 = vadd.f32 0.0, %v932
  %v934 = vpop.f32.mrb[0].mxu0
  %935 = vmatprep.mubr.f32.mxu0 0.0
  %936 = vmatmul.mubr.f32.gmra.mrb[0].mxu0 %v151
  %v937 = vpop.f32.mrb[0].mxu0
  %v938 = vadd.f32 0.0, %v937
  %v939 = vpop.f32.mrb[0].mxu0
  %940 = vmatprep.mubr.f32.mxu0 0.0
  %941 = vmatmul.mubr.f32.gmra.mrb[0].mxu0 %v152
  %v942 = vpop.f32.mrb[0].mxu0
  %v943 = vadd.f32 0.0, %v942
  %v944 = vpop.f32.mrb[0].mxu0
  %945 = vmatprep.mubr.f32.mxu0 0.0
  %946 = vmatmul.mubr.f32.gmra.mrb[0].mxu0 %v153
  %v947 = vpop.f32.mrb[0].mxu0
  %v948 = vadd.f32 0.0, %v947
  %v949 = vpop.f32.mrb[0].mxu0
  %950 = vmatprep.mubr.f32.mxu0 0.0
  %951 = vmatmul.mubr.f32.gmra.mrb[0].mxu0 %v154
  %v952 = vpop.f32.mrb[0].mxu0
  %v953 = vadd.f32 0.0, %v952
  %v954 = vpop.f32.mrb[0].mxu0
  %955 = vdwg.mxu0
  %vm956 = vcmp.ge.f32.partialorder %v238, 0.0
  %vm957 = vcmp.ge.f32.partialorder %v243, 0.0
  %vm958 = vcmp.ge.f32.partialorder %v248, 0.0
  %vm959 = vcmp.ge.f32.partialorder %v253, 0.0
  %vm960 = vcmp.ge.f32.partialorder %v258, 0.0
  %vm961 = vcmp.ge.f32.partialorder %v263, 0.0
  %vm962 = vcmp.ge.f32.partialorder %v268, 0.0
  %vm963 = vcmp.ge.f32.partialorder %v273, 0.0
  %vm964 = vcmp.ge.f32.partialorder %v278, 0.0
  %vm965 = vcmp.ge.f32.partialorder %v283, 0.0
  %vm966 = vcmp.ge.f32.partialorder %v288, 0.0
  %vm967 = vcmp.ge.f32.partialorder %v293, 0.0
  %vm968 = vcmp.ge.f32.partialorder %v298, 0.0
  %vm969 = vcmp.ge.f32.partialorder %v303, 0.0
  %vm970 = vcmp.ge.f32.partialorder %v308, 0.0
  %vm971 = vcmp.ge.f32.partialorder %v313, 0.0
  %vm972 = vcmp.ge.f32.partialorder %v318, 0.0
  %vm973 = vcmp.ge.f32.partialorder %v323, 0.0
  %vm974 = vcmp.ge.f32.partialorder %v328, 0.0
  %vm975 = vcmp.ge.f32.partialorder %v333, 0.0
  %vm976 = vcmp.ge.f32.partialorder %v338, 0.0
  %vm977 = vcmp.ge.f32.partialorder %v343, 0.0
  %vm978 = vcmp.ge.f32.partialorder %v348, 0.0
  %vm979 = vcmp.ge.f32.partialorder %v353, 0.0
  %vm980 = vcmp.ge.f32.partialorder %v358, 0.0
  %vm981 = vcmp.ge.f32.partialorder %v363, 0.0
  %vm982 = vcmp.ge.f32.partialorder %v368, 0.0
  %vm983 = vcmp.ge.f32.partialorder %v373, 0.0
  %vm984 = vcmp.ge.f32.partialorder %v378, 0.0
  %vm985 = vcmp.ge.f32.partialorder %v383, 0.0
  %vm986 = vcmp.ge.f32.partialorder %v388, 0.0
  %vm987 = vcmp.ge.f32.partialorder %v393, 0.0
  %vm988 = vcmp.ge.f32.partialorder %v398, 0.0
  %vm989 = vcmp.ge.f32.partialorder %v403, 0.0
  %vm990 = vcmp.ge.f32.partialorder %v408, 0.0
  %vm991 = vcmp.ge.f32.partialorder %v413, 0.0
  %vm992 = vcmp.ge.f32.partialorder %v418, 0.0
  %vm993 = vcmp.ge.f32.partialorder %v423, 0.0
  %vm994 = vcmp.ge.f32.partialorder %v428, 0.0
  %vm995 = vcmp.ge.f32.partialorder %v433, 0.0
  %vm996 = vcmp.ge.f32.partialorder %v438, 0.0
  %vm997 = vcmp.ge.f32.partialorder %v443, 0.0
  %vm998 = vcmp.ge.f32.partialorder %v448, 0.0
  %vm999 = vcmp.ge.f32.partialorder %v453, 0.0
  %vm1000 = vcmp.ge.f32.partialorder %v458, 0.0
  %vm1001 = vcmp.ge.f32.partialorder %v463, 0.0
  %vm1002 = vcmp.ge.f32.partialorder %v468, 0.0
  %vm1003 = vcmp.ge.f32.partialorder %v473, 0.0
  %vm1004 = vcmp.ge.f32.partialorder %v478, 0.0
  %vm1005 = vcmp.ge.f32.partialorder %v483, 0.0
  %vm1006 = vcmp.ge.f32.partialorder %v488, 0.0
  %vm1007 = vcmp.ge.f32.partialorder %v493, 0.0
  %vm1008 = vcmp.ge.f32.partialorder %v498, 0.0
  %vm1009 = vcmp.ge.f32.partialorder %v503, 0.0
  %vm1010 = vcmp.ge.f32.partialorder %v508, 0.0
  %vm1011 = vcmp.ge.f32.partialorder %v513, 0.0
  %vm1012 = vcmp.ge.f32.partialorder %v518, 0.0
  %vm1013 = vcmp.ge.f32.partialorder %v523, 0.0
  %vm1014 = vcmp.ge.f32.partialorder %v528, 0.0
  %vm1015 = vcmp.ge.f32.partialorder %v533, 0.0
  %vm1016 = vcmp.ge.f32.partialorder %v538, 0.0
  %vm1017 = vcmp.ge.f32.partialorder %v543, 0.0
  %vm1018 = vcmp.ge.f32.partialorder %v548, 0.0
  %vm1019 = vcmp.ge.f32.partialorder %v553, 0.0
  %vm1020 = vcmp.ge.f32.partialorder %v558, 0.0
  %vm1021 = vcmp.ge.f32.partialorder %v563, 0.0
  %vm1022 = vcmp.ge.f32.partialorder %v568, 0.0
  %vm1023 = vcmp.ge.f32.partialorder %v573, 0.0
  %vm1024 = vcmp.ge.f32.partialorder %v578, 0.0
  %vm1025 = vcmp.ge.f32.partialorder %v583, 0.0
  %vm1026 = vcmp.ge.f32.partialorder %v588, 0.0
  %vm1027 = vcmp.ge.f32.partialorder %v593, 0.0
  %vm1028 = vcmp.ge.f32.partialorder %v598, 0.0
  %vm1029 = vcmp.ge.f32.partialorder %v603, 0.0
  %vm1030 = vcmp.ge.f32.partialorder %v608, 0.0
  %vm1031 = vcmp.ge.f32.partialorder %v613, 0.0
  %vm1032 = vcmp.ge.f32.partialorder %v618, 0.0
  %vm1033 = vcmp.ge.f32.partialorder %v623, 0.0
  %vm1034 = vcmp.ge.f32.partialorder %v628, 0.0
  %vm1035 = vcmp.ge.f32.partialorder %v633, 0.0
  %vm1036 = vcmp.ge.f32.partialorder %v638, 0.0
  %vm1037 = vcmp.ge.f32.partialorder %v643, 0.0
  %vm1038 = vcmp.ge.f32.partialorder %v648, 0.0
  %vm1039 = vcmp.ge.f32.partialorder %v653, 0.0
  %vm1040 = vcmp.ge.f32.partialorder %v658, 0.0
  %vm1041 = vcmp.ge.f32.partialorder %v663, 0.0
  %vm1042 = vcmp.ge.f32.partialorder %v668, 0.0
  %vm1043 = vcmp.ge.f32.partialorder %v673, 0.0
  %vm1044 = vcmp.ge.f32.partialorder %v678, 0.0
  %vm1045 = vcmp.ge.f32.partialorder %v683, 0.0
  %vm1046 = vcmp.ge.f32.partialorder %v688, 0.0
  %vm1047 = vcmp.ge.f32.partialorder %v693, 0.0
  %vm1048 = vcmp.ge.f32.partialorder %v698, 0.0
  %vm1049 = vcmp.ge.f32.partialorder %v703, 0.0
  %vm1050 = vcmp.ge.f32.partialorder %v708, 0.0
  %vm1051 = vcmp.ge.f32.partialorder %v713, 0.0
  %vm1052 = vcmp.ge.f32.partialorder %v718, 0.0
  %vm1053 = vcmp.ge.f32.partialorder %v723, 0.0
  %vm1054 = vcmp.ge.f32.partialorder %v728, 0.0
  %vm1055 = vcmp.ge.f32.partialorder %v733, 0.0
  %vm1056 = vcmp.ge.f32.partialorder %v738, 0.0
  %vm1057 = vcmp.ge.f32.partialorder %v743, 0.0
  %vm1058 = vcmp.ge.f32.partialorder %v748, 0.0
  %vm1059 = vcmp.ge.f32.partialorder %v753, 0.0
  %vm1060 = vcmp.ge.f32.partialorder %v758, 0.0
  %vm1061 = vcmp.ge.f32.partialorder %v763, 0.0
  %vm1062 = vcmp.ge.f32.partialorder %v768, 0.0
  %vm1063 = vcmp.ge.f32.partialorder %v773, 0.0
  %vm1064 = vcmp.ge.f32.partialorder %v778, 0.0
  %vm1065 = vcmp.ge.f32.partialorder %v783, 0.0
  %vm1066 = vcmp.ge.f32.partialorder %v788, 0.0
  %vm1067 = vcmp.ge.f32.partialorder %v793, 0.0
  %vm1068 = vcmp.ge.f32.partialorder %v798, 0.0
  %vm1069 = vcmp.ge.f32.partialorder %v803, 0.0
  %vm1070 = vcmp.ge.f32.partialorder %v808, 0.0
  %vm1071 = vcmp.ge.f32.partialorder %v813, 0.0
  %vm1072 = vcmp.ge.f32.partialorder %v818, 0.0
  %vm1073 = vcmp.ge.f32.partialorder %v823, 0.0
  %vm1074 = vcmp.ge.f32.partialorder %v828, 0.0
  %vm1075 = vcmp.ge.f32.partialorder %v833, 0.0
  %vm1076 = vcmp.ge.f32.partialorder %v838, 0.0
  %vm1077 = vcmp.ge.f32.partialorder %v843, 0.0
  %vm1078 = vcmp.ge.f32.partialorder %v848, 0.0
  %vm1079 = vcmp.ge.f32.partialorder %v853, 0.0
  %vm1080 = vcmp.ge.f32.partialorder %v858, 0.0
  %vm1081 = vcmp.ge.f32.partialorder %v863, 0.0
  %vm1082 = vcmp.ge.f32.partialorder %v868, 0.0
  %vm1083 = vcmp.ge.f32.partialorder %v873, 0.0
  %vm1084 = vcmp.ge.f32.partialorder %v878, 0.0
  %vm1085 = vcmp.ge.f32.partialorder %v883, 0.0
  %vm1086 = vcmp.ge.f32.partialorder %v888, 0.0
  %vm1087 = vcmp.ge.f32.partialorder %v893, 0.0
  %vm1088 = vcmp.ge.f32.partialorder %v898, 0.0
  %vm1089 = vcmp.ge.f32.partialorder %v903, 0.0
  %vm1090 = vcmp.ge.f32.partialorder %v908, 0.0
  %vm1091 = vcmp.ge.f32.partialorder %v913, 0.0
  %vm1092 = vcmp.ge.f32.partialorder %v918, 0.0
  %vm1093 = vcmp.ge.f32.partialorder %v923, 0.0
  %vm1094 = vcmp.ge.f32.partialorder %v928, 0.0
  %vm1095 = vcmp.ge.f32.partialorder %v933, 0.0
  %vm1096 = vcmp.ge.f32.partialorder %v938, 0.0
  %vm1097 = vcmp.ge.f32.partialorder %v943, 0.0
  %vm1098 = vcmp.ge.f32.partialorder %v948, 0.0
  %vm1099 = vcmp.ge.f32.partialorder %v953, 0.0
  %v1100 = vmul.f32 %v238, 0.1
  %v1101 = vmul.f32 %v243, 0.1
  %v1102 = vmul.f32 %v248, 0.1
  %v1103 = vmul.f32 %v253, 0.1
  %v1104 = vmul.f32 %v258, 0.1
  %v1105 = vmul.f32 %v263, 0.1
  %v1106 = vmul.f32 %v268, 0.1
  %v1107 = vmul.f32 %v273, 0.1
  %v1108 = vmul.f32 %v278, 0.1
  %v1109 = vmul.f32 %v283, 0.1
  %v1110 = vmul.f32 %v288, 0.1
  %v1111 = vmul.f32 %v293, 0.1
  %v1112 = vmul.f32 %v298, 0.1
  %v1113 = vmul.f32 %v303, 0.1
  %v1114 = vmul.f32 %v308, 0.1
  %v1115 = vmul.f32 %v313, 0.1
  %v1116 = vmul.f32 %v318, 0.1
  %v1117 = vmul.f32 %v323, 0.1
  %v1118 = vmul.f32 %v328, 0.1
  %v1119 = vmul.f32 %v333, 0.1
  %v1120 = vmul.f32 %v338, 0.1
  %v1121 = vmul.f32 %v343, 0.1
  %v1122 = vmul.f32 %v348, 0.1
  %v1123 = vmul.f32 %v353, 0.1
  %v1124 = vmul.f32 %v358, 0.1
  %v1125 = vmul.f32 %v363, 0.1
  %v1126 = vmul.f32 %v368, 0.1
  %v1127 = vmul.f32 %v373, 0.1
  %v1128 = vmul.f32 %v378, 0.1
  %v1129 = vmul.f32 %v383, 0.1
  %v1130 = vmul.f32 %v388, 0.1
  %v1131 = vmul.f32 %v393, 0.1
  %v1132 = vmul.f32 %v398, 0.1
  %v1133 = vmul.f32 %v403, 0.1
  %v1134 = vmul.f32 %v408, 0.1
  %v1135 = vmul.f32 %v413, 0.1
  %v1136 = vmul.f32 %v418, 0.1
  %v1137 = vmul.f32 %v423, 0.1
  %v1138 = vmul.f32 %v428, 0.1
  %v1139 = vmul.f32 %v433, 0.1
  %v1140 = vmul.f32 %v438, 0.1
  %v1141 = vmul.f32 %v443, 0.1
  %v1142 = vmul.f32 %v448, 0.1
  %v1143 = vmul.f32 %v453, 0.1
  %v1144 = vmul.f32 %v458, 0.1
  %v1145 = vmul.f32 %v463, 0.1
  %v1146 = vmul.f32 %v468, 0.1
  %v1147 = vmul.f32 %v473, 0.1
  %v1148 = vmul.f32 %v478, 0.1
  %v1149 = vmul.f32 %v483, 0.1
  %v1150 = vmul.f32 %v488, 0.1
  %v1151 = vmul.f32 %v493, 0.1
  %v1152 = vmul.f32 %v498, 0.1
  %v1153 = vmul.f32 %v503, 0.1
  %v1154 = vmul.f32 %v508, 0.1
  %v1155 = vmul.f32 %v513, 0.1
  %v1156 = vmul.f32 %v518, 0.1
  %v1157 = vmul.f32 %v523, 0.1
  %v1158 = vmul.f32 %v528, 0.1
  %v1159 = vmul.f32 %v533, 0.1
  %v1160 = vmul.f32 %v538, 0.1
  %v1161 = vmul.f32 %v543, 0.1
  %v1162 = vmul.f32 %v548, 0.1
  %v1163 = vmul.f32 %v553, 0.1
  %v1164 = vmul.f32 %v558, 0.1
  %v1165 = vmul.f32 %v563, 0.1
  %v1166 = vmul.f32 %v568, 0.1
  %v1167 = vmul.f32 %v573, 0.1
  %v1168 = vmul.f32 %v578, 0.1
  %v1169 = vmul.f32 %v583, 0.1
  %v1170 = vmul.f32 %v588, 0.1
  %v1171 = vmul.f32 %v593, 0.1
  %v1172 = vmul.f32 %v598, 0.1
  %v1173 = vmul.f32 %v603, 0.1
  %v1174 = vmul.f32 %v608, 0.1
  %v1175 = vmul.f32 %v613, 0.1
  %v1176 = vmul.f32 %v618, 0.1
  %v1177 = vmul.f32 %v623, 0.1
  %v1178 = vmul.f32 %v628, 0.1
  %v1179 = vmul.f32 %v633, 0.1
  %v1180 = vmul.f32 %v638, 0.1
  %v1181 = vmul.f32 %v643, 0.1
  %v1182 = vmul.f32 %v648, 0.1
  %v1183 = vmul.f32 %v653, 0.1
  %v1184 = vmul.f32 %v658, 0.1
  %v1185 = vmul.f32 %v663, 0.1
  %v1186 = vmul.f32 %v668, 0.1
  %v1187 = vmul.f32 %v673, 0.1
  %v1188 = vmul.f32 %v678, 0.1
  %v1189 = vmul.f32 %v683, 0.1
  %v1190 = vmul.f32 %v688, 0.1
  %v1191 = vmul.f32 %v693, 0.1
  %v1192 = vmul.f32 %v698, 0.1
  %v1193 = vmul.f32 %v703, 0.1
  %v1194 = vmul.f32 %v708, 0.1
  %v1195 = vmul.f32 %v713, 0.1
  %v1196 = vmul.f32 %v718, 0.1
  %v1197 = vmul.f32 %v723, 0.1
  %v1198 = vmul.f32 %v728, 0.1
  %v1199 = vmul.f32 %v733, 0.1
  %v1200 = vmul.f32 %v738, 0.1
  %v1201 = vmul.f32 %v743, 0.1
  %v1202 = vmul.f32 %v748, 0.1
  %v1203 = vmul.f32 %v753, 0.1
  %v1204 = vmul.f32 %v758, 0.1
  %v1205 = vmul.f32 %v763, 0.1
  %v1206 = vmul.f32 %v768, 0.1
  %v1207 = vmul.f32 %v773, 0.1
  %v1208 = vmul.f32 %v778, 0.1
  %v1209 = vmul.f32 %v783, 0.1
  %v1210 = vmul.f32 %v788, 0.1
  %v1211 = vmul.f32 %v793, 0.1
  %v1212 = vmul.f32 %v798, 0.1
  %v1213 = vmul.f32 %v803, 0.1
  %v1214 = vmul.f32 %v808, 0.1
  %v1215 = vmul.f32 %v813, 0.1
  %v1216 = vmul.f32 %v818, 0.1
  %v1217 = vmul.f32 %v823, 0.1
  %v1218 = vmul.f32 %v828, 0.1
  %v1219 = vmul.f32 %v833, 0.1
  %v1220 = vmul.f32 %v838, 0.1
  %v1221 = vmul.f32 %v843, 0.1
  %v1222 = vmul.f32 %v848, 0.1
  %v1223 = vmul.f32 %v853, 0.1
  %v1224 = vmul.f32 %v858, 0.1
  %v1225 = vmul.f32 %v863, 0.1
  %v1226 = vmul.f32 %v868, 0.1
  %v1227 = vmul.f32 %v873, 0.1
  %v1228 = vmul.f32 %v878, 0.1
  %v1229 = vmul.f32 %v883, 0.1
  %v1230 = vmul.f32 %v888, 0.1
  %v1231 = vmul.f32 %v893, 0.1
  %v1232 = vmul.f32 %v898, 0.1
  %v1233 = vmul.f32 %v903, 0.1
  %v1234 = vmul.f32 %v908, 0.1
  %v1235 = vmul.f32 %v913, 0.1
  %v1236 = vmul.f32 %v918, 0.1
  %v1237 = vmul.f32 %v923, 0.1
  %v1238 = vmul.f32 %v928, 0.1
  %v1239 = vmul.f32 %v933, 0.1
  %v1240 = vmul.f32 %v938, 0.1
  %v1241 = vmul.f32 %v943, 0.1
  %v1242 = vmul.f32 %v948, 0.1
  %v1243 = vmul.f32 %v953, 0.1
  %v1244 = vsel %vm956, %v238, %v1100
  %v1245 = vsel %vm957, %v243, %v1101
  %v1246 = vsel %vm958, %v248, %v1102
  %v1247 = vsel %vm959, %v253, %v1103
  %v1248 = vsel %vm960, %v258, %v1104
  %v1249 = vsel %vm961, %v263, %v1105
  %v1250 = vsel %vm962, %v268, %v1106
  %v1251 = vsel %vm963, %v273, %v1107
  %v1252 = vsel %vm964, %v278, %v1108
  %v1253 = vsel %vm965, %v283, %v1109
  %v1254 = vsel %vm966, %v288, %v1110
  %v1255 = vsel %vm967, %v293, %v1111
  %v1256 = vsel %vm968, %v298, %v1112
  %v1257 = vsel %vm969, %v303, %v1113
  %v1258 = vsel %vm970, %v308, %v1114
  %v1259 = vsel %vm971, %v313, %v1115
  %v1260 = vsel %vm972, %v318, %v1116
  %v1261 = vsel %vm973, %v323, %v1117
  %v1262 = vsel %vm974, %v328, %v1118
  %v1263 = vsel %vm975, %v333, %v1119
  %v1264 = vsel %vm976, %v338, %v1120
  %v1265 = vsel %vm977, %v343, %v1121
  %v1266 = vsel %vm978, %v348, %v1122
  %v1267 = vsel %vm979, %v353, %v1123
  %v1268 = vsel %vm980, %v358, %v1124
  %v1269 = vsel %vm981, %v363, %v1125
  %v1270 = vsel %vm982, %v368, %v1126
  %v1271 = vsel %vm983, %v373, %v1127
  %v1272 = vsel %vm984, %v378, %v1128
  %v1273 = vsel %vm985, %v383, %v1129
  %v1274 = vsel %vm986, %v388, %v1130
  %v1275 = vsel %vm987, %v393, %v1131
  %v1276 = vsel %vm988, %v398, %v1132
  %v1277 = vsel %vm989, %v403, %v1133
  %v1278 = vsel %vm990, %v408, %v1134
  %v1279 = vsel %vm991, %v413, %v1135
  %v1280 = vsel %vm992, %v418, %v1136
  %v1281 = vsel %vm993, %v423, %v1137
  %v1282 = vsel %vm994, %v428, %v1138
  %v1283 = vsel %vm995, %v433, %v1139
  %v1284 = vsel %vm996, %v438, %v1140
  %v1285 = vsel %vm997, %v443, %v1141
  %v1286 = vsel %vm998, %v448, %v1142
  %v1287 = vsel %vm999, %v453, %v1143
  %v1288 = vsel %vm1000, %v458, %v1144
  %v1289 = vsel %vm1001, %v463, %v1145
  %v1290 = vsel %vm1002, %v468, %v1146
  %v1291 = vsel %vm1003, %v473, %v1147
  %v1292 = vsel %vm1004, %v478, %v1148
  %v1293 = vsel %vm1005, %v483, %v1149
  %v1294 = vsel %vm1006, %v488, %v1150
  %v1295 = vsel %vm1007, %v493, %v1151
  %v1296 = vsel %vm1008, %v498, %v1152
  %v1297 = vsel %vm1009, %v503, %v1153
  %v1298 = vsel %vm1010, %v508, %v1154
  %v1299 = vsel %vm1011, %v513, %v1155
  %v1300 = vsel %vm1012, %v518, %v1156
  %v1301 = vsel %vm1013, %v523, %v1157
  %v1302 = vsel %vm1014, %v528, %v1158
  %v1303 = vsel %vm1015, %v533, %v1159
  %v1304 = vsel %vm1016, %v538, %v1160
  %v1305 = vsel %vm1017, %v543, %v1161
  %v1306 = vsel %vm1018, %v548, %v1162
  %v1307 = vsel %vm1019, %v553, %v1163
  %v1308 = vsel %vm1020, %v558, %v1164
  %v1309 = vsel %vm1021, %v563, %v1165
  %v1310 = vsel %vm1022, %v568, %v1166
  %v1311 = vsel %vm1023, %v573, %v1167
  %v1312 = vsel %vm1024, %v578, %v1168
  %v1313 = vsel %vm1025, %v583, %v1169
  %v1314 = vsel %vm1026, %v588, %v1170
  %v1315 = vsel %vm1027, %v593, %v1171
  %v1316 = vsel %vm1028, %v598, %v1172
  %v1317 = vsel %vm1029, %v603, %v1173
  %v1318 = vsel %vm1030, %v608, %v1174
  %v1319 = vsel %vm1031, %v613, %v1175
  %v1320 = vsel %vm1032, %v618, %v1176
  %v1321 = vsel %vm1033, %v623, %v1177
  %v1322 = vsel %vm1034, %v628, %v1178
  %v1323 = vsel %vm1035, %v633, %v1179
  %v1324 = vsel %vm1036, %v638, %v1180
  %v1325 = vsel %vm1037, %v643, %v1181
  %v1326 = vsel %vm1038, %v648, %v1182
  %v1327 = vsel %vm1039, %v653, %v1183
  %v1328 = vsel %vm1040, %v658, %v1184
  %v1329 = vsel %vm1041, %v663, %v1185
  %v1330 = vsel %vm1042, %v668, %v1186
  %v1331 = vsel %vm1043, %v673, %v1187
  %v1332 = vsel %vm1044, %v678, %v1188
  %v1333 = vsel %vm1045, %v683, %v1189
  %v1334 = vsel %vm1046, %v688, %v1190
  %v1335 = vsel %vm1047, %v693, %v1191
  %v1336 = vsel %vm1048, %v698, %v1192
  %v1337 = vsel %vm1049, %v703, %v1193
  %v1338 = vsel %vm1050, %v708, %v1194
  %v1339 = vsel %vm1051, %v713, %v1195
  %v1340 = vsel %vm1052, %v718, %v1196
  %v1341 = vsel %vm1053, %v723, %v1197
  %v1342 = vsel %vm1054, %v728, %v1198
  %v1343 = vsel %vm1055, %v733, %v1199
  %v1344 = vsel %vm1056, %v738, %v1200
  %v1345 = vsel %vm1057, %v743, %v1201
  %v1346 = vsel %vm1058, %v748, %v1202
  %v1347 = vsel %vm1059, %v753, %v1203
  %v1348 = vsel %vm1060, %v758, %v1204
  %v1349 = vsel %vm1061, %v763, %v1205
  %v1350 = vsel %vm1062, %v768, %v1206
  %v1351 = vsel %vm1063, %v773, %v1207
  %v1352 = vsel %vm1064, %v778, %v1208
  %v1353 = vsel %vm1065, %v783, %v1209
  %v1354 = vsel %vm1066, %v788, %v1210
  %v1355 = vsel %vm1067, %v793, %v1211
  %v1356 = vsel %vm1068, %v798, %v1212
  %v1357 = vsel %vm1069, %v803, %v1213
  %v1358 = vsel %vm1070, %v808, %v1214
  %v1359 = vsel %vm1071, %v813, %v1215
  %v1360 = vsel %vm1072, %v818, %v1216
  %v1361 = vsel %vm1073, %v823, %v1217
  %v1362 = vsel %vm1074, %v828, %v1218
  %v1363 = vsel %vm1075, %v833, %v1219
  %v1364 = vsel %vm1076, %v838, %v1220
  %v1365 = vsel %vm1077, %v843, %v1221
  %v1366 = vsel %vm1078, %v848, %v1222
  %v1367 = vsel %vm1079, %v853, %v1223
  %v1368 = vsel %vm1080, %v858, %v1224
  %v1369 = vsel %vm1081, %v863, %v1225
  %v1370 = vsel %vm1082, %v868, %v1226
  %v1371 = vsel %vm1083, %v873, %v1227
  %v1372 = vsel %vm1084, %v878, %v1228
  %v1373 = vsel %vm1085, %v883, %v1229
  %v1374 = vsel %vm1086, %v888, %v1230
  %v1375 = vsel %vm1087, %v893, %v1231
  %v1376 = vsel %vm1088, %v898, %v1232
  %v1377 = vsel %vm1089, %v903, %v1233
  %v1378 = vsel %vm1090, %v908, %v1234
  %v1379 = vsel %vm1091, %v913, %v1235
  %v1380 = vsel %vm1092, %v918, %v1236
  %v1381 = vsel %vm1093, %v923, %v1237
  %v1382 = vsel %vm1094, %v928, %v1238
  %v1383 = vsel %vm1095, %v933, %v1239
  %v1384 = vsel %vm1096, %v938, %v1240
  %v1385 = vsel %vm1097, %v943, %v1241
  %v1386 = vsel %vm1098, %v948, %v1242
  %v1387 = vsel %vm1099, %v953, %v1243
  %1388 = vst [vmem:[%s2] sm:$0xff] %v1244
  %1389 = vst [vmem:[%s2 + $0x8] sm:$0xff] %v1245
  %1390 = vst [vmem:[%s2 + $0x10] sm:$0xff] %v1246
  %1391 = vst [vmem:[%s2 + $0x18] sm:$0xff] %v1247
  %1392 = vst [vmem:[%s2 + $0x20] sm:$0xff] %v1248
  %1393 = vst [vmem:[%s2 + $0x28] sm:$0xff] %v1249
  %1394 = vst [vmem:[%s2 + $0x30] sm:$0xff] %v1250
  %1395 = vst [vmem:[%s2 + $0x38] sm:$0xff] %v1251
  %1396 = vst [vmem:[%s2 + $0x40] sm:$0xff] %v1252
  %1397 = vst [vmem:[%s2 + $0x48] sm:$0xff] %v1253
  %1398 = vst [vmem:[%s2 + $0x50] sm:$0xff] %v1254
  %1399 = vst [vmem:[%s2 + $0x58] sm:$0xff] %v1255
  %1400 = vst [vmem:[%s2 + $0x60] sm:$0xff] %v1256
  %1401 = vst [vmem:[%s2 + $0x68] sm:$0xff] %v1257
  %1402 = vst [vmem:[%s2 + $0x70] sm:$0xff] %v1258
  %1403 = vst [vmem:[%s2 + $0x78] sm:$0xff] %v1259
  %1404 = vst [vmem:[%s2 + $0x80] sm:$0xff] %v1260
  %1405 = vst [vmem:[%s2 + $0x88] sm:$0xff] %v1261
  %1406 = vst [vmem:[%s2 + $0x90] sm:$0xff] %v1262
  %1407 = vst [vmem:[%s2 + $0x98] sm:$0xff] %v1263
  %1408 = vst [vmem:[%s2 + $0xa0] sm:$0xff] %v1264
  %1409 = vst [vmem:[%s2 + $0xa8] sm:$0xff] %v1265
  %1410 = vst [vmem:[%s2 + $0xb0] sm:$0xff] %v1266
  %1411 = vst [vmem:[%s2 + $0xb8] sm:$0xff] %v1267
  %1412 = vst [vmem:[%s2 + $0xc0] sm:$0xff] %v1268
  %1413 = vst [vmem:[%s2 + $0xc8] sm:$0xff] %v1269
  %1414 = vst [vmem:[%s2 + $0xd0] sm:$0xff] %v1270
  %1415 = vst [vmem:[%s2 + $0xd8] sm:$0xff] %v1271
  %1416 = vst [vmem:[%s2 + $0xe0] sm:$0xff] %v1272
  %1417 = vst [vmem:[%s2 + $0xe8] sm:$0xff] %v1273
  %1418 = vst [vmem:[%s2 + $0xf0] sm:$0xff] %v1274
  %1419 = vst [vmem:[%s2 + $0xf8] sm:$0xff] %v1275
  %1420 = vst [vmem:[%s2 + $0x100] sm:$0xff] %v1276
  %1421 = vst [vmem:[%s2 + $0x108] sm:$0xff] %v1277
  %1422 = vst [vmem:[%s2 + $0x110] sm:$0xff] %v1278
  %1423 = vst [vmem:[%s2 + $0x118] sm:$0xff] %v1279
  %1424 = vst [vmem:[%s2 + $0x120] sm:$0xff] %v1280
  %1425 = vst [vmem:[%s2 + $0x128] sm:$0xff] %v1281
  %1426 = vst [vmem:[%s2 + $0x130] sm:$0xff] %v1282
  %1427 = vst [vmem:[%s2 + $0x138] sm:$0xff] %v1283
  %1428 = vst [vmem:[%s2 + $0x140] sm:$0xff] %v1284
  %1429 = vst [vmem:[%s2 + $0x148] sm:$0xff] %v1285
  %1430 = vst [vmem:[%s2 + $0x150] sm:$0xff] %v1286
  %1431 = vst [vmem:[%s2 + $0x158] sm:$0xff] %v1287
  %1432 = vst [vmem:[%s2 + $0x160] sm:$0xff] %v1288
  %1433 = vst [vmem:[%s2 + $0x168] sm:$0xff] %v1289
  %1434 = vst [vmem:[%s2 + $0x170] sm:$0xff] %v1290
  %1435 = vst [vmem:[%s2 + $0x178] sm:$0xff] %v1291
  %1436 = vst [vmem:[%s2 + $0x180] sm:$0xff] %v1292
  %1437 = vst [vmem:[%s2 + $0x188] sm:$0xff] %v1293
  %1438 = vst [vmem:[%s2 + $0x190] sm:$0xff] %v1294
  %1439 = vst [vmem:[%s2 + $0x198] sm:$0xff] %v1295
  %1440 = vst [vmem:[%s2 + $0x1a0] sm:$0xff] %v1296
  %1441 = vst [vmem:[%s2 + $0x1a8] sm:$0xff] %v1297
  %1442 = vst [vmem:[%s2 + $0x1b0] sm:$0xff] %v1298
  %1443 = vst [vmem:[%s2 + $0x1b8] sm:$0xff] %v1299
  %1444 = vst [vmem:[%s2 + $0x1c0] sm:$0xff] %v1300
  %1445 = vst [vmem:[%s2 + $0x1c8] sm:$0xff] %v1301
  %1446 = vst [vmem:[%s2 + $0x1d0] sm:$0xff] %v1302
  %1447 = vst [vmem:[%s2 + $0x1d8] sm:$0xff] %v1303
  %1448 = vst [vmem:[%s2 + $0x1e0] sm:$0xff] %v1304
  %1449 = vst [vmem:[%s2 + $0x1e8] sm:$0xff] %v1305
  %1450 = vst [vmem:[%s2 + $0x1f0] sm:$0xff] %v1306
  %1451 = vst [vmem:[%s2 + $0x1f8] sm:$0xff] %v1307
  %1452 = vst [vmem:[%s2 + $0x200] sm:$0xff] %v1308
  %1453 = vst [vmem:[%s2 + $0x208] sm:$0xff] %v1309
  %1454 = vst [vmem:[%s2 + $0x210] sm:$0xff] %v1310
  %1455 = vst [vmem:[%s2 + $0x218] sm:$0xff] %v1311
  %1456 = vst [vmem:[%s2 + $0x220] sm:$0xff] %v1312
  %1457 = vst [vmem:[%s2 + $0x228] sm:$0xff] %v1313
  %1458 = vst [vmem:[%s2 + $0x230] sm:$0xff] %v1314
  %1459 = vst [vmem:[%s2 + $0x238] sm:$0xff] %v1315
  %1460 = vst [vmem:[%s2 + $0x240] sm:$0xff] %v1316
  %1461 = vst [vmem:[%s2 + $0x248] sm:$0xff] %v1317
  %1462 = vst [vmem:[%s2 + $0x250] sm:$0xff] %v1318
  %1463 = vst [vmem:[%s2 + $0x258] sm:$0xff] %v1319
  %1464 = vst [vmem:[%s2 + $0x260] sm:$0xff] %v1320
  %1465 = vst [vmem:[%s2 + $0x268] sm:$0xff] %v1321
  %1466 = vst [vmem:[%s2 + $0x270] sm:$0xff] %v1322
  %1467 = vst [vmem:[%s2 + $0x278] sm:$0xff] %v1323
  %1468 = vst [vmem:[%s2 + $0x280] sm:$0xff] %v1324
  %1469 = vst [vmem:[%s2 + $0x288] sm:$0xff] %v1325
  %1470 = vst [vmem:[%s2 + $0x290] sm:$0xff] %v1326
  %1471 = vst [vmem:[%s2 + $0x298] sm:$0xff] %v1327
  %1472 = vst [vmem:[%s2 + $0x2a0] sm:$0xff] %v1328
  %1473 = vst [vmem:[%s2 + $0x2a8] sm:$0xff] %v1329
  %1474 = vst [vmem:[%s2 + $0x2b0] sm:$0xff] %v1330
  %1475 = vst [vmem:[%s2 + $0x2b8] sm:$0xff] %v1331
  %1476 = vst [vmem:[%s2 + $0x2c0] sm:$0xff] %v1332
  %1477 = vst [vmem:[%s2 + $0x2c8] sm:$0xff] %v1333
  %1478 = vst [vmem:[%s2 + $0x2d0] sm:$0xff] %v1334
  %1479 = vst [vmem:[%s2 + $0x2d8] sm:$0xff] %v1335
  %1480 = vst [vmem:[%s2 + $0x2e0] sm:$0xff] %v1336
  %1481 = vst [vmem:[%s2 + $0x2e8] sm:$0xff] %v1337
  %1482 = vst [vmem:[%s2 + $0x2f0] sm:$0xff] %v1338
  %1483 = vst [vmem:[%s2 + $0x2f8] sm:$0xff] %v1339
  %1484 = vst [vmem:[%s2 + $0x300] sm:$0xff] %v1340
  %1485 = vst [vmem:[%s2 + $0x308] sm:$0xff] %v1341
  %1486 = vst [vmem:[%s2 + $0x310] sm:$0xff] %v1342
  %1487 = vst [vmem:[%s2 + $0x318] sm:$0xff] %v1343
  %1488 = vst [vmem:[%s2 + $0x320] sm:$0xff] %v1344
  %1489 = vst [vmem:[%s2 + $0x328] sm:$0xff] %v1345
  %1490 = vst [vmem:[%s2 + $0x330] sm:$0xff] %v1346
  %1491 = vst [vmem:[%s2 + $0x338] sm:$0xff] %v1347
  %1492 = vst [vmem:[%s2 + $0x340] sm:$0xff] %v1348
  %1493 = vst [vmem:[%s2 + $0x348] sm:$0xff] %v1349
  %1494 = vst [vmem:[%s2 + $0x350] sm:$0xff] %v1350
  %1495 = vst [vmem:[%s2 + $0x358] sm:$0xff] %v1351
  %1496 = vst [vmem:[%s2 + $0x360] sm:$0xff] %v1352
  %1497 = vst [vmem:[%s2 + $0x368] sm:$0xff] %v1353
  %1498 = vst [vmem:[%s2 + $0x370] sm:$0xff] %v1354
  %1499 = vst [vmem:[%s2 + $0x378] sm:$0xff] %v1355
  %1500 = vst [vmem:[%s2 + $0x380] sm:$0xff] %v1356
  %1501 = vst [vmem:[%s2 + $0x388] sm:$0xff] %v1357
  %1502 = vst [vmem:[%s2 + $0x390] sm:$0xff] %v1358
  %1503 = vst [vmem:[%s2 + $0x398] sm:$0xff] %v1359
  %1504 = vst [vmem:[%s2 + $0x3a0] sm:$0xff] %v1360
  %1505 = vst [vmem:[%s2 + $0x3a8] sm:$0xff] %v1361
  %1506 = vst [vmem:[%s2 + $0x3b0] sm:$0xff] %v1362
  %1507 = vst [vmem:[%s2 + $0x3b8] sm:$0xff] %v1363
  %1508 = vst [vmem:[%s2 + $0x3c0] sm:$0xff] %v1364
  %1509 = vst [vmem:[%s2 + $0x3c8] sm:$0xff] %v1365
  %1510 = vst [vmem:[%s2 + $0x3d0] sm:$0xff] %v1366
  %1511 = vst [vmem:[%s2 + $0x3d8] sm:$0xff] %v1367
  %1512 = vst [vmem:[%s2 + $0x3e0] sm:$0xff] %v1368
  %1513 = vst [vmem:[%s2 + $0x3e8] sm:$0xff] %v1369
  %1514 = vst [vmem:[%s2 + $0x3f0] sm:$0xff] %v1370
  %1515 = vst [vmem:[%s2 + $0x3f8] sm:$0xff] %v1371
  %1516 = vst [vmem:[%s2 + $0x400] sm:$0xff] %v1372
  %1517 = vst [vmem:[%s2 + $0x408] sm:$0xff] %v1373
  %1518 = vst [vmem:[%s2 + $0x410] sm:$0xff] %v1374
  %1519 = vst [vmem:[%s2 + $0x418] sm:$0xff] %v1375
  %1520 = vst [vmem:[%s2 + $0x420] sm:$0xff] %v1376
  %1521 = vst [vmem:[%s2 + $0x428] sm:$0xff] %v1377
  %1522 = vst [vmem:[%s2 + $0x430] sm:$0xff] %v1378
  %1523 = vst [vmem:[%s2 + $0x438] sm:$0xff] %v1379
  %1524 = vst [vmem:[%s2 + $0x440] sm:$0xff] %v1380
  %1525 = vst [vmem:[%s2 + $0x448] sm:$0xff] %v1381
  %1526 = vst [vmem:[%s2 + $0x450] sm:$0xff] %v1382
  %1527 = vst [vmem:[%s2 + $0x458] sm:$0xff] %v1383
  %1528 = vst [vmem:[%s2 + $0x460] sm:$0xff] %v1384
  %1529 = vst [vmem:[%s2 + $0x468] sm:$0xff] %v1385
  %1530 = vst [vmem:[%s2 + $0x470] sm:$0xff] %v1386
  %1531 = vst [vmem:[%s2 + $0x478] sm:$0xff] %v1387
  // Predicated region
  $region10: #{disentg_block_forward.10} parent=0 // pred_check
    _
  $region11: #{disentg_block_forward.10} parent=0 // pred_check_branch
    %1533 = sbr.rel (0) target = $region13
  $region12: #{disentg_block_forward.10} parent=0 // pred_region
    _
  $region13: #{disentg_block_forward.10} parent=0 // pred_fallthru
    _
  // Predicated region
  $region14: #{disentg_block_forward.10} parent=0 // pred_check
    _
  $region15: #{disentg_block_forward.10} parent=0 // pred_check_branch
    %1535 = sbr.rel (0) target = $region17
  $region16: #{disentg_block_forward.10} parent=0 // pred_region
    _
  $region17: #{disentg_block_forward.10} parent=0 // pred_fallthru
    _

// kernel: disentg_block_forward.11
$region0: #{disentg_block_forward.11}
  #allocation0 [shape = 'u32[]', space=smem, size = 0x4, offset = 0x4, fixed_abs, tag = 'smem constant byte address 0x4 - core index']
  #allocation1 [shape = 'u32[144,128]{1,0:T(1,128)}', space=vmem, size = 0x12000, scoped, tag = 'internal scratch']
  %s0 = inlined_call_operand.vmem [shape: f32[1152,384], index: 0, kind: input, shape index: {}]
  %s1 = inlined_call_operand.vmem [shape: f32[384,128], index: 1, kind: input, shape index: {}]
  %s2 = inlined_call_operand.vmem [shape: f32[1152,128], index: 2, kind: input, shape index: {}]
  %s3 = inlined_call_operand.hbm [shape: f32[1152,128], index: 3, kind: output, shape index: {}]
  %s4 = sld [smem:[#allocation0]]
  $region22: #{disentg_block_forward.11} parent=0
    _
  %s6 = ssub.s32 1, %s4
  %s7 = scalar_select 0, %s6, %s4
  $region1: #{disentg_block_forward.11} parent=0
    #allocation2 [shape = 'u8[589824]{0}', space=vmem, size = 0x90000, scoped, tag = 'output window, operand 0, single buffered']
    #allocation3 [shape = 's32[1]{0}', space=sflag, size = 0x4, scoped, tag = 'scoped memory for disentg_block_forward.11']
    %8 = vsyncpa [#allocation3], 0
    // Predicated region
    $region2: #{disentg_block_forward.11} parent=1 // pred_check
      _
    $region3: #{disentg_block_forward.11} parent=1 // pred_check_branch
      %10 = sbr.rel (0) target = $region5
    $region4: #{disentg_block_forward.11} parent=1 // pred_region
      _
    $region5: #{disentg_block_forward.11} parent=1 // pred_fallthru
      _
    // Predicated region
    $region6: #{disentg_block_forward.11} parent=1 // pred_check
      _
    $region7: #{disentg_block_forward.11} parent=1 // pred_check_branch
      %12 = sbr.rel (0) target = $region9
    $region8: #{disentg_block_forward.11} parent=1 // pred_region
      _
    $region9: #{disentg_block_forward.11} parent=1 // pred_fallthru
      _
    // Predicated region
    $region10: #{disentg_block_forward.11} parent=1 // pred_check
      _
    $region11: #{disentg_block_forward.11} parent=1 // pred_check_branch
      %14 = sbr.rel (0) target = $region13
    $region12: #{disentg_block_forward.11} parent=1 // pred_region
      _
    $region13: #{disentg_block_forward.11} parent=1 // pred_fallthru
      _
    %v15 = vld [vmem:[%s0] sm:$0xff]
    %v16 = vld [vmem:[%s0 + $0x8] sm:$0xff]
    %v17 = vld [vmem:[%s0 + $0x10] sm:$0xff]
    %v18 = vld [vmem:[%s0 + $0x18] sm:$0xff]
    %v19 = vld [vmem:[%s0 + $0x20] sm:$0xff]
    %v20 = vld [vmem:[%s0 + $0x28] sm:$0xff]
    %v21 = vld [vmem:[%s0 + $0x30] sm:$0xff]
    %v22 = vld [vmem:[%s0 + $0x38] sm:$0xff]
    %v23 = vld [vmem:[%s0 + $0x40] sm:$0xff]
    %v24 = vld [vmem:[%s0 + $0x48] sm:$0xff]
    %v25 = vld [vmem:[%s0 + $0x50] sm:$0xff]
    %v26 = vld [vmem:[%s0 + $0x58] sm:$0xff]
    %v27 = vld [vmem:[%s0 + $0x60] sm:$0xff]
    %v28 = vld [vmem:[%s0 + $0x68] sm:$0xff]
    %v29 = vld [vmem:[%s0 + $0x70] sm:$0xff]
    %v30 = vld [vmem:[%s0 + $0x78] sm:$0xff]
    %v31 = vld [vmem:[%s0 + $0x80] sm:$0xff]
    %v32 = vld [vmem:[%s0 + $0x88] sm:$0xff]
    %v33 = vld [vmem:[%s0 + $0x90] sm:$0xff]
    %v34 = vld [vmem:[%s0 + $0x98] sm:$0xff]
    %v35 = vld [vmem:[%s0 + $0xa0] sm:$0xff]
    %v36 = vld [vmem:[%s0 + $0xa8] sm:$0xff]
    %v37 = vld [vmem:[%s0 + $0xb0] sm:$0xff]
    %v38 = vld [vmem:[%s0 + $0xb8] sm:$0xff]
    %v39 = vld [vmem:[%s0 + $0xc0] sm:$0xff]
    %v40 = vld [vmem:[%s0 + $0xc8] sm:$0xff]
    %v41 = vld [vmem:[%s0 + $0xd0] sm:$0xff]
    %v42 = vld [vmem:[%s0 + $0xd8] sm:$0xff]
    %v43 = vld [vmem:[%s0 + $0xe0] sm:$0xff]
    %v44 = vld [vmem:[%s0 + $0xe8] sm:$0xff]
    %v45 = vld [vmem:[%s0 + $0xf0] sm:$0xff]
    %v46 = vld [vmem:[%s0 + $0xf8] sm:$0xff]
    %v47 = vld [vmem:[%s0 + $0x100] sm:$0xff]
    %v48 = vld [vmem:[%s0 + $0x108] sm:$0xff]
    %v49 = vld [vmem:[%s0 + $0x110] sm:$0xff]
    %v50 = vld [vmem:[%s0 + $0x118] sm:$0xff]
    %v51 = vld [vmem:[%s0 + $0x120] sm:$0xff]
    %v52 = vld [vmem:[%s0 + $0x128] sm:$0xff]
    %v53 = vld [vmem:[%s0 + $0x130] sm:$0xff]
    %v54 = vld [vmem:[%s0 + $0x138] sm:$0xff]
    %v55 = vld [vmem:[%s0 + $0x140] sm:$0xff]
    %v56 = vld [vmem:[%s0 + $0x148] sm:$0xff]
    %v57 = vld [vmem:[%s0 + $0x150] sm:$0xff]
    %v58 = vld [vmem:[%s0 + $0x158] sm:$0xff]
    %v59 = vld [vmem:[%s0 + $0x160] sm:$0xff]
    %v60 = vld [vmem:[%s0 + $0x168] sm:$0xff]
    %v61 = vld [vmem:[%s0 + $0x170] sm:$0xff]
    %v62 = vld [vmem:[%s0 + $0x178] sm:$0xff]
    %v63 = vld [vmem:[%s0 + $0x180] sm:$0xff]
    %v64 = vld [vmem:[%s0 + $0x188] sm:$0xff]
    %v65 = vld [vmem:[%s0 + $0x190] sm:$0xff]
    %v66 = vld [vmem:[%s0 + $0x198] sm:$0xff]
    %v67 = vld [vmem:[%s0 + $0x1a0] sm:$0xff]
    %v68 = vld [vmem:[%s0 + $0x1a8] sm:$0xff]
    %v69 = vld [vmem:[%s0 + $0x1b0] sm:$0xff]
    %v70 = vld [vmem:[%s0 + $0x1b8] sm:$0xff]
    %v71 = vld [vmem:[%s0 + $0x1c0] sm:$0xff]
    %v72 = vld [vmem:[%s0 + $0x1c8] sm:$0xff]
    %v73 = vld [vmem:[%s0 + $0x1d0] sm:$0xff]
    %v74 = vld [vmem:[%s0 + $0x1d8] sm:$0xff]
    %v75 = vld [vmem:[%s0 + $0x1e0] sm:$0xff]
    %v76 = vld [vmem:[%s0 + $0x1e8] sm:$0xff]
    %v77 = vld [vmem:[%s0 + $0x1f0] sm:$0xff]
    %v78 = vld [vmem:[%s0 + $0x1f8] sm:$0xff]
    %v79 = vld [vmem:[%s0 + $0x200] sm:$0xff]
    %v80 = vld [vmem:[%s0 + $0x208] sm:$0xff]
    %v81 = vld [vmem:[%s0 + $0x210] sm:$0xff]
    %v82 = vld [vmem:[%s0 + $0x218] sm:$0xff]
    %v83 = vld [vmem:[%s0 + $0x220] sm:$0xff]
    %v84 = vld [vmem:[%s0 + $0x228] sm:$0xff]
    %v85 = vld [vmem:[%s0 + $0x230] sm:$0xff]
    %v86 = vld [vmem:[%s0 + $0x238] sm:$0xff]
    %v87 = vld [vmem:[%s0 + $0x240] sm:$0xff]
    %v88 = vld [vmem:[%s0 + $0x248] sm:$0xff]
    %v89 = vld [vmem:[%s0 + $0x250] sm:$0xff]
    %v90 = vld [vmem:[%s0 + $0x258] sm:$0xff]
    %v91 = vld [vmem:[%s0 + $0x260] sm:$0xff]
    %v92 = vld [vmem:[%s0 + $0x268] sm:$0xff]
    %v93 = vld [vmem:[%s0 + $0x270] sm:$0xff]
    %v94 = vld [vmem:[%s0 + $0x278] sm:$0xff]
    %v95 = vld [vmem:[%s0 + $0x280] sm:$0xff]
    %v96 = vld [vmem:[%s0 + $0x288] sm:$0xff]
    %v97 = vld [vmem:[%s0 + $0x290] sm:$0xff]
    %v98 = vld [vmem:[%s0 + $0x298] sm:$0xff]
    %v99 = vld [vmem:[%s0 + $0x2a0] sm:$0xff]
    %v100 = vld [vmem:[%s0 + $0x2a8] sm:$0xff]
    %v101 = vld [vmem:[%s0 + $0x2b0] sm:$0xff]
    %v102 = vld [vmem:[%s0 + $0x2b8] sm:$0xff]
    %v103 = vld [vmem:[%s0 + $0x2c0] sm:$0xff]
    %v104 = vld [vmem:[%s0 + $0x2c8] sm:$0xff]
    %v105 = vld [vmem:[%s0 + $0x2d0] sm:$0xff]
    %v106 = vld [vmem:[%s0 + $0x2d8] sm:$0xff]
    %v107 = vld [vmem:[%s0 + $0x2e0] sm:$0xff]
    %v108 = vld [vmem:[%s0 + $0x2e8] sm:$0xff]
    %v109 = vld [vmem:[%s0 + $0x2f0] sm:$0xff]
    %v110 = vld [vmem:[%s0 + $0x2f8] sm:$0xff]
    %v111 = vld [vmem:[%s0 + $0x300] sm:$0xff]
    %v112 = vld [vmem:[%s0 + $0x308] sm:$0xff]
    %v113 = vld [vmem:[%s0 + $0x310] sm:$0xff]
    %v114 = vld [vmem:[%s0 + $0x318] sm:$0xff]
    %v115 = vld [vmem:[%s0 + $0x320] sm:$0xff]
    %v116 = vld [vmem:[%s0 + $0x328] sm:$0xff]
    %v117 = vld [vmem:[%s0 + $0x330] sm:$0xff]
    %v118 = vld [vmem:[%s0 + $0x338] sm:$0xff]
    %v119 = vld [vmem:[%s0 + $0x340] sm:$0xff]
    %v120 = vld [vmem:[%s0 + $0x348] sm:$0xff]
    %v121 = vld [vmem:[%s0 + $0x350] sm:$0xff]
    %v122 = vld [vmem:[%s0 + $0x358] sm:$0xff]
    %v123 = vld [vmem:[%s0 + $0x360] sm:$0xff]
    %v124 = vld [vmem:[%s0 + $0x368] sm:$0xff]
    %v125 = vld [vmem:[%s0 + $0x370] sm:$0xff]
    %v126 = vld [vmem:[%s0 + $0x378] sm:$0xff]
    %v127 = vld [vmem:[%s0 + $0x380] sm:$0xff]
    %v128 = vld [vmem:[%s0 + $0x388] sm:$0xff]
    %v129 = vld [vmem:[%s0 + $0x390] sm:$0xff]
    %v130 = vld [vmem:[%s0 + $0x398] sm:$0xff]
    %v131 = vld [vmem:[%s0 + $0x3a0] sm:$0xff]
    %v132 = vld [vmem:[%s0 + $0x3a8] sm:$0xff]
    %v133 = vld [vmem:[%s0 + $0x3b0] sm:$0xff]
    %v134 = vld [vmem:[%s0 + $0x3b8] sm:$0xff]
    %v135 = vld [vmem:[%s0 + $0x3c0] sm:$0xff]
    %v136 = vld [vmem:[%s0 + $0x3c8] sm:$0xff]
    %v137 = vld [vmem:[%s0 + $0x3d0] sm:$0xff]
    %v138 = vld [vmem:[%s0 + $0x3d8] sm:$0xff]
    %v139 = vld [vmem:[%s0 + $0x3e0] sm:$0xff]
    %v140 = vld [vmem:[%s0 + $0x3e8] sm:$0xff]
    %v141 = vld [vmem:[%s0 + $0x3f0] sm:$0xff]
    %v142 = vld [vmem:[%s0 + $0x3f8] sm:$0xff]
    %v143 = vld [vmem:[%s0 + $0x400] sm:$0xff]
    %v144 = vld [vmem:[%s0 + $0x408] sm:$0xff]
    %v145 = vld [vmem:[%s0 + $0x410] sm:$0xff]
    %v146 = vld [vmem:[%s0 + $0x418] sm:$0xff]
    %v147 = vld [vmem:[%s0 + $0x420] sm:$0xff]
    %v148 = vld [vmem:[%s0 + $0x428] sm:$0xff]
    %v149 = vld [vmem:[%s0 + $0x430] sm:$0xff]
    %v150 = vld [vmem:[%s0 + $0x438] sm:$0xff]
    %v151 = vld [vmem:[%s0 + $0x440] sm:$0xff]
    %v152 = vld [vmem:[%s0 + $0x448] sm:$0xff]
    %v153 = vld [vmem:[%s0 + $0x450] sm:$0xff]
    %v154 = vld [vmem:[%s0 + $0x458] sm:$0xff]
    %v155 = vld [vmem:[%s0 + $0x460] sm:$0xff]
    %v156 = vld [vmem:[%s0 + $0x468] sm:$0xff]
    %v157 = vld [vmem:[%s0 + $0x470] sm:$0xff]
    %v158 = vld [vmem:[%s0 + $0x478] sm:$0xff]
    %v159 = vld [vmem:[%s0 + $0x480] sm:$0xff]
    %v160 = vld [vmem:[%s0 + $0x488] sm:$0xff]
    %v161 = vld [vmem:[%s0 + $0x490] sm:$0xff]
    %v162 = vld [vmem:[%s0 + $0x498] sm:$0xff]
    %v163 = vld [vmem:[%s0 + $0x4a0] sm:$0xff]
    %v164 = vld [vmem:[%s0 + $0x4a8] sm:$0xff]
    %v165 = vld [vmem:[%s0 + $0x4b0] sm:$0xff]
    %v166 = vld [vmem:[%s0 + $0x4b8] sm:$0xff]
    %v167 = vld [vmem:[%s0 + $0x4c0] sm:$0xff]
    %v168 = vld [vmem:[%s0 + $0x4c8] sm:$0xff]
    %v169 = vld [vmem:[%s0 + $0x4d0] sm:$0xff]
    %v170 = vld [vmem:[%s0 + $0x4d8] sm:$0xff]
    %v171 = vld [vmem:[%s0 + $0x4e0] sm:$0xff]
    %v172 = vld [vmem:[%s0 + $0x4e8] sm:$0xff]
    %v173 = vld [vmem:[%s0 + $0x4f0] sm:$0xff]
    %v174 = vld [vmem:[%s0 + $0x4f8] sm:$0xff]
    %v175 = vld [vmem:[%s0 + $0x500] sm:$0xff]
    %v176 = vld [vmem:[%s0 + $0x508] sm:$0xff]
    %v177 = vld [vmem:[%s0 + $0x510] sm:$0xff]
    %v178 = vld [vmem:[%s0 + $0x518] sm:$0xff]
    %v179 = vld [vmem:[%s0 + $0x520] sm:$0xff]
    %v180 = vld [vmem:[%s0 + $0x528] sm:$0xff]
    %v181 = vld [vmem:[%s0 + $0x530] sm:$0xff]
    %v182 = vld [vmem:[%s0 + $0x538] sm:$0xff]
    %v183 = vld [vmem:[%s0 + $0x540] sm:$0xff]
    %v184 = vld [vmem:[%s0 + $0x548] sm:$0xff]
    %v185 = vld [vmem:[%s0 + $0x550] sm:$0xff]
    %v186 = vld [vmem:[%s0 + $0x558] sm:$0xff]
    %v187 = vld [vmem:[%s0 + $0x560] sm:$0xff]
    %v188 = vld [vmem:[%s0 + $0x568] sm:$0xff]
    %v189 = vld [vmem:[%s0 + $0x570] sm:$0xff]
    %v190 = vld [vmem:[%s0 + $0x578] sm:$0xff]
    %v191 = vld [vmem:[%s0 + $0x580] sm:$0xff]
    %v192 = vld [vmem:[%s0 + $0x588] sm:$0xff]
    %v193 = vld [vmem:[%s0 + $0x590] sm:$0xff]
    %v194 = vld [vmem:[%s0 + $0x598] sm:$0xff]
    %v195 = vld [vmem:[%s0 + $0x5a0] sm:$0xff]
    %v196 = vld [vmem:[%s0 + $0x5a8] sm:$0xff]
    %v197 = vld [vmem:[%s0 + $0x5b0] sm:$0xff]
    %v198 = vld [vmem:[%s0 + $0x5b8] sm:$0xff]
    %v199 = vld [vmem:[%s0 + $0x5c0] sm:$0xff]
    %v200 = vld [vmem:[%s0 + $0x5c8] sm:$0xff]
    %v201 = vld [vmem:[%s0 + $0x5d0] sm:$0xff]
    %v202 = vld [vmem:[%s0 + $0x5d8] sm:$0xff]
    %v203 = vld [vmem:[%s0 + $0x5e0] sm:$0xff]
    %v204 = vld [vmem:[%s0 + $0x5e8] sm:$0xff]
    %v205 = vld [vmem:[%s0 + $0x5f0] sm:$0xff]
    %v206 = vld [vmem:[%s0 + $0x5f8] sm:$0xff]
    %v207 = vld [vmem:[%s0 + $0x600] sm:$0xff]
    %v208 = vld [vmem:[%s0 + $0x608] sm:$0xff]
    %v209 = vld [vmem:[%s0 + $0x610] sm:$0xff]
    %v210 = vld [vmem:[%s0 + $0x618] sm:$0xff]
    %v211 = vld [vmem:[%s0 + $0x620] sm:$0xff]
    %v212 = vld [vmem:[%s0 + $0x628] sm:$0xff]
    %v213 = vld [vmem:[%s0 + $0x630] sm:$0xff]
    %v214 = vld [vmem:[%s0 + $0x638] sm:$0xff]
    %v215 = vld [vmem:[%s0 + $0x640] sm:$0xff]
    %v216 = vld [vmem:[%s0 + $0x648] sm:$0xff]
    %v217 = vld [vmem:[%s0 + $0x650] sm:$0xff]
    %v218 = vld [vmem:[%s0 + $0x658] sm:$0xff]
    %v219 = vld [vmem:[%s0 + $0x660] sm:$0xff]
    %v220 = vld [vmem:[%s0 + $0x668] sm:$0xff]
    %v221 = vld [vmem:[%s0 + $0x670] sm:$0xff]
    %v222 = vld [vmem:[%s0 + $0x678] sm:$0xff]
    %v223 = vld [vmem:[%s0 + $0x680] sm:$0xff]
    %v224 = vld [vmem:[%s0 + $0x688] sm:$0xff]
    %v225 = vld [vmem:[%s0 + $0x690] sm:$0xff]
    %v226 = vld [vmem:[%s0 + $0x698] sm:$0xff]
    %v227 = vld [vmem:[%s0 + $0x6a0] sm:$0xff]
    %v228 = vld [vmem:[%s0 + $0x6a8] sm:$0xff]
    %v229 = vld [vmem:[%s0 + $0x6b0] sm:$0xff]
    %v230 = vld [vmem:[%s0 + $0x6b8] sm:$0xff]
    %v231 = vld [vmem:[%s0 + $0x6c0] sm:$0xff]
    %v232 = vld [vmem:[%s0 + $0x6c8] sm:$0xff]
    %v233 = vld [vmem:[%s0 + $0x6d0] sm:$0xff]
    %v234 = vld [vmem:[%s0 + $0x6d8] sm:$0xff]
    %v235 = vld [vmem:[%s0 + $0x6e0] sm:$0xff]
    %v236 = vld [vmem:[%s0 + $0x6e8] sm:$0xff]
    %v237 = vld [vmem:[%s0 + $0x6f0] sm:$0xff]
    %v238 = vld [vmem:[%s0 + $0x6f8] sm:$0xff]
    %v239 = vld [vmem:[%s0 + $0x700] sm:$0xff]
    %v240 = vld [vmem:[%s0 + $0x708] sm:$0xff]
    %v241 = vld [vmem:[%s0 + $0x710] sm:$0xff]
    %v242 = vld [vmem:[%s0 + $0x718] sm:$0xff]
    %v243 = vld [vmem:[%s0 + $0x720] sm:$0xff]
    %v244 = vld [vmem:[%s0 + $0x728] sm:$0xff]
    %v245 = vld [vmem:[%s0 + $0x730] sm:$0xff]
    %v246 = vld [vmem:[%s0 + $0x738] sm:$0xff]
    %v247 = vld [vmem:[%s0 + $0x740] sm:$0xff]
    %v248 = vld [vmem:[%s0 + $0x748] sm:$0xff]
    %v249 = vld [vmem:[%s0 + $0x750] sm:$0xff]
    %v250 = vld [vmem:[%s0 + $0x758] sm:$0xff]
    %v251 = vld [vmem:[%s0 + $0x760] sm:$0xff]
    %v252 = vld [vmem:[%s0 + $0x768] sm:$0xff]
    %v253 = vld [vmem:[%s0 + $0x770] sm:$0xff]
    %v254 = vld [vmem:[%s0 + $0x778] sm:$0xff]
    %v255 = vld [vmem:[%s0 + $0x780] sm:$0xff]
    %v256 = vld [vmem:[%s0 + $0x788] sm:$0xff]
    %v257 = vld [vmem:[%s0 + $0x790] sm:$0xff]
    %v258 = vld [vmem:[%s0 + $0x798] sm:$0xff]
    %v259 = vld [vmem:[%s0 + $0x7a0] sm:$0xff]
    %v260 = vld [vmem:[%s0 + $0x7a8] sm:$0xff]
    %v261 = vld [vmem:[%s0 + $0x7b0] sm:$0xff]
    %v262 = vld [vmem:[%s0 + $0x7b8] sm:$0xff]
    %v263 = vld [vmem:[%s0 + $0x7c0] sm:$0xff]
    %v264 = vld [vmem:[%s0 + $0x7c8] sm:$0xff]
    %v265 = vld [vmem:[%s0 + $0x7d0] sm:$0xff]
    %v266 = vld [vmem:[%s0 + $0x7d8] sm:$0xff]
    %v267 = vld [vmem:[%s0 + $0x7e0] sm:$0xff]
    %v268 = vld [vmem:[%s0 + $0x7e8] sm:$0xff]
    %v269 = vld [vmem:[%s0 + $0x7f0] sm:$0xff]
    %v270 = vld [vmem:[%s0 + $0x7f8] sm:$0xff]
    %v271 = vld [vmem:[%s0 + $0x800] sm:$0xff]
    %v272 = vld [vmem:[%s0 + $0x808] sm:$0xff]
    %v273 = vld [vmem:[%s0 + $0x810] sm:$0xff]
    %v274 = vld [vmem:[%s0 + $0x818] sm:$0xff]
    %v275 = vld [vmem:[%s0 + $0x820] sm:$0xff]
    %v276 = vld [vmem:[%s0 + $0x828] sm:$0xff]
    %v277 = vld [vmem:[%s0 + $0x830] sm:$0xff]
    %v278 = vld [vmem:[%s0 + $0x838] sm:$0xff]
    %v279 = vld [vmem:[%s0 + $0x840] sm:$0xff]
    %v280 = vld [vmem:[%s0 + $0x848] sm:$0xff]
    %v281 = vld [vmem:[%s0 + $0x850] sm:$0xff]
    %v282 = vld [vmem:[%s0 + $0x858] sm:$0xff]
    %v283 = vld [vmem:[%s0 + $0x860] sm:$0xff]
    %v284 = vld [vmem:[%s0 + $0x868] sm:$0xff]
    %v285 = vld [vmem:[%s0 + $0x870] sm:$0xff]
    %v286 = vld [vmem:[%s0 + $0x878] sm:$0xff]
    %v287 = vld [vmem:[%s0 + $0x880] sm:$0xff]
    %v288 = vld [vmem:[%s0 + $0x888] sm:$0xff]
    %v289 = vld [vmem:[%s0 + $0x890] sm:$0xff]
    %v290 = vld [vmem:[%s0 + $0x898] sm:$0xff]
    %v291 = vld [vmem:[%s0 + $0x8a0] sm:$0xff]
    %v292 = vld [vmem:[%s0 + $0x8a8] sm:$0xff]
    %v293 = vld [vmem:[%s0 + $0x8b0] sm:$0xff]
    %v294 = vld [vmem:[%s0 + $0x8b8] sm:$0xff]
    %v295 = vld [vmem:[%s0 + $0x8c0] sm:$0xff]
    %v296 = vld [vmem:[%s0 + $0x8c8] sm:$0xff]
    %v297 = vld [vmem:[%s0 + $0x8d0] sm:$0xff]
    %v298 = vld [vmem:[%s0 + $0x8d8] sm:$0xff]
    %v299 = vld [vmem:[%s0 + $0x8e0] sm:$0xff]
    %v300 = vld [vmem:[%s0 + $0x8e8] sm:$0xff]
    %v301 = vld [vmem:[%s0 + $0x8f0] sm:$0xff]
    %v302 = vld [vmem:[%s0 + $0x8f8] sm:$0xff]
    %v303 = vld [vmem:[%s0 + $0x900] sm:$0xff]
    %v304 = vld [vmem:[%s0 + $0x908] sm:$0xff]
    %v305 = vld [vmem:[%s0 + $0x910] sm:$0xff]
    %v306 = vld [vmem:[%s0 + $0x918] sm:$0xff]
    %v307 = vld [vmem:[%s0 + $0x920] sm:$0xff]
    %v308 = vld [vmem:[%s0 + $0x928] sm:$0xff]
    %v309 = vld [vmem:[%s0 + $0x930] sm:$0xff]
    %v310 = vld [vmem:[%s0 + $0x938] sm:$0xff]
    %v311 = vld [vmem:[%s0 + $0x940] sm:$0xff]
    %v312 = vld [vmem:[%s0 + $0x948] sm:$0xff]
    %v313 = vld [vmem:[%s0 + $0x950] sm:$0xff]
    %v314 = vld [vmem:[%s0 + $0x958] sm:$0xff]
    %v315 = vld [vmem:[%s0 + $0x960] sm:$0xff]
    %v316 = vld [vmem:[%s0 + $0x968] sm:$0xff]
    %v317 = vld [vmem:[%s0 + $0x970] sm:$0xff]
    %v318 = vld [vmem:[%s0 + $0x978] sm:$0xff]
    %v319 = vld [vmem:[%s0 + $0x980] sm:$0xff]
    %v320 = vld [vmem:[%s0 + $0x988] sm:$0xff]
    %v321 = vld [vmem:[%s0 + $0x990] sm:$0xff]
    %v322 = vld [vmem:[%s0 + $0x998] sm:$0xff]
    %v323 = vld [vmem:[%s0 + $0x9a0] sm:$0xff]
    %v324 = vld [vmem:[%s0 + $0x9a8] sm:$0xff]
    %v325 = vld [vmem:[%s0 + $0x9b0] sm:$0xff]
    %v326 = vld [vmem:[%s0 + $0x9b8] sm:$0xff]
    %v327 = vld [vmem:[%s0 + $0x9c0] sm:$0xff]
    %v328 = vld [vmem:[%s0 + $0x9c8] sm:$0xff]
    %v329 = vld [vmem:[%s0 + $0x9d0] sm:$0xff]
    %v330 = vld [vmem:[%s0 + $0x9d8] sm:$0xff]
    %v331 = vld [vmem:[%s0 + $0x9e0] sm:$0xff]
    %v332 = vld [vmem:[%s0 + $0x9e8] sm:$0xff]
    %v333 = vld [vmem:[%s0 + $0x9f0] sm:$0xff]
    %v334 = vld [vmem:[%s0 + $0x9f8] sm:$0xff]
    %v335 = vld [vmem:[%s0 + $0xa00] sm:$0xff]
    %v336 = vld [vmem:[%s0 + $0xa08] sm:$0xff]
    %v337 = vld [vmem:[%s0 + $0xa10] sm:$0xff]
    %v338 = vld [vmem:[%s0 + $0xa18] sm:$0xff]
    %v339 = vld [vmem:[%s0 + $0xa20] sm:$0xff]
    %v340 = vld [vmem:[%s0 + $0xa28] sm:$0xff]
    %v341 = vld [vmem:[%s0 + $0xa30] sm:$0xff]
    %v342 = vld [vmem:[%s0 + $0xa38] sm:$0xff]
    %v343 = vld [vmem:[%s0 + $0xa40] sm:$0xff]
    %v344 = vld [vmem:[%s0 + $0xa48] sm:$0xff]
    %v345 = vld [vmem:[%s0 + $0xa50] sm:$0xff]
    %v346 = vld [vmem:[%s0 + $0xa58] sm:$0xff]
    %v347 = vld [vmem:[%s0 + $0xa60] sm:$0xff]
    %v348 = vld [vmem:[%s0 + $0xa68] sm:$0xff]
    %v349 = vld [vmem:[%s0 + $0xa70] sm:$0xff]
    %v350 = vld [vmem:[%s0 + $0xa78] sm:$0xff]
    %v351 = vld [vmem:[%s0 + $0xa80] sm:$0xff]
    %v352 = vld [vmem:[%s0 + $0xa88] sm:$0xff]
    %v353 = vld [vmem:[%s0 + $0xa90] sm:$0xff]
    %v354 = vld [vmem:[%s0 + $0xa98] sm:$0xff]
    %v355 = vld [vmem:[%s0 + $0xaa0] sm:$0xff]
    %v356 = vld [vmem:[%s0 + $0xaa8] sm:$0xff]
    %v357 = vld [vmem:[%s0 + $0xab0] sm:$0xff]
    %v358 = vld [vmem:[%s0 + $0xab8] sm:$0xff]
    %v359 = vld [vmem:[%s0 + $0xac0] sm:$0xff]
    %v360 = vld [vmem:[%s0 + $0xac8] sm:$0xff]
    %v361 = vld [vmem:[%s0 + $0xad0] sm:$0xff]
    %v362 = vld [vmem:[%s0 + $0xad8] sm:$0xff]
    %v363 = vld [vmem:[%s0 + $0xae0] sm:$0xff]
    %v364 = vld [vmem:[%s0 + $0xae8] sm:$0xff]
    %v365 = vld [vmem:[%s0 + $0xaf0] sm:$0xff]
    %v366 = vld [vmem:[%s0 + $0xaf8] sm:$0xff]
    %v367 = vld [vmem:[%s0 + $0xb00] sm:$0xff]
    %v368 = vld [vmem:[%s0 + $0xb08] sm:$0xff]
    %v369 = vld [vmem:[%s0 + $0xb10] sm:$0xff]
    %v370 = vld [vmem:[%s0 + $0xb18] sm:$0xff]
    %v371 = vld [vmem:[%s0 + $0xb20] sm:$0xff]
    %v372 = vld [vmem:[%s0 + $0xb28] sm:$0xff]
    %v373 = vld [vmem:[%s0 + $0xb30] sm:$0xff]
    %v374 = vld [vmem:[%s0 + $0xb38] sm:$0xff]
    %v375 = vld [vmem:[%s0 + $0xb40] sm:$0xff]
    %v376 = vld [vmem:[%s0 + $0xb48] sm:$0xff]
    %v377 = vld [vmem:[%s0 + $0xb50] sm:$0xff]
    %v378 = vld [vmem:[%s0 + $0xb58] sm:$0xff]
    %v379 = vld [vmem:[%s0 + $0xb60] sm:$0xff]
    %v380 = vld [vmem:[%s0 + $0xb68] sm:$0xff]
    %v381 = vld [vmem:[%s0 + $0xb70] sm:$0xff]
    %v382 = vld [vmem:[%s0 + $0xb78] sm:$0xff]
    %v383 = vld [vmem:[%s0 + $0xb80] sm:$0xff]
    %v384 = vld [vmem:[%s0 + $0xb88] sm:$0xff]
    %v385 = vld [vmem:[%s0 + $0xb90] sm:$0xff]
    %v386 = vld [vmem:[%s0 + $0xb98] sm:$0xff]
    %v387 = vld [vmem:[%s0 + $0xba0] sm:$0xff]
    %v388 = vld [vmem:[%s0 + $0xba8] sm:$0xff]
    %v389 = vld [vmem:[%s0 + $0xbb0] sm:$0xff]
    %v390 = vld [vmem:[%s0 + $0xbb8] sm:$0xff]
    %v391 = vld [vmem:[%s0 + $0xbc0] sm:$0xff]
    %v392 = vld [vmem:[%s0 + $0xbc8] sm:$0xff]
    %v393 = vld [vmem:[%s0 + $0xbd0] sm:$0xff]
    %v394 = vld [vmem:[%s0 + $0xbd8] sm:$0xff]
    %v395 = vld [vmem:[%s0 + $0xbe0] sm:$0xff]
    %v396 = vld [vmem:[%s0 + $0xbe8] sm:$0xff]
    %v397 = vld [vmem:[%s0 + $0xbf0] sm:$0xff]
    %v398 = vld [vmem:[%s0 + $0xbf8] sm:$0xff]
    %v399 = vld [vmem:[%s0 + $0xc00] sm:$0xff]
    %v400 = vld [vmem:[%s0 + $0xc08] sm:$0xff]
    %v401 = vld [vmem:[%s0 + $0xc10] sm:$0xff]
    %v402 = vld [vmem:[%s0 + $0xc18] sm:$0xff]
    %v403 = vld [vmem:[%s0 + $0xc20] sm:$0xff]
    %v404 = vld [vmem:[%s0 + $0xc28] sm:$0xff]
    %v405 = vld [vmem:[%s0 + $0xc30] sm:$0xff]
    %v406 = vld [vmem:[%s0 + $0xc38] sm:$0xff]
    %v407 = vld [vmem:[%s0 + $0xc40] sm:$0xff]
    %v408 = vld [vmem:[%s0 + $0xc48] sm:$0xff]
    %v409 = vld [vmem:[%s0 + $0xc50] sm:$0xff]
    %v410 = vld [vmem:[%s0 + $0xc58] sm:$0xff]
    %v411 = vld [vmem:[%s0 + $0xc60] sm:$0xff]
    %v412 = vld [vmem:[%s0 + $0xc68] sm:$0xff]
    %v413 = vld [vmem:[%s0 + $0xc70] sm:$0xff]
    %v414 = vld [vmem:[%s0 + $0xc78] sm:$0xff]
    %v415 = vld [vmem:[%s0 + $0xc80] sm:$0xff]
    %v416 = vld [vmem:[%s0 + $0xc88] sm:$0xff]
    %v417 = vld [vmem:[%s0 + $0xc90] sm:$0xff]
    %v418 = vld [vmem:[%s0 + $0xc98] sm:$0xff]
    %v419 = vld [vmem:[%s0 + $0xca0] sm:$0xff]
    %v420 = vld [vmem:[%s0 + $0xca8] sm:$0xff]
    %v421 = vld [vmem:[%s0 + $0xcb0] sm:$0xff]
    %v422 = vld [vmem:[%s0 + $0xcb8] sm:$0xff]
    %v423 = vld [vmem:[%s0 + $0xcc0] sm:$0xff]
    %v424 = vld [vmem:[%s0 + $0xcc8] sm:$0xff]
    %v425 = vld [vmem:[%s0 + $0xcd0] sm:$0xff]
    %v426 = vld [vmem:[%s0 + $0xcd8] sm:$0xff]
    %v427 = vld [vmem:[%s0 + $0xce0] sm:$0xff]
    %v428 = vld [vmem:[%s0 + $0xce8] sm:$0xff]
    %v429 = vld [vmem:[%s0 + $0xcf0] sm:$0xff]
    %v430 = vld [vmem:[%s0 + $0xcf8] sm:$0xff]
    %v431 = vld [vmem:[%s0 + $0xd00] sm:$0xff]
    %v432 = vld [vmem:[%s0 + $0xd08] sm:$0xff]
    %v433 = vld [vmem:[%s0 + $0xd10] sm:$0xff]
    %v434 = vld [vmem:[%s0 + $0xd18] sm:$0xff]
    %v435 = vld [vmem:[%s0 + $0xd20] sm:$0xff]
    %v436 = vld [vmem:[%s0 + $0xd28] sm:$0xff]
    %v437 = vld [vmem:[%s0 + $0xd30] sm:$0xff]
    %v438 = vld [vmem:[%s0 + $0xd38] sm:$0xff]
    %v439 = vld [vmem:[%s0 + $0xd40] sm:$0xff]
    %v440 = vld [vmem:[%s0 + $0xd48] sm:$0xff]
    %v441 = vld [vmem:[%s0 + $0xd50] sm:$0xff]
    %v442 = vld [vmem:[%s0 + $0xd58] sm:$0xff]
    %v443 = vld [vmem:[%s0 + $0xd60] sm:$0xff]
    %v444 = vld [vmem:[%s0 + $0xd68] sm:$0xff]
    %v445 = vld [vmem:[%s0 + $0xd70] sm:$0xff]
    %v446 = vld [vmem:[%s0 + $0xd78] sm:$0xff]
    %v447 = vld [vmem:[%s1] sm:$0xff]
    %v448 = vld [vmem:[%s1 + $0x8] sm:$0xff]
    %v449 = vld [vmem:[%s1 + $0x10] sm:$0xff]
    %v450 = vld [vmem:[%s1 + $0x18] sm:$0xff]
    %v451 = vld [vmem:[%s1 + $0x20] sm:$0xff]
    %v452 = vld [vmem:[%s1 + $0x28] sm:$0xff]
    %v453 = vld [vmem:[%s1 + $0x30] sm:$0xff]
    %v454 = vld [vmem:[%s1 + $0x38] sm:$0xff]
    %v455 = vld [vmem:[%s1 + $0x40] sm:$0xff]
    %v456 = vld [vmem:[%s1 + $0x48] sm:$0xff]
    %v457 = vld [vmem:[%s1 + $0x50] sm:$0xff]
    %v458 = vld [vmem:[%s1 + $0x58] sm:$0xff]
    %v459 = vld [vmem:[%s1 + $0x60] sm:$0xff]
    %v460 = vld [vmem:[%s1 + $0x68] sm:$0xff]
    %v461 = vld [vmem:[%s1 + $0x70] sm:$0xff]
    %v462 = vld [vmem:[%s1 + $0x78] sm:$0xff]
    %v463 = vld [vmem:[%s1 + $0x80] sm:$0xff]
    %v464 = vld [vmem:[%s1 + $0x88] sm:$0xff]
    %v465 = vld [vmem:[%s1 + $0x90] sm:$0xff]
    %v466 = vld [vmem:[%s1 + $0x98] sm:$0xff]
    %v467 = vld [vmem:[%s1 + $0xa0] sm:$0xff]
    %v468 = vld [vmem:[%s1 + $0xa8] sm:$0xff]
    %v469 = vld [vmem:[%s1 + $0xb0] sm:$0xff]
    %v470 = vld [vmem:[%s1 + $0xb8] sm:$0xff]
    %v471 = vld [vmem:[%s1 + $0xc0] sm:$0xff]
    %v472 = vld [vmem:[%s1 + $0xc8] sm:$0xff]
    %v473 = vld [vmem:[%s1 + $0xd0] sm:$0xff]
    %v474 = vld [vmem:[%s1 + $0xd8] sm:$0xff]
    %v475 = vld [vmem:[%s1 + $0xe0] sm:$0xff]
    %v476 = vld [vmem:[%s1 + $0xe8] sm:$0xff]
    %v477 = vld [vmem:[%s1 + $0xf0] sm:$0xff]
    %v478 = vld [vmem:[%s1 + $0xf8] sm:$0xff]
    %v479 = vld [vmem:[%s1 + $0x100] sm:$0xff]
    %v480 = vld [vmem:[%s1 + $0x108] sm:$0xff]
    %v481 = vld [vmem:[%s1 + $0x110] sm:$0xff]
    %v482 = vld [vmem:[%s1 + $0x118] sm:$0xff]
    %v483 = vld [vmem:[%s1 + $0x120] sm:$0xff]
    %v484 = vld [vmem:[%s1 + $0x128] sm:$0xff]
    %v485 = vld [vmem:[%s1 + $0x130] sm:$0xff]
    %v486 = vld [vmem:[%s1 + $0x138] sm:$0xff]
    %v487 = vld [vmem:[%s1 + $0x140] sm:$0xff]
    %v488 = vld [vmem:[%s1 + $0x148] sm:$0xff]
    %v489 = vld [vmem:[%s1 + $0x150] sm:$0xff]
    %v490 = vld [vmem:[%s1 + $0x158] sm:$0xff]
    %v491 = vld [vmem:[%s1 + $0x160] sm:$0xff]
    %v492 = vld [vmem:[%s1 + $0x168] sm:$0xff]
    %v493 = vld [vmem:[%s1 + $0x170] sm:$0xff]
    %v494 = vld [vmem:[%s1 + $0x178] sm:$0xff]
    %v495 = vld [vmem:[%s2] sm:$0xff]
    %v496 = vld [vmem:[%s2 + $0x8] sm:$0xff]
    %v497 = vld [vmem:[%s2 + $0x10] sm:$0xff]
    %v498 = vld [vmem:[%s2 + $0x18] sm:$0xff]
    %v499 = vld [vmem:[%s2 + $0x20] sm:$0xff]
    %v500 = vld [vmem:[%s2 + $0x28] sm:$0xff]
    %v501 = vld [vmem:[%s2 + $0x30] sm:$0xff]
    %v502 = vld [vmem:[%s2 + $0x38] sm:$0xff]
    %v503 = vld [vmem:[%s2 + $0x40] sm:$0xff]
    %v504 = vld [vmem:[%s2 + $0x48] sm:$0xff]
    %v505 = vld [vmem:[%s2 + $0x50] sm:$0xff]
    %v506 = vld [vmem:[%s2 + $0x58] sm:$0xff]
    %v507 = vld [vmem:[%s2 + $0x60] sm:$0xff]
    %v508 = vld [vmem:[%s2 + $0x68] sm:$0xff]
    %v509 = vld [vmem:[%s2 + $0x70] sm:$0xff]
    %v510 = vld [vmem:[%s2 + $0x78] sm:$0xff]
    %v511 = vld [vmem:[%s2 + $0x80] sm:$0xff]
    %v512 = vld [vmem:[%s2 + $0x88] sm:$0xff]
    %v513 = vld [vmem:[%s2 + $0x90] sm:$0xff]
    %v514 = vld [vmem:[%s2 + $0x98] sm:$0xff]
    %v515 = vld [vmem:[%s2 + $0xa0] sm:$0xff]
    %v516 = vld [vmem:[%s2 + $0xa8] sm:$0xff]
    %v517 = vld [vmem:[%s2 + $0xb0] sm:$0xff]
    %v518 = vld [vmem:[%s2 + $0xb8] sm:$0xff]
    %v519 = vld [vmem:[%s2 + $0xc0] sm:$0xff]
    %v520 = vld [vmem:[%s2 + $0xc8] sm:$0xff]
    %v521 = vld [vmem:[%s2 + $0xd0] sm:$0xff]
    %v522 = vld [vmem:[%s2 + $0xd8] sm:$0xff]
    %v523 = vld [vmem:[%s2 + $0xe0] sm:$0xff]
    %v524 = vld [vmem:[%s2 + $0xe8] sm:$0xff]
    %v525 = vld [vmem:[%s2 + $0xf0] sm:$0xff]
    %v526 = vld [vmem:[%s2 + $0xf8] sm:$0xff]
    %v527 = vld [vmem:[%s2 + $0x100] sm:$0xff]
    %v528 = vld [vmem:[%s2 + $0x108] sm:$0xff]
    %v529 = vld [vmem:[%s2 + $0x110] sm:$0xff]
    %v530 = vld [vmem:[%s2 + $0x118] sm:$0xff]
    %v531 = vld [vmem:[%s2 + $0x120] sm:$0xff]
    %v532 = vld [vmem:[%s2 + $0x128] sm:$0xff]
    %v533 = vld [vmem:[%s2 + $0x130] sm:$0xff]
    %v534 = vld [vmem:[%s2 + $0x138] sm:$0xff]
    %v535 = vld [vmem:[%s2 + $0x140] sm:$0xff]
    %v536 = vld [vmem:[%s2 + $0x148] sm:$0xff]
    %v537 = vld [vmem:[%s2 + $0x150] sm:$0xff]
    %v538 = vld [vmem:[%s2 + $0x158] sm:$0xff]
    %v539 = vld [vmem:[%s2 + $0x160] sm:$0xff]
    %v540 = vld [vmem:[%s2 + $0x168] sm:$0xff]
    %v541 = vld [vmem:[%s2 + $0x170] sm:$0xff]
    %v542 = vld [vmem:[%s2 + $0x178] sm:$0xff]
    %v543 = vld [vmem:[%s2 + $0x180] sm:$0xff]
    %v544 = vld [vmem:[%s2 + $0x188] sm:$0xff]
    %v545 = vld [vmem:[%s2 + $0x190] sm:$0xff]
    %v546 = vld [vmem:[%s2 + $0x198] sm:$0xff]
    %v547 = vld [vmem:[%s2 + $0x1a0] sm:$0xff]
    %v548 = vld [vmem:[%s2 + $0x1a8] sm:$0xff]
    %v549 = vld [vmem:[%s2 + $0x1b0] sm:$0xff]
    %v550 = vld [vmem:[%s2 + $0x1b8] sm:$0xff]
    %v551 = vld [vmem:[%s2 + $0x1c0] sm:$0xff]
    %v552 = vld [vmem:[%s2 + $0x1c8] sm:$0xff]
    %v553 = vld [vmem:[%s2 + $0x1d0] sm:$0xff]
    %v554 = vld [vmem:[%s2 + $0x1d8] sm:$0xff]
    %v555 = vld [vmem:[%s2 + $0x1e0] sm:$0xff]
    %v556 = vld [vmem:[%s2 + $0x1e8] sm:$0xff]
    %v557 = vld [vmem:[%s2 + $0x1f0] sm:$0xff]
    %v558 = vld [vmem:[%s2 + $0x1f8] sm:$0xff]
    %v559 = vld [vmem:[%s2 + $0x200] sm:$0xff]
    %v560 = vld [vmem:[%s2 + $0x208] sm:$0xff]
    %v561 = vld [vmem:[%s2 + $0x210] sm:$0xff]
    %v562 = vld [vmem:[%s2 + $0x218] sm:$0xff]
    %v563 = vld [vmem:[%s2 + $0x220] sm:$0xff]
    %v564 = vld [vmem:[%s2 + $0x228] sm:$0xff]
    %v565 = vld [vmem:[%s2 + $0x230] sm:$0xff]
    %v566 = vld [vmem:[%s2 + $0x238] sm:$0xff]
    %v567 = vld [vmem:[%s2 + $0x240] sm:$0xff]
    %v568 = vld [vmem:[%s2 + $0x248] sm:$0xff]
    %v569 = vld [vmem:[%s2 + $0x250] sm:$0xff]
    %v570 = vld [vmem:[%s2 + $0x258] sm:$0xff]
    %v571 = vld [vmem:[%s2 + $0x260] sm:$0xff]
    %v572 = vld [vmem:[%s2 + $0x268] sm:$0xff]
    %v573 = vld [vmem:[%s2 + $0x270] sm:$0xff]
    %v574 = vld [vmem:[%s2 + $0x278] sm:$0xff]
    %v575 = vld [vmem:[%s2 + $0x280] sm:$0xff]
    %v576 = vld [vmem:[%s2 + $0x288] sm:$0xff]
    %v577 = vld [vmem:[%s2 + $0x290] sm:$0xff]
    %v578 = vld [vmem:[%s2 + $0x298] sm:$0xff]
    %v579 = vld [vmem:[%s2 + $0x2a0] sm:$0xff]
    %v580 = vld [vmem:[%s2 + $0x2a8] sm:$0xff]
    %v581 = vld [vmem:[%s2 + $0x2b0] sm:$0xff]
    %v582 = vld [vmem:[%s2 + $0x2b8] sm:$0xff]
    %v583 = vld [vmem:[%s2 + $0x2c0] sm:$0xff]
    %v584 = vld [vmem:[%s2 + $0x2c8] sm:$0xff]
    %v585 = vld [vmem:[%s2 + $0x2d0] sm:$0xff]
    %v586 = vld [vmem:[%s2 + $0x2d8] sm:$0xff]
    %v587 = vld [vmem:[%s2 + $0x2e0] sm:$0xff]
    %v588 = vld [vmem:[%s2 + $0x2e8] sm:$0xff]
    %v589 = vld [vmem:[%s2 + $0x2f0] sm:$0xff]
    %v590 = vld [vmem:[%s2 + $0x2f8] sm:$0xff]
    %v591 = vld [vmem:[%s2 + $0x300] sm:$0xff]
    %v592 = vld [vmem:[%s2 + $0x308] sm:$0xff]
    %v593 = vld [vmem:[%s2 + $0x310] sm:$0xff]
    %v594 = vld [vmem:[%s2 + $0x318] sm:$0xff]
    %v595 = vld [vmem:[%s2 + $0x320] sm:$0xff]
    %v596 = vld [vmem:[%s2 + $0x328] sm:$0xff]
    %v597 = vld [vmem:[%s2 + $0x330] sm:$0xff]
    %v598 = vld [vmem:[%s2 + $0x338] sm:$0xff]
    %v599 = vld [vmem:[%s2 + $0x340] sm:$0xff]
    %v600 = vld [vmem:[%s2 + $0x348] sm:$0xff]
    %v601 = vld [vmem:[%s2 + $0x350] sm:$0xff]
    %v602 = vld [vmem:[%s2 + $0x358] sm:$0xff]
    %v603 = vld [vmem:[%s2 + $0x360] sm:$0xff]
    %v604 = vld [vmem:[%s2 + $0x368] sm:$0xff]
    %v605 = vld [vmem:[%s2 + $0x370] sm:$0xff]
    %v606 = vld [vmem:[%s2 + $0x378] sm:$0xff]
    %v607 = vld [vmem:[%s2 + $0x380] sm:$0xff]
    %v608 = vld [vmem:[%s2 + $0x388] sm:$0xff]
    %v609 = vld [vmem:[%s2 + $0x390] sm:$0xff]
    %v610 = vld [vmem:[%s2 + $0x398] sm:$0xff]
    %v611 = vld [vmem:[%s2 + $0x3a0] sm:$0xff]
    %v612 = vld [vmem:[%s2 + $0x3a8] sm:$0xff]
    %v613 = vld [vmem:[%s2 + $0x3b0] sm:$0xff]
    %v614 = vld [vmem:[%s2 + $0x3b8] sm:$0xff]
    %v615 = vld [vmem:[%s2 + $0x3c0] sm:$0xff]
    %v616 = vld [vmem:[%s2 + $0x3c8] sm:$0xff]
    %v617 = vld [vmem:[%s2 + $0x3d0] sm:$0xff]
    %v618 = vld [vmem:[%s2 + $0x3d8] sm:$0xff]
    %v619 = vld [vmem:[%s2 + $0x3e0] sm:$0xff]
    %v620 = vld [vmem:[%s2 + $0x3e8] sm:$0xff]
    %v621 = vld [vmem:[%s2 + $0x3f0] sm:$0xff]
    %v622 = vld [vmem:[%s2 + $0x3f8] sm:$0xff]
    %v623 = vld [vmem:[%s2 + $0x400] sm:$0xff]
    %v624 = vld [vmem:[%s2 + $0x408] sm:$0xff]
    %v625 = vld [vmem:[%s2 + $0x410] sm:$0xff]
    %v626 = vld [vmem:[%s2 + $0x418] sm:$0xff]
    %v627 = vld [vmem:[%s2 + $0x420] sm:$0xff]
    %v628 = vld [vmem:[%s2 + $0x428] sm:$0xff]
    %v629 = vld [vmem:[%s2 + $0x430] sm:$0xff]
    %v630 = vld [vmem:[%s2 + $0x438] sm:$0xff]
    %v631 = vld [vmem:[%s2 + $0x440] sm:$0xff]
    %v632 = vld [vmem:[%s2 + $0x448] sm:$0xff]
    %v633 = vld [vmem:[%s2 + $0x450] sm:$0xff]
    %v634 = vld [vmem:[%s2 + $0x458] sm:$0xff]
    %v635 = vld [vmem:[%s2 + $0x460] sm:$0xff]
    %v636 = vld [vmem:[%s2 + $0x468] sm:$0xff]
    %v637 = vld [vmem:[%s2 + $0x470] sm:$0xff]
    %v638 = vld [vmem:[%s2 + $0x478] sm:$0xff]
    %639 = vmatprep.subr.mxu0 0.0
    %640 = vmatpush1.msra.mxu0 %v447
    %641 = vmatprep.subr.mxu0 0.0
    %642 = vmatpush1.msra.mxu0 %v448
    %643 = vmatprep.subr.mxu0 0.0
    %644 = vmatpush1.msra.mxu0 %v449
    %645 = vmatprep.subr.mxu0 0.0
    %646 = vmatpush1.msra.mxu0 %v450
    %647 = vmatprep.subr.mxu0 0.0
    %648 = vmatpush1.msra.mxu0 %v451
    %649 = vmatprep.subr.mxu0 0.0
    %650 = vmatpush1.msra.mxu0 %v452
    %651 = vmatprep.subr.mxu0 0.0
    %652 = vmatpush1.msra.mxu0 %v453
    %653 = vmatprep.subr.mxu0 0.0
    %654 = vmatpush1.msra.mxu0 %v454
    %655 = vmatprep.subr.mxu0 0.0
    %656 = vmatpush1.msra.mxu0 %v455
    %657 = vmatprep.subr.mxu0 0.0
    %658 = vmatpush1.msra.mxu0 %v456
    %659 = vmatprep.subr.mxu0 0.0
    %660 = vmatpush1.msra.mxu0 %v457
    %661 = vmatprep.subr.mxu0 0.0
    %662 = vmatpush1.msra.mxu0 %v458
    %663 = vmatprep.subr.mxu0 0.0
    %664 = vmatpush1.msra.mxu0 %v459
    %665 = vmatprep.subr.mxu0 0.0
    %666 = vmatpush1.msra.mxu0 %v460
    %667 = vmatprep.subr.mxu0 0.0
    %668 = vmatpush1.msra.mxu0 %v461
    %669 = vmatprep.subr.mxu0 0.0
    %670 = vmatpush1.msra.mxu0 %v462
    %671 = vmatprep.subr.mxu0 0.0
    %672 = vmatpush1.msra.mxu0 %v463
    %673 = vmatprep.subr.mxu0 0.0
    %674 = vmatpush1.msra.mxu0 %v464
    %675 = vmatprep.subr.mxu0 0.0
    %676 = vmatpush1.msra.mxu0 %v465
    %677 = vmatprep.subr.mxu0 0.0
    %678 = vmatpush1.msra.mxu0 %v466
    %679 = vmatprep.subr.mxu0 0.0
    %680 = vmatpush1.msra.mxu0 %v467
    %681 = vmatprep.subr.mxu0 0.0
    %682 = vmatpush1.msra.mxu0 %v468
    %683 = vmatprep.subr.mxu0 0.0
    %684 = vmatpush1.msra.mxu0 %v469
    %685 = vmatprep.subr.mxu0 0.0
    %686 = vmatpush1.msra.mxu0 %v470
    %687 = vmatprep.subr.mxu0 0.0
    %688 = vmatpush1.msra.mxu0 %v471
    %689 = vmatprep.subr.mxu0 0.0
    %690 = vmatpush1.msra.mxu0 %v472
    %691 = vmatprep.subr.mxu0 0.0
    %692 = vmatpush1.msra.mxu0 %v473
    %693 = vmatprep.subr.mxu0 0.0
    %694 = vmatpush1.msra.mxu0 %v474
    %695 = vmatprep.subr.mxu0 0.0
    %696 = vmatpush1.msra.mxu0 %v475
    %697 = vmatprep.subr.mxu0 0.0
    %698 = vmatpush1.msra.mxu0 %v476
    %699 = vmatprep.subr.mxu0 0.0
    %700 = vmatpush1.msra.mxu0 %v477
    %701 = vmatprep.subr.mxu0 0.0
    %702 = vmatpush1.msra.mxu0 %v478
    %703 = vmatprep.mubr.f32.mxu0 %v16
    %704 = vmatmul.mubr.f32.gmra.mrb[0].mxu0 %v15
    %v705 = vpop.f32.mrb[0].mxu0
    %v706 = vadd.f32 %v495, %v705
    %v707 = vpop.f32.mrb[0].mxu0
    %708 = vmatprep.mubr.f32.mxu0 %v19
    %709 = vmatmul.mubr.f32.gmra.mrb[0].mxu0 %v18
    %v710 = vpop.f32.mrb[0].mxu0
    %v711 = vadd.f32 %v496, %v710
    %v712 = vpop.f32.mrb[0].mxu0
    %713 = vmatprep.mubr.f32.mxu0 %v22
    %714 = vmatmul.mubr.f32.gmra.mrb[0].mxu0 %v21
    %v715 = vpop.f32.mrb[0].mxu0
    %v716 = vadd.f32 %v497, %v715
    %v717 = vpop.f32.mrb[0].mxu0
    %718 = vmatprep.mubr.f32.mxu0 %v25
    %719 = vmatmul.mubr.f32.gmra.mrb[0].mxu0 %v24
    %v720 = vpop.f32.mrb[0].mxu0
    %v721 = vadd.f32 %v498, %v720
    %v722 = vpop.f32.mrb[0].mxu0
    %723 = vmatprep.mubr.f32.mxu0 %v28
    %724 = vmatmul.mubr.f32.gmra.mrb[0].mxu0 %v27
    %v725 = vpop.f32.mrb[0].mxu0
    %v726 = vadd.f32 %v499, %v725
    %v727 = vpop.f32.mrb[0].mxu0
    %728 = vmatprep.mubr.f32.mxu0 %v31
    %729 = vmatmul.mubr.f32.gmra.mrb[0].mxu0 %v30
    %v730 = vpop.f32.mrb[0].mxu0
    %v731 = vadd.f32 %v500, %v730
    %v732 = vpop.f32.mrb[0].mxu0
    %733 = vmatprep.mubr.f32.mxu0 %v34
    %734 = vmatmul.mubr.f32.gmra.mrb[0].mxu0 %v33
    %v735 = vpop.f32.mrb[0].mxu0
    %v736 = vadd.f32 %v501, %v735
    %v737 = vpop.f32.mrb[0].mxu0
    %738 = vmatprep.mubr.f32.mxu0 %v37
    %739 = vmatmul.mubr.f32.gmra.mrb[0].mxu0 %v36
    %v740 = vpop.f32.mrb[0].mxu0
    %v741 = vadd.f32 %v502, %v740
    %v742 = vpop.f32.mrb[0].mxu0
    %743 = vmatprep.mubr.f32.mxu0 %v40
    %744 = vmatmul.mubr.f32.gmra.mrb[0].mxu0 %v39
    %v745 = vpop.f32.mrb[0].mxu0
    %v746 = vadd.f32 %v503, %v745
    %v747 = vpop.f32.mrb[0].mxu0
    %748 = vmatprep.mubr.f32.mxu0 %v43
    %749 = vmatmul.mubr.f32.gmra.mrb[0].mxu0 %v42
    %v750 = vpop.f32.mrb[0].mxu0
    %v751 = vadd.f32 %v504, %v750
    %v752 = vpop.f32.mrb[0].mxu0
    %753 = vmatprep.mubr.f32.mxu0 %v46
    %754 = vmatmul.mubr.f32.gmra.mrb[0].mxu0 %v45
    %v755 = vpop.f32.mrb[0].mxu0
    %v756 = vadd.f32 %v505, %v755
    %v757 = vpop.f32.mrb[0].mxu0
    %758 = vmatprep.mubr.f32.mxu0 %v49
    %759 = vmatmul.mubr.f32.gmra.mrb[0].mxu0 %v48
    %v760 = vpop.f32.mrb[0].mxu0
    %v761 = vadd.f32 %v506, %v760
    %v762 = vpop.f32.mrb[0].mxu0
    %763 = vmatprep.mubr.f32.mxu0 %v52
    %764 = vmatmul.mubr.f32.gmra.mrb[0].mxu0 %v51
    %v765 = vpop.f32.mrb[0].mxu0
    %v766 = vadd.f32 %v507, %v765
    %v767 = vpop.f32.mrb[0].mxu0
    %768 = vmatprep.mubr.f32.mxu0 %v55
    %769 = vmatmul.mubr.f32.gmra.mrb[0].mxu0 %v54
    %v770 = vpop.f32.mrb[0].mxu0
    %v771 = vadd.f32 %v508, %v770
    %v772 = vpop.f32.mrb[0].mxu0
    %773 = vmatprep.mubr.f32.mxu0 %v58
    %774 = vmatmul.mubr.f32.gmra.mrb[0].mxu0 %v57
    %v775 = vpop.f32.mrb[0].mxu0
    %v776 = vadd.f32 %v509, %v775
    %v777 = vpop.f32.mrb[0].mxu0
    %778 = vmatprep.mubr.f32.mxu0 %v61
    %779 = vmatmul.mubr.f32.gmra.mrb[0].mxu0 %v60
    %v780 = vpop.f32.mrb[0].mxu0
    %v781 = vadd.f32 %v510, %v780
    %v782 = vpop.f32.mrb[0].mxu0
    %783 = vmatprep.mubr.f32.mxu0 %v64
    %784 = vmatmul.mubr.f32.gmra.mrb[0].mxu0 %v63
    %v785 = vpop.f32.mrb[0].mxu0
    %v786 = vadd.f32 %v511, %v785
    %v787 = vpop.f32.mrb[0].mxu0
    %788 = vmatprep.mubr.f32.mxu0 %v67
    %789 = vmatmul.mubr.f32.gmra.mrb[0].mxu0 %v66
    %v790 = vpop.f32.mrb[0].mxu0
    %v791 = vadd.f32 %v512, %v790
    %v792 = vpop.f32.mrb[0].mxu0
    %793 = vmatprep.mubr.f32.mxu0 %v70
    %794 = vmatmul.mubr.f32.gmra.mrb[0].mxu0 %v69
    %v795 = vpop.f32.mrb[0].mxu0
    %v796 = vadd.f32 %v513, %v795
    %v797 = vpop.f32.mrb[0].mxu0
    %798 = vmatprep.mubr.f32.mxu0 %v73
    %799 = vmatmul.mubr.f32.gmra.mrb[0].mxu0 %v72
    %v800 = vpop.f32.mrb[0].mxu0
    %v801 = vadd.f32 %v514, %v800
    %v802 = vpop.f32.mrb[0].mxu0
    %803 = vmatprep.mubr.f32.mxu0 %v76
    %804 = vmatmul.mubr.f32.gmra.mrb[0].mxu0 %v75
    %v805 = vpop.f32.mrb[0].mxu0
    %v806 = vadd.f32 %v515, %v805
    %v807 = vpop.f32.mrb[0].mxu0
    %808 = vmatprep.mubr.f32.mxu0 %v79
    %809 = vmatmul.mubr.f32.gmra.mrb[0].mxu0 %v78
    %v810 = vpop.f32.mrb[0].mxu0
    %v811 = vadd.f32 %v516, %v810
    %v812 = vpop.f32.mrb[0].mxu0
    %813 = vmatprep.mubr.f32.mxu0 %v82
    %814 = vmatmul.mubr.f32.gmra.mrb[0].mxu0 %v81
    %v815 = vpop.f32.mrb[0].mxu0
    %v816 = vadd.f32 %v517, %v815
    %v817 = vpop.f32.mrb[0].mxu0
    %818 = vmatprep.mubr.f32.mxu0 %v85
    %819 = vmatmul.mubr.f32.gmra.mrb[0].mxu0 %v84
    %v820 = vpop.f32.mrb[0].mxu0
    %v821 = vadd.f32 %v518, %v820
    %v822 = vpop.f32.mrb[0].mxu0
    %823 = vmatprep.mubr.f32.mxu0 %v88
    %824 = vmatmul.mubr.f32.gmra.mrb[0].mxu0 %v87
    %v825 = vpop.f32.mrb[0].mxu0
    %v826 = vadd.f32 %v519, %v825
    %v827 = vpop.f32.mrb[0].mxu0
    %828 = vmatprep.mubr.f32.mxu0 %v91
    %829 = vmatmul.mubr.f32.gmra.mrb[0].mxu0 %v90
    %v830 = vpop.f32.mrb[0].mxu0
    %v831 = vadd.f32 %v520, %v830
    %v832 = vpop.f32.mrb[0].mxu0
    %833 = vmatprep.mubr.f32.mxu0 %v94
    %834 = vmatmul.mubr.f32.gmra.mrb[0].mxu0 %v93
    %v835 = vpop.f32.mrb[0].mxu0
    %v836 = vadd.f32 %v521, %v835
    %v837 = vpop.f32.mrb[0].mxu0
    %838 = vmatprep.mubr.f32.mxu0 %v97
    %839 = vmatmul.mubr.f32.gmra.mrb[0].mxu0 %v96
    %v840 = vpop.f32.mrb[0].mxu0
    %v841 = vadd.f32 %v522, %v840
    %v842 = vpop.f32.mrb[0].mxu0
    %843 = vmatprep.mubr.f32.mxu0 %v100
    %844 = vmatmul.mubr.f32.gmra.mrb[0].mxu0 %v99
    %v845 = vpop.f32.mrb[0].mxu0
    %v846 = vadd.f32 %v523, %v845
    %v847 = vpop.f32.mrb[0].mxu0
    %848 = vmatprep.mubr.f32.mxu0 %v103
    %849 = vmatmul.mubr.f32.gmra.mrb[0].mxu0 %v102
    %v850 = vpop.f32.mrb[0].mxu0
    %v851 = vadd.f32 %v524, %v850
    %v852 = vpop.f32.mrb[0].mxu0
    %853 = vmatprep.mubr.f32.mxu0 %v106
    %854 = vmatmul.mubr.f32.gmra.mrb[0].mxu0 %v105
    %v855 = vpop.f32.mrb[0].mxu0
    %v856 = vadd.f32 %v525, %v855
    %v857 = vpop.f32.mrb[0].mxu0
    %858 = vmatprep.mubr.f32.mxu0 %v109
    %859 = vmatmul.mubr.f32.gmra.mrb[0].mxu0 %v108
    %v860 = vpop.f32.mrb[0].mxu0
    %v861 = vadd.f32 %v526, %v860
    %v862 = vpop.f32.mrb[0].mxu0
    %863 = vmatprep.mubr.f32.mxu0 %v112
    %864 = vmatmul.mubr.f32.gmra.mrb[0].mxu0 %v111
    %v865 = vpop.f32.mrb[0].mxu0
    %v866 = vadd.f32 %v527, %v865
    %v867 = vpop.f32.mrb[0].mxu0
    %868 = vmatprep.mubr.f32.mxu0 %v115
    %869 = vmatmul.mubr.f32.gmra.mrb[0].mxu0 %v114
    %v870 = vpop.f32.mrb[0].mxu0
    %v871 = vadd.f32 %v528, %v870
    %v872 = vpop.f32.mrb[0].mxu0
    %873 = vmatprep.mubr.f32.mxu0 %v118
    %874 = vmatmul.mubr.f32.gmra.mrb[0].mxu0 %v117
    %v875 = vpop.f32.mrb[0].mxu0
    %v876 = vadd.f32 %v529, %v875
    %v877 = vpop.f32.mrb[0].mxu0
    %878 = vmatprep.mubr.f32.mxu0 %v121
    %879 = vmatmul.mubr.f32.gmra.mrb[0].mxu0 %v120
    %v880 = vpop.f32.mrb[0].mxu0
    %v881 = vadd.f32 %v530, %v880
    %v882 = vpop.f32.mrb[0].mxu0
    %883 = vmatprep.mubr.f32.mxu0 %v124
    %884 = vmatmul.mubr.f32.gmra.mrb[0].mxu0 %v123
    %v885 = vpop.f32.mrb[0].mxu0
    %v886 = vadd.f32 %v531, %v885
    %v887 = vpop.f32.mrb[0].mxu0
    %888 = vmatprep.mubr.f32.mxu0 %v127
    %889 = vmatmul.mubr.f32.gmra.mrb[0].mxu0 %v126
    %v890 = vpop.f32.mrb[0].mxu0
    %v891 = vadd.f32 %v532, %v890
    %v892 = vpop.f32.mrb[0].mxu0
    %893 = vmatprep.mubr.f32.mxu0 %v130
    %894 = vmatmul.mubr.f32.gmra.mrb[0].mxu0 %v129
    %v895 = vpop.f32.mrb[0].mxu0
    %v896 = vadd.f32 %v533, %v895
    %v897 = vpop.f32.mrb[0].mxu0
    %898 = vmatprep.mubr.f32.mxu0 %v133
    %899 = vmatmul.mubr.f32.gmra.mrb[0].mxu0 %v132
    %v900 = vpop.f32.mrb[0].mxu0
    %v901 = vadd.f32 %v534, %v900
    %v902 = vpop.f32.mrb[0].mxu0
    %903 = vmatprep.mubr.f32.mxu0 %v136
    %904 = vmatmul.mubr.f32.gmra.mrb[0].mxu0 %v135
    %v905 = vpop.f32.mrb[0].mxu0
    %v906 = vadd.f32 %v535, %v905
    %v907 = vpop.f32.mrb[0].mxu0
    %908 = vmatprep.mubr.f32.mxu0 %v139
    %909 = vmatmul.mubr.f32.gmra.mrb[0].mxu0 %v138
    %v910 = vpop.f32.mrb[0].mxu0
    %v911 = vadd.f32 %v536, %v910
    %v912 = vpop.f32.mrb[0].mxu0
    %913 = vmatprep.mubr.f32.mxu0 %v142
    %914 = vmatmul.mubr.f32.gmra.mrb[0].mxu0 %v141
    %v915 = vpop.f32.mrb[0].mxu0
    %v916 = vadd.f32 %v537, %v915
    %v917 = vpop.f32.mrb[0].mxu0
    %918 = vmatprep.mubr.f32.mxu0 %v145
    %919 = vmatmul.mubr.f32.gmra.mrb[0].mxu0 %v144
    %v920 = vpop.f32.mrb[0].mxu0
    %v921 = vadd.f32 %v538, %v920
    %v922 = vpop.f32.mrb[0].mxu0
    %923 = vmatprep.mubr.f32.mxu0 %v148
    %924 = vmatmul.mubr.f32.gmra.mrb[0].mxu0 %v147
    %v925 = vpop.f32.mrb[0].mxu0
    %v926 = vadd.f32 %v539, %v925
    %v927 = vpop.f32.mrb[0].mxu0
    %928 = vmatprep.mubr.f32.mxu0 %v151
    %929 = vmatmul.mubr.f32.gmra.mrb[0].mxu0 %v150
    %v930 = vpop.f32.mrb[0].mxu0
    %v931 = vadd.f32 %v540, %v930
    %v932 = vpop.f32.mrb[0].mxu0
    %933 = vmatprep.mubr.f32.mxu0 %v154
    %934 = vmatmul.mubr.f32.gmra.mrb[0].mxu0 %v153
    %v935 = vpop.f32.mrb[0].mxu0
    %v936 = vadd.f32 %v541, %v935
    %v937 = vpop.f32.mrb[0].mxu0
    %938 = vmatprep.mubr.f32.mxu0 %v157
    %939 = vmatmul.mubr.f32.gmra.mrb[0].mxu0 %v156
    %v940 = vpop.f32.mrb[0].mxu0
    %v941 = vadd.f32 %v542, %v940
    %v942 = vpop.f32.mrb[0].mxu0
    %943 = vmatprep.mubr.f32.mxu0 %v160
    %944 = vmatmul.mubr.f32.gmra.mrb[0].mxu0 %v159
    %v945 = vpop.f32.mrb[0].mxu0
    %v946 = vadd.f32 %v543, %v945
    %v947 = vpop.f32.mrb[0].mxu0
    %948 = vmatprep.mubr.f32.mxu0 %v163
    %949 = vmatmul.mubr.f32.gmra.mrb[0].mxu0 %v162
    %v950 = vpop.f32.mrb[0].mxu0
    %v951 = vadd.f32 %v544, %v950
    %v952 = vpop.f32.mrb[0].mxu0
    %953 = vmatprep.mubr.f32.mxu0 %v166
    %954 = vmatmul.mubr.f32.gmra.mrb[0].mxu0 %v165
    %v955 = vpop.f32.mrb[0].mxu0
    %v956 = vadd.f32 %v545, %v955
    %v957 = vpop.f32.mrb[0].mxu0
    %958 = vmatprep.mubr.f32.mxu0 %v169
    %959 = vmatmul.mubr.f32.gmra.mrb[0].mxu0 %v168
    %v960 = vpop.f32.mrb[0].mxu0
    %v961 = vadd.f32 %v546, %v960
    %v962 = vpop.f32.mrb[0].mxu0
    %963 = vmatprep.mubr.f32.mxu0 %v172
    %964 = vmatmul.mubr.f32.gmra.mrb[0].mxu0 %v171
    %v965 = vpop.f32.mrb[0].mxu0
    %v966 = vadd.f32 %v547, %v965
    %v967 = vpop.f32.mrb[0].mxu0
    %968 = vmatprep.mubr.f32.mxu0 %v175
    %969 = vmatmul.mubr.f32.gmra.mrb[0].mxu0 %v174
    %v970 = vpop.f32.mrb[0].mxu0
    %v971 = vadd.f32 %v548, %v970
    %v972 = vpop.f32.mrb[0].mxu0
    %973 = vmatprep.mubr.f32.mxu0 %v178
    %974 = vmatmul.mubr.f32.gmra.mrb[0].mxu0 %v177
    %v975 = vpop.f32.mrb[0].mxu0
    %v976 = vadd.f32 %v549, %v975
    %v977 = vpop.f32.mrb[0].mxu0
    %978 = vmatprep.mubr.f32.mxu0 %v181
    %979 = vmatmul.mubr.f32.gmra.mrb[0].mxu0 %v180
    %v980 = vpop.f32.mrb[0].mxu0
    %v981 = vadd.f32 %v550, %v980
    %v982 = vpop.f32.mrb[0].mxu0
    %983 = vmatprep.mubr.f32.mxu0 %v184
    %984 = vmatmul.mubr.f32.gmra.mrb[0].mxu0 %v183
    %v985 = vpop.f32.mrb[0].mxu0
    %v986 = vadd.f32 %v551, %v985
    %v987 = vpop.f32.mrb[0].mxu0
    %988 = vmatprep.mubr.f32.mxu0 %v187
    %989 = vmatmul.mubr.f32.gmra.mrb[0].mxu0 %v186
    %v990 = vpop.f32.mrb[0].mxu0
    %v991 = vadd.f32 %v552, %v990
    %v992 = vpop.f32.mrb[0].mxu0
    %993 = vmatprep.mubr.f32.mxu0 %v190
    %994 = vmatmul.mubr.f32.gmra.mrb[0].mxu0 %v189
    %v995 = vpop.f32.mrb[0].mxu0
    %v996 = vadd.f32 %v553, %v995
    %v997 = vpop.f32.mrb[0].mxu0
    %998 = vmatprep.mubr.f32.mxu0 %v193
    %999 = vmatmul.mubr.f32.gmra.mrb[0].mxu0 %v192
    %v1000 = vpop.f32.mrb[0].mxu0
    %v1001 = vadd.f32 %v554, %v1000
    %v1002 = vpop.f32.mrb[0].mxu0
    %1003 = vmatprep.mubr.f32.mxu0 %v196
    %1004 = vmatmul.mubr.f32.gmra.mrb[0].mxu0 %v195
    %v1005 = vpop.f32.mrb[0].mxu0
    %v1006 = vadd.f32 %v555, %v1005
    %v1007 = vpop.f32.mrb[0].mxu0
    %1008 = vmatprep.mubr.f32.mxu0 %v199
    %1009 = vmatmul.mubr.f32.gmra.mrb[0].mxu0 %v198
    %v1010 = vpop.f32.mrb[0].mxu0
    %v1011 = vadd.f32 %v556, %v1010
    %v1012 = vpop.f32.mrb[0].mxu0
    %1013 = vmatprep.mubr.f32.mxu0 %v202
    %1014 = vmatmul.mubr.f32.gmra.mrb[0].mxu0 %v201
    %v1015 = vpop.f32.mrb[0].mxu0
    %v1016 = vadd.f32 %v557, %v1015
    %v1017 = vpop.f32.mrb[0].mxu0
    %1018 = vmatprep.mubr.f32.mxu0 %v205
    %1019 = vmatmul.mubr.f32.gmra.mrb[0].mxu0 %v204
    %v1020 = vpop.f32.mrb[0].mxu0
    %v1021 = vadd.f32 %v558, %v1020
    %v1022 = vpop.f32.mrb[0].mxu0
    %1023 = vmatprep.mubr.f32.mxu0 %v208
    %1024 = vmatmul.mubr.f32.gmra.mrb[0].mxu0 %v207
    %v1025 = vpop.f32.mrb[0].mxu0
    %v1026 = vadd.f32 %v559, %v1025
    %v1027 = vpop.f32.mrb[0].mxu0
    %1028 = vmatprep.mubr.f32.mxu0 %v211
    %1029 = vmatmul.mubr.f32.gmra.mrb[0].mxu0 %v210
    %v1030 = vpop.f32.mrb[0].mxu0
    %v1031 = vadd.f32 %v560, %v1030
    %v1032 = vpop.f32.mrb[0].mxu0
    %1033 = vmatprep.mubr.f32.mxu0 %v214
    %1034 = vmatmul.mubr.f32.gmra.mrb[0].mxu0 %v213
    %v1035 = vpop.f32.mrb[0].mxu0
    %v1036 = vadd.f32 %v561, %v1035
    %v1037 = vpop.f32.mrb[0].mxu0
    %1038 = vmatprep.mubr.f32.mxu0 %v217
    %1039 = vmatmul.mubr.f32.gmra.mrb[0].mxu0 %v216
    %v1040 = vpop.f32.mrb[0].mxu0
    %v1041 = vadd.f32 %v562, %v1040
    %v1042 = vpop.f32.mrb[0].mxu0
    %1043 = vmatprep.mubr.f32.mxu0 %v220
    %1044 = vmatmul.mubr.f32.gmra.mrb[0].mxu0 %v219
    %v1045 = vpop.f32.mrb[0].mxu0
    %v1046 = vadd.f32 %v563, %v1045
    %v1047 = vpop.f32.mrb[0].mxu0
    %1048 = vmatprep.mubr.f32.mxu0 %v223
    %1049 = vmatmul.mubr.f32.gmra.mrb[0].mxu0 %v222
    %v1050 = vpop.f32.mrb[0].mxu0
    %v1051 = vadd.f32 %v564, %v1050
    %v1052 = vpop.f32.mrb[0].mxu0
    %1053 = vmatprep.mubr.f32.mxu0 %v226
    %1054 = vmatmul.mubr.f32.gmra.mrb[0].mxu0 %v225
    %v1055 = vpop.f32.mrb[0].mxu0
    %v1056 = vadd.f32 %v565, %v1055
    %v1057 = vpop.f32.mrb[0].mxu0
    %1058 = vmatprep.mubr.f32.mxu0 %v229
    %1059 = vmatmul.mubr.f32.gmra.mrb[0].mxu0 %v228
    %v1060 = vpop.f32.mrb[0].mxu0
    %v1061 = vadd.f32 %v566, %v1060
    %v1062 = vpop.f32.mrb[0].mxu0
    %1063 = vmatprep.mubr.f32.mxu0 %v232
    %1064 = vmatmul.mubr.f32.gmra.mrb[0].mxu0 %v231
    %v1065 = vpop.f32.mrb[0].mxu0
    %v1066 = vadd.f32 %v567, %v1065
    %v1067 = vpop.f32.mrb[0].mxu0
    %1068 = vmatprep.mubr.f32.mxu0 %v235
    %1069 = vmatmul.mubr.f32.gmra.mrb[0].mxu0 %v234
    %v1070 = vpop.f32.mrb[0].mxu0
    %v1071 = vadd.f32 %v568, %v1070
    %v1072 = vpop.f32.mrb[0].mxu0
    %1073 = vmatprep.mubr.f32.mxu0 %v238
    %1074 = vmatmul.mubr.f32.gmra.mrb[0].mxu0 %v237
    %v1075 = vpop.f32.mrb[0].mxu0
    %v1076 = vadd.f32 %v569, %v1075
    %v1077 = vpop.f32.mrb[0].mxu0
    %1078 = vmatprep.mubr.f32.mxu0 %v241
    %1079 = vmatmul.mubr.f32.gmra.mrb[0].mxu0 %v240
    %v1080 = vpop.f32.mrb[0].mxu0
    %v1081 = vadd.f32 %v570, %v1080
    %v1082 = vpop.f32.mrb[0].mxu0
    %1083 = vmatprep.mubr.f32.mxu0 %v244
    %1084 = vmatmul.mubr.f32.gmra.mrb[0].mxu0 %v243
    %v1085 = vpop.f32.mrb[0].mxu0
    %v1086 = vadd.f32 %v571, %v1085
    %v1087 = vpop.f32.mrb[0].mxu0
    %1088 = vmatprep.mubr.f32.mxu0 %v247
    %1089 = vmatmul.mubr.f32.gmra.mrb[0].mxu0 %v246
    %v1090 = vpop.f32.mrb[0].mxu0
    %v1091 = vadd.f32 %v572, %v1090
    %v1092 = vpop.f32.mrb[0].mxu0
    %1093 = vmatprep.mubr.f32.mxu0 %v250
    %1094 = vmatmul.mubr.f32.gmra.mrb[0].mxu0 %v249
    %v1095 = vpop.f32.mrb[0].mxu0
    %v1096 = vadd.f32 %v573, %v1095
    %v1097 = vpop.f32.mrb[0].mxu0
    %1098 = vmatprep.mubr.f32.mxu0 %v253
    %1099 = vmatmul.mubr.f32.gmra.mrb[0].mxu0 %v252
    %v1100 = vpop.f32.mrb[0].mxu0
    %v1101 = vadd.f32 %v574, %v1100
    %v1102 = vpop.f32.mrb[0].mxu0
    %1103 = vmatprep.mubr.f32.mxu0 %v256
    %1104 = vmatmul.mubr.f32.gmra.mrb[0].mxu0 %v255
    %v1105 = vpop.f32.mrb[0].mxu0
    %v1106 = vadd.f32 %v575, %v1105
    %v1107 = vpop.f32.mrb[0].mxu0
    %1108 = vmatprep.mubr.f32.mxu0 %v259
    %1109 = vmatmul.mubr.f32.gmra.mrb[0].mxu0 %v258
    %v1110 = vpop.f32.mrb[0].mxu0
    %v1111 = vadd.f32 %v576, %v1110
    %v1112 = vpop.f32.mrb[0].mxu0
    %1113 = vmatprep.mubr.f32.mxu0 %v262
    %1114 = vmatmul.mubr.f32.gmra.mrb[0].mxu0 %v261
    %v1115 = vpop.f32.mrb[0].mxu0
    %v1116 = vadd.f32 %v577, %v1115
    %v1117 = vpop.f32.mrb[0].mxu0
    %1118 = vmatprep.mubr.f32.mxu0 %v265
    %1119 = vmatmul.mubr.f32.gmra.mrb[0].mxu0 %v264
    %v1120 = vpop.f32.mrb[0].mxu0
    %v1121 = vadd.f32 %v578, %v1120
    %v1122 = vpop.f32.mrb[0].mxu0
    %1123 = vmatprep.mubr.f32.mxu0 %v268
    %1124 = vmatmul.mubr.f32.gmra.mrb[0].mxu0 %v267
    %v1125 = vpop.f32.mrb[0].mxu0
    %v1126 = vadd.f32 %v579, %v1125
    %v1127 = vpop.f32.mrb[0].mxu0
    %1128 = vmatprep.mubr.f32.mxu0 %v271
    %1129 = vmatmul.mubr.f32.gmra.mrb[0].mxu0 %v270
    %v1130 = vpop.f32.mrb[0].mxu0
    %v1131 = vadd.f32 %v580, %v1130
    %v1132 = vpop.f32.mrb[0].mxu0
    %1133 = vmatprep.mubr.f32.mxu0 %v274
    %1134 = vmatmul.mubr.f32.gmra.mrb[0].mxu0 %v273
    %v1135 = vpop.f32.mrb[0].mxu0
    %v1136 = vadd.f32 %v581, %v1135
    %v1137 = vpop.f32.mrb[0].mxu0
    %1138 = vmatprep.mubr.f32.mxu0 %v277
    %1139 = vmatmul.mubr.f32.gmra.mrb[0].mxu0 %v276
    %v1140 = vpop.f32.mrb[0].mxu0
    %v1141 = vadd.f32 %v582, %v1140
    %v1142 = vpop.f32.mrb[0].mxu0
    %1143 = vmatprep.mubr.f32.mxu0 %v280
    %1144 = vmatmul.mubr.f32.gmra.mrb[0].mxu0 %v279
    %v1145 = vpop.f32.mrb[0].mxu0
    %v1146 = vadd.f32 %v583, %v1145
    %v1147 = vpop.f32.mrb[0].mxu0
    %1148 = vmatprep.mubr.f32.mxu0 %v283
    %1149 = vmatmul.mubr.f32.gmra.mrb[0].mxu0 %v282
    %v1150 = vpop.f32.mrb[0].mxu0
    %v1151 = vadd.f32 %v584, %v1150
    %v1152 = vpop.f32.mrb[0].mxu0
    %1153 = vmatprep.mubr.f32.mxu0 %v286
    %1154 = vmatmul.mubr.f32.gmra.mrb[0].mxu0 %v285
    %v1155 = vpop.f32.mrb[0].mxu0
    %v1156 = vadd.f32 %v585, %v1155
    %v1157 = vpop.f32.mrb[0].mxu0
    %1158 = vmatprep.mubr.f32.mxu0 %v289
    %1159 = vmatmul.mubr.f32.gmra.mrb[0].mxu0 %v288
    %v1160 = vpop.f32.mrb[0].mxu0
    %v1161 = vadd.f32 %v586, %v1160
    %v1162 = vpop.f32.mrb[0].mxu0
    %1163 = vmatprep.mubr.f32.mxu0 %v292
    %1164 = vmatmul.mubr.f32.gmra.mrb[0].mxu0 %v291
    %v1165 = vpop.f32.mrb[0].mxu0
    %v1166 = vadd.f32 %v587, %v1165
    %v1167 = vpop.f32.mrb[0].mxu0
    %1168 = vmatprep.mubr.f32.mxu0 %v295
    %1169 = vmatmul.mubr.f32.gmra.mrb[0].mxu0 %v294
    %v1170 = vpop.f32.mrb[0].mxu0
    %v1171 = vadd.f32 %v588, %v1170
    %v1172 = vpop.f32.mrb[0].mxu0
    %1173 = vmatprep.mubr.f32.mxu0 %v298
    %1174 = vmatmul.mubr.f32.gmra.mrb[0].mxu0 %v297
    %v1175 = vpop.f32.mrb[0].mxu0
    %v1176 = vadd.f32 %v589, %v1175
    %v1177 = vpop.f32.mrb[0].mxu0
    %1178 = vmatprep.mubr.f32.mxu0 %v301
    %1179 = vmatmul.mubr.f32.gmra.mrb[0].mxu0 %v300
    %v1180 = vpop.f32.mrb[0].mxu0
    %v1181 = vadd.f32 %v590, %v1180
    %v1182 = vpop.f32.mrb[0].mxu0
    %1183 = vmatprep.mubr.f32.mxu0 %v304
    %1184 = vmatmul.mubr.f32.gmra.mrb[0].mxu0 %v303
    %v1185 = vpop.f32.mrb[0].mxu0
    %v1186 = vadd.f32 %v591, %v1185
    %v1187 = vpop.f32.mrb[0].mxu0
    %1188 = vmatprep.mubr.f32.mxu0 %v307
    %1189 = vmatmul.mubr.f32.gmra.mrb[0].mxu0 %v306
    %v1190 = vpop.f32.mrb[0].mxu0
    %v1191 = vadd.f32 %v592, %v1190
    %v1192 = vpop.f32.mrb[0].mxu0
    %1193 = vmatprep.mubr.f32.mxu0 %v310
    %1194 = vmatmul.mubr.f32.gmra.mrb[0].mxu0 %v309
    %v1195 = vpop.f32.mrb[0].mxu0
    %v1196 = vadd.f32 %v593, %v1195
    %v1197 = vpop.f32.mrb[0].mxu0
    %1198 = vmatprep.mubr.f32.mxu0 %v313
    %1199 = vmatmul.mubr.f32.gmra.mrb[0].mxu0 %v312
    %v1200 = vpop.f32.mrb[0].mxu0
    %v1201 = vadd.f32 %v594, %v1200
    %v1202 = vpop.f32.mrb[0].mxu0
    %1203 = vmatprep.mubr.f32.mxu0 %v316
    %1204 = vmatmul.mubr.f32.gmra.mrb[0].mxu0 %v315
    %v1205 = vpop.f32.mrb[0].mxu0
    %v1206 = vadd.f32 %v595, %v1205
    %v1207 = vpop.f32.mrb[0].mxu0
    %1208 = vmatprep.mubr.f32.mxu0 %v319
    %1209 = vmatmul.mubr.f32.gmra.mrb[0].mxu0 %v318
    %v1210 = vpop.f32.mrb[0].mxu0
    %v1211 = vadd.f32 %v596, %v1210
    %v1212 = vpop.f32.mrb[0].mxu0
    %1213 = vmatprep.mubr.f32.mxu0 %v322
    %1214 = vmatmul.mubr.f32.gmra.mrb[0].mxu0 %v321
    %v1215 = vpop.f32.mrb[0].mxu0
    %v1216 = vadd.f32 %v597, %v1215
    %v1217 = vpop.f32.mrb[0].mxu0
    %1218 = vmatprep.mubr.f32.mxu0 %v325
    %1219 = vmatmul.mubr.f32.gmra.mrb[0].mxu0 %v324
    %v1220 = vpop.f32.mrb[0].mxu0
    %v1221 = vadd.f32 %v598, %v1220
    %v1222 = vpop.f32.mrb[0].mxu0
    %1223 = vmatprep.mubr.f32.mxu0 %v328
    %1224 = vmatmul.mubr.f32.gmra.mrb[0].mxu0 %v327
    %v1225 = vpop.f32.mrb[0].mxu0
    %v1226 = vadd.f32 %v599, %v1225
    %v1227 = vpop.f32.mrb[0].mxu0
    %1228 = vmatprep.mubr.f32.mxu0 %v331
    %1229 = vmatmul.mubr.f32.gmra.mrb[0].mxu0 %v330
    %v1230 = vpop.f32.mrb[0].mxu0
    %v1231 = vadd.f32 %v600, %v1230
    %v1232 = vpop.f32.mrb[0].mxu0
    %1233 = vmatprep.mubr.f32.mxu0 %v334
    %1234 = vmatmul.mubr.f32.gmra.mrb[0].mxu0 %v333
    %v1235 = vpop.f32.mrb[0].mxu0
    %v1236 = vadd.f32 %v601, %v1235
    %v1237 = vpop.f32.mrb[0].mxu0
    %1238 = vmatprep.mubr.f32.mxu0 %v337
    %1239 = vmatmul.mubr.f32.gmra.mrb[0].mxu0 %v336
    %v1240 = vpop.f32.mrb[0].mxu0
    %v1241 = vadd.f32 %v602, %v1240
    %v1242 = vpop.f32.mrb[0].mxu0
    %1243 = vmatprep.mubr.f32.mxu0 %v340
    %1244 = vmatmul.mubr.f32.gmra.mrb[0].mxu0 %v339
    %v1245 = vpop.f32.mrb[0].mxu0
    %v1246 = vadd.f32 %v603, %v1245
    %v1247 = vpop.f32.mrb[0].mxu0
    %1248 = vmatprep.mubr.f32.mxu0 %v343
    %1249 = vmatmul.mubr.f32.gmra.mrb[0].mxu0 %v342
    %v1250 = vpop.f32.mrb[0].mxu0
    %v1251 = vadd.f32 %v604, %v1250
    %v1252 = vpop.f32.mrb[0].mxu0
    %1253 = vmatprep.mubr.f32.mxu0 %v346
    %1254 = vmatmul.mubr.f32.gmra.mrb[0].mxu0 %v345
    %v1255 = vpop.f32.mrb[0].mxu0
    %v1256 = vadd.f32 %v605, %v1255
    %v1257 = vpop.f32.mrb[0].mxu0
    %1258 = vmatprep.mubr.f32.mxu0 %v349
    %1259 = vmatmul.mubr.f32.gmra.mrb[0].mxu0 %v348
    %v1260 = vpop.f32.mrb[0].mxu0
    %v1261 = vadd.f32 %v606, %v1260
    %v1262 = vpop.f32.mrb[0].mxu0
    %1263 = vmatprep.mubr.f32.mxu0 %v352
    %1264 = vmatmul.mubr.f32.gmra.mrb[0].mxu0 %v351
    %v1265 = vpop.f32.mrb[0].mxu0
    %v1266 = vadd.f32 %v607, %v1265
    %v1267 = vpop.f32.mrb[0].mxu0
    %1268 = vmatprep.mubr.f32.mxu0 %v355
    %1269 = vmatmul.mubr.f32.gmra.mrb[0].mxu0 %v354
    %v1270 = vpop.f32.mrb[0].mxu0
    %v1271 = vadd.f32 %v608, %v1270
    %v1272 = vpop.f32.mrb[0].mxu0
    %1273 = vmatprep.mubr.f32.mxu0 %v358
    %1274 = vmatmul.mubr.f32.gmra.mrb[0].mxu0 %v357
    %v1275 = vpop.f32.mrb[0].mxu0
    %v1276 = vadd.f32 %v609, %v1275
    %v1277 = vpop.f32.mrb[0].mxu0
    %1278 = vmatprep.mubr.f32.mxu0 %v361
    %1279 = vmatmul.mubr.f32.gmra.mrb[0].mxu0 %v360
    %v1280 = vpop.f32.mrb[0].mxu0
    %v1281 = vadd.f32 %v610, %v1280
    %v1282 = vpop.f32.mrb[0].mxu0
    %1283 = vmatprep.mubr.f32.mxu0 %v364
    %1284 = vmatmul.mubr.f32.gmra.mrb[0].mxu0 %v363
    %v1285 = vpop.f32.mrb[0].mxu0
    %v1286 = vadd.f32 %v611, %v1285
    %v1287 = vpop.f32.mrb[0].mxu0
    %1288 = vmatprep.mubr.f32.mxu0 %v367
    %1289 = vmatmul.mubr.f32.gmra.mrb[0].mxu0 %v366
    %v1290 = vpop.f32.mrb[0].mxu0
    %v1291 = vadd.f32 %v612, %v1290
    %v1292 = vpop.f32.mrb[0].mxu0
    %1293 = vmatprep.mubr.f32.mxu0 %v370
    %1294 = vmatmul.mubr.f32.gmra.mrb[0].mxu0 %v369
    %v1295 = vpop.f32.mrb[0].mxu0
    %v1296 = vadd.f32 %v613, %v1295
    %v1297 = vpop.f32.mrb[0].mxu0
    %1298 = vmatprep.mubr.f32.mxu0 %v373
    %1299 = vmatmul.mubr.f32.gmra.mrb[0].mxu0 %v372
    %v1300 = vpop.f32.mrb[0].mxu0
    %v1301 = vadd.f32 %v614, %v1300
    %v1302 = vpop.f32.mrb[0].mxu0
    %1303 = vmatprep.mubr.f32.mxu0 %v376
    %1304 = vmatmul.mubr.f32.gmra.mrb[0].mxu0 %v375
    %v1305 = vpop.f32.mrb[0].mxu0
    %v1306 = vadd.f32 %v615, %v1305
    %v1307 = vpop.f32.mrb[0].mxu0
    %1308 = vmatprep.mubr.f32.mxu0 %v379
    %1309 = vmatmul.mubr.f32.gmra.mrb[0].mxu0 %v378
    %v1310 = vpop.f32.mrb[0].mxu0
    %v1311 = vadd.f32 %v616, %v1310
    %v1312 = vpop.f32.mrb[0].mxu0
    %1313 = vmatprep.mubr.f32.mxu0 %v382
    %1314 = vmatmul.mubr.f32.gmra.mrb[0].mxu0 %v381
    %v1315 = vpop.f32.mrb[0].mxu0
    %v1316 = vadd.f32 %v617, %v1315
    %v1317 = vpop.f32.mrb[0].mxu0
    %1318 = vmatprep.mubr.f32.mxu0 %v385
    %1319 = vmatmul.mubr.f32.gmra.mrb[0].mxu0 %v384
    %v1320 = vpop.f32.mrb[0].mxu0
    %v1321 = vadd.f32 %v618, %v1320
    %v1322 = vpop.f32.mrb[0].mxu0
    %1323 = vmatprep.mubr.f32.mxu0 %v388
    %1324 = vmatmul.mubr.f32.gmra.mrb[0].mxu0 %v387
    %v1325 = vpop.f32.mrb[0].mxu0
    %v1326 = vadd.f32 %v619, %v1325
    %v1327 = vpop.f32.mrb[0].mxu0
    %1328 = vmatprep.mubr.f32.mxu0 %v391
    %1329 = vmatmul.mubr.f32.gmra.mrb[0].mxu0 %v390
    %v1330 = vpop.f32.mrb[0].mxu0
    %v1331 = vadd.f32 %v620, %v1330
    %v1332 = vpop.f32.mrb[0].mxu0
    %1333 = vmatprep.mubr.f32.mxu0 %v394
    %1334 = vmatmul.mubr.f32.gmra.mrb[0].mxu0 %v393
    %v1335 = vpop.f32.mrb[0].mxu0
    %v1336 = vadd.f32 %v621, %v1335
    %v1337 = vpop.f32.mrb[0].mxu0
    %1338 = vmatprep.mubr.f32.mxu0 %v397
    %1339 = vmatmul.mubr.f32.gmra.mrb[0].mxu0 %v396
    %v1340 = vpop.f32.mrb[0].mxu0
    %v1341 = vadd.f32 %v622, %v1340
    %v1342 = vpop.f32.mrb[0].mxu0
    %1343 = vmatprep.mubr.f32.mxu0 %v400
    %1344 = vmatmul.mubr.f32.gmra.mrb[0].mxu0 %v399
    %v1345 = vpop.f32.mrb[0].mxu0
    %v1346 = vadd.f32 %v623, %v1345
    %v1347 = vpop.f32.mrb[0].mxu0
    %1348 = vmatprep.mubr.f32.mxu0 %v403
    %1349 = vmatmul.mubr.f32.gmra.mrb[0].mxu0 %v402
    %v1350 = vpop.f32.mrb[0].mxu0
    %v1351 = vadd.f32 %v624, %v1350
    %v1352 = vpop.f32.mrb[0].mxu0
    %1353 = vmatprep.mubr.f32.mxu0 %v406
    %1354 = vmatmul.mubr.f32.gmra.mrb[0].mxu0 %v405
    %v1355 = vpop.f32.mrb[0].mxu0
    %v1356 = vadd.f32 %v625, %v1355
    %v1357 = vpop.f32.mrb[0].mxu0
    %1358 = vmatprep.mubr.f32.mxu0 %v409
    %1359 = vmatmul.mubr.f32.gmra.mrb[0].mxu0 %v408
    %v1360 = vpop.f32.mrb[0].mxu0
    %v1361 = vadd.f32 %v626, %v1360
    %v1362 = vpop.f32.mrb[0].mxu0
    %1363 = vmatprep.mubr.f32.mxu0 %v412
    %1364 = vmatmul.mubr.f32.gmra.mrb[0].mxu0 %v411
    %v1365 = vpop.f32.mrb[0].mxu0
    %v1366 = vadd.f32 %v627, %v1365
    %v1367 = vpop.f32.mrb[0].mxu0
    %1368 = vmatprep.mubr.f32.mxu0 %v415
    %1369 = vmatmul.mubr.f32.gmra.mrb[0].mxu0 %v414
    %v1370 = vpop.f32.mrb[0].mxu0
    %v1371 = vadd.f32 %v628, %v1370
    %v1372 = vpop.f32.mrb[0].mxu0
    %1373 = vmatprep.mubr.f32.mxu0 %v418
    %1374 = vmatmul.mubr.f32.gmra.mrb[0].mxu0 %v417
    %v1375 = vpop.f32.mrb[0].mxu0
    %v1376 = vadd.f32 %v629, %v1375
    %v1377 = vpop.f32.mrb[0].mxu0
    %1378 = vmatprep.mubr.f32.mxu0 %v421
    %1379 = vmatmul.mubr.f32.gmra.mrb[0].mxu0 %v420
    %v1380 = vpop.f32.mrb[0].mxu0
    %v1381 = vadd.f32 %v630, %v1380
    %v1382 = vpop.f32.mrb[0].mxu0
    %1383 = vmatprep.mubr.f32.mxu0 %v424
    %1384 = vmatmul.mubr.f32.gmra.mrb[0].mxu0 %v423
    %v1385 = vpop.f32.mrb[0].mxu0
    %v1386 = vadd.f32 %v631, %v1385
    %v1387 = vpop.f32.mrb[0].mxu0
    %1388 = vmatprep.mubr.f32.mxu0 %v427
    %1389 = vmatmul.mubr.f32.gmra.mrb[0].mxu0 %v426
    %v1390 = vpop.f32.mrb[0].mxu0
    %v1391 = vadd.f32 %v632, %v1390
    %v1392 = vpop.f32.mrb[0].mxu0
    %1393 = vmatprep.mubr.f32.mxu0 %v430
    %1394 = vmatmul.mubr.f32.gmra.mrb[0].mxu0 %v429
    %v1395 = vpop.f32.mrb[0].mxu0
    %v1396 = vadd.f32 %v633, %v1395
    %v1397 = vpop.f32.mrb[0].mxu0
    %1398 = vmatprep.mubr.f32.mxu0 %v433
    %1399 = vmatmul.mubr.f32.gmra.mrb[0].mxu0 %v432
    %v1400 = vpop.f32.mrb[0].mxu0
    %v1401 = vadd.f32 %v634, %v1400
    %v1402 = vpop.f32.mrb[0].mxu0
    %1403 = vmatprep.mubr.f32.mxu0 %v436
    %1404 = vmatmul.mubr.f32.gmra.mrb[0].mxu0 %v435
    %v1405 = vpop.f32.mrb[0].mxu0
    %v1406 = vadd.f32 %v635, %v1405
    %v1407 = vpop.f32.mrb[0].mxu0
    %1408 = vmatprep.mubr.f32.mxu0 %v439
    %1409 = vmatmul.mubr.f32.gmra.mrb[0].mxu0 %v438
    %v1410 = vpop.f32.mrb[0].mxu0
    %v1411 = vadd.f32 %v636, %v1410
    %v1412 = vpop.f32.mrb[0].mxu0
    %1413 = vmatprep.mubr.f32.mxu0 %v442
    %1414 = vmatmul.mubr.f32.gmra.mrb[0].mxu0 %v441
    %v1415 = vpop.f32.mrb[0].mxu0
    %v1416 = vadd.f32 %v637, %v1415
    %v1417 = vpop.f32.mrb[0].mxu0
    %1418 = vmatprep.mubr.f32.mxu0 %v445
    %1419 = vmatmul.mubr.f32.gmra.mrb[0].mxu0 %v444
    %v1420 = vpop.f32.mrb[0].mxu0
    %v1421 = vadd.f32 %v638, %v1420
    %v1422 = vpop.f32.mrb[0].mxu0
    %1423 = vdwg.mxu0
    %1424 = vmatprep.subr.mxu0 0.0
    %1425 = vmatpush1.msra.mxu0 %v479
    %1426 = vmatprep.subr.mxu0 0.0
    %1427 = vmatpush1.msra.mxu0 %v480
    %1428 = vmatprep.subr.mxu0 0.0
    %1429 = vmatpush1.msra.mxu0 %v481
    %1430 = vmatprep.subr.mxu0 0.0
    %1431 = vmatpush1.msra.mxu0 %v482
    %1432 = vmatprep.subr.mxu0 0.0
    %1433 = vmatpush1.msra.mxu0 %v483
    %1434 = vmatprep.subr.mxu0 0.0
    %1435 = vmatpush1.msra.mxu0 %v484
    %1436 = vmatprep.subr.mxu0 0.0
    %1437 = vmatpush1.msra.mxu0 %v485
    %1438 = vmatprep.subr.mxu0 0.0
    %1439 = vmatpush1.msra.mxu0 %v486
    %1440 = vmatprep.subr.mxu0 0.0
    %1441 = vmatpush1.msra.mxu0 %v487
    %1442 = vmatprep.subr.mxu0 0.0
    %1443 = vmatpush1.msra.mxu0 %v488
    %1444 = vmatprep.subr.mxu0 0.0
    %1445 = vmatpush1.msra.mxu0 %v489
    %1446 = vmatprep.subr.mxu0 0.0
    %1447 = vmatpush1.msra.mxu0 %v490
    %1448 = vmatprep.subr.mxu0 0.0
    %1449 = vmatpush1.msra.mxu0 %v491
    %1450 = vmatprep.subr.mxu0 0.0
    %1451 = vmatpush1.msra.mxu0 %v492
    %1452 = vmatprep.subr.mxu0 0.0
    %1453 = vmatpush1.msra.mxu0 %v493
    %1454 = vmatprep.subr.mxu0 0.0
    %1455 = vmatpush1.msra.mxu0 %v494
    %1456 = vmatprep.subr.mxu0 0.0
    %1457 = vmatpush1.msra.mxu0 0.0
    %1458 = vmatprep.subr.mxu0 0.0
    %1459 = vmatpush1.msra.mxu0 0.0
    %1460 = vmatprep.subr.mxu0 0.0
    %1461 = vmatpush1.msra.mxu0 0.0
    %1462 = vmatprep.subr.mxu0 0.0
    %1463 = vmatpush1.msra.mxu0 0.0
    %1464 = vmatprep.subr.mxu0 0.0
    %1465 = vmatpush1.msra.mxu0 0.0
    %1466 = vmatprep.subr.mxu0 0.0
    %1467 = vmatpush1.msra.mxu0 0.0
    %1468 = vmatprep.subr.mxu0 0.0
    %1469 = vmatpush1.msra.mxu0 0.0
    %1470 = vmatprep.subr.mxu0 0.0
    %1471 = vmatpush1.msra.mxu0 0.0
    %1472 = vmatprep.subr.mxu0 0.0
    %1473 = vmatpush1.msra.mxu0 0.0
    %1474 = vmatprep.subr.mxu0 0.0
    %1475 = vmatpush1.msra.mxu0 0.0
    %1476 = vmatprep.subr.mxu0 0.0
    %1477 = vmatpush1.msra.mxu0 0.0
    %1478 = vmatprep.subr.mxu0 0.0
    %1479 = vmatpush1.msra.mxu0 0.0
    %1480 = vmatprep.subr.mxu0 0.0
    %1481 = vmatpush1.msra.mxu0 0.0
    %1482 = vmatprep.subr.mxu0 0.0
    %1483 = vmatpush1.msra.mxu0 0.0
    %1484 = vmatprep.subr.mxu0 0.0
    %1485 = vmatpush1.msra.mxu0 0.0
    %1486 = vmatprep.subr.mxu0 0.0
    %1487 = vmatpush1.msra.mxu0 0.0
    %1488 = vmatprep.mubr.f32.mxu0 0.0
    %1489 = vmatmul.mubr.f32.gmra.mrb[0].mxu0 %v17
    %v1490 = vpop.f32.mrb[0].mxu0
    %v1491 = vadd.f32 %v706, %v1490
    %v1492 = vpop.f32.mrb[0].mxu0
    %1493 = vmatprep.mubr.f32.mxu0 0.0
    %1494 = vmatmul.mubr.f32.gmra.mrb[0].mxu0 %v20
    %v1495 = vpop.f32.mrb[0].mxu0
    %v1496 = vadd.f32 %v711, %v1495
    %v1497 = vpop.f32.mrb[0].mxu0
    %1498 = vmatprep.mubr.f32.mxu0 0.0
    %1499 = vmatmul.mubr.f32.gmra.mrb[0].mxu0 %v23
    %v1500 = vpop.f32.mrb[0].mxu0
    %v1501 = vadd.f32 %v716, %v1500
    %v1502 = vpop.f32.mrb[0].mxu0
    %1503 = vmatprep.mubr.f32.mxu0 0.0
    %1504 = vmatmul.mubr.f32.gmra.mrb[0].mxu0 %v26
    %v1505 = vpop.f32.mrb[0].mxu0
    %v1506 = vadd.f32 %v721, %v1505
    %v1507 = vpop.f32.mrb[0].mxu0
    %1508 = vmatprep.mubr.f32.mxu0 0.0
    %1509 = vmatmul.mubr.f32.gmra.mrb[0].mxu0 %v29
    %v1510 = vpop.f32.mrb[0].mxu0
    %v1511 = vadd.f32 %v726, %v1510
    %v1512 = vpop.f32.mrb[0].mxu0
    %1513 = vmatprep.mubr.f32.mxu0 0.0
    %1514 = vmatmul.mubr.f32.gmra.mrb[0].mxu0 %v32
    %v1515 = vpop.f32.mrb[0].mxu0
    %v1516 = vadd.f32 %v731, %v1515
    %v1517 = vpop.f32.mrb[0].mxu0
    %1518 = vmatprep.mubr.f32.mxu0 0.0
    %1519 = vmatmul.mubr.f32.gmra.mrb[0].mxu0 %v35
    %v1520 = vpop.f32.mrb[0].mxu0
    %v1521 = vadd.f32 %v736, %v1520
    %v1522 = vpop.f32.mrb[0].mxu0
    %1523 = vmatprep.mubr.f32.mxu0 0.0
    %1524 = vmatmul.mubr.f32.gmra.mrb[0].mxu0 %v38
    %v1525 = vpop.f32.mrb[0].mxu0
    %v1526 = vadd.f32 %v741, %v1525
    %v1527 = vpop.f32.mrb[0].mxu0
    %1528 = vmatprep.mubr.f32.mxu0 0.0
    %1529 = vmatmul.mubr.f32.gmra.mrb[0].mxu0 %v41
    %v1530 = vpop.f32.mrb[0].mxu0
    %v1531 = vadd.f32 %v746, %v1530
    %v1532 = vpop.f32.mrb[0].mxu0
    %1533 = vmatprep.mubr.f32.mxu0 0.0
    %1534 = vmatmul.mubr.f32.gmra.mrb[0].mxu0 %v44
    %v1535 = vpop.f32.mrb[0].mxu0
    %v1536 = vadd.f32 %v751, %v1535
    %v1537 = vpop.f32.mrb[0].mxu0
    %1538 = vmatprep.mubr.f32.mxu0 0.0
    %1539 = vmatmul.mubr.f32.gmra.mrb[0].mxu0 %v47
    %v1540 = vpop.f32.mrb[0].mxu0
    %v1541 = vadd.f32 %v756, %v1540
    %v1542 = vpop.f32.mrb[0].mxu0
    %1543 = vmatprep.mubr.f32.mxu0 0.0
    %1544 = vmatmul.mubr.f32.gmra.mrb[0].mxu0 %v50
    %v1545 = vpop.f32.mrb[0].mxu0
    %v1546 = vadd.f32 %v761, %v1545
    %v1547 = vpop.f32.mrb[0].mxu0
    %1548 = vmatprep.mubr.f32.mxu0 0.0
    %1549 = vmatmul.mubr.f32.gmra.mrb[0].mxu0 %v53
    %v1550 = vpop.f32.mrb[0].mxu0
    %v1551 = vadd.f32 %v766, %v1550
    %v1552 = vpop.f32.mrb[0].mxu0
    %1553 = vmatprep.mubr.f32.mxu0 0.0
    %1554 = vmatmul.mubr.f32.gmra.mrb[0].mxu0 %v56
    %v1555 = vpop.f32.mrb[0].mxu0
    %v1556 = vadd.f32 %v771, %v1555
    %v1557 = vpop.f32.mrb[0].mxu0
    %1558 = vmatprep.mubr.f32.mxu0 0.0
    %1559 = vmatmul.mubr.f32.gmra.mrb[0].mxu0 %v59
    %v1560 = vpop.f32.mrb[0].mxu0
    %v1561 = vadd.f32 %v776, %v1560
    %v1562 = vpop.f32.mrb[0].mxu0
    %1563 = vmatprep.mubr.f32.mxu0 0.0
    %1564 = vmatmul.mubr.f32.gmra.mrb[0].mxu0 %v62
    %v1565 = vpop.f32.mrb[0].mxu0
    %v1566 = vadd.f32 %v781, %v1565
    %v1567 = vpop.f32.mrb[0].mxu0
    %1568 = vmatprep.mubr.f32.mxu0 0.0
    %1569 = vmatmul.mubr.f32.gmra.mrb[0].mxu0 %v65
    %v1570 = vpop.f32.mrb[0].mxu0
    %v1571 = vadd.f32 %v786, %v1570
    %v1572 = vpop.f32.mrb[0].mxu0
    %1573 = vmatprep.mubr.f32.mxu0 0.0
    %1574 = vmatmul.mubr.f32.gmra.mrb[0].mxu0 %v68
    %v1575 = vpop.f32.mrb[0].mxu0
    %v1576 = vadd.f32 %v791, %v1575
    %v1577 = vpop.f32.mrb[0].mxu0
    %1578 = vmatprep.mubr.f32.mxu0 0.0
    %1579 = vmatmul.mubr.f32.gmra.mrb[0].mxu0 %v71
    %v1580 = vpop.f32.mrb[0].mxu0
    %v1581 = vadd.f32 %v796, %v1580
    %v1582 = vpop.f32.mrb[0].mxu0
    %1583 = vmatprep.mubr.f32.mxu0 0.0
    %1584 = vmatmul.mubr.f32.gmra.mrb[0].mxu0 %v74
    %v1585 = vpop.f32.mrb[0].mxu0
    %v1586 = vadd.f32 %v801, %v1585
    %v1587 = vpop.f32.mrb[0].mxu0
    %1588 = vmatprep.mubr.f32.mxu0 0.0
    %1589 = vmatmul.mubr.f32.gmra.mrb[0].mxu0 %v77
    %v1590 = vpop.f32.mrb[0].mxu0
    %v1591 = vadd.f32 %v806, %v1590
    %v1592 = vpop.f32.mrb[0].mxu0
    %1593 = vmatprep.mubr.f32.mxu0 0.0
    %1594 = vmatmul.mubr.f32.gmra.mrb[0].mxu0 %v80
    %v1595 = vpop.f32.mrb[0].mxu0
    %v1596 = vadd.f32 %v811, %v1595
    %v1597 = vpop.f32.mrb[0].mxu0
    %1598 = vmatprep.mubr.f32.mxu0 0.0
    %1599 = vmatmul.mubr.f32.gmra.mrb[0].mxu0 %v83
    %v1600 = vpop.f32.mrb[0].mxu0
    %v1601 = vadd.f32 %v816, %v1600
    %v1602 = vpop.f32.mrb[0].mxu0
    %1603 = vmatprep.mubr.f32.mxu0 0.0
    %1604 = vmatmul.mubr.f32.gmra.mrb[0].mxu0 %v86
    %v1605 = vpop.f32.mrb[0].mxu0
    %v1606 = vadd.f32 %v821, %v1605
    %v1607 = vpop.f32.mrb[0].mxu0
    %1608 = vmatprep.mubr.f32.mxu0 0.0
    %1609 = vmatmul.mubr.f32.gmra.mrb[0].mxu0 %v89
    %v1610 = vpop.f32.mrb[0].mxu0
    %v1611 = vadd.f32 %v826, %v1610
    %v1612 = vpop.f32.mrb[0].mxu0
    %1613 = vmatprep.mubr.f32.mxu0 0.0
    %1614 = vmatmul.mubr.f32.gmra.mrb[0].mxu0 %v92
    %v1615 = vpop.f32.mrb[0].mxu0
    %v1616 = vadd.f32 %v831, %v1615
    %v1617 = vpop.f32.mrb[0].mxu0
    %1618 = vmatprep.mubr.f32.mxu0 0.0
    %1619 = vmatmul.mubr.f32.gmra.mrb[0].mxu0 %v95
    %v1620 = vpop.f32.mrb[0].mxu0
    %v1621 = vadd.f32 %v836, %v1620
    %v1622 = vpop.f32.mrb[0].mxu0
    %1623 = vmatprep.mubr.f32.mxu0 0.0
    %1624 = vmatmul.mubr.f32.gmra.mrb[0].mxu0 %v98
    %v1625 = vpop.f32.mrb[0].mxu0
    %v1626 = vadd.f32 %v841, %v1625
    %v1627 = vpop.f32.mrb[0].mxu0
    %1628 = vmatprep.mubr.f32.mxu0 0.0
    %1629 = vmatmul.mubr.f32.gmra.mrb[0].mxu0 %v101
    %v1630 = vpop.f32.mrb[0].mxu0
    %v1631 = vadd.f32 %v846, %v1630
    %v1632 = vpop.f32.mrb[0].mxu0
    %1633 = vmatprep.mubr.f32.mxu0 0.0
    %1634 = vmatmul.mubr.f32.gmra.mrb[0].mxu0 %v104
    %v1635 = vpop.f32.mrb[0].mxu0
    %v1636 = vadd.f32 %v851, %v1635
    %v1637 = vpop.f32.mrb[0].mxu0
    %1638 = vmatprep.mubr.f32.mxu0 0.0
    %1639 = vmatmul.mubr.f32.gmra.mrb[0].mxu0 %v107
    %v1640 = vpop.f32.mrb[0].mxu0
    %v1641 = vadd.f32 %v856, %v1640
    %v1642 = vpop.f32.mrb[0].mxu0
    %1643 = vmatprep.mubr.f32.mxu0 0.0
    %1644 = vmatmul.mubr.f32.gmra.mrb[0].mxu0 %v110
    %v1645 = vpop.f32.mrb[0].mxu0
    %v1646 = vadd.f32 %v861, %v1645
    %v1647 = vpop.f32.mrb[0].mxu0
    %1648 = vmatprep.mubr.f32.mxu0 0.0
    %1649 = vmatmul.mubr.f32.gmra.mrb[0].mxu0 %v113
    %v1650 = vpop.f32.mrb[0].mxu0
    %v1651 = vadd.f32 %v866, %v1650
    %v1652 = vpop.f32.mrb[0].mxu0
    %1653 = vmatprep.mubr.f32.mxu0 0.0
    %1654 = vmatmul.mubr.f32.gmra.mrb[0].mxu0 %v116
    %v1655 = vpop.f32.mrb[0].mxu0
    %v1656 = vadd.f32 %v871, %v1655
    %v1657 = vpop.f32.mrb[0].mxu0
    %1658 = vmatprep.mubr.f32.mxu0 0.0
    %1659 = vmatmul.mubr.f32.gmra.mrb[0].mxu0 %v119
    %v1660 = vpop.f32.mrb[0].mxu0
    %v1661 = vadd.f32 %v876, %v1660
    %v1662 = vpop.f32.mrb[0].mxu0
    %1663 = vmatprep.mubr.f32.mxu0 0.0
    %1664 = vmatmul.mubr.f32.gmra.mrb[0].mxu0 %v122
    %v1665 = vpop.f32.mrb[0].mxu0
    %v1666 = vadd.f32 %v881, %v1665
    %v1667 = vpop.f32.mrb[0].mxu0
    %1668 = vmatprep.mubr.f32.mxu0 0.0
    %1669 = vmatmul.mubr.f32.gmra.mrb[0].mxu0 %v125
    %v1670 = vpop.f32.mrb[0].mxu0
    %v1671 = vadd.f32 %v886, %v1670
    %v1672 = vpop.f32.mrb[0].mxu0
    %1673 = vmatprep.mubr.f32.mxu0 0.0
    %1674 = vmatmul.mubr.f32.gmra.mrb[0].mxu0 %v128
    %v1675 = vpop.f32.mrb[0].mxu0
    %v1676 = vadd.f32 %v891, %v1675
    %v1677 = vpop.f32.mrb[0].mxu0
    %1678 = vmatprep.mubr.f32.mxu0 0.0
    %1679 = vmatmul.mubr.f32.gmra.mrb[0].mxu0 %v131
    %v1680 = vpop.f32.mrb[0].mxu0
    %v1681 = vadd.f32 %v896, %v1680
    %v1682 = vpop.f32.mrb[0].mxu0
    %1683 = vmatprep.mubr.f32.mxu0 0.0
    %1684 = vmatmul.mubr.f32.gmra.mrb[0].mxu0 %v134
    %v1685 = vpop.f32.mrb[0].mxu0
    %v1686 = vadd.f32 %v901, %v1685
    %v1687 = vpop.f32.mrb[0].mxu0
    %1688 = vmatprep.mubr.f32.mxu0 0.0
    %1689 = vmatmul.mubr.f32.gmra.mrb[0].mxu0 %v137
    %v1690 = vpop.f32.mrb[0].mxu0
    %v1691 = vadd.f32 %v906, %v1690
    %v1692 = vpop.f32.mrb[0].mxu0
    %1693 = vmatprep.mubr.f32.mxu0 0.0
    %1694 = vmatmul.mubr.f32.gmra.mrb[0].mxu0 %v140
    %v1695 = vpop.f32.mrb[0].mxu0
    %v1696 = vadd.f32 %v911, %v1695
    %v1697 = vpop.f32.mrb[0].mxu0
    %1698 = vmatprep.mubr.f32.mxu0 0.0
    %1699 = vmatmul.mubr.f32.gmra.mrb[0].mxu0 %v143
    %v1700 = vpop.f32.mrb[0].mxu0
    %v1701 = vadd.f32 %v916, %v1700
    %v1702 = vpop.f32.mrb[0].mxu0
    %1703 = vmatprep.mubr.f32.mxu0 0.0
    %1704 = vmatmul.mubr.f32.gmra.mrb[0].mxu0 %v146
    %v1705 = vpop.f32.mrb[0].mxu0
    %v1706 = vadd.f32 %v921, %v1705
    %v1707 = vpop.f32.mrb[0].mxu0
    %1708 = vmatprep.mubr.f32.mxu0 0.0
    %1709 = vmatmul.mubr.f32.gmra.mrb[0].mxu0 %v149
    %v1710 = vpop.f32.mrb[0].mxu0
    %v1711 = vadd.f32 %v926, %v1710
    %v1712 = vpop.f32.mrb[0].mxu0
    %1713 = vmatprep.mubr.f32.mxu0 0.0
    %1714 = vmatmul.mubr.f32.gmra.mrb[0].mxu0 %v152
    %v1715 = vpop.f32.mrb[0].mxu0
    %v1716 = vadd.f32 %v931, %v1715
    %v1717 = vpop.f32.mrb[0].mxu0
    %1718 = vmatprep.mubr.f32.mxu0 0.0
    %1719 = vmatmul.mubr.f32.gmra.mrb[0].mxu0 %v155
    %v1720 = vpop.f32.mrb[0].mxu0
    %v1721 = vadd.f32 %v936, %v1720
    %v1722 = vpop.f32.mrb[0].mxu0
    %1723 = vmatprep.mubr.f32.mxu0 0.0
    %1724 = vmatmul.mubr.f32.gmra.mrb[0].mxu0 %v158
    %v1725 = vpop.f32.mrb[0].mxu0
    %v1726 = vadd.f32 %v941, %v1725
    %v1727 = vpop.f32.mrb[0].mxu0
    %1728 = vmatprep.mubr.f32.mxu0 0.0
    %1729 = vmatmul.mubr.f32.gmra.mrb[0].mxu0 %v161
    %v1730 = vpop.f32.mrb[0].mxu0
    %v1731 = vadd.f32 %v946, %v1730
    %v1732 = vpop.f32.mrb[0].mxu0
    %1733 = vmatprep.mubr.f32.mxu0 0.0
    %1734 = vmatmul.mubr.f32.gmra.mrb[0].mxu0 %v164
    %v1735 = vpop.f32.mrb[0].mxu0
    %v1736 = vadd.f32 %v951, %v1735
    %v1737 = vpop.f32.mrb[0].mxu0
    %1738 = vmatprep.mubr.f32.mxu0 0.0
    %1739 = vmatmul.mubr.f32.gmra.mrb[0].mxu0 %v167
    %v1740 = vpop.f32.mrb[0].mxu0
    %v1741 = vadd.f32 %v956, %v1740
    %v1742 = vpop.f32.mrb[0].mxu0
    %1743 = vmatprep.mubr.f32.mxu0 0.0
    %1744 = vmatmul.mubr.f32.gmra.mrb[0].mxu0 %v170
    %v1745 = vpop.f32.mrb[0].mxu0
    %v1746 = vadd.f32 %v961, %v1745
    %v1747 = vpop.f32.mrb[0].mxu0
    %1748 = vmatprep.mubr.f32.mxu0 0.0
    %1749 = vmatmul.mubr.f32.gmra.mrb[0].mxu0 %v173
    %v1750 = vpop.f32.mrb[0].mxu0
    %v1751 = vadd.f32 %v966, %v1750
    %v1752 = vpop.f32.mrb[0].mxu0
    %1753 = vmatprep.mubr.f32.mxu0 0.0
    %1754 = vmatmul.mubr.f32.gmra.mrb[0].mxu0 %v176
    %v1755 = vpop.f32.mrb[0].mxu0
    %v1756 = vadd.f32 %v971, %v1755
    %v1757 = vpop.f32.mrb[0].mxu0
    %1758 = vmatprep.mubr.f32.mxu0 0.0
    %1759 = vmatmul.mubr.f32.gmra.mrb[0].mxu0 %v179
    %v1760 = vpop.f32.mrb[0].mxu0
    %v1761 = vadd.f32 %v976, %v1760
    %v1762 = vpop.f32.mrb[0].mxu0
    %1763 = vmatprep.mubr.f32.mxu0 0.0
    %1764 = vmatmul.mubr.f32.gmra.mrb[0].mxu0 %v182
    %v1765 = vpop.f32.mrb[0].mxu0
    %v1766 = vadd.f32 %v981, %v1765
    %v1767 = vpop.f32.mrb[0].mxu0
    %1768 = vmatprep.mubr.f32.mxu0 0.0
    %1769 = vmatmul.mubr.f32.gmra.mrb[0].mxu0 %v185
    %v1770 = vpop.f32.mrb[0].mxu0
    %v1771 = vadd.f32 %v986, %v1770
    %v1772 = vpop.f32.mrb[0].mxu0
    %1773 = vmatprep.mubr.f32.mxu0 0.0
    %1774 = vmatmul.mubr.f32.gmra.mrb[0].mxu0 %v188
    %v1775 = vpop.f32.mrb[0].mxu0
    %v1776 = vadd.f32 %v991, %v1775
    %v1777 = vpop.f32.mrb[0].mxu0
    %1778 = vmatprep.mubr.f32.mxu0 0.0
    %1779 = vmatmul.mubr.f32.gmra.mrb[0].mxu0 %v191
    %v1780 = vpop.f32.mrb[0].mxu0
    %v1781 = vadd.f32 %v996, %v1780
    %v1782 = vpop.f32.mrb[0].mxu0
    %1783 = vmatprep.mubr.f32.mxu0 0.0
    %1784 = vmatmul.mubr.f32.gmra.mrb[0].mxu0 %v194
    %v1785 = vpop.f32.mrb[0].mxu0
    %v1786 = vadd.f32 %v1001, %v1785
    %v1787 = vpop.f32.mrb[0].mxu0
    %1788 = vmatprep.mubr.f32.mxu0 0.0
    %1789 = vmatmul.mubr.f32.gmra.mrb[0].mxu0 %v197
    %v1790 = vpop.f32.mrb[0].mxu0
    %v1791 = vadd.f32 %v1006, %v1790
    %v1792 = vpop.f32.mrb[0].mxu0
    %1793 = vmatprep.mubr.f32.mxu0 0.0
    %1794 = vmatmul.mubr.f32.gmra.mrb[0].mxu0 %v200
    %v1795 = vpop.f32.mrb[0].mxu0
    %v1796 = vadd.f32 %v1011, %v1795
    %v1797 = vpop.f32.mrb[0].mxu0
    %1798 = vmatprep.mubr.f32.mxu0 0.0
    %1799 = vmatmul.mubr.f32.gmra.mrb[0].mxu0 %v203
    %v1800 = vpop.f32.mrb[0].mxu0
    %v1801 = vadd.f32 %v1016, %v1800
    %v1802 = vpop.f32.mrb[0].mxu0
    %1803 = vmatprep.mubr.f32.mxu0 0.0
    %1804 = vmatmul.mubr.f32.gmra.mrb[0].mxu0 %v206
    %v1805 = vpop.f32.mrb[0].mxu0
    %v1806 = vadd.f32 %v1021, %v1805
    %v1807 = vpop.f32.mrb[0].mxu0
    %1808 = vmatprep.mubr.f32.mxu0 0.0
    %1809 = vmatmul.mubr.f32.gmra.mrb[0].mxu0 %v209
    %v1810 = vpop.f32.mrb[0].mxu0
    %v1811 = vadd.f32 %v1026, %v1810
    %v1812 = vpop.f32.mrb[0].mxu0
    %1813 = vmatprep.mubr.f32.mxu0 0.0
    %1814 = vmatmul.mubr.f32.gmra.mrb[0].mxu0 %v212
    %v1815 = vpop.f32.mrb[0].mxu0
    %v1816 = vadd.f32 %v1031, %v1815
    %v1817 = vpop.f32.mrb[0].mxu0
    %1818 = vmatprep.mubr.f32.mxu0 0.0
    %1819 = vmatmul.mubr.f32.gmra.mrb[0].mxu0 %v215
    %v1820 = vpop.f32.mrb[0].mxu0
    %v1821 = vadd.f32 %v1036, %v1820
    %v1822 = vpop.f32.mrb[0].mxu0
    %1823 = vmatprep.mubr.f32.mxu0 0.0
    %1824 = vmatmul.mubr.f32.gmra.mrb[0].mxu0 %v218
    %v1825 = vpop.f32.mrb[0].mxu0
    %v1826 = vadd.f32 %v1041, %v1825
    %v1827 = vpop.f32.mrb[0].mxu0
    %1828 = vmatprep.mubr.f32.mxu0 0.0
    %1829 = vmatmul.mubr.f32.gmra.mrb[0].mxu0 %v221
    %v1830 = vpop.f32.mrb[0].mxu0
    %v1831 = vadd.f32 %v1046, %v1830
    %v1832 = vpop.f32.mrb[0].mxu0
    %1833 = vmatprep.mubr.f32.mxu0 0.0
    %1834 = vmatmul.mubr.f32.gmra.mrb[0].mxu0 %v224
    %v1835 = vpop.f32.mrb[0].mxu0
    %v1836 = vadd.f32 %v1051, %v1835
    %v1837 = vpop.f32.mrb[0].mxu0
    %1838 = vmatprep.mubr.f32.mxu0 0.0
    %1839 = vmatmul.mubr.f32.gmra.mrb[0].mxu0 %v227
    %v1840 = vpop.f32.mrb[0].mxu0
    %v1841 = vadd.f32 %v1056, %v1840
    %v1842 = vpop.f32.mrb[0].mxu0
    %1843 = vmatprep.mubr.f32.mxu0 0.0
    %1844 = vmatmul.mubr.f32.gmra.mrb[0].mxu0 %v230
    %v1845 = vpop.f32.mrb[0].mxu0
    %v1846 = vadd.f32 %v1061, %v1845
    %v1847 = vpop.f32.mrb[0].mxu0
    %1848 = vmatprep.mubr.f32.mxu0 0.0
    %1849 = vmatmul.mubr.f32.gmra.mrb[0].mxu0 %v233
    %v1850 = vpop.f32.mrb[0].mxu0
    %v1851 = vadd.f32 %v1066, %v1850
    %v1852 = vpop.f32.mrb[0].mxu0
    %1853 = vmatprep.mubr.f32.mxu0 0.0
    %1854 = vmatmul.mubr.f32.gmra.mrb[0].mxu0 %v236
    %v1855 = vpop.f32.mrb[0].mxu0
    %v1856 = vadd.f32 %v1071, %v1855
    %v1857 = vpop.f32.mrb[0].mxu0
    %1858 = vmatprep.mubr.f32.mxu0 0.0
    %1859 = vmatmul.mubr.f32.gmra.mrb[0].mxu0 %v239
    %v1860 = vpop.f32.mrb[0].mxu0
    %v1861 = vadd.f32 %v1076, %v1860
    %v1862 = vpop.f32.mrb[0].mxu0
    %1863 = vmatprep.mubr.f32.mxu0 0.0
    %1864 = vmatmul.mubr.f32.gmra.mrb[0].mxu0 %v242
    %v1865 = vpop.f32.mrb[0].mxu0
    %v1866 = vadd.f32 %v1081, %v1865
    %v1867 = vpop.f32.mrb[0].mxu0
    %1868 = vmatprep.mubr.f32.mxu0 0.0
    %1869 = vmatmul.mubr.f32.gmra.mrb[0].mxu0 %v245
    %v1870 = vpop.f32.mrb[0].mxu0
    %v1871 = vadd.f32 %v1086, %v1870
    %v1872 = vpop.f32.mrb[0].mxu0
    %1873 = vmatprep.mubr.f32.mxu0 0.0
    %1874 = vmatmul.mubr.f32.gmra.mrb[0].mxu0 %v248
    %v1875 = vpop.f32.mrb[0].mxu0
    %v1876 = vadd.f32 %v1091, %v1875
    %v1877 = vpop.f32.mrb[0].mxu0
    %1878 = vmatprep.mubr.f32.mxu0 0.0
    %1879 = vmatmul.mubr.f32.gmra.mrb[0].mxu0 %v251
    %v1880 = vpop.f32.mrb[0].mxu0
    %v1881 = vadd.f32 %v1096, %v1880
    %v1882 = vpop.f32.mrb[0].mxu0
    %1883 = vmatprep.mubr.f32.mxu0 0.0
    %1884 = vmatmul.mubr.f32.gmra.mrb[0].mxu0 %v254
    %v1885 = vpop.f32.mrb[0].mxu0
    %v1886 = vadd.f32 %v1101, %v1885
    %v1887 = vpop.f32.mrb[0].mxu0
    %1888 = vmatprep.mubr.f32.mxu0 0.0
    %1889 = vmatmul.mubr.f32.gmra.mrb[0].mxu0 %v257
    %v1890 = vpop.f32.mrb[0].mxu0
    %v1891 = vadd.f32 %v1106, %v1890
    %v1892 = vpop.f32.mrb[0].mxu0
    %1893 = vmatprep.mubr.f32.mxu0 0.0
    %1894 = vmatmul.mubr.f32.gmra.mrb[0].mxu0 %v260
    %v1895 = vpop.f32.mrb[0].mxu0
    %v1896 = vadd.f32 %v1111, %v1895
    %v1897 = vpop.f32.mrb[0].mxu0
    %1898 = vmatprep.mubr.f32.mxu0 0.0
    %1899 = vmatmul.mubr.f32.gmra.mrb[0].mxu0 %v263
    %v1900 = vpop.f32.mrb[0].mxu0
    %v1901 = vadd.f32 %v1116, %v1900
    %v1902 = vpop.f32.mrb[0].mxu0
    %1903 = vmatprep.mubr.f32.mxu0 0.0
    %1904 = vmatmul.mubr.f32.gmra.mrb[0].mxu0 %v266
    %v1905 = vpop.f32.mrb[0].mxu0
    %v1906 = vadd.f32 %v1121, %v1905
    %v1907 = vpop.f32.mrb[0].mxu0
    %1908 = vmatprep.mubr.f32.mxu0 0.0
    %1909 = vmatmul.mubr.f32.gmra.mrb[0].mxu0 %v269
    %v1910 = vpop.f32.mrb[0].mxu0
    %v1911 = vadd.f32 %v1126, %v1910
    %v1912 = vpop.f32.mrb[0].mxu0
    %1913 = vmatprep.mubr.f32.mxu0 0.0
    %1914 = vmatmul.mubr.f32.gmra.mrb[0].mxu0 %v272
    %v1915 = vpop.f32.mrb[0].mxu0
    %v1916 = vadd.f32 %v1131, %v1915
    %v1917 = vpop.f32.mrb[0].mxu0
    %1918 = vmatprep.mubr.f32.mxu0 0.0
    %1919 = vmatmul.mubr.f32.gmra.mrb[0].mxu0 %v275
    %v1920 = vpop.f32.mrb[0].mxu0
    %v1921 = vadd.f32 %v1136, %v1920
    %v1922 = vpop.f32.mrb[0].mxu0
    %1923 = vmatprep.mubr.f32.mxu0 0.0
    %1924 = vmatmul.mubr.f32.gmra.mrb[0].mxu0 %v278
    %v1925 = vpop.f32.mrb[0].mxu0
    %v1926 = vadd.f32 %v1141, %v1925
    %v1927 = vpop.f32.mrb[0].mxu0
    %1928 = vmatprep.mubr.f32.mxu0 0.0
    %1929 = vmatmul.mubr.f32.gmra.mrb[0].mxu0 %v281
    %v1930 = vpop.f32.mrb[0].mxu0
    %v1931 = vadd.f32 %v1146, %v1930
    %v1932 = vpop.f32.mrb[0].mxu0
    %1933 = vmatprep.mubr.f32.mxu0 0.0
    %1934 = vmatmul.mubr.f32.gmra.mrb[0].mxu0 %v284
    %v1935 = vpop.f32.mrb[0].mxu0
    %v1936 = vadd.f32 %v1151, %v1935
    %v1937 = vpop.f32.mrb[0].mxu0
    %1938 = vmatprep.mubr.f32.mxu0 0.0
    %1939 = vmatmul.mubr.f32.gmra.mrb[0].mxu0 %v287
    %v1940 = vpop.f32.mrb[0].mxu0
    %v1941 = vadd.f32 %v1156, %v1940
    %v1942 = vpop.f32.mrb[0].mxu0
    %1943 = vmatprep.mubr.f32.mxu0 0.0
    %1944 = vmatmul.mubr.f32.gmra.mrb[0].mxu0 %v290
    %v1945 = vpop.f32.mrb[0].mxu0
    %v1946 = vadd.f32 %v1161, %v1945
    %v1947 = vpop.f32.mrb[0].mxu0
    %1948 = vmatprep.mubr.f32.mxu0 0.0
    %1949 = vmatmul.mubr.f32.gmra.mrb[0].mxu0 %v293
    %v1950 = vpop.f32.mrb[0].mxu0
    %v1951 = vadd.f32 %v1166, %v1950
    %v1952 = vpop.f32.mrb[0].mxu0
    %1953 = vmatprep.mubr.f32.mxu0 0.0
    %1954 = vmatmul.mubr.f32.gmra.mrb[0].mxu0 %v296
    %v1955 = vpop.f32.mrb[0].mxu0
    %v1956 = vadd.f32 %v1171, %v1955
    %v1957 = vpop.f32.mrb[0].mxu0
    %1958 = vmatprep.mubr.f32.mxu0 0.0
    %1959 = vmatmul.mubr.f32.gmra.mrb[0].mxu0 %v299
    %v1960 = vpop.f32.mrb[0].mxu0
    %v1961 = vadd.f32 %v1176, %v1960
    %v1962 = vpop.f32.mrb[0].mxu0
    %1963 = vmatprep.mubr.f32.mxu0 0.0
    %1964 = vmatmul.mubr.f32.gmra.mrb[0].mxu0 %v302
    %v1965 = vpop.f32.mrb[0].mxu0
    %v1966 = vadd.f32 %v1181, %v1965
    %v1967 = vpop.f32.mrb[0].mxu0
    %1968 = vmatprep.mubr.f32.mxu0 0.0
    %1969 = vmatmul.mubr.f32.gmra.mrb[0].mxu0 %v305
    %v1970 = vpop.f32.mrb[0].mxu0
    %v1971 = vadd.f32 %v1186, %v1970
    %v1972 = vpop.f32.mrb[0].mxu0
    %1973 = vmatprep.mubr.f32.mxu0 0.0
    %1974 = vmatmul.mubr.f32.gmra.mrb[0].mxu0 %v308
    %v1975 = vpop.f32.mrb[0].mxu0
    %v1976 = vadd.f32 %v1191, %v1975
    %v1977 = vpop.f32.mrb[0].mxu0
    %1978 = vmatprep.mubr.f32.mxu0 0.0
    %1979 = vmatmul.mubr.f32.gmra.mrb[0].mxu0 %v311
    %v1980 = vpop.f32.mrb[0].mxu0
    %v1981 = vadd.f32 %v1196, %v1980
    %v1982 = vpop.f32.mrb[0].mxu0
    %1983 = vmatprep.mubr.f32.mxu0 0.0
    %1984 = vmatmul.mubr.f32.gmra.mrb[0].mxu0 %v314
    %v1985 = vpop.f32.mrb[0].mxu0
    %v1986 = vadd.f32 %v1201, %v1985
    %v1987 = vpop.f32.mrb[0].mxu0
    %1988 = vmatprep.mubr.f32.mxu0 0.0
    %1989 = vmatmul.mubr.f32.gmra.mrb[0].mxu0 %v317
    %v1990 = vpop.f32.mrb[0].mxu0
    %v1991 = vadd.f32 %v1206, %v1990
    %v1992 = vpop.f32.mrb[0].mxu0
    %1993 = vmatprep.mubr.f32.mxu0 0.0
    %1994 = vmatmul.mubr.f32.gmra.mrb[0].mxu0 %v320
    %v1995 = vpop.f32.mrb[0].mxu0
    %v1996 = vadd.f32 %v1211, %v1995
    %v1997 = vpop.f32.mrb[0].mxu0
    %1998 = vmatprep.mubr.f32.mxu0 0.0
    %1999 = vmatmul.mubr.f32.gmra.mrb[0].mxu0 %v323
    %v2000 = vpop.f32.mrb[0].mxu0
    %v2001 = vadd.f32 %v1216, %v2000
    %v2002 = vpop.f32.mrb[0].mxu0
    %2003 = vmatprep.mubr.f32.mxu0 0.0
    %2004 = vmatmul.mubr.f32.gmra.mrb[0].mxu0 %v326
    %v2005 = vpop.f32.mrb[0].mxu0
    %v2006 = vadd.f32 %v1221, %v2005
    %v2007 = vpop.f32.mrb[0].mxu0
    %2008 = vmatprep.mubr.f32.mxu0 0.0
    %2009 = vmatmul.mubr.f32.gmra.mrb[0].mxu0 %v329
    %v2010 = vpop.f32.mrb[0].mxu0
    %v2011 = vadd.f32 %v1226, %v2010
    %v2012 = vpop.f32.mrb[0].mxu0
    %2013 = vmatprep.mubr.f32.mxu0 0.0
    %2014 = vmatmul.mubr.f32.gmra.mrb[0].mxu0 %v332
    %v2015 = vpop.f32.mrb[0].mxu0
    %v2016 = vadd.f32 %v1231, %v2015
    %v2017 = vpop.f32.mrb[0].mxu0
    %2018 = vmatprep.mubr.f32.mxu0 0.0
    %2019 = vmatmul.mubr.f32.gmra.mrb[0].mxu0 %v335
    %v2020 = vpop.f32.mrb[0].mxu0
    %v2021 = vadd.f32 %v1236, %v2020
    %v2022 = vpop.f32.mrb[0].mxu0
    %2023 = vmatprep.mubr.f32.mxu0 0.0
    %2024 = vmatmul.mubr.f32.gmra.mrb[0].mxu0 %v338
    %v2025 = vpop.f32.mrb[0].mxu0
    %v2026 = vadd.f32 %v1241, %v2025
    %v2027 = vpop.f32.mrb[0].mxu0
    %2028 = vmatprep.mubr.f32.mxu0 0.0
    %2029 = vmatmul.mubr.f32.gmra.mrb[0].mxu0 %v341
    %v2030 = vpop.f32.mrb[0].mxu0
    %v2031 = vadd.f32 %v1246, %v2030
    %v2032 = vpop.f32.mrb[0].mxu0
    %2033 = vmatprep.mubr.f32.mxu0 0.0
    %2034 = vmatmul.mubr.f32.gmra.mrb[0].mxu0 %v344
    %v2035 = vpop.f32.mrb[0].mxu0
    %v2036 = vadd.f32 %v1251, %v2035
    %v2037 = vpop.f32.mrb[0].mxu0
    %2038 = vmatprep.mubr.f32.mxu0 0.0
    %2039 = vmatmul.mubr.f32.gmra.mrb[0].mxu0 %v347
    %v2040 = vpop.f32.mrb[0].mxu0
    %v2041 = vadd.f32 %v1256, %v2040
    %v2042 = vpop.f32.mrb[0].mxu0
    %2043 = vmatprep.mubr.f32.mxu0 0.0
    %2044 = vmatmul.mubr.f32.gmra.mrb[0].mxu0 %v350
    %v2045 = vpop.f32.mrb[0].mxu0
    %v2046 = vadd.f32 %v1261, %v2045
    %v2047 = vpop.f32.mrb[0].mxu0
    %2048 = vmatprep.mubr.f32.mxu0 0.0
    %2049 = vmatmul.mubr.f32.gmra.mrb[0].mxu0 %v353
    %v2050 = vpop.f32.mrb[0].mxu0
    %v2051 = vadd.f32 %v1266, %v2050
    %v2052 = vpop.f32.mrb[0].mxu0
    %2053 = vmatprep.mubr.f32.mxu0 0.0
    %2054 = vmatmul.mubr.f32.gmra.mrb[0].mxu0 %v356
    %v2055 = vpop.f32.mrb[0].mxu0
    %v2056 = vadd.f32 %v1271, %v2055
    %v2057 = vpop.f32.mrb[0].mxu0
    %2058 = vmatprep.mubr.f32.mxu0 0.0
    %2059 = vmatmul.mubr.f32.gmra.mrb[0].mxu0 %v359
    %v2060 = vpop.f32.mrb[0].mxu0
    %v2061 = vadd.f32 %v1276, %v2060
    %v2062 = vpop.f32.mrb[0].mxu0
    %2063 = vmatprep.mubr.f32.mxu0 0.0
    %2064 = vmatmul.mubr.f32.gmra.mrb[0].mxu0 %v362
    %v2065 = vpop.f32.mrb[0].mxu0
    %v2066 = vadd.f32 %v1281, %v2065
    %v2067 = vpop.f32.mrb[0].mxu0
    %2068 = vmatprep.mubr.f32.mxu0 0.0
    %2069 = vmatmul.mubr.f32.gmra.mrb[0].mxu0 %v365
    %v2070 = vpop.f32.mrb[0].mxu0
    %v2071 = vadd.f32 %v1286, %v2070
    %v2072 = vpop.f32.mrb[0].mxu0
    %2073 = vmatprep.mubr.f32.mxu0 0.0
    %2074 = vmatmul.mubr.f32.gmra.mrb[0].mxu0 %v368
    %v2075 = vpop.f32.mrb[0].mxu0
    %v2076 = vadd.f32 %v1291, %v2075
    %v2077 = vpop.f32.mrb[0].mxu0
    %2078 = vmatprep.mubr.f32.mxu0 0.0
    %2079 = vmatmul.mubr.f32.gmra.mrb[0].mxu0 %v371
    %v2080 = vpop.f32.mrb[0].mxu0
    %v2081 = vadd.f32 %v1296, %v2080
    %v2082 = vpop.f32.mrb[0].mxu0
    %2083 = vmatprep.mubr.f32.mxu0 0.0
    %2084 = vmatmul.mubr.f32.gmra.mrb[0].mxu0 %v374
    %v2085 = vpop.f32.mrb[0].mxu0
    %v2086 = vadd.f32 %v1301, %v2085
    %v2087 = vpop.f32.mrb[0].mxu0
    %2088 = vmatprep.mubr.f32.mxu0 0.0
    %2089 = vmatmul.mubr.f32.gmra.mrb[0].mxu0 %v377
    %v2090 = vpop.f32.mrb[0].mxu0
    %v2091 = vadd.f32 %v1306, %v2090
    %v2092 = vpop.f32.mrb[0].mxu0
    %2093 = vmatprep.mubr.f32.mxu0 0.0
    %2094 = vmatmul.mubr.f32.gmra.mrb[0].mxu0 %v380
    %v2095 = vpop.f32.mrb[0].mxu0
    %v2096 = vadd.f32 %v1311, %v2095
    %v2097 = vpop.f32.mrb[0].mxu0
    %2098 = vmatprep.mubr.f32.mxu0 0.0
    %2099 = vmatmul.mubr.f32.gmra.mrb[0].mxu0 %v383
    %v2100 = vpop.f32.mrb[0].mxu0
    %v2101 = vadd.f32 %v1316, %v2100
    %v2102 = vpop.f32.mrb[0].mxu0
    %2103 = vmatprep.mubr.f32.mxu0 0.0
    %2104 = vmatmul.mubr.f32.gmra.mrb[0].mxu0 %v386
    %v2105 = vpop.f32.mrb[0].mxu0
    %v2106 = vadd.f32 %v1321, %v2105
    %v2107 = vpop.f32.mrb[0].mxu0
    %2108 = vmatprep.mubr.f32.mxu0 0.0
    %2109 = vmatmul.mubr.f32.gmra.mrb[0].mxu0 %v389
    %v2110 = vpop.f32.mrb[0].mxu0
    %v2111 = vadd.f32 %v1326, %v2110
    %v2112 = vpop.f32.mrb[0].mxu0
    %2113 = vmatprep.mubr.f32.mxu0 0.0
    %2114 = vmatmul.mubr.f32.gmra.mrb[0].mxu0 %v392
    %v2115 = vpop.f32.mrb[0].mxu0
    %v2116 = vadd.f32 %v1331, %v2115
    %v2117 = vpop.f32.mrb[0].mxu0
    %2118 = vmatprep.mubr.f32.mxu0 0.0
    %2119 = vmatmul.mubr.f32.gmra.mrb[0].mxu0 %v395
    %v2120 = vpop.f32.mrb[0].mxu0
    %v2121 = vadd.f32 %v1336, %v2120
    %v2122 = vpop.f32.mrb[0].mxu0
    %2123 = vmatprep.mubr.f32.mxu0 0.0
    %2124 = vmatmul.mubr.f32.gmra.mrb[0].mxu0 %v398
    %v2125 = vpop.f32.mrb[0].mxu0
    %v2126 = vadd.f32 %v1341, %v2125
    %v2127 = vpop.f32.mrb[0].mxu0
    %2128 = vmatprep.mubr.f32.mxu0 0.0
    %2129 = vmatmul.mubr.f32.gmra.mrb[0].mxu0 %v401
    %v2130 = vpop.f32.mrb[0].mxu0
    %v2131 = vadd.f32 %v1346, %v2130
    %v2132 = vpop.f32.mrb[0].mxu0
    %2133 = vmatprep.mubr.f32.mxu0 0.0
    %2134 = vmatmul.mubr.f32.gmra.mrb[0].mxu0 %v404
    %v2135 = vpop.f32.mrb[0].mxu0
    %v2136 = vadd.f32 %v1351, %v2135
    %v2137 = vpop.f32.mrb[0].mxu0
    %2138 = vmatprep.mubr.f32.mxu0 0.0
    %2139 = vmatmul.mubr.f32.gmra.mrb[0].mxu0 %v407
    %v2140 = vpop.f32.mrb[0].mxu0
    %v2141 = vadd.f32 %v1356, %v2140
    %v2142 = vpop.f32.mrb[0].mxu0
    %2143 = vmatprep.mubr.f32.mxu0 0.0
    %2144 = vmatmul.mubr.f32.gmra.mrb[0].mxu0 %v410
    %v2145 = vpop.f32.mrb[0].mxu0
    %v2146 = vadd.f32 %v1361, %v2145
    %v2147 = vpop.f32.mrb[0].mxu0
    %2148 = vmatprep.mubr.f32.mxu0 0.0
    %2149 = vmatmul.mubr.f32.gmra.mrb[0].mxu0 %v413
    %v2150 = vpop.f32.mrb[0].mxu0
    %v2151 = vadd.f32 %v1366, %v2150
    %v2152 = vpop.f32.mrb[0].mxu0
    %2153 = vmatprep.mubr.f32.mxu0 0.0
    %2154 = vmatmul.mubr.f32.gmra.mrb[0].mxu0 %v416
    %v2155 = vpop.f32.mrb[0].mxu0
    %v2156 = vadd.f32 %v1371, %v2155
    %v2157 = vpop.f32.mrb[0].mxu0
    %2158 = vmatprep.mubr.f32.mxu0 0.0
    %2159 = vmatmul.mubr.f32.gmra.mrb[0].mxu0 %v419
    %v2160 = vpop.f32.mrb[0].mxu0
    %v2161 = vadd.f32 %v1376, %v2160
    %v2162 = vpop.f32.mrb[0].mxu0
    %2163 = vmatprep.mubr.f32.mxu0 0.0
    %2164 = vmatmul.mubr.f32.gmra.mrb[0].mxu0 %v422
    %v2165 = vpop.f32.mrb[0].mxu0
    %v2166 = vadd.f32 %v1381, %v2165
    %v2167 = vpop.f32.mrb[0].mxu0
    %2168 = vmatprep.mubr.f32.mxu0 0.0
    %2169 = vmatmul.mubr.f32.gmra.mrb[0].mxu0 %v425
    %v2170 = vpop.f32.mrb[0].mxu0
    %v2171 = vadd.f32 %v1386, %v2170
    %v2172 = vpop.f32.mrb[0].mxu0
    %2173 = vmatprep.mubr.f32.mxu0 0.0
    %2174 = vmatmul.mubr.f32.gmra.mrb[0].mxu0 %v428
    %v2175 = vpop.f32.mrb[0].mxu0
    %v2176 = vadd.f32 %v1391, %v2175
    %v2177 = vpop.f32.mrb[0].mxu0
    %2178 = vmatprep.mubr.f32.mxu0 0.0
    %2179 = vmatmul.mubr.f32.gmra.mrb[0].mxu0 %v431
    %v2180 = vpop.f32.mrb[0].mxu0
    %v2181 = vadd.f32 %v1396, %v2180
    %v2182 = vpop.f32.mrb[0].mxu0
    %2183 = vmatprep.mubr.f32.mxu0 0.0
    %2184 = vmatmul.mubr.f32.gmra.mrb[0].mxu0 %v434
    %v2185 = vpop.f32.mrb[0].mxu0
    %v2186 = vadd.f32 %v1401, %v2185
    %v2187 = vpop.f32.mrb[0].mxu0
    %2188 = vmatprep.mubr.f32.mxu0 0.0
    %2189 = vmatmul.mubr.f32.gmra.mrb[0].mxu0 %v437
    %v2190 = vpop.f32.mrb[0].mxu0
    %v2191 = vadd.f32 %v1406, %v2190
    %v2192 = vpop.f32.mrb[0].mxu0
    %2193 = vmatprep.mubr.f32.mxu0 0.0
    %2194 = vmatmul.mubr.f32.gmra.mrb[0].mxu0 %v440
    %v2195 = vpop.f32.mrb[0].mxu0
    %v2196 = vadd.f32 %v1411, %v2195
    %v2197 = vpop.f32.mrb[0].mxu0
    %2198 = vmatprep.mubr.f32.mxu0 0.0
    %2199 = vmatmul.mubr.f32.gmra.mrb[0].mxu0 %v443
    %v2200 = vpop.f32.mrb[0].mxu0
    %v2201 = vadd.f32 %v1416, %v2200
    %v2202 = vpop.f32.mrb[0].mxu0
    %2203 = vmatprep.mubr.f32.mxu0 0.0
    %2204 = vmatmul.mubr.f32.gmra.mrb[0].mxu0 %v446
    %v2205 = vpop.f32.mrb[0].mxu0
    %v2206 = vadd.f32 %v1421, %v2205
    %v2207 = vpop.f32.mrb[0].mxu0
    %2208 = vdwg.mxu0
    %2209 = vst [vmem:[#allocation2] sm:$0xff] %v1491
    %2210 = vst [vmem:[#allocation2 + $0x8] sm:$0xff] %v1496
    %2211 = vst [vmem:[#allocation2 + $0x10] sm:$0xff] %v1501
    %2212 = vst [vmem:[#allocation2 + $0x18] sm:$0xff] %v1506
    %2213 = vst [vmem:[#allocation2 + $0x20] sm:$0xff] %v1511
    %2214 = vst [vmem:[#allocation2 + $0x28] sm:$0xff] %v1516
    %2215 = vst [vmem:[#allocation2 + $0x30] sm:$0xff] %v1521
    %2216 = vst [vmem:[#allocation2 + $0x38] sm:$0xff] %v1526
    %2217 = vst [vmem:[#allocation2 + $0x40] sm:$0xff] %v1531
    %2218 = vst [vmem:[#allocation2 + $0x48] sm:$0xff] %v1536
    %2219 = vst [vmem:[#allocation2 + $0x50] sm:$0xff] %v1541
    %2220 = vst [vmem:[#allocation2 + $0x58] sm:$0xff] %v1546
    %2221 = vst [vmem:[#allocation2 + $0x60] sm:$0xff] %v1551
    %2222 = vst [vmem:[#allocation2 + $0x68] sm:$0xff] %v1556
    %2223 = vst [vmem:[#allocation2 + $0x70] sm:$0xff] %v1561
    %2224 = vst [vmem:[#allocation2 + $0x78] sm:$0xff] %v1566
    %2225 = vst [vmem:[#allocation2 + $0x80] sm:$0xff] %v1571
    %2226 = vst [vmem:[#allocation2 + $0x88] sm:$0xff] %v1576
    %2227 = vst [vmem:[#allocation2 + $0x90] sm:$0xff] %v1581
    %2228 = vst [vmem:[#allocation2 + $0x98] sm:$0xff] %v1586
    %2229 = vst [vmem:[#allocation2 + $0xa0] sm:$0xff] %v1591
    %2230 = vst [vmem:[#allocation2 + $0xa8] sm:$0xff] %v1596
    %2231 = vst [vmem:[#allocation2 + $0xb0] sm:$0xff] %v1601
    %2232 = vst [vmem:[#allocation2 + $0xb8] sm:$0xff] %v1606
    %2233 = vst [vmem:[#allocation2 + $0xc0] sm:$0xff] %v1611
    %2234 = vst [vmem:[#allocation2 + $0xc8] sm:$0xff] %v1616
    %2235 = vst [vmem:[#allocation2 + $0xd0] sm:$0xff] %v1621
    %2236 = vst [vmem:[#allocation2 + $0xd8] sm:$0xff] %v1626
    %2237 = vst [vmem:[#allocation2 + $0xe0] sm:$0xff] %v1631
    %2238 = vst [vmem:[#allocation2 + $0xe8] sm:$0xff] %v1636
    %2239 = vst [vmem:[#allocation2 + $0xf0] sm:$0xff] %v1641
    %2240 = vst [vmem:[#allocation2 + $0xf8] sm:$0xff] %v1646
    %2241 = vst [vmem:[#allocation2 + $0x100] sm:$0xff] %v1651
    %2242 = vst [vmem:[#allocation2 + $0x108] sm:$0xff] %v1656
    %2243 = vst [vmem:[#allocation2 + $0x110] sm:$0xff] %v1661
    %2244 = vst [vmem:[#allocation2 + $0x118] sm:$0xff] %v1666
    %2245 = vst [vmem:[#allocation2 + $0x120] sm:$0xff] %v1671
    %2246 = vst [vmem:[#allocation2 + $0x128] sm:$0xff] %v1676
    %2247 = vst [vmem:[#allocation2 + $0x130] sm:$0xff] %v1681
    %2248 = vst [vmem:[#allocation2 + $0x138] sm:$0xff] %v1686
    %2249 = vst [vmem:[#allocation2 + $0x140] sm:$0xff] %v1691
    %2250 = vst [vmem:[#allocation2 + $0x148] sm:$0xff] %v1696
    %2251 = vst [vmem:[#allocation2 + $0x150] sm:$0xff] %v1701
    %2252 = vst [vmem:[#allocation2 + $0x158] sm:$0xff] %v1706
    %2253 = vst [vmem:[#allocation2 + $0x160] sm:$0xff] %v1711
    %2254 = vst [vmem:[#allocation2 + $0x168] sm:$0xff] %v1716
    %2255 = vst [vmem:[#allocation2 + $0x170] sm:$0xff] %v1721
    %2256 = vst [vmem:[#allocation2 + $0x178] sm:$0xff] %v1726
    %2257 = vst [vmem:[#allocation2 + $0x180] sm:$0xff] %v1731
    %2258 = vst [vmem:[#allocation2 + $0x188] sm:$0xff] %v1736
    %2259 = vst [vmem:[#allocation2 + $0x190] sm:$0xff] %v1741
    %2260 = vst [vmem:[#allocation2 + $0x198] sm:$0xff] %v1746
    %2261 = vst [vmem:[#allocation2 + $0x1a0] sm:$0xff] %v1751
    %2262 = vst [vmem:[#allocation2 + $0x1a8] sm:$0xff] %v1756
    %2263 = vst [vmem:[#allocation2 + $0x1b0] sm:$0xff] %v1761
    %2264 = vst [vmem:[#allocation2 + $0x1b8] sm:$0xff] %v1766
    %2265 = vst [vmem:[#allocation2 + $0x1c0] sm:$0xff] %v1771
    %2266 = vst [vmem:[#allocation2 + $0x1c8] sm:$0xff] %v1776
    %2267 = vst [vmem:[#allocation2 + $0x1d0] sm:$0xff] %v1781
    %2268 = vst [vmem:[#allocation2 + $0x1d8] sm:$0xff] %v1786
    %2269 = vst [vmem:[#allocation2 + $0x1e0] sm:$0xff] %v1791
    %2270 = vst [vmem:[#allocation2 + $0x1e8] sm:$0xff] %v1796
    %2271 = vst [vmem:[#allocation2 + $0x1f0] sm:$0xff] %v1801
    %2272 = vst [vmem:[#allocation2 + $0x1f8] sm:$0xff] %v1806
    %2273 = vst [vmem:[#allocation2 + $0x200] sm:$0xff] %v1811
    %2274 = vst [vmem:[#allocation2 + $0x208] sm:$0xff] %v1816
    %2275 = vst [vmem:[#allocation2 + $0x210] sm:$0xff] %v1821
    %2276 = vst [vmem:[#allocation2 + $0x218] sm:$0xff] %v1826
    %2277 = vst [vmem:[#allocation2 + $0x220] sm:$0xff] %v1831
    %2278 = vst [vmem:[#allocation2 + $0x228] sm:$0xff] %v1836
    %2279 = vst [vmem:[#allocation2 + $0x230] sm:$0xff] %v1841
    %2280 = vst [vmem:[#allocation2 + $0x238] sm:$0xff] %v1846
    %2281 = vst [vmem:[#allocation2 + $0x240] sm:$0xff] %v1851
    %2282 = vst [vmem:[#allocation2 + $0x248] sm:$0xff] %v1856
    %2283 = vst [vmem:[#allocation2 + $0x250] sm:$0xff] %v1861
    %2284 = vst [vmem:[#allocation2 + $0x258] sm:$0xff] %v1866
    %2285 = vst [vmem:[#allocation2 + $0x260] sm:$0xff] %v1871
    %2286 = vst [vmem:[#allocation2 + $0x268] sm:$0xff] %v1876
    %2287 = vst [vmem:[#allocation2 + $0x270] sm:$0xff] %v1881
    %2288 = vst [vmem:[#allocation2 + $0x278] sm:$0xff] %v1886
    %2289 = vst [vmem:[#allocation2 + $0x280] sm:$0xff] %v1891
    %2290 = vst [vmem:[#allocation2 + $0x288] sm:$0xff] %v1896
    %2291 = vst [vmem:[#allocation2 + $0x290] sm:$0xff] %v1901
    %2292 = vst [vmem:[#allocation2 + $0x298] sm:$0xff] %v1906
    %2293 = vst [vmem:[#allocation2 + $0x2a0] sm:$0xff] %v1911
    %2294 = vst [vmem:[#allocation2 + $0x2a8] sm:$0xff] %v1916
    %2295 = vst [vmem:[#allocation2 + $0x2b0] sm:$0xff] %v1921
    %2296 = vst [vmem:[#allocation2 + $0x2b8] sm:$0xff] %v1926
    %2297 = vst [vmem:[#allocation2 + $0x2c0] sm:$0xff] %v1931
    %2298 = vst [vmem:[#allocation2 + $0x2c8] sm:$0xff] %v1936
    %2299 = vst [vmem:[#allocation2 + $0x2d0] sm:$0xff] %v1941
    %2300 = vst [vmem:[#allocation2 + $0x2d8] sm:$0xff] %v1946
    %2301 = vst [vmem:[#allocation2 + $0x2e0] sm:$0xff] %v1951
    %2302 = vst [vmem:[#allocation2 + $0x2e8] sm:$0xff] %v1956
    %2303 = vst [vmem:[#allocation2 + $0x2f0] sm:$0xff] %v1961
    %2304 = vst [vmem:[#allocation2 + $0x2f8] sm:$0xff] %v1966
    %2305 = vst [vmem:[#allocation2 + $0x300] sm:$0xff] %v1971
    %2306 = vst [vmem:[#allocation2 + $0x308] sm:$0xff] %v1976
    %2307 = vst [vmem:[#allocation2 + $0x310] sm:$0xff] %v1981
    %2308 = vst [vmem:[#allocation2 + $0x318] sm:$0xff] %v1986
    %2309 = vst [vmem:[#allocation2 + $0x320] sm:$0xff] %v1991
    %2310 = vst [vmem:[#allocation2 + $0x328] sm:$0xff] %v1996
    %2311 = vst [vmem:[#allocation2 + $0x330] sm:$0xff] %v2001
    %2312 = vst [vmem:[#allocation2 + $0x338] sm:$0xff] %v2006
    %2313 = vst [vmem:[#allocation2 + $0x340] sm:$0xff] %v2011
    %2314 = vst [vmem:[#allocation2 + $0x348] sm:$0xff] %v2016
    %2315 = vst [vmem:[#allocation2 + $0x350] sm:$0xff] %v2021
    %2316 = vst [vmem:[#allocation2 + $0x358] sm:$0xff] %v2026
    %2317 = vst [vmem:[#allocation2 + $0x360] sm:$0xff] %v2031
    %2318 = vst [vmem:[#allocation2 + $0x368] sm:$0xff] %v2036
    %2319 = vst [vmem:[#allocation2 + $0x370] sm:$0xff] %v2041
    %2320 = vst [vmem:[#allocation2 + $0x378] sm:$0xff] %v2046
    %2321 = vst [vmem:[#allocation2 + $0x380] sm:$0xff] %v2051
    %2322 = vst [vmem:[#allocation2 + $0x388] sm:$0xff] %v2056
    %2323 = vst [vmem:[#allocation2 + $0x390] sm:$0xff] %v2061
    %2324 = vst [vmem:[#allocation2 + $0x398] sm:$0xff] %v2066
    %2325 = vst [vmem:[#allocation2 + $0x3a0] sm:$0xff] %v2071
    %2326 = vst [vmem:[#allocation2 + $0x3a8] sm:$0xff] %v2076
    %2327 = vst [vmem:[#allocation2 + $0x3b0] sm:$0xff] %v2081
    %2328 = vst [vmem:[#allocation2 + $0x3b8] sm:$0xff] %v2086
    %2329 = vst [vmem:[#allocation2 + $0x3c0] sm:$0xff] %v2091
    %2330 = vst [vmem:[#allocation2 + $0x3c8] sm:$0xff] %v2096
    %2331 = vst [vmem:[#allocation2 + $0x3d0] sm:$0xff] %v2101
    %2332 = vst [vmem:[#allocation2 + $0x3d8] sm:$0xff] %v2106
    %2333 = vst [vmem:[#allocation2 + $0x3e0] sm:$0xff] %v2111
    %2334 = vst [vmem:[#allocation2 + $0x3e8] sm:$0xff] %v2116
    %2335 = vst [vmem:[#allocation2 + $0x3f0] sm:$0xff] %v2121
    %2336 = vst [vmem:[#allocation2 + $0x3f8] sm:$0xff] %v2126
    %2337 = vst [vmem:[#allocation2 + $0x400] sm:$0xff] %v2131
    %2338 = vst [vmem:[#allocation2 + $0x408] sm:$0xff] %v2136
    %2339 = vst [vmem:[#allocation2 + $0x410] sm:$0xff] %v2141
    %2340 = vst [vmem:[#allocation2 + $0x418] sm:$0xff] %v2146
    %2341 = vst [vmem:[#allocation2 + $0x420] sm:$0xff] %v2151
    %2342 = vst [vmem:[#allocation2 + $0x428] sm:$0xff] %v2156
    %2343 = vst [vmem:[#allocation2 + $0x430] sm:$0xff] %v2161
    %2344 = vst [vmem:[#allocation2 + $0x438] sm:$0xff] %v2166
    %2345 = vst [vmem:[#allocation2 + $0x440] sm:$0xff] %v2171
    %2346 = vst [vmem:[#allocation2 + $0x448] sm:$0xff] %v2176
    %2347 = vst [vmem:[#allocation2 + $0x450] sm:$0xff] %v2181
    %2348 = vst [vmem:[#allocation2 + $0x458] sm:$0xff] %v2186
    %2349 = vst [vmem:[#allocation2 + $0x460] sm:$0xff] %v2191
    %2350 = vst [vmem:[#allocation2 + $0x468] sm:$0xff] %v2196
    %2351 = vst [vmem:[#allocation2 + $0x470] sm:$0xff] %v2201
    %2352 = vst [vmem:[#allocation2 + $0x478] sm:$0xff] %v2206
    // Predicated region
    $region14: #{disentg_block_forward.11} parent=1 // pred_check
      _
    $region15: #{disentg_block_forward.11} parent=1 // pred_check_branch
      %2354 = sbr.rel (0) target = $region17
    $region16: #{disentg_block_forward.11} parent=1 // pred_region
      %s2356 = ssub.s32 18432, 18432
      %2357 = vsyncadd [#allocation3], %s2356
      %s2358 = sshll.u32 [#allocation2], 4
      %s2359 = int_to_ptr.vmem [resolvable:$true] %s2358
      %2364 = dma.vmem_to_hbm [thread:$0]  %s2359, 18432, %s3, [#allocation3], 128, 128, 8
    $region17: #{disentg_block_forward.11} parent=1 // pred_fallthru
      _
    // Predicated region
    $region18: #{disentg_block_forward.11} parent=1 // pred_check
      _
    $region19: #{disentg_block_forward.11} parent=1 // pred_check_branch
      %2366 = sbr.rel (0) target = $region21
    $region20: #{disentg_block_forward.11} parent=1 // pred_region
      %2367 = dma.done [#allocation3], 18432
    $region21: #{disentg_block_forward.11} parent=1 // pred_fallthru
      _
    %2368 = vsyncpa [#allocation3], 1

</llo_original>
